<compile_context>
chip_gen: v5e
topology: v5e:2x2
jax: 0.10.0
libtpu: 0.0.40
codegen_flags: <defaults>
</compile_context>

<pallas_src>
import functools

import jax
import jax.numpy as jnp
from jax.experimental import pallas as pl
from jax.experimental.pallas import tpu as pltpu

NEG_SLOPE = 0.01   # nn.LeakyReLU default negative_slope
BN_EPS = 1e-5      # nn.BatchNorm3d default eps


# ------------------------------ helpers ---------------------------------

def _round_up(x, m):
    return ((x + m - 1) // m) * m


def _vmem_budget_bytes():
    """Generation-aware scoped-VMEM budget (v5e/v6e: 128 MiB phys, v7x: 64)."""
    phys = 64 * 1024 * 1024                      # conservative default (v7x)
    try:
        v = getattr(pltpu.get_tpu_info(), "vmem_capacity_bytes", None)
        if isinstance(v, (int, float)) and v > 0:
            phys = int(v)
    except Exception:
        pass
    return int(min(phys // 2, 96 * 1024 * 1024))


def _pick_tile(q, off0, cin, cout, budget, cap=32768):
    """Lane tile: multiple of 128, >= 2*off0 (tap halo), bounded by VMEM budget."""
    per_lane = 16 * max(cin, cout) + 8 * cout + 64      # rough bytes / lane
    t_budget = max((budget // (2 * per_lane)) // 128 * 128, 128)
    t = min(cap, t_budget, _round_up(q, 128))
    t = max(t, _round_up(max(2 * off0, 128), 128))      # halo must fit in 2 blocks
    return int(t)


def _prep_taps(wt, c_pad):
    """(Cout, Cin, w1, w1, w2) -> bf16 (K, Cout, c_pad), tap-major (kd, kh, kw)."""
    cout, cin = wt.shape[0], wt.shape[1]
    k = wt.shape[2] * wt.shape[3] * wt.shape[4]
    w = jnp.transpose(wt, (2, 3, 4, 0, 1)).reshape(k, cout, cin)
    if cin < c_pad:
        w = jnp.pad(w, ((0, 0), (0, 0), (0, c_pad - cin)))
    return w.astype(jnp.bfloat16)


def _bn_affine(stats, gamma, beta, m_count):
    """Training-mode BN scale/shift per tensor (R/I) from fused [sum, sumsq]."""
    mean = stats[..., 0] / m_count                           # (2, Cout)
    var = jnp.maximum(stats[..., 1] / m_count - mean * mean, 0.0)
    # TODO(synk): E[x^2]-E[x]^2 in f32 can cancel for very large M / means;
    # switch to a shifted sum-of-squares if that regime is ever hit.
    scale = gamma[None, :] / jnp.sqrt(var + BN_EPS)
    shift = beta[None, :] - mean * scale
    return (scale[..., None].astype(jnp.float32),
            shift[..., None].astype(jnp.float32))


# ------------------------------ Pallas ----------------------------------

def conv_stats_pallas(x_flat, w_taps, mask_core, *, tap_offs, tm, vmem_limit,
                      out_dtype=jnp.bfloat16):
    """Implicit-GEMM conv over the padded-flat layout.

    x_flat:    (2, C, (B+1)*tm) bf16, padded input core at [off0, off0+Q).
    w_taps:    (K, Cout, C) bf16, tap-major.
    mask_core: (1, B*tm) f32, 1 on valid (interior) output columns.
    Returns y: (2, Cout, (B+2)*tm) out_dtype (conv output core at blocks 1..B)
    and stats: (2, Cout, 2) f32 = per-tensor/channel [sum, sumsq] over valid
    columns.  Conv bias is omitted (cancelled exactly by the BN mean).
    """
    t_ax, c, lx = x_flat.shape
    k, cout, _ = w_taps.shape
    b = lx // tm - 1

    def kernel(xa_ref, xb_ref, w_ref, mk_ref, y_ref, st_ref, acc_ref):
        m = pl.program_id(1)

        @pl.when(m == 0)
        def _():
            acc_ref[...] = jnp.zeros_like(acc_ref)

        # 2-block halo window over the flat axis; taps = static lane slices.
        xwin = jnp.concatenate([xa_ref[...], xb_ref[...]], axis=-1)   # (C, 2*tm)
        y = jnp.zeros((cout, tm), jnp.float32)
        for i, s in enumerate(tap_offs):
            xs = jax.lax.slice_in_dim(xwin, s, s + tm, axis=1)        # (C, tm)
            y = y + jnp.dot(w_ref[i], xs, preferred_element_type=jnp.float32)
        y_ref[...] = y.astype(y_ref.dtype)

        # fused BN statistics over valid columns only (f32, pre-cast values).
        ym = y * mk_ref[...]
        acc_ref[...] += jnp.concatenate(
            [jnp.sum(ym, axis=-1, keepdims=True),
             jnp.sum(ym * y, axis=-1, keepdims=True)], axis=-1)

        @pl.when(m == pl.num_programs(1) - 1)
        def _():
            st_ref[...] = acc_ref[...]

    return pl.pallas_call(
        kernel,
        out_shape=(jax.ShapeDtypeStruct((t_ax, cout, (b + 2) * tm), out_dtype),
                   jax.ShapeDtypeStruct((t_ax, cout, 2), jnp.float32)),
        grid=(t_ax, b),
        in_specs=[
            pl.BlockSpec((pl.Squeezed(), c, tm), lambda t, m: (t, 0, m)),
            pl.BlockSpec((pl.Squeezed(), c, tm), lambda t, m: (t, 0, m + 1)),
            pl.BlockSpec((k, cout, c), lambda t, m: (0, 0, 0)),       # resident
            pl.BlockSpec((1, tm), lambda t, m: (0, m)),
        ],
        out_specs=(
            pl.BlockSpec((pl.Squeezed(), cout, tm), lambda t, m: (t, 0, m + 1)),
            pl.BlockSpec((pl.Squeezed(), cout, 2), lambda t, m: (t, 0, 0)),
        ),
        scratch_shapes=[pltpu.VMEM((cout, 2), jnp.float32)],
        compiler_params=pltpu.CompilerParams(
            dimension_semantics=("parallel", "arbitrary"),
            vmem_limit_bytes=vmem_limit),
    )(x_flat, x_flat, w_taps, mask_core)


def bn_shift_lrelu_pallas(y, mask_x, scale, shift, *, tm, off0, vmem_limit,
                          out_dtype=jnp.bfloat16):
    """BN affine + LeakyReLU, written directly into the NEXT conv layer's
    padded-flat input layout (constant shift by off0, pad/invalid columns
    zeroed) -- fuses layer-1's activation with layer-2's input construction."""
    t_ax, c, ly = y.shape
    b = ly // tm - 2
    local = tm - off0

    def kernel(ya_ref, yb_ref, mk_ref, sc_ref, sh_ref, o_ref):
        win = jnp.concatenate([ya_ref[...], yb_ref[...]], axis=-1)    # (C, 2*tm)
        yv = jax.lax.slice_in_dim(win, local, local + tm, axis=1)
        z = yv.astype(jnp.float32) * sc_ref[...] + sh_ref[...]
        z = jnp.where(z >= 0, z, NEG_SLOPE * z)
        # where (not multiply): halo blocks 0 / B+1 of y are uninitialized.
        o_ref[...] = jnp.where(mk_ref[...] > 0.0, z, 0.0).astype(o_ref.dtype)

    return pl.pallas_call(
        kernel,
        out_shape=jax.ShapeDtypeStruct((t_ax, c, (b + 1) * tm), out_dtype),
        grid=(t_ax, b + 1),
        in_specs=[
            pl.BlockSpec((pl.Squeezed(), c, tm), lambda t, j: (t, 0, j)),
            pl.BlockSpec((pl.Squeezed(), c, tm), lambda t, j: (t, 0, j + 1)),
            pl.BlockSpec((1, tm), lambda t, j: (0, j)),
            pl.BlockSpec((pl.Squeezed(), c, 1), lambda t, j: (t, 0, 0)),
            pl.BlockSpec((pl.Squeezed(), c, 1), lambda t, j: (t, 0, 0)),
        ],
        out_specs=pl.BlockSpec((pl.Squeezed(), c, tm), lambda t, j: (t, 0, j)),
        compiler_params=pltpu.CompilerParams(
            dimension_semantics=("parallel", "parallel"),
            vmem_limit_bytes=vmem_limit),
    )(y, y, mask_x, scale, shift)


def bn_lrelu_pallas(y, scale, shift, *, tm, vmem_limit):
    """Final BN affine + LeakyReLU; reads the conv-output core blocks, writes a
    dense (2, Cout, B*tm) f32 array in padded output coordinates."""
    t_ax, c, ly = y.shape
    b = ly // tm - 2

    def kernel(y_ref, sc_ref, sh_ref, o_ref):
        z = y_ref[...].astype(jnp.float32) * sc_ref[...] + sh_ref[...]
        o_ref[...] = jnp.where(z >= 0, z, NEG_SLOPE * z)

    return pl.pallas_call(
        kernel,
        out_shape=jax.ShapeDtypeStruct((t_ax, c, b * tm), jnp.float32),
        grid=(t_ax, b),
        in_specs=[
            pl.BlockSpec((pl.Squeezed(), c, tm), lambda t, m: (t, 0, m + 1)),
            pl.BlockSpec((pl.Squeezed(), c, 1), lambda t, m: (t, 0, 0)),
            pl.BlockSpec((pl.Squeezed(), c, 1), lambda t, m: (t, 0, 0)),
        ],
        out_specs=pl.BlockSpec((pl.Squeezed(), c, tm), lambda t, m: (t, 0, m)),
        compiler_params=pltpu.CompilerParams(
            dimension_semantics=("parallel", "parallel"),
            vmem_limit_bytes=vmem_limit),
    )(y, scale, shift)


# ------------------------------ forward ---------------------------------

def downblock3dc_forward(xR, xI, params, w=(3, 3), p=(1, 1)):
    """DownBlock3dC.forward. xR, xI: (N, Cin, D, H, W) -> two (N, Cout, D, H, W)."""
    w1, w2 = w
    p1, p2 = p
    assert w1 == 2 * p1 + 1 and w2 == 2 * p2 + 1, "only stride-1 same-size convs"

    n, cin, d, h, wdim = xR.shape
    cout = params["conv0_w"].shape[0]
    dp, hp, wp = d + 2 * p1, h + 2 * p1, wdim + 2 * p2
    q = n * dp * hp * wp
    off0 = (p1 * hp + p1) * wp + p2

    budget = _vmem_budget_bytes()
    tm = _pick_tile(q, off0, cin, cout, budget)
    qr = _round_up(q, tm)
    b = qr // tm
    lx = (b + 1) * tm

    # tap offsets into the front-padded flat layout (0 .. 2*off0)
    tap_offs = [(kd * hp + kh) * wp + kw
                for kd in range(w1) for kh in range(w1) for kw in range(w2)]

    # validity mask over padded output coordinates (shared by both layers)
    qi = jnp.arange(qr, dtype=jnp.int32)
    r = qi % (dp * hp * wp)
    dpi = r // (hp * wp)
    hpi = (r % (hp * wp)) // wp
    wpi = r % wp
    valid = ((qi < q)
             & (dpi >= p1) & (dpi < p1 + d)
             & (hpi >= p1) & (hpi < p1 + h)
             & (wpi >= p2) & (wpi < p2 + wdim))
    mask_core = valid.astype(jnp.float32)[None, :]                  # (1, B*tm)
    mask_x = jnp.pad(mask_core, ((0, 0), (off0, tm - off0)))        # (1, (B+1)*tm)

    # layer-1 input in padded-flat layout, channels padded to a sublane multiple
    cin_p = _round_up(cin, 8)
    x = jnp.stack([xR, xI], axis=0)                                 # (2, N, Cin, D, H, W)
    x = jnp.transpose(x, (0, 2, 1, 3, 4, 5))                        # (2, Cin, N, D, H, W)
    xpad = jnp.pad(x, ((0, 0), (0, 0), (0, 0), (p1, p1), (p1, p1), (p2, p2)))
    x1 = jnp.pad(xpad.reshape(2, cin, q),
                 ((0, 0), (0, cin_p - cin),
                  (off0, lx - off0 - q))).astype(jnp.bfloat16)

    w0 = _prep_taps(params["conv0_w"], cin_p)                       # (K, Cout, Cin_p)
    w1m = _prep_taps(params["conv1_w"], cout)                       # (K, Cout, Cout)
    m_count = float(n * d * h * wdim)
    # conv biases dropped: training-mode BN mean subtraction cancels them.

    # layer 1: conv (+ fused BN stats) -> BN affine + LeakyReLU, written
    # straight into layer 2's padded-flat input layout.
    y1, st1 = conv_stats_pallas(x1, w0, mask_core, tap_offs=tap_offs, tm=tm,
                                vmem_limit=budget)
    sc1, sh1 = _bn_affine(st1, params["bn1_g"], params["bn1_b"], m_count)
    x2 = bn_shift_lrelu_pallas(y1, mask_x, sc1, sh1, tm=tm, off0=off0,
                               vmem_limit=budget)

    # layer 2: conv (+ stats) -> final BN affine + LeakyReLU (f32).
    y2, st2 = conv_stats_pallas(x2, w1m, mask_core, tap_offs=tap_offs, tm=tm,
                                vmem_limit=budget)
    sc2, sh2 = _bn_affine(st2, params["bn2_g"], params["bn2_b"], m_count)
    z = bn_lrelu_pallas(y2, sc2, sh2, tm=tm, vmem_limit=budget)     # (2, Cout, B*tm)

    # un-pad back to the dense NCDHW layout.
    z = z[:, :, :q].reshape(2, cout, n, dp, hp, wp)
    z = z[:, :, :, p1:p1 + d, p1:p1 + h, p2:p2 + wdim]
    z = jnp.transpose(z, (0, 2, 1, 3, 4, 5))                        # (2, N, Cout, D, H, W)
    return z[0], z[1]


# --------------------------- pure-JAX reference ---------------------------

def _reference(xR, xI, params, w=(3, 3), p=(1, 1)):
    w1, w2 = w
    p1, p2 = p

    def conv(x, wt, bb):
        y = jax.lax.conv_general_dilated(
            x, wt, window_strides=(1, 1, 1),
            padding=[(p1, p1), (p1, p1), (p2, p2)],
            dimension_numbers=("NCDHW", "OIDHW", "NCDHW"),
            precision=jax.lax.Precision.HIGHEST)
        return y + bb.reshape(1, -1, 1, 1, 1)

    def bn(x, g, bb):
        mean = jnp.mean(x, axis=(0, 2, 3, 4), keepdims=True)
        var = jnp.mean((x - mean) ** 2, axis=(0, 2, 3, 4), keepdims=True)
        xn = (x - mean) / jnp.sqrt(var + BN_EPS)
        return xn * g.reshape(1, -1, 1, 1, 1) + bb.reshape(1, -1, 1, 1, 1)

    def lrelu(x):
        return jnp.where(x >= 0, x, NEG_SLOPE * x)

    yR = lrelu(bn(conv(xR, params["conv0_w"], params["conv0_b"]),
                  params["bn1_g"], params["bn1_b"]))
    yI = lrelu(bn(conv(xI, params["conv0_w"], params["conv0_b"]),
                  params["bn1_g"], params["bn1_b"]))
    yR = lrelu(bn(conv(yR, params["conv1_w"], params["conv1_b"]),
                  params["bn2_g"], params["bn2_b"]))
    yI = lrelu(bn(conv(yI, params["conv1_w"], params["conv1_b"]),
                  params["bn2_g"], params["bn2_b"]))
    return yR, yI


# --------------------------------- main -----------------------------------

if __name__ == "__main__":
    N, Cin, Cout, D, H, W = 2, 4, 8, 4, 8, 8
    w1w2, p1p2 = (3, 3), (1, 1)

    key = jax.random.PRNGKey(0)
    k = jax.random.split(key, 8)
    params = {
        "conv0_w": 0.1 * jax.random.normal(k[0], (Cout, Cin, 3, 3, 3), jnp.float32),
        "conv0_b": 0.1 * jax.random.normal(k[1], (Cout,), jnp.float32),
        "conv1_w": 0.1 * jax.random.normal(k[2], (Cout, Cout, 3, 3, 3), jnp.float32),
        "conv1_b": 0.1 * jax.random.normal(k[3], (Cout,), jnp.float32),
        "bn1_g": 1.0 + 0.1 * jax.random.normal(k[4], (Cout,), jnp.float32),
        "bn1_b": 0.1 * jax.random.normal(k[5], (Cout,), jnp.float32),
        "bn2_g": 1.0 + 0.1 * jax.random.normal(k[6], (Cout,), jnp.float32),
        "bn2_b": 0.1 * jax.random.normal(k[7], (Cout,), jnp.float32),
    }
    kx = jax.random.split(jax.random.PRNGKey(1), 2)
    xR = jax.random.normal(kx[0], (N, Cin, D, H, W), jnp.float32)
    xI = jax.random.normal(kx[1], (N, Cin, D, H, W), jnp.float32)

    fwd = jax.jit(functools.partial(downblock3dc_forward, w=w1w2, p=p1p2))
    yR, yI = fwd(xR, xI, params)
    jax.block_until_ready((yR, yI))

    rR, rI = _reference(xR, xI, params, w=w1w2, p=p1p2)
    assert yR.shape == (N, Cout, D, H, W) and yI.shape == (N, Cout, D, H, W)
    # Tolerance accounts for bf16 MXU operands and bf16 intermediate storage
    # (f32 accumulation + f32 BN math) vs the f32 HIGHEST-precision reference.
    assert jnp.allclose(yR, rR, rtol=5e-2, atol=5e-2), "real path mismatch"
    assert jnp.allclose(yI, rI, rtol=5e-2, atol=5e-2), "imag path mismatch"

    print("KERNEL_OK")
</pallas_src>

<mosaic_0001>
module attributes {stable_mosaic.version = 11 : i64} {
  func.func @kernel(%arg0: i32, %arg1: i32, %arg2: memref<1x8x1280xbf16, #tpu.memory_space<vmem>>, %arg3: memref<1x8x1280xbf16, #tpu.memory_space<vmem>>, %arg4: memref<27x8x8xbf16, #tpu.memory_space<vmem>>, %arg5: memref<1x1280xf32, #tpu.memory_space<vmem>>, %arg6: memref<1x8x1280xbf16, #tpu.memory_space<vmem>>, %arg7: memref<1x8x2xf32, #tpu.memory_space<vmem>>, %arg8: memref<8x2xf32, #tpu.memory_space<vmem>>) attributes {dimension_semantics = [#tpu.dimension_semantics<parallel>, #tpu.dimension_semantics<arbitrary>], iteration_bounds = array<i64: 2, 1>, scalar_prefetch = 0 : i64, scratch_operands = 1 : i64, tpu.core_type = #tpu.core_type<tc>, window_params = [{transform_indices = @transform_0, window_bounds = array<i64: 1, 8, 1280>}, {transform_indices = @transform_1, window_bounds = array<i64: 1, 8, 1280>}, {pipeline_mode = #tpu.pipeline_mode<synchronous>, transform_indices = @transform_2, window_bounds = array<i64: 27, 8, 8>}, {transform_indices = @transform_3, window_bounds = array<i64: 1, 1280>}, {transform_indices = @transform_4, window_bounds = array<i64: 1, 8, 1280>}, {transform_indices = @transform_5, window_bounds = array<i64: 1, 8, 2>}]} {
    %c0_i32 = arith.constant 0 : i32
    %0 = arith.cmpi eq, %arg1, %c0_i32 : i32
    %1 = arith.extui %0 : i1 to i32
    %c0_i32_0 = arith.constant 0 : i32
    %2 = arith.cmpi ne, %1, %c0_i32_0 : i32
    scf.if %2 {
      %cst_101 = arith.constant 0.000000e+00 : f32
      %163 = vector.broadcast %cst_101 : f32 to vector<8x2xf32>
      %c0_102 = arith.constant 0 : index
      %c0_103 = arith.constant 0 : index
      %164 = vector.load %arg8[%c0_102, %c0_103] : memref<8x2xf32, #tpu.memory_space<vmem>>, vector<8x2xf32>
      tpu.vector_store %arg8[%c0_102, %c0_103], %163 {strides = array<i32>} : memref<8x2xf32, #tpu.memory_space<vmem>>, vector<8x2xf32>,
    } else {
    }
    %c0 = arith.constant 0 : index
    %c0_1 = arith.constant 0 : index
    %c0_2 = arith.constant 0 : index
    %3 = vector.load %arg2[%c0, %c0_1, %c0_2] : memref<1x8x1280xbf16, #tpu.memory_space<vmem>>, vector<1x8x1280xbf16>
    %4 = vector.shape_cast %3 : vector<1x8x1280xbf16> to vector<8x1280xbf16>
    %c0_3 = arith.constant 0 : index
    %c0_4 = arith.constant 0 : index
    %c0_5 = arith.constant 0 : index
    %5 = vector.load %arg3[%c0_3, %c0_4, %c0_5] : memref<1x8x1280xbf16, #tpu.memory_space<vmem>>, vector<1x8x1280xbf16>
    %6 = vector.shape_cast %5 : vector<1x8x1280xbf16> to vector<8x1280xbf16>
    %7 = tpu.concatenate %4, %6 in 1 : vector<8x1280xbf16>, vector<8x1280xbf16> -> vector<8x2560xbf16>
    %cst = arith.constant 0.000000e+00 : f32
    %8 = vector.broadcast %cst : f32 to vector<8x1280xf32>
    %9 = vector.extract_strided_slice %7 {offsets = [0, 0], sizes = [8, 1280], strides = [1, 1]} : vector<8x2560xbf16> to vector<8x1280xbf16>
    %c0_6 = arith.constant 0 : index
    %c0_7 = arith.constant 0 : index
    %c0_8 = arith.constant 0 : index
    %10 = vector.load %arg4[%c0_6, %c0_7, %c0_8] : memref<27x8x8xbf16, #tpu.memory_space<vmem>>, vector<1x8x8xbf16>
    %11 = vector.shape_cast %10 : vector<1x8x8xbf16> to vector<8x8xbf16>
    %cst_9 = arith.constant dense<0.000000e+00> : vector<8x1280xf32>
    %12 = tpu.matmul %11, %9, %cst_9 {dimension_numbers = #tpu.dot_dimension_numbers<[1], [0], [0], [1], [0, 0, 1, 1], [], []>} : vector<8x8xbf16>, vector<8x1280xbf16>, vector<8x1280xf32> -> vector<8x1280xf32>
    %13 = arith.addf %8, %12 : vector<8x1280xf32>
    %14 = vector.extract_strided_slice %7 {offsets = [0, 1], sizes = [8, 1280], strides = [1, 1]} : vector<8x2560xbf16> to vector<8x1280xbf16>
    %c1 = arith.constant 1 : index
    %c0_10 = arith.constant 0 : index
    %c0_11 = arith.constant 0 : index
    %15 = vector.load %arg4[%c1, %c0_10, %c0_11] : memref<27x8x8xbf16, #tpu.memory_space<vmem>>, vector<1x8x8xbf16>
    %16 = vector.shape_cast %15 : vector<1x8x8xbf16> to vector<8x8xbf16>
    %cst_12 = arith.constant dense<0.000000e+00> : vector<8x1280xf32>
    %17 = tpu.matmul %16, %14, %cst_12 {dimension_numbers = #tpu.dot_dimension_numbers<[1], [0], [0], [1], [0, 0, 1, 1], [], []>} : vector<8x8xbf16>, vector<8x1280xbf16>, vector<8x1280xf32> -> vector<8x1280xf32>
    %18 = arith.addf %13, %17 : vector<8x1280xf32>
    %19 = vector.extract_strided_slice %7 {offsets = [0, 2], sizes = [8, 1280], strides = [1, 1]} : vector<8x2560xbf16> to vector<8x1280xbf16>
    %c2 = arith.constant 2 : index
    %c0_13 = arith.constant 0 : index
    %c0_14 = arith.constant 0 : index
    %20 = vector.load %arg4[%c2, %c0_13, %c0_14] : memref<27x8x8xbf16, #tpu.memory_space<vmem>>, vector<1x8x8xbf16>
    %21 = vector.shape_cast %20 : vector<1x8x8xbf16> to vector<8x8xbf16>
    %cst_15 = arith.constant dense<0.000000e+00> : vector<8x1280xf32>
    %22 = tpu.matmul %21, %19, %cst_15 {dimension_numbers = #tpu.dot_dimension_numbers<[1], [0], [0], [1], [0, 0, 1, 1], [], []>} : vector<8x8xbf16>, vector<8x1280xbf16>, vector<8x1280xf32> -> vector<8x1280xf32>
    %23 = arith.addf %18, %22 : vector<8x1280xf32>
    %24 = vector.extract_strided_slice %7 {offsets = [0, 10], sizes = [8, 1280], strides = [1, 1]} : vector<8x2560xbf16> to vector<8x1280xbf16>
    %c3 = arith.constant 3 : index
    %c0_16 = arith.constant 0 : index
    %c0_17 = arith.constant 0 : index
    %25 = vector.load %arg4[%c3, %c0_16, %c0_17] : memref<27x8x8xbf16, #tpu.memory_space<vmem>>, vector<1x8x8xbf16>
    %26 = vector.shape_cast %25 : vector<1x8x8xbf16> to vector<8x8xbf16>
    %cst_18 = arith.constant dense<0.000000e+00> : vector<8x1280xf32>
    %27 = tpu.matmul %26, %24, %cst_18 {dimension_numbers = #tpu.dot_dimension_numbers<[1], [0], [0], [1], [0, 0, 1, 1], [], []>} : vector<8x8xbf16>, vector<8x1280xbf16>, vector<8x1280xf32> -> vector<8x1280xf32>
    %28 = arith.addf %23, %27 : vector<8x1280xf32>
    %29 = vector.extract_strided_slice %7 {offsets = [0, 11], sizes = [8, 1280], strides = [1, 1]} : vector<8x2560xbf16> to vector<8x1280xbf16>
    %c4 = arith.constant 4 : index
    %c0_19 = arith.constant 0 : index
    %c0_20 = arith.constant 0 : index
    %30 = vector.load %arg4[%c4, %c0_19, %c0_20] : memref<27x8x8xbf16, #tpu.memory_space<vmem>>, vector<1x8x8xbf16>
    %31 = vector.shape_cast %30 : vector<1x8x8xbf16> to vector<8x8xbf16>
    %cst_21 = arith.constant dense<0.000000e+00> : vector<8x1280xf32>
    %32 = tpu.matmul %31, %29, %cst_21 {dimension_numbers = #tpu.dot_dimension_numbers<[1], [0], [0], [1], [0, 0, 1, 1], [], []>} : vector<8x8xbf16>, vector<8x1280xbf16>, vector<8x1280xf32> -> vector<8x1280xf32>
    %33 = arith.addf %28, %32 : vector<8x1280xf32>
    %34 = vector.extract_strided_slice %7 {offsets = [0, 12], sizes = [8, 1280], strides = [1, 1]} : vector<8x2560xbf16> to vector<8x1280xbf16>
    %c5 = arith.constant 5 : index
    %c0_22 = arith.constant 0 : index
    %c0_23 = arith.constant 0 : index
    %35 = vector.load %arg4[%c5, %c0_22, %c0_23] : memref<27x8x8xbf16, #tpu.memory_space<vmem>>, vector<1x8x8xbf16>
    %36 = vector.shape_cast %35 : vector<1x8x8xbf16> to vector<8x8xbf16>
    %cst_24 = arith.constant dense<0.000000e+00> : vector<8x1280xf32>
    %37 = tpu.matmul %36, %34, %cst_24 {dimension_numbers = #tpu.dot_dimension_numbers<[1], [0], [0], [1], [0, 0, 1, 1], [], []>} : vector<8x8xbf16>, vector<8x1280xbf16>, vector<8x1280xf32> -> vector<8x1280xf32>
    %38 = arith.addf %33, %37 : vector<8x1280xf32>
    %39 = vector.extract_strided_slice %7 {offsets = [0, 20], sizes = [8, 1280], strides = [1, 1]} : vector<8x2560xbf16> to vector<8x1280xbf16>
    %c6 = arith.constant 6 : index
    %c0_25 = arith.constant 0 : index
    %c0_26 = arith.constant 0 : index
    %40 = vector.load %arg4[%c6, %c0_25, %c0_26] : memref<27x8x8xbf16, #tpu.memory_space<vmem>>, vector<1x8x8xbf16>
    %41 = vector.shape_cast %40 : vector<1x8x8xbf16> to vector<8x8xbf16>
    %cst_27 = arith.constant dense<0.000000e+00> : vector<8x1280xf32>
    %42 = tpu.matmul %41, %39, %cst_27 {dimension_numbers = #tpu.dot_dimension_numbers<[1], [0], [0], [1], [0, 0, 1, 1], [], []>} : vector<8x8xbf16>, vector<8x1280xbf16>, vector<8x1280xf32> -> vector<8x1280xf32>
    %43 = arith.addf %38, %42 : vector<8x1280xf32>
    %44 = vector.extract_strided_slice %7 {offsets = [0, 21], sizes = [8, 1280], strides = [1, 1]} : vector<8x2560xbf16> to vector<8x1280xbf16>
    %c7 = arith.constant 7 : index
    %c0_28 = arith.constant 0 : index
    %c0_29 = arith.constant 0 : index
    %45 = vector.load %arg4[%c7, %c0_28, %c0_29] : memref<27x8x8xbf16, #tpu.memory_space<vmem>>, vector<1x8x8xbf16>
    %46 = vector.shape_cast %45 : vector<1x8x8xbf16> to vector<8x8xbf16>
    %cst_30 = arith.constant dense<0.000000e+00> : vector<8x1280xf32>
    %47 = tpu.matmul %46, %44, %cst_30 {dimension_numbers = #tpu.dot_dimension_numbers<[1], [0], [0], [1], [0, 0, 1, 1], [], []>} : vector<8x8xbf16>, vector<8x1280xbf16>, vector<8x1280xf32> -> vector<8x1280xf32>
    %48 = arith.addf %43, %47 : vector<8x1280xf32>
    %49 = vector.extract_strided_slice %7 {offsets = [0, 22], sizes = [8, 1280], strides = [1, 1]} : vector<8x2560xbf16> to vector<8x1280xbf16>
    %c8 = arith.constant 8 : index
    %c0_31 = arith.constant 0 : index
    %c0_32 = arith.constant 0 : index
    %50 = vector.load %arg4[%c8, %c0_31, %c0_32] : memref<27x8x8xbf16, #tpu.memory_space<vmem>>, vector<1x8x8xbf16>
    %51 = vector.shape_cast %50 : vector<1x8x8xbf16> to vector<8x8xbf16>
    %cst_33 = arith.constant dense<0.000000e+00> : vector<8x1280xf32>
    %52 = tpu.matmul %51, %49, %cst_33 {dimension_numbers = #tpu.dot_dimension_numbers<[1], [0], [0], [1], [0, 0, 1, 1], [], []>} : vector<8x8xbf16>, vector<8x1280xbf16>, vector<8x1280xf32> -> vector<8x1280xf32>
    %53 = arith.addf %48, %52 : vector<8x1280xf32>
    %54 = vector.extract_strided_slice %7 {offsets = [0, 100], sizes = [8, 1280], strides = [1, 1]} : vector<8x2560xbf16> to vector<8x1280xbf16>
    %c9 = arith.constant 9 : index
    %c0_34 = arith.constant 0 : index
    %c0_35 = arith.constant 0 : index
    %55 = vector.load %arg4[%c9, %c0_34, %c0_35] : memref<27x8x8xbf16, #tpu.memory_space<vmem>>, vector<1x8x8xbf16>
    %56 = vector.shape_cast %55 : vector<1x8x8xbf16> to vector<8x8xbf16>
    %cst_36 = arith.constant dense<0.000000e+00> : vector<8x1280xf32>
    %57 = tpu.matmul %56, %54, %cst_36 {dimension_numbers = #tpu.dot_dimension_numbers<[1], [0], [0], [1], [0, 0, 1, 1], [], []>} : vector<8x8xbf16>, vector<8x1280xbf16>, vector<8x1280xf32> -> vector<8x1280xf32>
    %58 = arith.addf %53, %57 : vector<8x1280xf32>
    %59 = vector.extract_strided_slice %7 {offsets = [0, 101], sizes = [8, 1280], strides = [1, 1]} : vector<8x2560xbf16> to vector<8x1280xbf16>
    %c10 = arith.constant 10 : index
    %c0_37 = arith.constant 0 : index
    %c0_38 = arith.constant 0 : index
    %60 = vector.load %arg4[%c10, %c0_37, %c0_38] : memref<27x8x8xbf16, #tpu.memory_space<vmem>>, vector<1x8x8xbf16>
    %61 = vector.shape_cast %60 : vector<1x8x8xbf16> to vector<8x8xbf16>
    %cst_39 = arith.constant dense<0.000000e+00> : vector<8x1280xf32>
    %62 = tpu.matmul %61, %59, %cst_39 {dimension_numbers = #tpu.dot_dimension_numbers<[1], [0], [0], [1], [0, 0, 1, 1], [], []>} : vector<8x8xbf16>, vector<8x1280xbf16>, vector<8x1280xf32> -> vector<8x1280xf32>
    %63 = arith.addf %58, %62 : vector<8x1280xf32>
    %64 = vector.extract_strided_slice %7 {offsets = [0, 102], sizes = [8, 1280], strides = [1, 1]} : vector<8x2560xbf16> to vector<8x1280xbf16>
    %c11 = arith.constant 11 : index
    %c0_40 = arith.constant 0 : index
    %c0_41 = arith.constant 0 : index
    %65 = vector.load %arg4[%c11, %c0_40, %c0_41] : memref<27x8x8xbf16, #tpu.memory_space<vmem>>, vector<1x8x8xbf16>
    %66 = vector.shape_cast %65 : vector<1x8x8xbf16> to vector<8x8xbf16>
    %cst_42 = arith.constant dense<0.000000e+00> : vector<8x1280xf32>
    %67 = tpu.matmul %66, %64, %cst_42 {dimension_numbers = #tpu.dot_dimension_numbers<[1], [0], [0], [1], [0, 0, 1, 1], [], []>} : vector<8x8xbf16>, vector<8x1280xbf16>, vector<8x1280xf32> -> vector<8x1280xf32>
    %68 = arith.addf %63, %67 : vector<8x1280xf32>
    %69 = vector.extract_strided_slice %7 {offsets = [0, 110], sizes = [8, 1280], strides = [1, 1]} : vector<8x2560xbf16> to vector<8x1280xbf16>
    %c12 = arith.constant 12 : index
    %c0_43 = arith.constant 0 : index
    %c0_44 = arith.constant 0 : index
    %70 = vector.load %arg4[%c12, %c0_43, %c0_44] : memref<27x8x8xbf16, #tpu.memory_space<vmem>>, vector<1x8x8xbf16>
    %71 = vector.shape_cast %70 : vector<1x8x8xbf16> to vector<8x8xbf16>
    %cst_45 = arith.constant dense<0.000000e+00> : vector<8x1280xf32>
    %72 = tpu.matmul %71, %69, %cst_45 {dimension_numbers = #tpu.dot_dimension_numbers<[1], [0], [0], [1], [0, 0, 1, 1], [], []>} : vector<8x8xbf16>, vector<8x1280xbf16>, vector<8x1280xf32> -> vector<8x1280xf32>
    %73 = arith.addf %68, %72 : vector<8x1280xf32>
    %74 = vector.extract_strided_slice %7 {offsets = [0, 111], sizes = [8, 1280], strides = [1, 1]} : vector<8x2560xbf16> to vector<8x1280xbf16>
    %c13 = arith.constant 13 : index
    %c0_46 = arith.constant 0 : index
    %c0_47 = arith.constant 0 : index
    %75 = vector.load %arg4[%c13, %c0_46, %c0_47] : memref<27x8x8xbf16, #tpu.memory_space<vmem>>, vector<1x8x8xbf16>
    %76 = vector.shape_cast %75 : vector<1x8x8xbf16> to vector<8x8xbf16>
    %cst_48 = arith.constant dense<0.000000e+00> : vector<8x1280xf32>
    %77 = tpu.matmul %76, %74, %cst_48 {dimension_numbers = #tpu.dot_dimension_numbers<[1], [0], [0], [1], [0, 0, 1, 1], [], []>} : vector<8x8xbf16>, vector<8x1280xbf16>, vector<8x1280xf32> -> vector<8x1280xf32>
    %78 = arith.addf %73, %77 : vector<8x1280xf32>
    %79 = vector.extract_strided_slice %7 {offsets = [0, 112], sizes = [8, 1280], strides = [1, 1]} : vector<8x2560xbf16> to vector<8x1280xbf16>
    %c14 = arith.constant 14 : index
    %c0_49 = arith.constant 0 : index
    %c0_50 = arith.constant 0 : index
    %80 = vector.load %arg4[%c14, %c0_49, %c0_50] : memref<27x8x8xbf16, #tpu.memory_space<vmem>>, vector<1x8x8xbf16>
    %81 = vector.shape_cast %80 : vector<1x8x8xbf16> to vector<8x8xbf16>
    %cst_51 = arith.constant dense<0.000000e+00> : vector<8x1280xf32>
    %82 = tpu.matmul %81, %79, %cst_51 {dimension_numbers = #tpu.dot_dimension_numbers<[1], [0], [0], [1], [0, 0, 1, 1], [], []>} : vector<8x8xbf16>, vector<8x1280xbf16>, vector<8x1280xf32> -> vector<8x1280xf32>
    %83 = arith.addf %78, %82 : vector<8x1280xf32>
    %84 = vector.extract_strided_slice %7 {offsets = [0, 120], sizes = [8, 1280], strides = [1, 1]} : vector<8x2560xbf16> to vector<8x1280xbf16>
    %c15 = arith.constant 15 : index
    %c0_52 = arith.constant 0 : index
    %c0_53 = arith.constant 0 : index
    %85 = vector.load %arg4[%c15, %c0_52, %c0_53] : memref<27x8x8xbf16, #tpu.memory_space<vmem>>, vector<1x8x8xbf16>
    %86 = vector.shape_cast %85 : vector<1x8x8xbf16> to vector<8x8xbf16>
    %cst_54 = arith.constant dense<0.000000e+00> : vector<8x1280xf32>
    %87 = tpu.matmul %86, %84, %cst_54 {dimension_numbers = #tpu.dot_dimension_numbers<[1], [0], [0], [1], [0, 0, 1, 1], [], []>} : vector<8x8xbf16>, vector<8x1280xbf16>, vector<8x1280xf32> -> vector<8x1280xf32>
    %88 = arith.addf %83, %87 : vector<8x1280xf32>
    %89 = vector.extract_strided_slice %7 {offsets = [0, 121], sizes = [8, 1280], strides = [1, 1]} : vector<8x2560xbf16> to vector<8x1280xbf16>
    %c16 = arith.constant 16 : index
    %c0_55 = arith.constant 0 : index
    %c0_56 = arith.constant 0 : index
    %90 = vector.load %arg4[%c16, %c0_55, %c0_56] : memref<27x8x8xbf16, #tpu.memory_space<vmem>>, vector<1x8x8xbf16>
    %91 = vector.shape_cast %90 : vector<1x8x8xbf16> to vector<8x8xbf16>
    %cst_57 = arith.constant dense<0.000000e+00> : vector<8x1280xf32>
    %92 = tpu.matmul %91, %89, %cst_57 {dimension_numbers = #tpu.dot_dimension_numbers<[1], [0], [0], [1], [0, 0, 1, 1], [], []>} : vector<8x8xbf16>, vector<8x1280xbf16>, vector<8x1280xf32> -> vector<8x1280xf32>
    %93 = arith.addf %88, %92 : vector<8x1280xf32>
    %94 = vector.extract_strided_slice %7 {offsets = [0, 122], sizes = [8, 1280], strides = [1, 1]} : vector<8x2560xbf16> to vector<8x1280xbf16>
    %c17 = arith.constant 17 : index
    %c0_58 = arith.constant 0 : index
    %c0_59 = arith.constant 0 : index
    %95 = vector.load %arg4[%c17, %c0_58, %c0_59] : memref<27x8x8xbf16, #tpu.memory_space<vmem>>, vector<1x8x8xbf16>
    %96 = vector.shape_cast %95 : vector<1x8x8xbf16> to vector<8x8xbf16>
    %cst_60 = arith.constant dense<0.000000e+00> : vector<8x1280xf32>
    %97 = tpu.matmul %96, %94, %cst_60 {dimension_numbers = #tpu.dot_dimension_numbers<[1], [0], [0], [1], [0, 0, 1, 1], [], []>} : vector<8x8xbf16>, vector<8x1280xbf16>, vector<8x1280xf32> -> vector<8x1280xf32>
    %98 = arith.addf %93, %97 : vector<8x1280xf32>
    %99 = vector.extract_strided_slice %7 {offsets = [0, 200], sizes = [8, 1280], strides = [1, 1]} : vector<8x2560xbf16> to vector<8x1280xbf16>
    %c18 = arith.constant 18 : index
    %c0_61 = arith.constant 0 : index
    %c0_62 = arith.constant 0 : index
    %100 = vector.load %arg4[%c18, %c0_61, %c0_62] : memref<27x8x8xbf16, #tpu.memory_space<vmem>>, vector<1x8x8xbf16>
    %101 = vector.shape_cast %100 : vector<1x8x8xbf16> to vector<8x8xbf16>
    %cst_63 = arith.constant dense<0.000000e+00> : vector<8x1280xf32>
    %102 = tpu.matmul %101, %99, %cst_63 {dimension_numbers = #tpu.dot_dimension_numbers<[1], [0], [0], [1], [0, 0, 1, 1], [], []>} : vector<8x8xbf16>, vector<8x1280xbf16>, vector<8x1280xf32> -> vector<8x1280xf32>
    %103 = arith.addf %98, %102 : vector<8x1280xf32>
    %104 = vector.extract_strided_slice %7 {offsets = [0, 201], sizes = [8, 1280], strides = [1, 1]} : vector<8x2560xbf16> to vector<8x1280xbf16>
    %c19 = arith.constant 19 : index
    %c0_64 = arith.constant 0 : index
    %c0_65 = arith.constant 0 : index
    %105 = vector.load %arg4[%c19, %c0_64, %c0_65] : memref<27x8x8xbf16, #tpu.memory_space<vmem>>, vector<1x8x8xbf16>
    %106 = vector.shape_cast %105 : vector<1x8x8xbf16> to vector<8x8xbf16>
    %cst_66 = arith.constant dense<0.000000e+00> : vector<8x1280xf32>
    %107 = tpu.matmul %106, %104, %cst_66 {dimension_numbers = #tpu.dot_dimension_numbers<[1], [0], [0], [1], [0, 0, 1, 1], [], []>} : vector<8x8xbf16>, vector<8x1280xbf16>, vector<8x1280xf32> -> vector<8x1280xf32>
    %108 = arith.addf %103, %107 : vector<8x1280xf32>
    %109 = vector.extract_strided_slice %7 {offsets = [0, 202], sizes = [8, 1280], strides = [1, 1]} : vector<8x2560xbf16> to vector<8x1280xbf16>
    %c20 = arith.constant 20 : index
    %c0_67 = arith.constant 0 : index
    %c0_68 = arith.constant 0 : index
    %110 = vector.load %arg4[%c20, %c0_67, %c0_68] : memref<27x8x8xbf16, #tpu.memory_space<vmem>>, vector<1x8x8xbf16>
    %111 = vector.shape_cast %110 : vector<1x8x8xbf16> to vector<8x8xbf16>
    %cst_69 = arith.constant dense<0.000000e+00> : vector<8x1280xf32>
    %112 = tpu.matmul %111, %109, %cst_69 {dimension_numbers = #tpu.dot_dimension_numbers<[1], [0], [0], [1], [0, 0, 1, 1], [], []>} : vector<8x8xbf16>, vector<8x1280xbf16>, vector<8x1280xf32> -> vector<8x1280xf32>
    %113 = arith.addf %108, %112 : vector<8x1280xf32>
    %114 = vector.extract_strided_slice %7 {offsets = [0, 210], sizes = [8, 1280], strides = [1, 1]} : vector<8x2560xbf16> to vector<8x1280xbf16>
    %c21 = arith.constant 21 : index
    %c0_70 = arith.constant 0 : index
    %c0_71 = arith.constant 0 : index
    %115 = vector.load %arg4[%c21, %c0_70, %c0_71] : memref<27x8x8xbf16, #tpu.memory_space<vmem>>, vector<1x8x8xbf16>
    %116 = vector.shape_cast %115 : vector<1x8x8xbf16> to vector<8x8xbf16>
    %cst_72 = arith.constant dense<0.000000e+00> : vector<8x1280xf32>
    %117 = tpu.matmul %116, %114, %cst_72 {dimension_numbers = #tpu.dot_dimension_numbers<[1], [0], [0], [1], [0, 0, 1, 1], [], []>} : vector<8x8xbf16>, vector<8x1280xbf16>, vector<8x1280xf32> -> vector<8x1280xf32>
    %118 = arith.addf %113, %117 : vector<8x1280xf32>
    %119 = vector.extract_strided_slice %7 {offsets = [0, 211], sizes = [8, 1280], strides = [1, 1]} : vector<8x2560xbf16> to vector<8x1280xbf16>
    %c22 = arith.constant 22 : index
    %c0_73 = arith.constant 0 : index
    %c0_74 = arith.constant 0 : index
    %120 = vector.load %arg4[%c22, %c0_73, %c0_74] : memref<27x8x8xbf16, #tpu.memory_space<vmem>>, vector<1x8x8xbf16>
    %121 = vector.shape_cast %120 : vector<1x8x8xbf16> to vector<8x8xbf16>
    %cst_75 = arith.constant dense<0.000000e+00> : vector<8x1280xf32>
    %122 = tpu.matmul %121, %119, %cst_75 {dimension_numbers = #tpu.dot_dimension_numbers<[1], [0], [0], [1], [0, 0, 1, 1], [], []>} : vector<8x8xbf16>, vector<8x1280xbf16>, vector<8x1280xf32> -> vector<8x1280xf32>
    %123 = arith.addf %118, %122 : vector<8x1280xf32>
    %124 = vector.extract_strided_slice %7 {offsets = [0, 212], sizes = [8, 1280], strides = [1, 1]} : vector<8x2560xbf16> to vector<8x1280xbf16>
    %c23 = arith.constant 23 : index
    %c0_76 = arith.constant 0 : index
    %c0_77 = arith.constant 0 : index
    %125 = vector.load %arg4[%c23, %c0_76, %c0_77] : memref<27x8x8xbf16, #tpu.memory_space<vmem>>, vector<1x8x8xbf16>
    %126 = vector.shape_cast %125 : vector<1x8x8xbf16> to vector<8x8xbf16>
    %cst_78 = arith.constant dense<0.000000e+00> : vector<8x1280xf32>
    %127 = tpu.matmul %126, %124, %cst_78 {dimension_numbers = #tpu.dot_dimension_numbers<[1], [0], [0], [1], [0, 0, 1, 1], [], []>} : vector<8x8xbf16>, vector<8x1280xbf16>, vector<8x1280xf32> -> vector<8x1280xf32>
    %128 = arith.addf %123, %127 : vector<8x1280xf32>
    %129 = vector.extract_strided_slice %7 {offsets = [0, 220], sizes = [8, 1280], strides = [1, 1]} : vector<8x2560xbf16> to vector<8x1280xbf16>
    %c24 = arith.constant 24 : index
    %c0_79 = arith.constant 0 : index
    %c0_80 = arith.constant 0 : index
    %130 = vector.load %arg4[%c24, %c0_79, %c0_80] : memref<27x8x8xbf16, #tpu.memory_space<vmem>>, vector<1x8x8xbf16>
    %131 = vector.shape_cast %130 : vector<1x8x8xbf16> to vector<8x8xbf16>
    %cst_81 = arith.constant dense<0.000000e+00> : vector<8x1280xf32>
    %132 = tpu.matmul %131, %129, %cst_81 {dimension_numbers = #tpu.dot_dimension_numbers<[1], [0], [0], [1], [0, 0, 1, 1], [], []>} : vector<8x8xbf16>, vector<8x1280xbf16>, vector<8x1280xf32> -> vector<8x1280xf32>
    %133 = arith.addf %128, %132 : vector<8x1280xf32>
    %134 = vector.extract_strided_slice %7 {offsets = [0, 221], sizes = [8, 1280], strides = [1, 1]} : vector<8x2560xbf16> to vector<8x1280xbf16>
    %c25 = arith.constant 25 : index
    %c0_82 = arith.constant 0 : index
    %c0_83 = arith.constant 0 : index
    %135 = vector.load %arg4[%c25, %c0_82, %c0_83] : memref<27x8x8xbf16, #tpu.memory_space<vmem>>, vector<1x8x8xbf16>
    %136 = vector.shape_cast %135 : vector<1x8x8xbf16> to vector<8x8xbf16>
    %cst_84 = arith.constant dense<0.000000e+00> : vector<8x1280xf32>
    %137 = tpu.matmul %136, %134, %cst_84 {dimension_numbers = #tpu.dot_dimension_numbers<[1], [0], [0], [1], [0, 0, 1, 1], [], []>} : vector<8x8xbf16>, vector<8x1280xbf16>, vector<8x1280xf32> -> vector<8x1280xf32>
    %138 = arith.addf %133, %137 : vector<8x1280xf32>
    %139 = vector.extract_strided_slice %7 {offsets = [0, 222], sizes = [8, 1280], strides = [1, 1]} : vector<8x2560xbf16> to vector<8x1280xbf16>
    %c26 = arith.constant 26 : index
    %c0_85 = arith.constant 0 : index
    %c0_86 = arith.constant 0 : index
    %140 = vector.load %arg4[%c26, %c0_85, %c0_86] : memref<27x8x8xbf16, #tpu.memory_space<vmem>>, vector<1x8x8xbf16>
    %141 = vector.shape_cast %140 : vector<1x8x8xbf16> to vector<8x8xbf16>
    %cst_87 = arith.constant dense<0.000000e+00> : vector<8x1280xf32>
    %142 = tpu.matmul %141, %139, %cst_87 {dimension_numbers = #tpu.dot_dimension_numbers<[1], [0], [0], [1], [0, 0, 1, 1], [], []>} : vector<8x8xbf16>, vector<8x1280xbf16>, vector<8x1280xf32> -> vector<8x1280xf32>
    %143 = arith.addf %138, %142 : vector<8x1280xf32>
    %144 = arith.truncf %143 : vector<8x1280xf32> to vector<8x1280xbf16>
    %c0_88 = arith.constant 0 : index
    %c0_89 = arith.constant 0 : index
    %c0_90 = arith.constant 0 : index
    %145 = vector.load %arg6[%c0_88, %c0_89, %c0_90] : memref<1x8x1280xbf16, #tpu.memory_space<vmem>>, vector<1x8x1280xbf16>
    %146 = vector.shape_cast %145 : vector<1x8x1280xbf16> to vector<8x1280xbf16>
    %147 = vector.shape_cast %144 : vector<8x1280xbf16> to vector<1x8x1280xbf16>
    tpu.vector_store %arg6[%c0_88, %c0_89, %c0_90], %147 {strides = array<i32>} : memref<1x8x1280xbf16, #tpu.memory_space<vmem>>, vector<1x8x1280xbf16>,
    %c0_91 = arith.constant 0 : index
    %c0_92 = arith.constant 0 : index
    %148 = vector.load %arg5[%c0_91, %c0_92] : memref<1x1280xf32, #tpu.memory_space<vmem>>, vector<1x1280xf32>
    %149 = vector.broadcast %148 : vector<1x1280xf32> to vector<8x1280xf32>
    %150 = arith.mulf %143, %149 : vector<8x1280xf32>
    %c0_93 = arith.constant 0 : index
    %c0_94 = arith.constant 0 : index
    %151 = vector.load %arg8[%c0_93, %c0_94] : memref<8x2xf32, #tpu.memory_space<vmem>>, vector<8x2xf32>
    %cst_95 = arith.constant dense<0.000000e+00> : vector<8xf32>
    %152 = vector.multi_reduction <add>, %150, %cst_95 [1] : vector<8x1280xf32> to vector<8xf32>
    %153 = vector.shape_cast %152 : vector<8xf32> to vector<8x1xf32>
    %154 = arith.mulf %150, %143 : vector<8x1280xf32>
    %cst_96 = arith.constant dense<0.000000e+00> : vector<8xf32>
    %155 = vector.multi_reduction <add>, %154, %cst_96 [1] : vector<8x1280xf32> to vector<8xf32>
    %156 = vector.shape_cast %155 : vector<8xf32> to vector<8x1xf32>
    %157 = tpu.concatenate %153, %156 in 1 : vector<8x1xf32>, vector<8x1xf32> -> vector<8x2xf32>
    %158 = arith.addf %151, %157 : vector<8x2xf32>
    %c0_97 = arith.constant 0 : index
    %c0_98 = arith.constant 0 : index
    %159 = vector.load %arg8[%c0_97, %c0_98] : memref<8x2xf32, #tpu.memory_space<vmem>>, vector<8x2xf32>
    tpu.vector_store %arg8[%c0_97, %c0_98], %158 {strides = array<i32>} : memref<8x2xf32, #tpu.memory_space<vmem>>, vector<8x2xf32>,
    %c0_i32_99 = arith.constant 0 : i32
    %160 = arith.cmpi eq, %arg1, %c0_i32_99 : i32
    %161 = arith.extui %160 : i1 to i32
    %c0_i32_100 = arith.constant 0 : i32
    %162 = arith.cmpi ne, %161, %c0_i32_100 : i32
    scf.if %162 {
      %c0_101 = arith.constant 0 : index
      %c0_102 = arith.constant 0 : index
      %163 = vector.load %arg8[%c0_101, %c0_102] : memref<8x2xf32, #tpu.memory_space<vmem>>, vector<8x2xf32>
      %c0_103 = arith.constant 0 : index
      %c0_104 = arith.constant 0 : index
      %c0_105 = arith.constant 0 : index
      %164 = vector.load %arg7[%c0_103, %c0_104, %c0_105] : memref<1x8x2xf32, #tpu.memory_space<vmem>>, vector<1x8x2xf32>
      %165 = vector.shape_cast %164 : vector<1x8x2xf32> to vector<8x2xf32>
      %166 = vector.shape_cast %163 : vector<8x2xf32> to vector<1x8x2xf32>
      tpu.vector_store %arg7[%c0_103, %c0_104, %c0_105], %166 {strides = array<i32>} : memref<1x8x2xf32, #tpu.memory_space<vmem>>, vector<1x8x2xf32>,
    } else {
    }
    return
  }
  func.func @transform_0(%arg0: i32, %arg1: i32) -> (i32, i32, i32) {
    %c0_i32 = arith.constant 0 : i32
    %c0_i32_0 = arith.constant 0 : i32
    return %arg0, %c0_i32, %arg1 : i32, i32, i32
  }
  func.func @transform_1(%arg0: i32, %arg1: i32) -> (i32, i32, i32) {
    %c1_i32 = arith.constant 1 : i32
    %0 = arith.addi %arg1, %c1_i32 : i32
    %c0_i32 = arith.constant 0 : i32
    %c0_i32_0 = arith.constant 0 : i32
    return %arg0, %c0_i32, %0 : i32, i32, i32
  }
  func.func @transform_2(%arg0: i32, %arg1: i32) -> (i32, i32, i32) {
    %c0_i32 = arith.constant 0 : i32
    %c0_i32_0 = arith.constant 0 : i32
    %c0_i32_1 = arith.constant 0 : i32
    %c0_i32_2 = arith.constant 0 : i32
    return %c0_i32, %c0_i32_0, %c0_i32_1 : i32, i32, i32
  }
  func.func @transform_3(%arg0: i32, %arg1: i32) -> (i32, i32) {
    %c0_i32 = arith.constant 0 : i32
    %c0_i32_0 = arith.constant 0 : i32
    return %c0_i32, %arg1 : i32, i32
  }
  func.func @transform_4(%arg0: i32, %arg1: i32) -> (i32, i32, i32) {
    %c1_i32 = arith.constant 1 : i32
    %0 = arith.addi %arg1, %c1_i32 : i32
    %c0_i32 = arith.constant 0 : i32
    %c0_i32_0 = arith.constant 0 : i32
    return %arg0, %c0_i32, %0 : i32, i32, i32
  }
  func.func @transform_5(%arg0: i32, %arg1: i32) -> (i32, i32, i32) {
    %c0_i32 = arith.constant 0 : i32
    %c0_i32_0 = arith.constant 0 : i32
    %c0_i32_1 = arith.constant 0 : i32
    return %arg0, %c0_i32, %c0_i32_0 : i32, i32, i32
  }
}

module attributes {stable_mosaic.version = 11 : i64} {
  func.func @kernel(%arg0: i32, %arg1: i32, %arg2: memref<1x8x1280xbf16, #tpu.memory_space<vmem>>, %arg3: memref<1x8x1280xbf16, #tpu.memory_space<vmem>>, %arg4: memref<1x1280xf32, #tpu.memory_space<vmem>>, %arg5: memref<1x8x1xf32, #tpu.memory_space<vmem>>, %arg6: memref<1x8x1xf32, #tpu.memory_space<vmem>>, %arg7: memref<1x8x1280xbf16, #tpu.memory_space<vmem>>) attributes {dimension_semantics = [#tpu.dimension_semantics<parallel>, #tpu.dimension_semantics<parallel>], iteration_bounds = array<i64: 2, 2>, scalar_prefetch = 0 : i64, scratch_operands = 0 : i64, tpu.core_type = #tpu.core_type<tc>, window_params = [{transform_indices = @transform_0, window_bounds = array<i64: 1, 8, 1280>}, {transform_indices = @transform_1, window_bounds = array<i64: 1, 8, 1280>}, {transform_indices = @transform_2, window_bounds = array<i64: 1, 1280>}, {transform_indices = @transform_3, window_bounds = array<i64: 1, 8, 1>}, {transform_indices = @transform_4, window_bounds = array<i64: 1, 8, 1>}, {transform_indices = @transform_5, window_bounds = array<i64: 1, 8, 1280>}]} {
    %c0 = arith.constant 0 : index
    %c0_0 = arith.constant 0 : index
    %c0_1 = arith.constant 0 : index
    %0 = vector.load %arg2[%c0, %c0_0, %c0_1] : memref<1x8x1280xbf16, #tpu.memory_space<vmem>>, vector<1x8x1280xbf16>
    %1 = vector.shape_cast %0 : vector<1x8x1280xbf16> to vector<8x1280xbf16>
    %c0_2 = arith.constant 0 : index
    %c0_3 = arith.constant 0 : index
    %c0_4 = arith.constant 0 : index
    %2 = vector.load %arg3[%c0_2, %c0_3, %c0_4] : memref<1x8x1280xbf16, #tpu.memory_space<vmem>>, vector<1x8x1280xbf16>
    %3 = vector.shape_cast %2 : vector<1x8x1280xbf16> to vector<8x1280xbf16>
    %4 = tpu.concatenate %1, %3 in 1 : vector<8x1280xbf16>, vector<8x1280xbf16> -> vector<8x2560xbf16>
    %5 = vector.extract_strided_slice %4 {offsets = [0, 1169], sizes = [8, 1280], strides = [1, 1]} : vector<8x2560xbf16> to vector<8x1280xbf16>
    %6 = arith.extf %5 : vector<8x1280xbf16> to vector<8x1280xf32>
    %c0_5 = arith.constant 0 : index
    %c0_6 = arith.constant 0 : index
    %c0_7 = arith.constant 0 : index
    %7 = vector.load %arg5[%c0_5, %c0_6, %c0_7] : memref<1x8x1xf32, #tpu.memory_space<vmem>>, vector<1x8x1xf32>
    %8 = vector.shape_cast %7 : vector<1x8x1xf32> to vector<8x1xf32>
    %9 = vector.broadcast %8 : vector<8x1xf32> to vector<8x1280xf32>
    %10 = arith.mulf %6, %9 : vector<8x1280xf32>
    %c0_8 = arith.constant 0 : index
    %c0_9 = arith.constant 0 : index
    %c0_10 = arith.constant 0 : index
    %11 = vector.load %arg6[%c0_8, %c0_9, %c0_10] : memref<1x8x1xf32, #tpu.memory_space<vmem>>, vector<1x8x1xf32>
    %12 = vector.shape_cast %11 : vector<1x8x1xf32> to vector<8x1xf32>
    %13 = vector.broadcast %12 : vector<8x1xf32> to vector<8x1280xf32>
    %14 = arith.addf %10, %13 : vector<8x1280xf32>
    %cst = arith.constant 0.000000e+00 : f32
    %15 = vector.broadcast %cst : f32 to vector<8x1280xf32>
    %16 = arith.cmpf oge, %14, %15 : vector<8x1280xf32>
    %cst_11 = arith.constant 0.00999999977 : f32
    %17 = vector.broadcast %cst_11 : f32 to vector<8x1280xf32>
    %18 = arith.mulf %17, %14 : vector<8x1280xf32>
    %19 = arith.select %16, %14, %18 : vector<8x1280xi1>, vector<8x1280xf32>
    %c0_12 = arith.constant 0 : index
    %c0_13 = arith.constant 0 : index
    %20 = vector.load %arg4[%c0_12, %c0_13] : memref<1x1280xf32, #tpu.memory_space<vmem>>, vector<1x1280xf32>
    %cst_14 = arith.constant 0.000000e+00 : f32
    %21 = vector.broadcast %cst_14 : f32 to vector<1x1280xf32>
    %22 = arith.cmpf ogt, %20, %21 : vector<1x1280xf32>
    %cst_15 = arith.constant 0.000000e+00 : f32
    %23 = vector.shape_cast %22 : vector<1x1280xi1> to vector<1x1280xi1>
    %24 = vector.broadcast %23 : vector<1x1280xi1> to vector<8x1280xi1>
    %25 = vector.broadcast %cst_15 : f32 to vector<8x1280xf32>
    %26 = arith.select %24, %19, %25 : vector<8x1280xi1>, vector<8x1280xf32>
    %27 = arith.truncf %26 : vector<8x1280xf32> to vector<8x1280xbf16>
    %c0_16 = arith.constant 0 : index
    %c0_17 = arith.constant 0 : index
    %c0_18 = arith.constant 0 : index
    %28 = vector.load %arg7[%c0_16, %c0_17, %c0_18] : memref<1x8x1280xbf16, #tpu.memory_space<vmem>>, vector<1x8x1280xbf16>
    %29 = vector.shape_cast %28 : vector<1x8x1280xbf16> to vector<8x1280xbf16>
    %30 = vector.shape_cast %27 : vector<8x1280xbf16> to vector<1x8x1280xbf16>
    tpu.vector_store %arg7[%c0_16, %c0_17, %c0_18], %30 {strides = array<i32>} : memref<1x8x1280xbf16, #tpu.memory_space<vmem>>, vector<1x8x1280xbf16>,
    return
  }
  func.func @transform_0(%arg0: i32, %arg1: i32) -> (i32, i32, i32) {
    %c0_i32 = arith.constant 0 : i32
    %c0_i32_0 = arith.constant 0 : i32
    return %arg0, %c0_i32, %arg1 : i32, i32, i32
  }
  func.func @transform_1(%arg0: i32, %arg1: i32) -> (i32, i32, i32) {
    %c1_i32 = arith.constant 1 : i32
    %0 = arith.addi %arg1, %c1_i32 : i32
    %c0_i32 = arith.constant 0 : i32
    %c0_i32_0 = arith.constant 0 : i32
    return %arg0, %c0_i32, %0 : i32, i32, i32
  }
  func.func @transform_2(%arg0: i32, %arg1: i32) -> (i32, i32) {
    %c0_i32 = arith.constant 0 : i32
    %c0_i32_0 = arith.constant 0 : i32
    return %c0_i32, %arg1 : i32, i32
  }
  func.func @transform_3(%arg0: i32, %arg1: i32) -> (i32, i32, i32) {
    %c0_i32 = arith.constant 0 : i32
    %c0_i32_0 = arith.constant 0 : i32
    %c0_i32_1 = arith.constant 0 : i32
    return %arg0, %c0_i32, %c0_i32_0 : i32, i32, i32
  }
  func.func @transform_4(%arg0: i32, %arg1: i32) -> (i32, i32, i32) {
    %c0_i32 = arith.constant 0 : i32
    %c0_i32_0 = arith.constant 0 : i32
    %c0_i32_1 = arith.constant 0 : i32
    return %arg0, %c0_i32, %c0_i32_0 : i32, i32, i32
  }
  func.func @transform_5(%arg0: i32, %arg1: i32) -> (i32, i32, i32) {
    %c0_i32 = arith.constant 0 : i32
    %c0_i32_0 = arith.constant 0 : i32
    return %arg0, %c0_i32, %arg1 : i32, i32, i32
  }
}

module attributes {stable_mosaic.version = 11 : i64} {
  func.func @kernel(%arg0: i32, %arg1: i32, %arg2: memref<1x8x1280xbf16, #tpu.memory_space<vmem>>, %arg3: memref<1x8x1xf32, #tpu.memory_space<vmem>>, %arg4: memref<1x8x1xf32, #tpu.memory_space<vmem>>, %arg5: memref<1x8x1280xf32, #tpu.memory_space<vmem>>) attributes {dimension_semantics = [#tpu.dimension_semantics<parallel>, #tpu.dimension_semantics<parallel>], iteration_bounds = array<i64: 2, 1>, scalar_prefetch = 0 : i64, scratch_operands = 0 : i64, tpu.core_type = #tpu.core_type<tc>, window_params = [{transform_indices = @transform_0, window_bounds = array<i64: 1, 8, 1280>}, {transform_indices = @transform_1, window_bounds = array<i64: 1, 8, 1>}, {transform_indices = @transform_2, window_bounds = array<i64: 1, 8, 1>}, {transform_indices = @transform_3, window_bounds = array<i64: 1, 8, 1280>}]} {
    %c0 = arith.constant 0 : index
    %c0_0 = arith.constant 0 : index
    %c0_1 = arith.constant 0 : index
    %0 = vector.load %arg2[%c0, %c0_0, %c0_1] : memref<1x8x1280xbf16, #tpu.memory_space<vmem>>, vector<1x8x1280xbf16>
    %1 = vector.shape_cast %0 : vector<1x8x1280xbf16> to vector<8x1280xbf16>
    %2 = arith.extf %1 : vector<8x1280xbf16> to vector<8x1280xf32>
    %c0_2 = arith.constant 0 : index
    %c0_3 = arith.constant 0 : index
    %c0_4 = arith.constant 0 : index
    %3 = vector.load %arg3[%c0_2, %c0_3, %c0_4] : memref<1x8x1xf32, #tpu.memory_space<vmem>>, vector<1x8x1xf32>
    %4 = vector.shape_cast %3 : vector<1x8x1xf32> to vector<8x1xf32>
    %5 = vector.broadcast %4 : vector<8x1xf32> to vector<8x1280xf32>
    %6 = arith.mulf %2, %5 : vector<8x1280xf32>
    %c0_5 = arith.constant 0 : index
    %c0_6 = arith.constant 0 : index
    %c0_7 = arith.constant 0 : index
    %7 = vector.load %arg4[%c0_5, %c0_6, %c0_7] : memref<1x8x1xf32, #tpu.memory_space<vmem>>, vector<1x8x1xf32>
    %8 = vector.shape_cast %7 : vector<1x8x1xf32> to vector<8x1xf32>
    %9 = vector.broadcast %8 : vector<8x1xf32> to vector<8x1280xf32>
    %10 = arith.addf %6, %9 : vector<8x1280xf32>
    %cst = arith.constant 0.000000e+00 : f32
    %11 = vector.broadcast %cst : f32 to vector<8x1280xf32>
    %12 = arith.cmpf oge, %10, %11 : vector<8x1280xf32>
    %cst_8 = arith.constant 0.00999999977 : f32
    %13 = vector.broadcast %cst_8 : f32 to vector<8x1280xf32>
    %14 = arith.mulf %13, %10 : vector<8x1280xf32>
    %15 = arith.select %12, %10, %14 : vector<8x1280xi1>, vector<8x1280xf32>
    %c0_9 = arith.constant 0 : index
    %c0_10 = arith.constant 0 : index
    %c0_11 = arith.constant 0 : index
    %16 = vector.load %arg5[%c0_9, %c0_10, %c0_11] : memref<1x8x1280xf32, #tpu.memory_space<vmem>>, vector<1x8x1280xf32>
    %17 = vector.shape_cast %16 : vector<1x8x1280xf32> to vector<8x1280xf32>
    %18 = vector.shape_cast %15 : vector<8x1280xf32> to vector<1x8x1280xf32>
    tpu.vector_store %arg5[%c0_9, %c0_10, %c0_11], %18 {strides = array<i32>} : memref<1x8x1280xf32, #tpu.memory_space<vmem>>, vector<1x8x1280xf32>,
    return
  }
  func.func @transform_0(%arg0: i32, %arg1: i32) -> (i32, i32, i32) {
    %c1_i32 = arith.constant 1 : i32
    %0 = arith.addi %arg1, %c1_i32 : i32
    %c0_i32 = arith.constant 0 : i32
    %c0_i32_0 = arith.constant 0 : i32
    return %arg0, %c0_i32, %0 : i32, i32, i32
  }
  func.func @transform_1(%arg0: i32, %arg1: i32) -> (i32, i32, i32) {
    %c0_i32 = arith.constant 0 : i32
    %c0_i32_0 = arith.constant 0 : i32
    %c0_i32_1 = arith.constant 0 : i32
    return %arg0, %c0_i32, %c0_i32_0 : i32, i32, i32
  }
  func.func @transform_2(%arg0: i32, %arg1: i32) -> (i32, i32, i32) {
    %c0_i32 = arith.constant 0 : i32
    %c0_i32_0 = arith.constant 0 : i32
    %c0_i32_1 = arith.constant 0 : i32
    return %arg0, %c0_i32, %c0_i32_0 : i32, i32, i32
  }
  func.func @transform_3(%arg0: i32, %arg1: i32) -> (i32, i32, i32) {
    %c0_i32 = arith.constant 0 : i32
    %c0_i32_0 = arith.constant 0 : i32
    return %arg0, %c0_i32, %arg1 : i32, i32, i32
  }
}

</mosaic_0001>

<llo_original>
// kernel: downblock3dc_forward.5
$region0: #{downblock3dc_forward.5}
  #allocation0 [shape = 'u32[]', space=smem, size = 0x4, offset = 0x4, fixed_abs, tag = 'smem constant byte address 0x4 - core index']
  #allocation1 [shape = 'u32[72,128]{1,0:T(1,128)}', space=vmem, size = 0x9000, scoped, tag = 'internal scratch']
  %s0 = inlined_call_operand.vmem [shape: bf16[2,8,3840], index: 0, kind: input, shape index: {}, may-alias: {0,1}]
  %s1 = inlined_call_operand.vmem [shape: bf16[2,8,3840], index: 1, kind: input, shape index: {}, may-alias: {0,1}]
  %s2 = inlined_call_operand.vmem [shape: f32[1,2560], index: 2, kind: input, shape index: {}]
  %s3 = inlined_call_operand.vmem [shape: f32[2,8,1], index: 3, kind: input, shape index: {}]
  %s4 = inlined_call_operand.vmem [shape: f32[2,8,1], index: 4, kind: input, shape index: {}]
  %s5 = inlined_call_operand.vmem [shape: bf16[2,8,2560], index: 5, kind: output, shape index: {}]
  %s6 = sld [smem:[#allocation0]]
  $region53: #{downblock3dc_forward.5} parent=0
    _
  %s8 = ssub.s32 1, %s6
  %s9 = scalar_select 0, %s8, %s6
  loop: start=0, step=1, limit=6
  $region2: #{downblock3dc_forward.5} parent=0 // loop_pre_header
    _
  $region3: #{downblock3dc_forward.5} parent=0 // loop_header
    %s11 = sphi 0, %s15
    %p12 = scmp.ge.s32.totalorder %s11, 6
    %s18 = sphi 0, %s30
    %s19 = sphi 0, %s26
    %s20 = sphi 0, %s18
    %s21 = sphi 0, %s19
    %s22 = sphi 0, %s20
    %s23 = sphi 0, %s21
    %s35 = sphi 0, %s37
    %s38 = sphi 0, %s35
    %s39 = sphi 0, %s38
    %s55 = sphi 0, %s39
    %s65 = sphi 0, %s67
    %s68 = sphi 0, %s65
    %s69 = sphi 0, %s68
    %s85 = sphi 0, %s69
    %s91 = sphi 0, %s93
    %s94 = sphi 0, %s91
    %s95 = sphi 0, %s94
    %s111 = sphi 0, %s95
    %s117 = sphi 0, %s119
    %s120 = sphi 0, %s117
    %s121 = sphi 0, %s120
    %s137 = sphi 0, %s121
    %s143 = sphi 0, %s145
    %s146 = sphi 0, %s143
    %s147 = sphi 0, %s146
    %s163 = sphi 0, %s147
    %s171 = sphi 0, %s173
    %s174 = sphi 0, %s171
    %s175 = sphi 0, %s174
    %s191 = sphi 0, %s175
  $region4: #{downblock3dc_forward.5} parent=0 // loop_header_branch
    %14 = sbr.rel (%p12) target = $region8
  $region5: #{downblock3dc_forward.5} parent=0 // loop_body
    %s16 = ssub.s32 %s11, 1
    %s17 = ssub.s32 %s11, 2
    %s24 = sadd.s32 1, %s19
    %p25 = scmp.ge.s32.totalorder %s24, 2
    %s26 = scalar_select %p25, 0, %s24
    %s27 = sadd.s32 1, %s18
    %s28 = scalar_select %p25, %s27, %s18
    %p29 = scmp.ge.s32.totalorder %s28, 2
    %s30 = scalar_select %p29, 0, %s28
    %s31 = ssub.s32 %s18, %s30
    %s32 = ssub.s32 %s19, %s26
    %s33 = sor.u32 %s31, %s32
    %p34 = scmp.eq.s32.totalorder %s33, 0
    %s36 = sadd.s32 %s35, 1
    %s37 = scalar_select %p34, %s35, %s36
    %p40 = pneg %p34
    %p41 = scmp.eq.s32.totalorder %s11, 3
    %p42 = por %p40, %p41
    %p43 = scmp.ne.s32.totalorder %s35, %s38
    %p44 = scmp.eq.s32.totalorder %s11, 0
    %p45 = por %p43, %p44
    %p46 = scmp.ne.s32.totalorder %s35, %s38
    %p47 = scmp.eq.s32.totalorder %s16, 3
    %p48 = por %p46, %p47
    %p49 = scmp.ne.s32.totalorder %s38, %s39
    %p50 = scmp.eq.s32.totalorder %s16, 0
    %p51 = por %p49, %p50
    %p52 = scmp.ne.s32.totalorder %s38, %s39
    %p53 = scmp.eq.s32.totalorder %s17, 3
    %p54 = por %p52, %p53
    %p56 = scmp.ne.s32.totalorder %s39, %s55
    %p57 = scmp.eq.s32.totalorder %s17, 0
    %p58 = por %p56, %p57
    %s59 = sadd.s32 %s19, 1
    %s60 = sadd.s32 %s26, 1
    %s61 = ssub.s32 %s18, %s30
    %s62 = ssub.s32 %s59, %s60
    %s63 = sor.u32 %s61, %s62
    %p64 = scmp.eq.s32.totalorder %s63, 0
    %s66 = sadd.s32 %s65, 1
    %s67 = scalar_select %p64, %s65, %s66
    %p70 = pneg %p64
    %p71 = scmp.eq.s32.totalorder %s11, 3
    %p72 = por %p70, %p71
    %p73 = scmp.ne.s32.totalorder %s65, %s68
    %p74 = scmp.eq.s32.totalorder %s11, 0
    %p75 = por %p73, %p74
    %p76 = scmp.ne.s32.totalorder %s65, %s68
    %p77 = scmp.eq.s32.totalorder %s16, 3
    %p78 = por %p76, %p77
    %p79 = scmp.ne.s32.totalorder %s68, %s69
    %p80 = scmp.eq.s32.totalorder %s16, 0
    %p81 = por %p79, %p80
    %p82 = scmp.ne.s32.totalorder %s68, %s69
    %p83 = scmp.eq.s32.totalorder %s17, 3
    %p84 = por %p82, %p83
    %p86 = scmp.ne.s32.totalorder %s69, %s85
    %p87 = scmp.eq.s32.totalorder %s17, 0
    %p88 = por %p86, %p87
    %s89 = ssub.s32 %s19, %s26
    %p90 = scmp.eq.s32.totalorder %s89, 0
    %s92 = sadd.s32 %s91, 1
    %s93 = scalar_select %p90, %s91, %s92
    %p96 = pneg %p90
    %p97 = scmp.eq.s32.totalorder %s11, 3
    %p98 = por %p96, %p97
    %p99 = scmp.ne.s32.totalorder %s91, %s94
    %p100 = scmp.eq.s32.totalorder %s11, 0
    %p101 = por %p99, %p100
    %p102 = scmp.ne.s32.totalorder %s91, %s94
    %p103 = scmp.eq.s32.totalorder %s16, 3
    %p104 = por %p102, %p103
    %p105 = scmp.ne.s32.totalorder %s94, %s95
    %p106 = scmp.eq.s32.totalorder %s16, 0
    %p107 = por %p105, %p106
    %p108 = scmp.ne.s32.totalorder %s94, %s95
    %p109 = scmp.eq.s32.totalorder %s17, 3
    %p110 = por %p108, %p109
    %p112 = scmp.ne.s32.totalorder %s95, %s111
    %p113 = scmp.eq.s32.totalorder %s17, 0
    %p114 = por %p112, %p113
    %s115 = ssub.s32 %s18, %s30
    %p116 = scmp.eq.s32.totalorder %s115, 0
    %s118 = sadd.s32 %s117, 1
    %s119 = scalar_select %p116, %s117, %s118
    %p122 = pneg %p116
    %p123 = scmp.eq.s32.totalorder %s11, 3
    %p124 = por %p122, %p123
    %p125 = scmp.ne.s32.totalorder %s117, %s120
    %p126 = scmp.eq.s32.totalorder %s11, 0
    %p127 = por %p125, %p126
    %p128 = scmp.ne.s32.totalorder %s117, %s120
    %p129 = scmp.eq.s32.totalorder %s16, 3
    %p130 = por %p128, %p129
    %p131 = scmp.ne.s32.totalorder %s120, %s121
    %p132 = scmp.eq.s32.totalorder %s16, 0
    %p133 = por %p131, %p132
    %p134 = scmp.ne.s32.totalorder %s120, %s121
    %p135 = scmp.eq.s32.totalorder %s17, 3
    %p136 = por %p134, %p135
    %p138 = scmp.ne.s32.totalorder %s121, %s137
    %p139 = scmp.eq.s32.totalorder %s17, 0
    %p140 = por %p138, %p139
    %s141 = ssub.s32 %s18, %s30
    %p142 = scmp.eq.s32.totalorder %s141, 0
    %s144 = sadd.s32 %s143, 1
    %s145 = scalar_select %p142, %s143, %s144
    %p148 = pneg %p142
    %p149 = scmp.eq.s32.totalorder %s11, 3
    %p150 = por %p148, %p149
    %p151 = scmp.ne.s32.totalorder %s143, %s146
    %p152 = scmp.eq.s32.totalorder %s11, 0
    %p153 = por %p151, %p152
    %p154 = scmp.ne.s32.totalorder %s143, %s146
    %p155 = scmp.eq.s32.totalorder %s16, 3
    %p156 = por %p154, %p155
    %p157 = scmp.ne.s32.totalorder %s146, %s147
    %p158 = scmp.eq.s32.totalorder %s16, 0
    %p159 = por %p157, %p158
    %p160 = scmp.ne.s32.totalorder %s146, %s147
    %p161 = scmp.eq.s32.totalorder %s17, 3
    %p162 = por %p160, %p161
    %p164 = scmp.ne.s32.totalorder %s147, %s163
    %p165 = scmp.eq.s32.totalorder %s17, 0
    %p166 = por %p164, %p165
    %s167 = ssub.s32 %s18, %s30
    %s168 = ssub.s32 %s19, %s26
    %s169 = sor.u32 %s167, %s168
    %p170 = scmp.eq.s32.totalorder %s169, 0
    %s172 = sadd.s32 %s171, 1
    %s173 = scalar_select %p170, %s171, %s172
    %p176 = pneg %p170
    %p177 = scmp.eq.s32.totalorder %s11, 3
    %p178 = por %p176, %p177
    %p179 = scmp.ne.s32.totalorder %s171, %s174
    %p180 = scmp.eq.s32.totalorder %s11, 0
    %p181 = por %p179, %p180
    %p182 = scmp.ne.s32.totalorder %s171, %s174
    %p183 = scmp.eq.s32.totalorder %s16, 3
    %p184 = por %p182, %p183
    %p185 = scmp.ne.s32.totalorder %s174, %s175
    %p186 = scmp.eq.s32.totalorder %s16, 0
    %p187 = por %p185, %p186
    %p188 = scmp.ne.s32.totalorder %s174, %s175
    %p189 = scmp.eq.s32.totalorder %s17, 3
    %p190 = por %p188, %p189
    %p192 = scmp.ne.s32.totalorder %s175, %s191
    %p193 = scmp.eq.s32.totalorder %s17, 0
    %p194 = por %p192, %p193
    %p195 = scmp.le.s32.totalorder 1, %s11
    %p196 = scmp.lt.s32.totalorder %s11, 5
    %p197 = pnand %p195, %p196
    %p198 = pneg %p197
    // Predicated region
    $region9: #{downblock3dc_forward.5} parent=5 // pred_check
      _
    $region10: #{downblock3dc_forward.5} parent=5 // pred_check_branch
      %200 = sbr.rel (%p197) target = $region12
    $region11: #{downblock3dc_forward.5} parent=5 // pred_region
      %s201 = ssub.s32 %s11, 1
    $region12: #{downblock3dc_forward.5} parent=5 // pred_fallthru
      _
    %p202 = scmp.lt.s32.totalorder %s11, 4
    // Predicated region
    $region13: #{downblock3dc_forward.5} parent=5 // pred_check
      %p203 = pneg %p202
    $region14: #{downblock3dc_forward.5} parent=5 // pred_check_branch
      %205 = sbr.rel (%p203) target = $region16
    $region15: #{downblock3dc_forward.5} parent=5 // pred_region
      // Predicated region
      $region17: #{downblock3dc_forward.5} parent=15 // pred_check
        %p206 = pneg %p45
      $region18: #{downblock3dc_forward.5} parent=15 // pred_check_branch
        %208 = sbr.rel (%p206) target = $region20
      $region19: #{downblock3dc_forward.5} parent=15 // pred_region
        %s209 = smul.u32 10, %s19
        %p210 = scmp.lt.s32.totalorder %s18, 1
        %s211 = scalar_select %p210, %s18, 1
        %p212 = scmp.lt.s32.totalorder %s209, 29
        %s213 = scalar_select %p212, %s209, 29
        %s214 = smul.addr %s211, 30
        %s215 = sadd.s32 %s213, %s214
        %s216 = smul.addr %s215, 4
        %s217 = scalar_lea.vmem %s0, %s216
        %s218 = smul.u32 10, %s19
      $region20: #{downblock3dc_forward.5} parent=15 // pred_fallthru
        _
      // Predicated region
      $region21: #{downblock3dc_forward.5} parent=15 // pred_check
        %p219 = pneg %p75
      $region22: #{downblock3dc_forward.5} parent=15 // pred_check_branch
        %221 = sbr.rel (%p219) target = $region24
      $region23: #{downblock3dc_forward.5} parent=15 // pred_region
        %s222 = sadd.s32 %s19, 1
        %s223 = smul.u32 10, %s222
        %p224 = scmp.lt.s32.totalorder %s18, 1
        %s225 = scalar_select %p224, %s18, 1
        %p226 = scmp.lt.s32.totalorder %s223, 29
        %s227 = scalar_select %p226, %s223, 29
        %s228 = smul.addr %s225, 30
        %s229 = sadd.s32 %s227, %s228
        %s230 = smul.addr %s229, 4
        %s231 = scalar_lea.vmem %s1, %s230
        %s232 = sadd.s32 %s19, 1
        %s233 = smul.u32 10, %s232
      $region24: #{downblock3dc_forward.5} parent=15 // pred_fallthru
        _
      // Predicated region
      $region25: #{downblock3dc_forward.5} parent=15 // pred_check
        %p234 = pneg %p101
      $region26: #{downblock3dc_forward.5} parent=15 // pred_check_branch
        %236 = sbr.rel (%p234) target = $region28
      $region27: #{downblock3dc_forward.5} parent=15 // pred_region
        %s237 = smul.u32 10, %s19
        %p238 = scmp.lt.s32.totalorder %s237, 19
        %s239 = scalar_select %p238, %s237, 19
        %s240 = scalar_lea.vmem %s2, %s239
        %s241 = smul.u32 10, %s19
      $region28: #{downblock3dc_forward.5} parent=15 // pred_fallthru
        _
      // Predicated region
      $region29: #{downblock3dc_forward.5} parent=15 // pred_check
        %p242 = pneg %p127
      $region30: #{downblock3dc_forward.5} parent=15 // pred_check_branch
        %244 = sbr.rel (%p242) target = $region32
      $region31: #{downblock3dc_forward.5} parent=15 // pred_region
        %p245 = scmp.lt.s32.totalorder %s18, 1
        %s246 = scalar_select %p245, %s18, 1
        %s247 = smul.addr %s246, 8
        %s248 = scalar_lea.vmem %s3, %s247
      $region32: #{downblock3dc_forward.5} parent=15 // pred_fallthru
        _
      // Predicated region
      $region33: #{downblock3dc_forward.5} parent=15 // pred_check
        %p249 = pneg %p153
      $region34: #{downblock3dc_forward.5} parent=15 // pred_check_branch
        %251 = sbr.rel (%p249) target = $region36
      $region35: #{downblock3dc_forward.5} parent=15 // pred_region
        %p252 = scmp.lt.s32.totalorder %s18, 1
        %s253 = scalar_select %p252, %s18, 1
        %s254 = smul.addr %s253, 8
        %s255 = scalar_lea.vmem %s4, %s254
      $region36: #{downblock3dc_forward.5} parent=15 // pred_fallthru
        _
    $region16: #{downblock3dc_forward.5} parent=5 // pred_fallthru
      _
    %p256 = scmp.le.s32.totalorder 1, %s11
    %p257 = scmp.lt.s32.totalorder %s11, 5
    %p258 = pnand %p256, %p257
    %p259 = pneg %p258
    // Predicated region
    $region37: #{downblock3dc_forward.5} parent=5 // pred_check
      _
    $region38: #{downblock3dc_forward.5} parent=5 // pred_check_branch
      %261 = sbr.rel (%p258) target = $region40
    $region39: #{downblock3dc_forward.5} parent=5 // pred_region
      %s262 = ssub.s32 %s11, 1
      %s263 = smul.u32 10, %s21
      %p264 = scmp.lt.s32.totalorder %s20, 1
      %s265 = scalar_select %p264, %s20, 1
      %p266 = scmp.lt.s32.totalorder %s263, 29
      %s267 = scalar_select %p266, %s263, 29
      %s268 = smul.addr %s265, 30
      %s269 = sadd.s32 %s267, %s268
      %s270 = smul.addr %s269, 4
      %s271 = scalar_lea.vmem %s0, %s270
      %p272 = pneg %p51
      %p273 = pneg %p48
      %s274 = sadd.s32 %s21, 1
      %s275 = smul.u32 10, %s274
      %p276 = scmp.lt.s32.totalorder %s20, 1
      %s277 = scalar_select %p276, %s20, 1
      %p278 = scmp.lt.s32.totalorder %s275, 29
      %s279 = scalar_select %p278, %s275, 29
      %s280 = smul.addr %s277, 30
      %s281 = sadd.s32 %s279, %s280
      %s282 = smul.addr %s281, 4
      %s283 = scalar_lea.vmem %s1, %s282
      %p284 = pneg %p81
      %p285 = pneg %p78
      %s286 = smul.u32 10, %s21
      %p287 = scmp.lt.s32.totalorder %s286, 19
      %s288 = scalar_select %p287, %s286, 19
      %s289 = scalar_lea.vmem %s2, %s288
      %p290 = pneg %p107
      %p291 = pneg %p104
      %p292 = scmp.lt.s32.totalorder %s20, 1
      %s293 = scalar_select %p292, %s20, 1
      %s294 = smul.addr %s293, 8
      %s295 = scalar_lea.vmem %s3, %s294
      %p296 = pneg %p133
      %p297 = pneg %p130
      %p298 = scmp.lt.s32.totalorder %s20, 1
      %s299 = scalar_select %p298, %s20, 1
      %s300 = smul.addr %s299, 8
      %s301 = scalar_lea.vmem %s4, %s300
      %p302 = pneg %p159
      %p303 = pneg %p156
      %p304 = pneg %p187
      %p305 = pneg %p184
      %s306 = smul.u32 10, %s21
      %p307 = scmp.lt.s32.totalorder %s20, 1
      %s308 = scalar_select %p307, %s20, 1
      %p309 = scmp.lt.s32.totalorder %s306, 19
      %s310 = scalar_select %p309, %s306, 19
      %s311 = smul.addr %s308, 20
      %s312 = sadd.s32 %s310, %s311
      %s313 = smul.addr %s312, 4
      %s314 = scalar_lea.vmem %s5, %s313
      %s315 = smul.u32 10, %s21
      %p316 = scmp.lt.s32.totalorder %s20, 1
      %s317 = scalar_select %p316, %s20, 1
      %p318 = scmp.lt.s32.totalorder %s315, 29
      %s319 = scalar_select %p318, %s315, 29
      %s320 = smul.addr %s317, 30
      %s321 = sadd.s32 %s319, %s320
      %s322 = smul.addr %s321, 4
      %s323 = scalar_lea.vmem %s0, %s322
      %s324 = smul.u32 10, %s21
      %s325 = sadd.s32 %s21, 1
      %s326 = smul.u32 10, %s325
      %p327 = scmp.lt.s32.totalorder %s20, 1
      %s328 = scalar_select %p327, %s20, 1
      %p329 = scmp.lt.s32.totalorder %s326, 29
      %s330 = scalar_select %p329, %s326, 29
      %s331 = smul.addr %s328, 30
      %s332 = sadd.s32 %s330, %s331
      %s333 = smul.addr %s332, 4
      %s334 = scalar_lea.vmem %s1, %s333
      %s335 = sadd.s32 %s21, 1
      %s336 = smul.u32 10, %s335
      %s337 = smul.u32 10, %s21
      %p338 = scmp.lt.s32.totalorder %s337, 19
      %s339 = scalar_select %p338, %s337, 19
      %s340 = scalar_lea.vmem %s2, %s339
      %s341 = smul.u32 10, %s21
      %p342 = scmp.lt.s32.totalorder %s20, 1
      %s343 = scalar_select %p342, %s20, 1
      %s344 = smul.addr %s343, 8
      %s345 = scalar_lea.vmem %s3, %s344
      %p346 = scmp.lt.s32.totalorder %s20, 1
      %s347 = scalar_select %p346, %s20, 1
      %s348 = smul.addr %s347, 8
      %s349 = scalar_lea.vmem %s4, %s348
      %s350 = smul.u32 10, %s21
      %p351 = scmp.lt.s32.totalorder %s20, 1
      %s352 = scalar_select %p351, %s20, 1
      %p353 = scmp.lt.s32.totalorder %s350, 19
      %s354 = scalar_select %p353, %s350, 19
      %s355 = smul.addr %s352, 20
      %s356 = sadd.s32 %s354, %s355
      %s357 = smul.addr %s356, 4
      %s358 = scalar_lea.vmem %s5, %s357
      %s359 = smul.u32 10, %s21
      %v360 = vld [vmem:[%s323 + $0x20] sm:$0xff]
      %v361 = vld [vmem:[%s334] sm:$0xff]
      %v362 = vld [vmem:[%s334 + $0x8] sm:$0xff]
      %v363 = vld [vmem:[%s334 + $0x10] sm:$0xff]
      %v364 = vld [vmem:[%s334 + $0x18] sm:$0xff]
      %v365 = vld [vmem:[%s334 + $0x20] sm:$0xff]
      %v367 = vunpack.c.h.b16 %v360
      %v368 = vpack.c.b16 %v367, %v367
      %v375 = vunpack.c.l.b16 %v361
      %v376 = vunpack.c.h.b16 %v361
      %v377 = vunpack.c.l.b16 %v362
      %v378 = vunpack.c.h.b16 %v362
      %v379 = vunpack.c.l.b16 %v363
      %v380 = vunpack.c.h.b16 %v363
      %v381 = vunpack.c.l.b16 %v364
      %v382 = vunpack.c.h.b16 %v364
      %v383 = vunpack.c.l.b16 %v365
      %v384 = vunpack.c.h.b16 %v365
      %v385 = vpack.c.b16 %v375, %v375
      %v386 = vpack.c.b16 %v376, %v376
      %v387 = vpack.c.b16 %v377, %v377
      %v388 = vpack.c.b16 %v378, %v378
      %v389 = vpack.c.b16 %v379, %v379
      %v390 = vpack.c.b16 %v380, %v380
      %v391 = vpack.c.b16 %v381, %v381
      %v392 = vpack.c.b16 %v382, %v382
      %v393 = vpack.c.b16 %v383, %v383
      %v394 = vpack.c.b16 %v384, %v384
      %v405 = vunpack.c.l.bf16 %v368
      %v406 = vunpack.c.l.bf16 %v385
      %v407 = vunpack.c.l.bf16 %v386
      %v408 = vunpack.c.l.bf16 %v387
      %v409 = vunpack.c.l.bf16 %v388
      %v410 = vunpack.c.l.bf16 %v389
      %v411 = vunpack.c.l.bf16 %v390
      %v412 = vunpack.c.l.bf16 %v391
      %v413 = vunpack.c.l.bf16 %v392
      %v414 = vunpack.c.l.bf16 %v393
      %v415 = vunpack.c.l.bf16 %v394
      %v416 = vld [vmem:[%s345] sm:$0xff]
      %418 = vset.pattern.permute.xlu0 0
      %419 = vperm.xlu0 %418, %v416
      %v420 = vpop.permute.xlu0 %419
      %v422 = vmul.f32 %v405, %v420
      %v423 = vmul.f32 %v406, %v420
      %v424 = vmul.f32 %v407, %v420
      %v425 = vmul.f32 %v408, %v420
      %v426 = vmul.f32 %v409, %v420
      %v427 = vmul.f32 %v410, %v420
      %v428 = vmul.f32 %v411, %v420
      %v429 = vmul.f32 %v412, %v420
      %v430 = vmul.f32 %v413, %v420
      %v431 = vmul.f32 %v414, %v420
      %v432 = vmul.f32 %v415, %v420
      %v433 = vld [vmem:[%s349] sm:$0xff]
      %435 = vset.pattern.permute.xlu0 0
      %436 = vperm.xlu0 %435, %v433
      %v437 = vpop.permute.xlu0 %436
      %v439 = vadd.f32 %v422, %v437
      %v440 = vadd.f32 %v423, %v437
      %v441 = vadd.f32 %v424, %v437
      %v442 = vadd.f32 %v425, %v437
      %v443 = vadd.f32 %v426, %v437
      %v444 = vadd.f32 %v427, %v437
      %v445 = vadd.f32 %v428, %v437
      %v446 = vadd.f32 %v429, %v437
      %v447 = vadd.f32 %v430, %v437
      %v448 = vadd.f32 %v431, %v437
      %v449 = vadd.f32 %v432, %v437
      %vm450 = vcmp.ge.f32.partialorder %v439, 0.0
      %vm451 = vcmp.ge.f32.partialorder %v440, 0.0
      %vm452 = vcmp.ge.f32.partialorder %v441, 0.0
      %vm453 = vcmp.ge.f32.partialorder %v442, 0.0
      %vm454 = vcmp.ge.f32.partialorder %v443, 0.0
      %vm455 = vcmp.ge.f32.partialorder %v444, 0.0
      %vm456 = vcmp.ge.f32.partialorder %v445, 0.0
      %vm457 = vcmp.ge.f32.partialorder %v446, 0.0
      %vm458 = vcmp.ge.f32.partialorder %v447, 0.0
      %vm459 = vcmp.ge.f32.partialorder %v448, 0.0
      %vm460 = vcmp.ge.f32.partialorder %v449, 0.0
      %v461 = vmul.f32 %v439, 0.01
      %v462 = vmul.f32 %v440, 0.01
      %v463 = vmul.f32 %v441, 0.01
      %v464 = vmul.f32 %v442, 0.01
      %v465 = vmul.f32 %v443, 0.01
      %v466 = vmul.f32 %v444, 0.01
      %v467 = vmul.f32 %v445, 0.01
      %v468 = vmul.f32 %v446, 0.01
      %v469 = vmul.f32 %v447, 0.01
      %v470 = vmul.f32 %v448, 0.01
      %v471 = vmul.f32 %v449, 0.01
      %v472 = vsel %vm450, %v439, %v461
      %v473 = vsel %vm451, %v440, %v462
      %v474 = vsel %vm452, %v441, %v463
      %v475 = vsel %vm453, %v442, %v464
      %v476 = vsel %vm454, %v443, %v465
      %v477 = vsel %vm455, %v444, %v466
      %v478 = vsel %vm456, %v445, %v467
      %v479 = vsel %vm457, %v446, %v468
      %v480 = vsel %vm458, %v447, %v469
      %v481 = vsel %vm459, %v448, %v470
      %v482 = vsel %vm460, %v449, %v471
      %v483 = vld [vmem:[%s340] sm:$0xff]
      %v484 = vld [vmem:[%s340 + $0x8] sm:$0x3]
      %vm485 = vcmp.gt.f32.partialorder %v483, 0.0
      %vm486 = vcmp.gt.f32.partialorder %v484, 0.0
      %v487 = vsel %vm485, 1, 0
      %v488 = vsel %vm486, 1, 0
      %v489 = vperm.slane %v487, 0
      %v490 = vperm.slane %v487, 1
      %v491 = vperm.slane %v487, 2
      %v492 = vperm.slane %v487, 3
      %v493 = vperm.slane %v487, 4
      %v494 = vperm.slane %v487, 5
      %v495 = vperm.slane %v487, 6
      %v496 = vperm.slane %v487, 7
      %v497 = vperm.slane %v488, 0
      %v498 = vperm.slane %v488, 1
      %vm499 = vcmp.eq.s32.totalorder %v489, 1
      %vm500 = vcmp.eq.s32.totalorder %v490, 1
      %vm501 = vcmp.eq.s32.totalorder %v491, 1
      %vm502 = vcmp.eq.s32.totalorder %v492, 1
      %vm503 = vcmp.eq.s32.totalorder %v493, 1
      %vm504 = vcmp.eq.s32.totalorder %v494, 1
      %vm505 = vcmp.eq.s32.totalorder %v495, 1
      %vm506 = vcmp.eq.s32.totalorder %v496, 1
      %vm507 = vcmp.eq.s32.totalorder %v497, 1
      %vm508 = vcmp.eq.s32.totalorder %v498, 1
      %520 = vrot.lane.b32.xlu0 %v472, 111
      %v521 = vpop.permute.xlu0 %520
      %522 = vrot.lane.b32.xlu0 %v473, 111
      %v523 = vpop.permute.xlu0 %522
      %524 = vrot.lane.b32.xlu0 %v474, 111
      %v525 = vpop.permute.xlu0 %524
      %526 = vrot.lane.b32.xlu0 %v475, 111
      %v527 = vpop.permute.xlu0 %526
      %528 = vrot.lane.b32.xlu0 %v476, 111
      %v529 = vpop.permute.xlu0 %528
      %530 = vrot.lane.b32.xlu0 %v477, 111
      %v531 = vpop.permute.xlu0 %530
      %532 = vrot.lane.b32.xlu0 %v478, 111
      %v533 = vpop.permute.xlu0 %532
      %534 = vrot.lane.b32.xlu0 %v479, 111
      %v535 = vpop.permute.xlu0 %534
      %536 = vrot.lane.b32.xlu0 %v480, 111
      %v537 = vpop.permute.xlu0 %536
      %538 = vrot.lane.b32.xlu0 %v481, 111
      %v539 = vpop.permute.xlu0 %538
      %540 = vrot.lane.b32.xlu0 %v482, 111
      %v541 = vpop.permute.xlu0 %540
      %vm542 = vcmask 908288
      %v543 = vsel %vm542, %v521, %v523
      %v544 = vsel %vm542, %v523, %v525
      %v545 = vsel %vm542, %v525, %v527
      %v546 = vsel %vm542, %v527, %v529
      %v547 = vsel %vm542, %v529, %v531
      %v548 = vsel %vm542, %v531, %v533
      %v549 = vsel %vm542, %v533, %v535
      %v550 = vsel %vm542, %v535, %v537
      %v551 = vsel %vm542, %v537, %v539
      %v552 = vsel %vm542, %v539, %v541
      %v563 = vsel %vm499, %v543, 0.0
      %v564 = vsel %vm500, %v544, 0.0
      %v565 = vsel %vm501, %v545, 0.0
      %v566 = vsel %vm502, %v546, 0.0
      %v567 = vsel %vm503, %v547, 0.0
      %v568 = vsel %vm504, %v548, 0.0
      %v569 = vsel %vm505, %v549, 0.0
      %v570 = vsel %vm506, %v550, 0.0
      %v571 = vsel %vm507, %v551, 0.0
      %v572 = vsel %vm508, %v552, 0.0
      %v573 = vpack.c.bf16 %v564, %v563
      %v574 = vpack.c.bf16 %v566, %v565
      %v575 = vpack.c.bf16 %v568, %v567
      %v576 = vpack.c.bf16 %v570, %v569
      %v577 = vpack.c.bf16 %v572, %v571
      %578 = vst [vmem:[%s358] sm:$0xff] %v573
      %579 = vst [vmem:[%s358 + $0x8] sm:$0xff] %v574
      %580 = vst [vmem:[%s358 + $0x10] sm:$0xff] %v575
      %581 = vst [vmem:[%s358 + $0x18] sm:$0xff] %v576
      %582 = vst [vmem:[%s358 + $0x20] sm:$0xff] %v577
      %s583 = smul.u32 10, %s21
      %p584 = scmp.lt.s32.totalorder %s20, 1
      %s585 = scalar_select %p584, %s20, 1
      %p586 = scmp.lt.s32.totalorder %s583, 19
      %s587 = scalar_select %p586, %s583, 19
      %s588 = smul.addr %s585, 20
      %s589 = sadd.s32 %s587, %s588
      %s590 = smul.addr %s589, 4
      %s591 = scalar_lea.vmem %s5, %s590
      // Predicated region
      $region41: #{downblock3dc_forward.5} parent=39 // pred_check
        %p592 = pneg %p184
      $region42: #{downblock3dc_forward.5} parent=39 // pred_check_branch
        %594 = sbr.rel (%p592) target = $region44
      $region43: #{downblock3dc_forward.5} parent=39 // pred_region
        %s595 = smul.u32 10, %s21
      $region44: #{downblock3dc_forward.5} parent=39 // pred_fallthru
        _
    $region40: #{downblock3dc_forward.5} parent=5 // pred_fallthru
      _
    %p596 = scmp.le.s32.totalorder 2, %s11
    // Predicated region
    $region45: #{downblock3dc_forward.5} parent=5 // pred_check
      %p597 = pneg %p596
    $region46: #{downblock3dc_forward.5} parent=5 // pred_check_branch
      %599 = sbr.rel (%p597) target = $region48
    $region47: #{downblock3dc_forward.5} parent=5 // pred_region
      %s600 = ssub.s32 %s11, 2
      // Predicated region
      $region49: #{downblock3dc_forward.5} parent=47 // pred_check
        %p601 = pneg %p190
      $region50: #{downblock3dc_forward.5} parent=47 // pred_check_branch
        %603 = sbr.rel (%p601) target = $region52
      $region51: #{downblock3dc_forward.5} parent=47 // pred_region
        %s604 = smul.u32 10, %s23
        %p605 = scmp.lt.s32.totalorder %s22, 1
        %s606 = scalar_select %p605, %s22, 1
        %p607 = scmp.lt.s32.totalorder %s604, 19
        %s608 = scalar_select %p607, %s604, 19
        %s609 = smul.addr %s606, 20
        %s610 = sadd.s32 %s608, %s609
        %s611 = smul.addr %s610, 4
        %s612 = scalar_lea.vmem %s5, %s611
      $region52: #{downblock3dc_forward.5} parent=47 // pred_fallthru
        _
    $region48: #{downblock3dc_forward.5} parent=5 // pred_fallthru
      _
  $region6: #{downblock3dc_forward.5} parent=0 // loop_footer
    %s15 = sadd.s32 1, %s11
  $region7: #{downblock3dc_forward.5} parent=0 // loop_footer_branch
    %10 = sbr.rel target = $region3
  $region8: #{downblock3dc_forward.5} parent=0 // loop_exit
    _

// kernel: downblock3dc_forward.7
$region0: #{downblock3dc_forward.7}
  #allocation0 [shape = 'u32[]', space=smem, size = 0x4, offset = 0x4, fixed_abs, tag = 'smem constant byte address 0x4 - core index']
  #allocation1 [shape = 'u32[72,128]{1,0:T(1,128)}', space=vmem, size = 0x9000, scoped, tag = 'internal scratch']
  %s0 = inlined_call_operand.vmem [shape: bf16[2,8,3840], index: 0, kind: input, shape index: {}]
  %s1 = inlined_call_operand.vmem [shape: f32[2,8,1], index: 1, kind: input, shape index: {}]
  %s2 = inlined_call_operand.vmem [shape: f32[2,8,1], index: 2, kind: input, shape index: {}]
  %s3 = inlined_call_operand.vmem [shape: f32[2,8,1280], index: 3, kind: output, shape index: {}]
  %s4 = sld [smem:[#allocation0]]
  $region45: #{downblock3dc_forward.7} parent=0
    _
  %s6 = ssub.s32 1, %s4
  %s7 = scalar_select 0, %s6, %s4
  loop: start=0, step=1, limit=4
  $region2: #{downblock3dc_forward.7} parent=0 // loop_pre_header
    _
  $region3: #{downblock3dc_forward.7} parent=0 // loop_header
    %s9 = sphi 0, %s13
    %p10 = scmp.ge.s32.totalorder %s9, 4
    %s16 = sphi 0, %s28
    %s17 = sphi 0, %s24
    %s18 = sphi 0, %s16
    %s19 = sphi 0, %s17
    %s20 = sphi 0, %s18
    %s21 = sphi 0, %s19
    %s35 = sphi 0, %s37
    %s38 = sphi 0, %s35
    %s39 = sphi 0, %s38
    %s55 = sphi 0, %s39
    %s61 = sphi 0, %s63
    %s64 = sphi 0, %s61
    %s65 = sphi 0, %s64
    %s81 = sphi 0, %s65
    %s87 = sphi 0, %s89
    %s90 = sphi 0, %s87
    %s91 = sphi 0, %s90
    %s107 = sphi 0, %s91
    %s115 = sphi 0, %s117
    %s118 = sphi 0, %s115
    %s119 = sphi 0, %s118
    %s135 = sphi 0, %s119
  $region4: #{downblock3dc_forward.7} parent=0 // loop_header_branch
    %12 = sbr.rel (%p10) target = $region8
  $region5: #{downblock3dc_forward.7} parent=0 // loop_body
    %s14 = ssub.s32 %s9, 1
    %s15 = ssub.s32 %s9, 2
    %s22 = sadd.s32 1, %s17
    %p23 = scmp.ge.s32.totalorder %s22, 1
    %s24 = scalar_select %p23, 0, %s22
    %s25 = sadd.s32 1, %s16
    %s26 = scalar_select %p23, %s25, %s16
    %p27 = scmp.ge.s32.totalorder %s26, 2
    %s28 = scalar_select %p27, 0, %s26
    %s29 = sadd.s32 %s17, 1
    %s30 = sadd.s32 %s24, 1
    %s31 = ssub.s32 %s16, %s28
    %s32 = ssub.s32 %s29, %s30
    %s33 = sor.u32 %s31, %s32
    %p34 = scmp.eq.s32.totalorder %s33, 0
    %s36 = sadd.s32 %s35, 1
    %s37 = scalar_select %p34, %s35, %s36
    %p40 = pneg %p34
    %p41 = scmp.eq.s32.totalorder %s9, 1
    %p42 = por %p40, %p41
    %p43 = scmp.ne.s32.totalorder %s35, %s38
    %p44 = scmp.eq.s32.totalorder %s9, 0
    %p45 = por %p43, %p44
    %p46 = scmp.ne.s32.totalorder %s35, %s38
    %p47 = scmp.eq.s32.totalorder %s14, 1
    %p48 = por %p46, %p47
    %p49 = scmp.ne.s32.totalorder %s38, %s39
    %p50 = scmp.eq.s32.totalorder %s14, 0
    %p51 = por %p49, %p50
    %p52 = scmp.ne.s32.totalorder %s38, %s39
    %p53 = scmp.eq.s32.totalorder %s15, 1
    %p54 = por %p52, %p53
    %p56 = scmp.ne.s32.totalorder %s39, %s55
    %p57 = scmp.eq.s32.totalorder %s15, 0
    %p58 = por %p56, %p57
    %s59 = ssub.s32 %s16, %s28
    %p60 = scmp.eq.s32.totalorder %s59, 0
    %s62 = sadd.s32 %s61, 1
    %s63 = scalar_select %p60, %s61, %s62
    %p66 = pneg %p60
    %p67 = scmp.eq.s32.totalorder %s9, 1
    %p68 = por %p66, %p67
    %p69 = scmp.ne.s32.totalorder %s61, %s64
    %p70 = scmp.eq.s32.totalorder %s9, 0
    %p71 = por %p69, %p70
    %p72 = scmp.ne.s32.totalorder %s61, %s64
    %p73 = scmp.eq.s32.totalorder %s14, 1
    %p74 = por %p72, %p73
    %p75 = scmp.ne.s32.totalorder %s64, %s65
    %p76 = scmp.eq.s32.totalorder %s14, 0
    %p77 = por %p75, %p76
    %p78 = scmp.ne.s32.totalorder %s64, %s65
    %p79 = scmp.eq.s32.totalorder %s15, 1
    %p80 = por %p78, %p79
    %p82 = scmp.ne.s32.totalorder %s65, %s81
    %p83 = scmp.eq.s32.totalorder %s15, 0
    %p84 = por %p82, %p83
    %s85 = ssub.s32 %s16, %s28
    %p86 = scmp.eq.s32.totalorder %s85, 0
    %s88 = sadd.s32 %s87, 1
    %s89 = scalar_select %p86, %s87, %s88
    %p92 = pneg %p86
    %p93 = scmp.eq.s32.totalorder %s9, 1
    %p94 = por %p92, %p93
    %p95 = scmp.ne.s32.totalorder %s87, %s90
    %p96 = scmp.eq.s32.totalorder %s9, 0
    %p97 = por %p95, %p96
    %p98 = scmp.ne.s32.totalorder %s87, %s90
    %p99 = scmp.eq.s32.totalorder %s14, 1
    %p100 = por %p98, %p99
    %p101 = scmp.ne.s32.totalorder %s90, %s91
    %p102 = scmp.eq.s32.totalorder %s14, 0
    %p103 = por %p101, %p102
    %p104 = scmp.ne.s32.totalorder %s90, %s91
    %p105 = scmp.eq.s32.totalorder %s15, 1
    %p106 = por %p104, %p105
    %p108 = scmp.ne.s32.totalorder %s91, %s107
    %p109 = scmp.eq.s32.totalorder %s15, 0
    %p110 = por %p108, %p109
    %s111 = ssub.s32 %s16, %s28
    %s112 = ssub.s32 %s17, %s24
    %s113 = sor.u32 %s111, %s112
    %p114 = scmp.eq.s32.totalorder %s113, 0
    %s116 = sadd.s32 %s115, 1
    %s117 = scalar_select %p114, %s115, %s116
    %p120 = pneg %p114
    %p121 = scmp.eq.s32.totalorder %s9, 1
    %p122 = por %p120, %p121
    %p123 = scmp.ne.s32.totalorder %s115, %s118
    %p124 = scmp.eq.s32.totalorder %s9, 0
    %p125 = por %p123, %p124
    %p126 = scmp.ne.s32.totalorder %s115, %s118
    %p127 = scmp.eq.s32.totalorder %s14, 1
    %p128 = por %p126, %p127
    %p129 = scmp.ne.s32.totalorder %s118, %s119
    %p130 = scmp.eq.s32.totalorder %s14, 0
    %p131 = por %p129, %p130
    %p132 = scmp.ne.s32.totalorder %s118, %s119
    %p133 = scmp.eq.s32.totalorder %s15, 1
    %p134 = por %p132, %p133
    %p136 = scmp.ne.s32.totalorder %s119, %s135
    %p137 = scmp.eq.s32.totalorder %s15, 0
    %p138 = por %p136, %p137
    %p139 = scmp.le.s32.totalorder 1, %s9
    %p140 = scmp.lt.s32.totalorder %s9, 3
    %p141 = pnand %p139, %p140
    %p142 = pneg %p141
    // Predicated region
    $region9: #{downblock3dc_forward.7} parent=5 // pred_check
      _
    $region10: #{downblock3dc_forward.7} parent=5 // pred_check_branch
      %144 = sbr.rel (%p141) target = $region12
    $region11: #{downblock3dc_forward.7} parent=5 // pred_region
      %s145 = ssub.s32 %s9, 1
    $region12: #{downblock3dc_forward.7} parent=5 // pred_fallthru
      _
    %p146 = scmp.lt.s32.totalorder %s9, 2
    // Predicated region
    $region13: #{downblock3dc_forward.7} parent=5 // pred_check
      %p147 = pneg %p146
    $region14: #{downblock3dc_forward.7} parent=5 // pred_check_branch
      %149 = sbr.rel (%p147) target = $region16
    $region15: #{downblock3dc_forward.7} parent=5 // pred_region
      // Predicated region
      $region17: #{downblock3dc_forward.7} parent=15 // pred_check
        %p150 = pneg %p45
      $region18: #{downblock3dc_forward.7} parent=15 // pred_check_branch
        %152 = sbr.rel (%p150) target = $region20
      $region19: #{downblock3dc_forward.7} parent=15 // pred_region
        %s153 = sadd.s32 %s17, 1
        %s154 = smul.u32 10, %s153
        %p155 = scmp.lt.s32.totalorder %s16, 1
        %s156 = scalar_select %p155, %s16, 1
        %p157 = scmp.lt.s32.totalorder %s154, 29
        %s158 = scalar_select %p157, %s154, 29
        %s159 = smul.addr %s156, 30
        %s160 = sadd.s32 %s158, %s159
        %s161 = smul.addr %s160, 4
        %s162 = scalar_lea.vmem %s0, %s161
        %s163 = sadd.s32 %s17, 1
        %s164 = smul.u32 10, %s163
      $region20: #{downblock3dc_forward.7} parent=15 // pred_fallthru
        _
      // Predicated region
      $region21: #{downblock3dc_forward.7} parent=15 // pred_check
        %p165 = pneg %p71
      $region22: #{downblock3dc_forward.7} parent=15 // pred_check_branch
        %167 = sbr.rel (%p165) target = $region24
      $region23: #{downblock3dc_forward.7} parent=15 // pred_region
        %p168 = scmp.lt.s32.totalorder %s16, 1
        %s169 = scalar_select %p168, %s16, 1
        %s170 = smul.addr %s169, 8
        %s171 = scalar_lea.vmem %s1, %s170
      $region24: #{downblock3dc_forward.7} parent=15 // pred_fallthru
        _
      // Predicated region
      $region25: #{downblock3dc_forward.7} parent=15 // pred_check
        %p172 = pneg %p97
      $region26: #{downblock3dc_forward.7} parent=15 // pred_check_branch
        %174 = sbr.rel (%p172) target = $region28
      $region27: #{downblock3dc_forward.7} parent=15 // pred_region
        %p175 = scmp.lt.s32.totalorder %s16, 1
        %s176 = scalar_select %p175, %s16, 1
        %s177 = smul.addr %s176, 8
        %s178 = scalar_lea.vmem %s2, %s177
      $region28: #{downblock3dc_forward.7} parent=15 // pred_fallthru
        _
    $region16: #{downblock3dc_forward.7} parent=5 // pred_fallthru
      _
    %p179 = scmp.le.s32.totalorder 1, %s9
    %p180 = scmp.lt.s32.totalorder %s9, 3
    %p181 = pnand %p179, %p180
    %p182 = pneg %p181
    // Predicated region
    $region29: #{downblock3dc_forward.7} parent=5 // pred_check
      _
    $region30: #{downblock3dc_forward.7} parent=5 // pred_check_branch
      %184 = sbr.rel (%p181) target = $region32
    $region31: #{downblock3dc_forward.7} parent=5 // pred_region
      %s185 = ssub.s32 %s9, 1
      %s186 = sadd.s32 %s19, 1
      %s187 = smul.u32 10, %s186
      %p188 = scmp.lt.s32.totalorder %s18, 1
      %s189 = scalar_select %p188, %s18, 1
      %p190 = scmp.lt.s32.totalorder %s187, 29
      %s191 = scalar_select %p190, %s187, 29
      %s192 = smul.addr %s189, 30
      %s193 = sadd.s32 %s191, %s192
      %s194 = smul.addr %s193, 4
      %s195 = scalar_lea.vmem %s0, %s194
      %p196 = pneg %p51
      %p197 = pneg %p48
      %p198 = scmp.lt.s32.totalorder %s18, 1
      %s199 = scalar_select %p198, %s18, 1
      %s200 = smul.addr %s199, 8
      %s201 = scalar_lea.vmem %s1, %s200
      %p202 = pneg %p77
      %p203 = pneg %p74
      %p204 = scmp.lt.s32.totalorder %s18, 1
      %s205 = scalar_select %p204, %s18, 1
      %s206 = smul.addr %s205, 8
      %s207 = scalar_lea.vmem %s2, %s206
      %p208 = pneg %p103
      %p209 = pneg %p100
      %p210 = pneg %p131
      %p211 = pneg %p128
      %s212 = smul.u32 10, %s19
      %p213 = scmp.lt.s32.totalorder %s18, 1
      %s214 = scalar_select %p213, %s18, 1
      %p215 = scmp.lt.s32.totalorder %s212, 9
      %s216 = scalar_select %p215, %s212, 9
      %s217 = smul.addr %s214, 10
      %s218 = sadd.s32 %s216, %s217
      %s219 = smul.addr %s218, 8
      %s220 = scalar_lea.vmem %s3, %s219
      %s221 = sadd.s32 %s19, 1
      %s222 = smul.u32 10, %s221
      %p223 = scmp.lt.s32.totalorder %s18, 1
      %s224 = scalar_select %p223, %s18, 1
      %p225 = scmp.lt.s32.totalorder %s222, 29
      %s226 = scalar_select %p225, %s222, 29
      %s227 = smul.addr %s224, 30
      %s228 = sadd.s32 %s226, %s227
      %s229 = smul.addr %s228, 4
      %s230 = scalar_lea.vmem %s0, %s229
      %s231 = sadd.s32 %s19, 1
      %s232 = smul.u32 10, %s231
      %p233 = scmp.lt.s32.totalorder %s18, 1
      %s234 = scalar_select %p233, %s18, 1
      %s235 = smul.addr %s234, 8
      %s236 = scalar_lea.vmem %s1, %s235
      %p237 = scmp.lt.s32.totalorder %s18, 1
      %s238 = scalar_select %p237, %s18, 1
      %s239 = smul.addr %s238, 8
      %s240 = scalar_lea.vmem %s2, %s239
      %s241 = smul.u32 10, %s19
      %p242 = scmp.lt.s32.totalorder %s18, 1
      %s243 = scalar_select %p242, %s18, 1
      %p244 = scmp.lt.s32.totalorder %s241, 9
      %s245 = scalar_select %p244, %s241, 9
      %s246 = smul.addr %s243, 10
      %s247 = sadd.s32 %s245, %s246
      %s248 = smul.addr %s247, 8
      %s249 = scalar_lea.vmem %s3, %s248
      %s250 = smul.u32 10, %s19
      %v251 = vld [vmem:[%s230] sm:$0xff]
      %v252 = vld [vmem:[%s230 + $0x8] sm:$0xff]
      %v253 = vld [vmem:[%s230 + $0x10] sm:$0xff]
      %v254 = vld [vmem:[%s230 + $0x18] sm:$0xff]
      %v255 = vld [vmem:[%s230 + $0x20] sm:$0xff]
      %v256 = vunpack.c.l.bf16 %v251
      %v257 = vunpack.c.h.bf16 %v251
      %v258 = vunpack.c.l.bf16 %v252
      %v259 = vunpack.c.h.bf16 %v252
      %v260 = vunpack.c.l.bf16 %v253
      %v261 = vunpack.c.h.bf16 %v253
      %v262 = vunpack.c.l.bf16 %v254
      %v263 = vunpack.c.h.bf16 %v254
      %v264 = vunpack.c.l.bf16 %v255
      %v265 = vunpack.c.h.bf16 %v255
      %v266 = vld [vmem:[%s236] sm:$0xff]
      %268 = vset.pattern.permute.xlu0 0
      %269 = vperm.xlu0 %268, %v266
      %v270 = vpop.permute.xlu0 %269
      %v272 = vmul.f32 %v256, %v270
      %v273 = vmul.f32 %v257, %v270
      %v274 = vmul.f32 %v258, %v270
      %v275 = vmul.f32 %v259, %v270
      %v276 = vmul.f32 %v260, %v270
      %v277 = vmul.f32 %v261, %v270
      %v278 = vmul.f32 %v262, %v270
      %v279 = vmul.f32 %v263, %v270
      %v280 = vmul.f32 %v264, %v270
      %v281 = vmul.f32 %v265, %v270
      %v282 = vld [vmem:[%s240] sm:$0xff]
      %284 = vset.pattern.permute.xlu0 0
      %285 = vperm.xlu0 %284, %v282
      %v286 = vpop.permute.xlu0 %285
      %v288 = vadd.f32 %v272, %v286
      %v289 = vadd.f32 %v273, %v286
      %v290 = vadd.f32 %v274, %v286
      %v291 = vadd.f32 %v275, %v286
      %v292 = vadd.f32 %v276, %v286
      %v293 = vadd.f32 %v277, %v286
      %v294 = vadd.f32 %v278, %v286
      %v295 = vadd.f32 %v279, %v286
      %v296 = vadd.f32 %v280, %v286
      %v297 = vadd.f32 %v281, %v286
      %vm298 = vcmp.ge.f32.partialorder %v288, 0.0
      %vm299 = vcmp.ge.f32.partialorder %v289, 0.0
      %vm300 = vcmp.ge.f32.partialorder %v290, 0.0
      %vm301 = vcmp.ge.f32.partialorder %v291, 0.0
      %vm302 = vcmp.ge.f32.partialorder %v292, 0.0
      %vm303 = vcmp.ge.f32.partialorder %v293, 0.0
      %vm304 = vcmp.ge.f32.partialorder %v294, 0.0
      %vm305 = vcmp.ge.f32.partialorder %v295, 0.0
      %vm306 = vcmp.ge.f32.partialorder %v296, 0.0
      %vm307 = vcmp.ge.f32.partialorder %v297, 0.0
      %v308 = vmul.f32 %v288, 0.01
      %v309 = vmul.f32 %v289, 0.01
      %v310 = vmul.f32 %v290, 0.01
      %v311 = vmul.f32 %v291, 0.01
      %v312 = vmul.f32 %v292, 0.01
      %v313 = vmul.f32 %v293, 0.01
      %v314 = vmul.f32 %v294, 0.01
      %v315 = vmul.f32 %v295, 0.01
      %v316 = vmul.f32 %v296, 0.01
      %v317 = vmul.f32 %v297, 0.01
      %v318 = vsel %vm298, %v288, %v308
      %v319 = vsel %vm299, %v289, %v309
      %v320 = vsel %vm300, %v290, %v310
      %v321 = vsel %vm301, %v291, %v311
      %v322 = vsel %vm302, %v292, %v312
      %v323 = vsel %vm303, %v293, %v313
      %v324 = vsel %vm304, %v294, %v314
      %v325 = vsel %vm305, %v295, %v315
      %v326 = vsel %vm306, %v296, %v316
      %v327 = vsel %vm307, %v297, %v317
      %328 = vst [vmem:[%s249] sm:$0xff] %v318
      %329 = vst [vmem:[%s249 + $0x8] sm:$0xff] %v319
      %330 = vst [vmem:[%s249 + $0x10] sm:$0xff] %v320
      %331 = vst [vmem:[%s249 + $0x18] sm:$0xff] %v321
      %332 = vst [vmem:[%s249 + $0x20] sm:$0xff] %v322
      %333 = vst [vmem:[%s249 + $0x28] sm:$0xff] %v323
      %334 = vst [vmem:[%s249 + $0x30] sm:$0xff] %v324
      %335 = vst [vmem:[%s249 + $0x38] sm:$0xff] %v325
      %336 = vst [vmem:[%s249 + $0x40] sm:$0xff] %v326
      %337 = vst [vmem:[%s249 + $0x48] sm:$0xff] %v327
      %s338 = smul.u32 10, %s19
      %p339 = scmp.lt.s32.totalorder %s18, 1
      %s340 = scalar_select %p339, %s18, 1
      %p341 = scmp.lt.s32.totalorder %s338, 9
      %s342 = scalar_select %p341, %s338, 9
      %s343 = smul.addr %s340, 10
      %s344 = sadd.s32 %s342, %s343
      %s345 = smul.addr %s344, 8
      %s346 = scalar_lea.vmem %s3, %s345
      // Predicated region
      $region33: #{downblock3dc_forward.7} parent=31 // pred_check
        %p347 = pneg %p128
      $region34: #{downblock3dc_forward.7} parent=31 // pred_check_branch
        %349 = sbr.rel (%p347) target = $region36
      $region35: #{downblock3dc_forward.7} parent=31 // pred_region
        %s350 = smul.u32 10, %s19
      $region36: #{downblock3dc_forward.7} parent=31 // pred_fallthru
        _
    $region32: #{downblock3dc_forward.7} parent=5 // pred_fallthru
      _
    %p351 = scmp.le.s32.totalorder 2, %s9
    // Predicated region
    $region37: #{downblock3dc_forward.7} parent=5 // pred_check
      %p352 = pneg %p351
    $region38: #{downblock3dc_forward.7} parent=5 // pred_check_branch
      %354 = sbr.rel (%p352) target = $region40
    $region39: #{downblock3dc_forward.7} parent=5 // pred_region
      %s355 = ssub.s32 %s9, 2
      // Predicated region
      $region41: #{downblock3dc_forward.7} parent=39 // pred_check
        %p356 = pneg %p134
      $region42: #{downblock3dc_forward.7} parent=39 // pred_check_branch
        %358 = sbr.rel (%p356) target = $region44
      $region43: #{downblock3dc_forward.7} parent=39 // pred_region
        %s359 = smul.u32 10, %s21
        %p360 = scmp.lt.s32.totalorder %s20, 1
        %s361 = scalar_select %p360, %s20, 1
        %p362 = scmp.lt.s32.totalorder %s359, 9
        %s363 = scalar_select %p362, %s359, 9
        %s364 = smul.addr %s361, 10
        %s365 = sadd.s32 %s363, %s364
        %s366 = smul.addr %s365, 8
        %s367 = scalar_lea.vmem %s3, %s366
      $region44: #{downblock3dc_forward.7} parent=39 // pred_fallthru
        _
    $region40: #{downblock3dc_forward.7} parent=5 // pred_fallthru
      _
  $region6: #{downblock3dc_forward.7} parent=0 // loop_footer
    %s13 = sadd.s32 1, %s9
  $region7: #{downblock3dc_forward.7} parent=0 // loop_footer_branch
    %8 = sbr.rel target = $region3
  $region8: #{downblock3dc_forward.7} parent=0 // loop_exit
    _

// kernel: downblock3dc_forward.4
$region0: #{downblock3dc_forward.4}
  #allocation0 [shape = 'u32[]', space=smem, size = 0x4, offset = 0x4, fixed_abs, tag = 'smem constant byte address 0x4 - core index']
  #allocation1 [shape = 'u32[72,128]{1,0:T(1,128)}', space=vmem, size = 0x9000, scoped, tag = 'internal scratch']
  #allocation2 [shape = 'f32[8,2]{1,0:T(8,128)}', space=vmem, size = 0x1000, scoped, tag = 'scratch operand']
  %s0 = inlined_call_operand.vmem [shape: bf16[2,8,2560], index: 0, kind: input, shape index: {}, may-alias: {0,1}]
  %s1 = inlined_call_operand.vmem [shape: bf16[2,8,2560], index: 1, kind: input, shape index: {}, may-alias: {0,1}]
  %s2 = inlined_call_operand.vmem [shape: bf16[27,8,8], index: 2, kind: input, shape index: {}]
  %s3 = inlined_call_operand.vmem [shape: f32[1,1280], index: 3, kind: input, shape index: {}]
  %s4 = inlined_call_operand.vmem [shape: bf16[2,8,3840], index: 4, kind: output, shape index: {0}]
  %s5 = inlined_call_operand.vmem [shape: f32[2,8,2], index: 5, kind: output, shape index: {1}]
  %6 = xla_tuple %s4, %s5
  %s7 = sld [smem:[#allocation0]]
  $region65: #{downblock3dc_forward.4} parent=0
    _
  %s9 = ssub.s32 1, %s7
  %s10 = scalar_select 0, %s9, %s7
  loop: start=0, step=1, limit=4
  $region2: #{downblock3dc_forward.4} parent=0 // loop_pre_header
    _
  $region3: #{downblock3dc_forward.4} parent=0 // loop_header
    %s12 = sphi 0, %s16
    %p13 = scmp.ge.s32.totalorder %s12, 4
    %s19 = sphi 0, %s31
    %s20 = sphi 0, %s27
    %s21 = sphi 0, %s19
    %s22 = sphi 0, %s20
    %s23 = sphi 0, %s21
    %s24 = sphi 0, %s22
    %s36 = sphi 0, %s38
    %s39 = sphi 0, %s36
    %s40 = sphi 0, %s39
    %s56 = sphi 0, %s40
    %s66 = sphi 0, %s68
    %s69 = sphi 0, %s66
    %s70 = sphi 0, %s69
    %s86 = sphi 0, %s70
    %s90 = sphi 0, %s90
    %s92 = sphi 0, %s90
    %s93 = sphi 0, %s92
    %s107 = sphi 0, %s93
    %s113 = sphi 0, %s115
    %s116 = sphi 0, %s113
    %s117 = sphi 0, %s116
    %s133 = sphi 0, %s117
    %s143 = sphi 0, %s145
    %s146 = sphi 0, %s143
    %s147 = sphi 0, %s146
    %s163 = sphi 0, %s147
    %s169 = sphi 0, %s171
    %s172 = sphi 0, %s169
    %s173 = sphi 0, %s172
    %s189 = sphi 0, %s173
  $region4: #{downblock3dc_forward.4} parent=0 // loop_header_branch
    %15 = sbr.rel (%p13) target = $region8
  $region5: #{downblock3dc_forward.4} parent=0 // loop_body
    %s17 = ssub.s32 %s12, 1
    %s18 = ssub.s32 %s12, 2
    %s25 = sadd.s32 1, %s20
    %p26 = scmp.ge.s32.totalorder %s25, 1
    %s27 = scalar_select %p26, 0, %s25
    %s28 = sadd.s32 1, %s19
    %s29 = scalar_select %p26, %s28, %s19
    %p30 = scmp.ge.s32.totalorder %s29, 2
    %s31 = scalar_select %p30, 0, %s29
    %s32 = ssub.s32 %s19, %s31
    %s33 = ssub.s32 %s20, %s27
    %s34 = sor.u32 %s32, %s33
    %p35 = scmp.eq.s32.totalorder %s34, 0
    %s37 = sadd.s32 %s36, 1
    %s38 = scalar_select %p35, %s36, %s37
    %p41 = pneg %p35
    %p42 = scmp.eq.s32.totalorder %s12, 1
    %p43 = por %p41, %p42
    %p44 = scmp.ne.s32.totalorder %s36, %s39
    %p45 = scmp.eq.s32.totalorder %s12, 0
    %p46 = por %p44, %p45
    %p47 = scmp.ne.s32.totalorder %s36, %s39
    %p48 = scmp.eq.s32.totalorder %s17, 1
    %p49 = por %p47, %p48
    %p50 = scmp.ne.s32.totalorder %s39, %s40
    %p51 = scmp.eq.s32.totalorder %s17, 0
    %p52 = por %p50, %p51
    %p53 = scmp.ne.s32.totalorder %s39, %s40
    %p54 = scmp.eq.s32.totalorder %s18, 1
    %p55 = por %p53, %p54
    %p57 = scmp.ne.s32.totalorder %s40, %s56
    %p58 = scmp.eq.s32.totalorder %s18, 0
    %p59 = por %p57, %p58
    %s60 = sadd.s32 %s20, 1
    %s61 = sadd.s32 %s27, 1
    %s62 = ssub.s32 %s19, %s31
    %s63 = ssub.s32 %s60, %s61
    %s64 = sor.u32 %s62, %s63
    %p65 = scmp.eq.s32.totalorder %s64, 0
    %s67 = sadd.s32 %s66, 1
    %s68 = scalar_select %p65, %s66, %s67
    %p71 = pneg %p65
    %p72 = scmp.eq.s32.totalorder %s12, 1
    %p73 = por %p71, %p72
    %p74 = scmp.ne.s32.totalorder %s66, %s69
    %p75 = scmp.eq.s32.totalorder %s12, 0
    %p76 = por %p74, %p75
    %p77 = scmp.ne.s32.totalorder %s66, %s69
    %p78 = scmp.eq.s32.totalorder %s17, 1
    %p79 = por %p77, %p78
    %p80 = scmp.ne.s32.totalorder %s69, %s70
    %p81 = scmp.eq.s32.totalorder %s17, 0
    %p82 = por %p80, %p81
    %p83 = scmp.ne.s32.totalorder %s69, %s70
    %p84 = scmp.eq.s32.totalorder %s18, 1
    %p85 = por %p83, %p84
    %p87 = scmp.ne.s32.totalorder %s70, %s86
    %p88 = scmp.eq.s32.totalorder %s18, 0
    %p89 = por %p87, %p88
    %s91 = sadd.s32 %s90, 1
    %p94 = scmp.eq.s32.totalorder %s12, 1
    %p95 = scmp.ne.s32.totalorder %s90, %s92
    %p96 = scmp.eq.s32.totalorder %s12, 0
    %p97 = por %p95, %p96
    %p98 = scmp.ne.s32.totalorder %s90, %s92
    %p99 = scmp.eq.s32.totalorder %s17, 1
    %p100 = por %p98, %p99
    %p101 = scmp.ne.s32.totalorder %s92, %s93
    %p102 = scmp.eq.s32.totalorder %s17, 0
    %p103 = por %p101, %p102
    %p104 = scmp.ne.s32.totalorder %s92, %s93
    %p105 = scmp.eq.s32.totalorder %s18, 1
    %p106 = por %p104, %p105
    %p108 = scmp.ne.s32.totalorder %s93, %s107
    %p109 = scmp.eq.s32.totalorder %s18, 0
    %p110 = por %p108, %p109
    %s111 = ssub.s32 %s20, %s27
    %p112 = scmp.eq.s32.totalorder %s111, 0
    %s114 = sadd.s32 %s113, 1
    %s115 = scalar_select %p112, %s113, %s114
    %p118 = pneg %p112
    %p119 = scmp.eq.s32.totalorder %s12, 1
    %p120 = por %p118, %p119
    %p121 = scmp.ne.s32.totalorder %s113, %s116
    %p122 = scmp.eq.s32.totalorder %s12, 0
    %p123 = por %p121, %p122
    %p124 = scmp.ne.s32.totalorder %s113, %s116
    %p125 = scmp.eq.s32.totalorder %s17, 1
    %p126 = por %p124, %p125
    %p127 = scmp.ne.s32.totalorder %s116, %s117
    %p128 = scmp.eq.s32.totalorder %s17, 0
    %p129 = por %p127, %p128
    %p130 = scmp.ne.s32.totalorder %s116, %s117
    %p131 = scmp.eq.s32.totalorder %s18, 1
    %p132 = por %p130, %p131
    %p134 = scmp.ne.s32.totalorder %s117, %s133
    %p135 = scmp.eq.s32.totalorder %s18, 0
    %p136 = por %p134, %p135
    %s137 = sadd.s32 %s20, 1
    %s138 = sadd.s32 %s27, 1
    %s139 = ssub.s32 %s19, %s31
    %s140 = ssub.s32 %s137, %s138
    %s141 = sor.u32 %s139, %s140
    %p142 = scmp.eq.s32.totalorder %s141, 0
    %s144 = sadd.s32 %s143, 1
    %s145 = scalar_select %p142, %s143, %s144
    %p148 = pneg %p142
    %p149 = scmp.eq.s32.totalorder %s12, 1
    %p150 = por %p148, %p149
    %p151 = scmp.ne.s32.totalorder %s143, %s146
    %p152 = scmp.eq.s32.totalorder %s12, 0
    %p153 = por %p151, %p152
    %p154 = scmp.ne.s32.totalorder %s143, %s146
    %p155 = scmp.eq.s32.totalorder %s17, 1
    %p156 = por %p154, %p155
    %p157 = scmp.ne.s32.totalorder %s146, %s147
    %p158 = scmp.eq.s32.totalorder %s17, 0
    %p159 = por %p157, %p158
    %p160 = scmp.ne.s32.totalorder %s146, %s147
    %p161 = scmp.eq.s32.totalorder %s18, 1
    %p162 = por %p160, %p161
    %p164 = scmp.ne.s32.totalorder %s147, %s163
    %p165 = scmp.eq.s32.totalorder %s18, 0
    %p166 = por %p164, %p165
    %s167 = ssub.s32 %s19, %s31
    %p168 = scmp.eq.s32.totalorder %s167, 0
    %s170 = sadd.s32 %s169, 1
    %s171 = scalar_select %p168, %s169, %s170
    %p174 = pneg %p168
    %p175 = scmp.eq.s32.totalorder %s12, 1
    %p176 = por %p174, %p175
    %p177 = scmp.ne.s32.totalorder %s169, %s172
    %p178 = scmp.eq.s32.totalorder %s12, 0
    %p179 = por %p177, %p178
    %p180 = scmp.ne.s32.totalorder %s169, %s172
    %p181 = scmp.eq.s32.totalorder %s17, 1
    %p182 = por %p180, %p181
    %p183 = scmp.ne.s32.totalorder %s172, %s173
    %p184 = scmp.eq.s32.totalorder %s17, 0
    %p185 = por %p183, %p184
    %p186 = scmp.ne.s32.totalorder %s172, %s173
    %p187 = scmp.eq.s32.totalorder %s18, 1
    %p188 = por %p186, %p187
    %p190 = scmp.ne.s32.totalorder %s173, %s189
    %p191 = scmp.eq.s32.totalorder %s18, 0
    %p192 = por %p190, %p191
    %p193 = scmp.le.s32.totalorder 1, %s12
    %p194 = scmp.lt.s32.totalorder %s12, 3
    %p195 = pnand %p193, %p194
    %p196 = pneg %p195
    // Predicated region
    $region9: #{downblock3dc_forward.4} parent=5 // pred_check
      _
    $region10: #{downblock3dc_forward.4} parent=5 // pred_check_branch
      %198 = sbr.rel (%p195) target = $region12
    $region11: #{downblock3dc_forward.4} parent=5 // pred_region
      %s199 = ssub.s32 %s12, 1
      // Predicated region
      $region13: #{downblock3dc_forward.4} parent=11 // pred_check
        %p200 = pneg %p103
      $region14: #{downblock3dc_forward.4} parent=11 // pred_check_branch
        %202 = sbr.rel (%p200) target = $region16
      $region15: #{downblock3dc_forward.4} parent=11 // pred_region
        _
      $region16: #{downblock3dc_forward.4} parent=11 // pred_fallthru
        _
      // Predicated region
      $region17: #{downblock3dc_forward.4} parent=11 // pred_check
        %p203 = pneg %p129
      $region18: #{downblock3dc_forward.4} parent=11 // pred_check_branch
        %205 = sbr.rel (%p203) target = $region20
      $region19: #{downblock3dc_forward.4} parent=11 // pred_region
        %s206 = smul.u32 10, %s22
        %p207 = scmp.lt.s32.totalorder %s206, 9
        %s208 = scalar_select %p207, %s206, 9
        %s209 = scalar_lea.vmem %s3, %s208
        %s210 = smul.u32 10, %s22
      $region20: #{downblock3dc_forward.4} parent=11 // pred_fallthru
        _
    $region12: #{downblock3dc_forward.4} parent=5 // pred_fallthru
      _
    %p211 = scmp.lt.s32.totalorder %s12, 2
    // Predicated region
    $region21: #{downblock3dc_forward.4} parent=5 // pred_check
      %p212 = pneg %p211
    $region22: #{downblock3dc_forward.4} parent=5 // pred_check_branch
      %214 = sbr.rel (%p212) target = $region24
    $region23: #{downblock3dc_forward.4} parent=5 // pred_region
      // Predicated region
      $region25: #{downblock3dc_forward.4} parent=23 // pred_check
        %p215 = pneg %p46
      $region26: #{downblock3dc_forward.4} parent=23 // pred_check_branch
        %217 = sbr.rel (%p215) target = $region28
      $region27: #{downblock3dc_forward.4} parent=23 // pred_region
        %s218 = smul.u32 10, %s20
        %p219 = scmp.lt.s32.totalorder %s19, 1
        %s220 = scalar_select %p219, %s19, 1
        %p221 = scmp.lt.s32.totalorder %s218, 19
        %s222 = scalar_select %p221, %s218, 19
        %s223 = smul.addr %s220, 20
        %s224 = sadd.s32 %s222, %s223
        %s225 = smul.addr %s224, 4
        %s226 = scalar_lea.vmem %s0, %s225
        %s227 = smul.u32 10, %s20
      $region28: #{downblock3dc_forward.4} parent=23 // pred_fallthru
        _
      // Predicated region
      $region29: #{downblock3dc_forward.4} parent=23 // pred_check
        %p228 = pneg %p76
      $region30: #{downblock3dc_forward.4} parent=23 // pred_check_branch
        %230 = sbr.rel (%p228) target = $region32
      $region31: #{downblock3dc_forward.4} parent=23 // pred_region
        %s231 = sadd.s32 %s20, 1
        %s232 = smul.u32 10, %s231
        %p233 = scmp.lt.s32.totalorder %s19, 1
        %s234 = scalar_select %p233, %s19, 1
        %p235 = scmp.lt.s32.totalorder %s232, 19
        %s236 = scalar_select %p235, %s232, 19
        %s237 = smul.addr %s234, 20
        %s238 = sadd.s32 %s236, %s237
        %s239 = smul.addr %s238, 4
        %s240 = scalar_lea.vmem %s1, %s239
        %s241 = sadd.s32 %s20, 1
        %s242 = smul.u32 10, %s241
      $region32: #{downblock3dc_forward.4} parent=23 // pred_fallthru
        _
    $region24: #{downblock3dc_forward.4} parent=5 // pred_fallthru
      _
    %p243 = scmp.le.s32.totalorder 1, %s12
    %p244 = scmp.lt.s32.totalorder %s12, 3
    %p245 = pnand %p243, %p244
    %p246 = pneg %p245
    // Predicated region
    $region33: #{downblock3dc_forward.4} parent=5 // pred_check
      _
    $region34: #{downblock3dc_forward.4} parent=5 // pred_check_branch
      %248 = sbr.rel (%p245) target = $region36
    $region35: #{downblock3dc_forward.4} parent=5 // pred_region
      %s249 = ssub.s32 %s12, 1
      %s250 = smul.u32 10, %s22
      %p251 = scmp.lt.s32.totalorder %s21, 1
      %s252 = scalar_select %p251, %s21, 1
      %p253 = scmp.lt.s32.totalorder %s250, 19
      %s254 = scalar_select %p253, %s250, 19
      %s255 = smul.addr %s252, 20
      %s256 = sadd.s32 %s254, %s255
      %s257 = smul.addr %s256, 4
      %s258 = scalar_lea.vmem %s0, %s257
      %p259 = pneg %p52
      %p260 = pneg %p49
      %s261 = sadd.s32 %s22, 1
      %s262 = smul.u32 10, %s261
      %p263 = scmp.lt.s32.totalorder %s21, 1
      %s264 = scalar_select %p263, %s21, 1
      %p265 = scmp.lt.s32.totalorder %s262, 19
      %s266 = scalar_select %p265, %s262, 19
      %s267 = smul.addr %s264, 20
      %s268 = sadd.s32 %s266, %s267
      %s269 = smul.addr %s268, 4
      %s270 = scalar_lea.vmem %s1, %s269
      %p271 = pneg %p82
      %p272 = pneg %p79
      %p273 = pneg %p103
      %p274 = pneg %p100
      %s275 = smul.u32 10, %s22
      %p276 = scmp.lt.s32.totalorder %s275, 9
      %s277 = scalar_select %p276, %s275, 9
      %s278 = scalar_lea.vmem %s3, %s277
      %p279 = pneg %p129
      %p280 = pneg %p126
      %p281 = pneg %p159
      %p282 = pneg %p156
      %s283 = sadd.s32 %s22, 1
      %s284 = smul.u32 10, %s283
      %p285 = scmp.lt.s32.totalorder %s21, 1
      %s286 = scalar_select %p285, %s21, 1
      %p287 = scmp.lt.s32.totalorder %s284, 29
      %s288 = scalar_select %p287, %s284, 29
      %s289 = smul.addr %s286, 30
      %s290 = sadd.s32 %s288, %s289
      %s291 = smul.addr %s290, 4
      %s292 = scalar_lea.vmem %s4, %s291
      %p293 = pneg %p185
      %p294 = pneg %p182
      %p295 = scmp.lt.s32.totalorder %s21, 1
      %s296 = scalar_select %p295, %s21, 1
      %s297 = smul.addr %s296, 8
      %s298 = scalar_lea.vmem %s5, %s297
      %s299 = smul.u32 10, %s22
      %p300 = scmp.lt.s32.totalorder %s21, 1
      %s301 = scalar_select %p300, %s21, 1
      %p302 = scmp.lt.s32.totalorder %s299, 19
      %s303 = scalar_select %p302, %s299, 19
      %s304 = smul.addr %s301, 20
      %s305 = sadd.s32 %s303, %s304
      %s306 = smul.addr %s305, 4
      %s307 = scalar_lea.vmem %s0, %s306
      %s308 = smul.u32 10, %s22
      %s309 = sadd.s32 %s22, 1
      %s310 = smul.u32 10, %s309
      %p311 = scmp.lt.s32.totalorder %s21, 1
      %s312 = scalar_select %p311, %s21, 1
      %p313 = scmp.lt.s32.totalorder %s310, 19
      %s314 = scalar_select %p313, %s310, 19
      %s315 = smul.addr %s312, 20
      %s316 = sadd.s32 %s314, %s315
      %s317 = smul.addr %s316, 4
      %s318 = scalar_lea.vmem %s1, %s317
      %s319 = sadd.s32 %s22, 1
      %s320 = smul.u32 10, %s319
      %s321 = smul.u32 10, %s22
      %p322 = scmp.lt.s32.totalorder %s321, 9
      %s323 = scalar_select %p322, %s321, 9
      %s324 = scalar_lea.vmem %s3, %s323
      %s325 = smul.u32 10, %s22
      %s326 = sadd.s32 %s22, 1
      %s327 = smul.u32 10, %s326
      %p328 = scmp.lt.s32.totalorder %s21, 1
      %s329 = scalar_select %p328, %s21, 1
      %p330 = scmp.lt.s32.totalorder %s327, 29
      %s331 = scalar_select %p330, %s327, 29
      %s332 = smul.addr %s329, 30
      %s333 = sadd.s32 %s331, %s332
      %s334 = smul.addr %s333, 4
      %s335 = scalar_lea.vmem %s4, %s334
      %s336 = sadd.s32 %s22, 1
      %s337 = smul.u32 10, %s336
      %p338 = scmp.lt.s32.totalorder %s21, 1
      %s339 = scalar_select %p338, %s21, 1
      %s340 = smul.addr %s339, 8
      %s341 = scalar_lea.vmem %s5, %s340
      %p343 = scmp.eq.s32.totalorder %s22, 0
      // Predicated region
      $region37: #{downblock3dc_forward.4} parent=35 // pred_check
        %p344 = pneg %p343
      $region38: #{downblock3dc_forward.4} parent=35 // pred_check_branch
        %346 = sbr.rel (%p344) target = $region40
      $region39: #{downblock3dc_forward.4} parent=35 // pred_region
        %vm347 = vcmask 15360
        %348 = vst.msk [vmem:[#allocation2] sm:$0xff] %vm347, 0.0
      $region40: #{downblock3dc_forward.4} parent=35 // pred_fallthru
        _
      %v349 = vld [vmem:[%s307] sm:$0xff]
      %v350 = vld [vmem:[%s307 + $0x8] sm:$0xff]
      %v351 = vld [vmem:[%s307 + $0x10] sm:$0xff]
      %v352 = vld [vmem:[%s307 + $0x18] sm:$0xff]
      %v353 = vld [vmem:[%s307 + $0x20] sm:$0xff]
      %v354 = vld [vmem:[%s318] sm:$0xff]
      %v360 = vunpack.c.l.b16 %v349
      %v361 = vunpack.c.h.b16 %v349
      %v362 = vunpack.c.l.b16 %v350
      %v363 = vunpack.c.h.b16 %v350
      %v364 = vunpack.c.l.b16 %v351
      %v365 = vunpack.c.h.b16 %v351
      %v366 = vunpack.c.l.b16 %v352
      %v367 = vunpack.c.h.b16 %v352
      %v368 = vunpack.c.l.b16 %v353
      %v369 = vunpack.c.h.b16 %v353
      %v370 = vpack.c.b16 %v360, %v360
      %v371 = vpack.c.b16 %v361, %v361
      %v372 = vpack.c.b16 %v362, %v362
      %v373 = vpack.c.b16 %v363, %v363
      %v374 = vpack.c.b16 %v364, %v364
      %v375 = vpack.c.b16 %v365, %v365
      %v376 = vpack.c.b16 %v366, %v366
      %v377 = vpack.c.b16 %v367, %v367
      %v378 = vpack.c.b16 %v368, %v368
      %v379 = vpack.c.b16 %v369, %v369
      %v381 = vunpack.c.l.b16 %v354
      %v382 = vunpack.c.h.b16 %v354
      %v383 = vpack.c.b16 %v381, %v381
      %v384 = vpack.c.b16 %v382, %v382
      %v385 = vld [vmem:[%s2] sm:$0xf]
      %s386 = scalar_lea.vmem %s2, 4
      %v387 = vld [vmem:[%s386] sm:$0xf]
      %388 = vrot.lane.b32.xlu0 %v370, 127
      %v389 = vpop.permute.xlu0 %388
      %390 = vrot.lane.b32.xlu0 %v371, 127
      %v391 = vpop.permute.xlu0 %390
      %392 = vrot.lane.b32.xlu0 %v372, 127
      %v393 = vpop.permute.xlu0 %392
      %394 = vrot.lane.b32.xlu0 %v373, 127
      %v395 = vpop.permute.xlu0 %394
      %396 = vrot.lane.b32.xlu0 %v374, 127
      %v397 = vpop.permute.xlu0 %396
      %398 = vrot.lane.b32.xlu0 %v375, 127
      %v399 = vpop.permute.xlu0 %398
      %400 = vrot.lane.b32.xlu0 %v376, 127
      %v401 = vpop.permute.xlu0 %400
      %402 = vrot.lane.b32.xlu0 %v377, 127
      %v403 = vpop.permute.xlu0 %402
      %404 = vrot.lane.b32.xlu0 %v378, 127
      %v405 = vpop.permute.xlu0 %404
      %406 = vrot.lane.b32.xlu0 %v379, 127
      %v407 = vpop.permute.xlu0 %406
      %408 = vrot.lane.b32.xlu0 %v383, 127
      %v409 = vpop.permute.xlu0 %408
      %vm410 = vcmask 1039360
      %v411 = vsel %vm410, %v389, %v391
      %v412 = vsel %vm410, %v391, %v393
      %v413 = vsel %vm410, %v393, %v395
      %v414 = vsel %vm410, %v395, %v397
      %v415 = vsel %vm410, %v397, %v399
      %v416 = vsel %vm410, %v399, %v401
      %v417 = vsel %vm410, %v401, %v403
      %v418 = vsel %vm410, %v403, %v405
      %v419 = vsel %vm410, %v405, %v407
      %v420 = vsel %vm410, %v407, %v409
      %vm421 = vcmask 64512
      %v423 = vsel %vm421, %v387, 0
      %vm425 = vcmask 1043456
      %v427 = vsel %vm425, %v411, 0
      %v430 = vsel %vm425, %v412, 0
      %v433 = vsel %vm425, %v413, 0
      %v436 = vsel %vm425, %v414, 0
      %v439 = vsel %vm425, %v415, 0
      %v442 = vsel %vm425, %v416, 0
      %v445 = vsel %vm425, %v417, 0
      %v448 = vsel %vm425, %v418, 0
      %v451 = vsel %vm425, %v419, 0
      %v454 = vsel %vm425, %v420, 0
      %456 = vmatpush.bf16.msra.mxu0 0
      %457 = vmatpush.bf16.msra.mxu0 0
      %458 = vmatpush.bf16.msra.mxu0 0
      %459 = vmatpush.bf16.msra.mxu0 0
      %460 = vmatpush.bf16.msra.mxu0 0
      %461 = vmatpush.bf16.msra.mxu0 0
      %462 = vmatpush.bf16.msra.mxu0 0
      %463 = vmatpush.bf16.msra.mxu0 %v427
      %464 = vmatmul.bf16.gmra.mxu0 %v423
      %v465 = vpop.f32.mrf.mxu0
      %v466 = vadd.f32 0.0, %v465
      %v467 = vpop.f32.mrf.mxu0
      %468 = vdwg.mxu0
      %469 = vmatpush.bf16.msra.mxu0 0
      %470 = vmatpush.bf16.msra.mxu0 0
      %471 = vmatpush.bf16.msra.mxu0 0
      %472 = vmatpush.bf16.msra.mxu0 0
      %473 = vmatpush.bf16.msra.mxu0 0
      %474 = vmatpush.bf16.msra.mxu0 0
      %475 = vmatpush.bf16.msra.mxu0 0
      %476 = vmatpush.bf16.msra.mxu0 %v430
      %477 = vmatmul.bf16.gmra.mxu0 %v423
      %v478 = vpop.f32.mrf.mxu0
      %v479 = vadd.f32 0.0, %v478
      %v480 = vpop.f32.mrf.mxu0
      %481 = vdwg.mxu0
      %482 = vmatpush.bf16.msra.mxu0 0
      %483 = vmatpush.bf16.msra.mxu0 0
      %484 = vmatpush.bf16.msra.mxu0 0
      %485 = vmatpush.bf16.msra.mxu0 0
      %486 = vmatpush.bf16.msra.mxu0 0
      %487 = vmatpush.bf16.msra.mxu0 0
      %488 = vmatpush.bf16.msra.mxu0 0
      %489 = vmatpush.bf16.msra.mxu0 %v433
      %490 = vmatmul.bf16.gmra.mxu0 %v423
      %v491 = vpop.f32.mrf.mxu0
      %v492 = vadd.f32 0.0, %v491
      %v493 = vpop.f32.mrf.mxu0
      %494 = vdwg.mxu0
      %495 = vmatpush.bf16.msra.mxu0 0
      %496 = vmatpush.bf16.msra.mxu0 0
      %497 = vmatpush.bf16.msra.mxu0 0
      %498 = vmatpush.bf16.msra.mxu0 0
      %499 = vmatpush.bf16.msra.mxu0 0
      %500 = vmatpush.bf16.msra.mxu0 0
      %501 = vmatpush.bf16.msra.mxu0 0
      %502 = vmatpush.bf16.msra.mxu0 %v436
      %503 = vmatmul.bf16.gmra.mxu0 %v423
      %v504 = vpop.f32.mrf.mxu0
      %v505 = vadd.f32 0.0, %v504
      %v506 = vpop.f32.mrf.mxu0
      %507 = vdwg.mxu0
      %508 = vmatpush.bf16.msra.mxu0 0
      %509 = vmatpush.bf16.msra.mxu0 0
      %510 = vmatpush.bf16.msra.mxu0 0
      %511 = vmatpush.bf16.msra.mxu0 0
      %512 = vmatpush.bf16.msra.mxu0 0
      %513 = vmatpush.bf16.msra.mxu0 0
      %514 = vmatpush.bf16.msra.mxu0 0
      %515 = vmatpush.bf16.msra.mxu0 %v439
      %516 = vmatmul.bf16.gmra.mxu0 %v423
      %v517 = vpop.f32.mrf.mxu0
      %v518 = vadd.f32 0.0, %v517
      %v519 = vpop.f32.mrf.mxu0
      %520 = vdwg.mxu0
      %521 = vmatpush.bf16.msra.mxu0 0
      %522 = vmatpush.bf16.msra.mxu0 0
      %523 = vmatpush.bf16.msra.mxu0 0
      %524 = vmatpush.bf16.msra.mxu0 0
      %525 = vmatpush.bf16.msra.mxu0 0
      %526 = vmatpush.bf16.msra.mxu0 0
      %527 = vmatpush.bf16.msra.mxu0 0
      %528 = vmatpush.bf16.msra.mxu0 %v442
      %529 = vmatmul.bf16.gmra.mxu0 %v423
      %v530 = vpop.f32.mrf.mxu0
      %v531 = vadd.f32 0.0, %v530
      %v532 = vpop.f32.mrf.mxu0
      %533 = vdwg.mxu0
      %534 = vmatpush.bf16.msra.mxu0 0
      %535 = vmatpush.bf16.msra.mxu0 0
      %536 = vmatpush.bf16.msra.mxu0 0
      %537 = vmatpush.bf16.msra.mxu0 0
      %538 = vmatpush.bf16.msra.mxu0 0
      %539 = vmatpush.bf16.msra.mxu0 0
      %540 = vmatpush.bf16.msra.mxu0 0
      %541 = vmatpush.bf16.msra.mxu0 %v445
      %542 = vmatmul.bf16.gmra.mxu0 %v423
      %v543 = vpop.f32.mrf.mxu0
      %v544 = vadd.f32 0.0, %v543
      %v545 = vpop.f32.mrf.mxu0
      %546 = vdwg.mxu0
      %547 = vmatpush.bf16.msra.mxu0 0
      %548 = vmatpush.bf16.msra.mxu0 0
      %549 = vmatpush.bf16.msra.mxu0 0
      %550 = vmatpush.bf16.msra.mxu0 0
      %551 = vmatpush.bf16.msra.mxu0 0
      %552 = vmatpush.bf16.msra.mxu0 0
      %553 = vmatpush.bf16.msra.mxu0 0
      %554 = vmatpush.bf16.msra.mxu0 %v448
      %555 = vmatmul.bf16.gmra.mxu0 %v423
      %v556 = vpop.f32.mrf.mxu0
      %v557 = vadd.f32 0.0, %v556
      %v558 = vpop.f32.mrf.mxu0
      %559 = vdwg.mxu0
      %560 = vmatpush.bf16.msra.mxu0 0
      %561 = vmatpush.bf16.msra.mxu0 0
      %562 = vmatpush.bf16.msra.mxu0 0
      %563 = vmatpush.bf16.msra.mxu0 0
      %564 = vmatpush.bf16.msra.mxu0 0
      %565 = vmatpush.bf16.msra.mxu0 0
      %566 = vmatpush.bf16.msra.mxu0 0
      %567 = vmatpush.bf16.msra.mxu0 %v451
      %568 = vmatmul.bf16.gmra.mxu0 %v423
      %v569 = vpop.f32.mrf.mxu0
      %v570 = vadd.f32 0.0, %v569
      %v571 = vpop.f32.mrf.mxu0
      %572 = vdwg.mxu0
      %573 = vmatpush.bf16.msra.mxu0 0
      %574 = vmatpush.bf16.msra.mxu0 0
      %575 = vmatpush.bf16.msra.mxu0 0
      %576 = vmatpush.bf16.msra.mxu0 0
      %577 = vmatpush.bf16.msra.mxu0 0
      %578 = vmatpush.bf16.msra.mxu0 0
      %579 = vmatpush.bf16.msra.mxu0 0
      %580 = vmatpush.bf16.msra.mxu0 %v454
      %581 = vmatmul.bf16.gmra.mxu0 %v423
      %v582 = vpop.f32.mrf.mxu0
      %v583 = vadd.f32 0.0, %v582
      %v584 = vpop.f32.mrf.mxu0
      %585 = vdwg.mxu0
      %v587 = vsel %vm421, %v385, 0
      %v590 = vsel %vm425, %v370, 0
      %v593 = vsel %vm425, %v371, 0
      %v596 = vsel %vm425, %v372, 0
      %v599 = vsel %vm425, %v373, 0
      %v602 = vsel %vm425, %v374, 0
      %v605 = vsel %vm425, %v375, 0
      %v608 = vsel %vm425, %v376, 0
      %v611 = vsel %vm425, %v377, 0
      %v614 = vsel %vm425, %v378, 0
      %v617 = vsel %vm425, %v379, 0
      %619 = vmatpush.bf16.msra.mxu0 0
      %620 = vmatpush.bf16.msra.mxu0 0
      %621 = vmatpush.bf16.msra.mxu0 0
      %622 = vmatpush.bf16.msra.mxu0 0
      %623 = vmatpush.bf16.msra.mxu0 0
      %624 = vmatpush.bf16.msra.mxu0 0
      %625 = vmatpush.bf16.msra.mxu0 0
      %626 = vmatpush.bf16.msra.mxu0 %v590
      %627 = vmatmul.bf16.gmra.mxu0 %v587
      %v628 = vpop.f32.mrf.mxu0
      %v629 = vadd.f32 %v466, %v628
      %v630 = vpop.f32.mrf.mxu0
      %631 = vdwg.mxu0
      %632 = vmatpush.bf16.msra.mxu0 0
      %633 = vmatpush.bf16.msra.mxu0 0
      %634 = vmatpush.bf16.msra.mxu0 0
      %635 = vmatpush.bf16.msra.mxu0 0
      %636 = vmatpush.bf16.msra.mxu0 0
      %637 = vmatpush.bf16.msra.mxu0 0
      %638 = vmatpush.bf16.msra.mxu0 0
      %639 = vmatpush.bf16.msra.mxu0 %v593
      %640 = vmatmul.bf16.gmra.mxu0 %v587
      %v641 = vpop.f32.mrf.mxu0
      %v642 = vadd.f32 %v479, %v641
      %v643 = vpop.f32.mrf.mxu0
      %644 = vdwg.mxu0
      %645 = vmatpush.bf16.msra.mxu0 0
      %646 = vmatpush.bf16.msra.mxu0 0
      %647 = vmatpush.bf16.msra.mxu0 0
      %648 = vmatpush.bf16.msra.mxu0 0
      %649 = vmatpush.bf16.msra.mxu0 0
      %650 = vmatpush.bf16.msra.mxu0 0
      %651 = vmatpush.bf16.msra.mxu0 0
      %652 = vmatpush.bf16.msra.mxu0 %v596
      %653 = vmatmul.bf16.gmra.mxu0 %v587
      %v654 = vpop.f32.mrf.mxu0
      %v655 = vadd.f32 %v492, %v654
      %v656 = vpop.f32.mrf.mxu0
      %657 = vdwg.mxu0
      %658 = vmatpush.bf16.msra.mxu0 0
      %659 = vmatpush.bf16.msra.mxu0 0
      %660 = vmatpush.bf16.msra.mxu0 0
      %661 = vmatpush.bf16.msra.mxu0 0
      %662 = vmatpush.bf16.msra.mxu0 0
      %663 = vmatpush.bf16.msra.mxu0 0
      %664 = vmatpush.bf16.msra.mxu0 0
      %665 = vmatpush.bf16.msra.mxu0 %v599
      %666 = vmatmul.bf16.gmra.mxu0 %v587
      %v667 = vpop.f32.mrf.mxu0
      %v668 = vadd.f32 %v505, %v667
      %v669 = vpop.f32.mrf.mxu0
      %670 = vdwg.mxu0
      %671 = vmatpush.bf16.msra.mxu0 0
      %672 = vmatpush.bf16.msra.mxu0 0
      %673 = vmatpush.bf16.msra.mxu0 0
      %674 = vmatpush.bf16.msra.mxu0 0
      %675 = vmatpush.bf16.msra.mxu0 0
      %676 = vmatpush.bf16.msra.mxu0 0
      %677 = vmatpush.bf16.msra.mxu0 0
      %678 = vmatpush.bf16.msra.mxu0 %v602
      %679 = vmatmul.bf16.gmra.mxu0 %v587
      %v680 = vpop.f32.mrf.mxu0
      %v681 = vadd.f32 %v518, %v680
      %v682 = vpop.f32.mrf.mxu0
      %683 = vdwg.mxu0
      %684 = vmatpush.bf16.msra.mxu0 0
      %685 = vmatpush.bf16.msra.mxu0 0
      %686 = vmatpush.bf16.msra.mxu0 0
      %687 = vmatpush.bf16.msra.mxu0 0
      %688 = vmatpush.bf16.msra.mxu0 0
      %689 = vmatpush.bf16.msra.mxu0 0
      %690 = vmatpush.bf16.msra.mxu0 0
      %691 = vmatpush.bf16.msra.mxu0 %v605
      %692 = vmatmul.bf16.gmra.mxu0 %v587
      %v693 = vpop.f32.mrf.mxu0
      %v694 = vadd.f32 %v531, %v693
      %v695 = vpop.f32.mrf.mxu0
      %696 = vdwg.mxu0
      %697 = vmatpush.bf16.msra.mxu0 0
      %698 = vmatpush.bf16.msra.mxu0 0
      %699 = vmatpush.bf16.msra.mxu0 0
      %700 = vmatpush.bf16.msra.mxu0 0
      %701 = vmatpush.bf16.msra.mxu0 0
      %702 = vmatpush.bf16.msra.mxu0 0
      %703 = vmatpush.bf16.msra.mxu0 0
      %704 = vmatpush.bf16.msra.mxu0 %v608
      %705 = vmatmul.bf16.gmra.mxu0 %v587
      %v706 = vpop.f32.mrf.mxu0
      %v707 = vadd.f32 %v544, %v706
      %v708 = vpop.f32.mrf.mxu0
      %709 = vdwg.mxu0
      %710 = vmatpush.bf16.msra.mxu0 0
      %711 = vmatpush.bf16.msra.mxu0 0
      %712 = vmatpush.bf16.msra.mxu0 0
      %713 = vmatpush.bf16.msra.mxu0 0
      %714 = vmatpush.bf16.msra.mxu0 0
      %715 = vmatpush.bf16.msra.mxu0 0
      %716 = vmatpush.bf16.msra.mxu0 0
      %717 = vmatpush.bf16.msra.mxu0 %v611
      %718 = vmatmul.bf16.gmra.mxu0 %v587
      %v719 = vpop.f32.mrf.mxu0
      %v720 = vadd.f32 %v557, %v719
      %v721 = vpop.f32.mrf.mxu0
      %722 = vdwg.mxu0
      %723 = vmatpush.bf16.msra.mxu0 0
      %724 = vmatpush.bf16.msra.mxu0 0
      %725 = vmatpush.bf16.msra.mxu0 0
      %726 = vmatpush.bf16.msra.mxu0 0
      %727 = vmatpush.bf16.msra.mxu0 0
      %728 = vmatpush.bf16.msra.mxu0 0
      %729 = vmatpush.bf16.msra.mxu0 0
      %730 = vmatpush.bf16.msra.mxu0 %v614
      %731 = vmatmul.bf16.gmra.mxu0 %v587
      %v732 = vpop.f32.mrf.mxu0
      %v733 = vadd.f32 %v570, %v732
      %v734 = vpop.f32.mrf.mxu0
      %735 = vdwg.mxu0
      %736 = vmatpush.bf16.msra.mxu0 0
      %737 = vmatpush.bf16.msra.mxu0 0
      %738 = vmatpush.bf16.msra.mxu0 0
      %739 = vmatpush.bf16.msra.mxu0 0
      %740 = vmatpush.bf16.msra.mxu0 0
      %741 = vmatpush.bf16.msra.mxu0 0
      %742 = vmatpush.bf16.msra.mxu0 0
      %743 = vmatpush.bf16.msra.mxu0 %v617
      %744 = vmatmul.bf16.gmra.mxu0 %v587
      %v745 = vpop.f32.mrf.mxu0
      %v746 = vadd.f32 %v583, %v745
      %v747 = vpop.f32.mrf.mxu0
      %748 = vdwg.mxu0
      %s749 = scalar_lea.vmem %s2, 8
      %v750 = vld [vmem:[%s749] sm:$0xf]
      %751 = vrot.lane.b32.xlu0 %v370, 126
      %v752 = vpop.permute.xlu0 %751
      %753 = vrot.lane.b32.xlu0 %v371, 126
      %v754 = vpop.permute.xlu0 %753
      %755 = vrot.lane.b32.xlu0 %v372, 126
      %v756 = vpop.permute.xlu0 %755
      %757 = vrot.lane.b32.xlu0 %v373, 126
      %v758 = vpop.permute.xlu0 %757
      %759 = vrot.lane.b32.xlu0 %v374, 126
      %v760 = vpop.permute.xlu0 %759
      %761 = vrot.lane.b32.xlu0 %v375, 126
      %v762 = vpop.permute.xlu0 %761
      %763 = vrot.lane.b32.xlu0 %v376, 126
      %v764 = vpop.permute.xlu0 %763
      %765 = vrot.lane.b32.xlu0 %v377, 126
      %v766 = vpop.permute.xlu0 %765
      %767 = vrot.lane.b32.xlu0 %v378, 126
      %v768 = vpop.permute.xlu0 %767
      %769 = vrot.lane.b32.xlu0 %v379, 126
      %v770 = vpop.permute.xlu0 %769
      %771 = vrot.lane.b32.xlu0 %v383, 126
      %v772 = vpop.permute.xlu0 %771
      %vm773 = vcmask 1031168
      %v774 = vsel %vm773, %v752, %v754
      %v775 = vsel %vm773, %v754, %v756
      %v776 = vsel %vm773, %v756, %v758
      %v777 = vsel %vm773, %v758, %v760
      %v778 = vsel %vm773, %v760, %v762
      %v779 = vsel %vm773, %v762, %v764
      %v780 = vsel %vm773, %v764, %v766
      %v781 = vsel %vm773, %v766, %v768
      %v782 = vsel %vm773, %v768, %v770
      %v783 = vsel %vm773, %v770, %v772
      %v785 = vsel %vm421, %v750, 0
      %v788 = vsel %vm425, %v774, 0
      %v791 = vsel %vm425, %v775, 0
      %v794 = vsel %vm425, %v776, 0
      %v797 = vsel %vm425, %v777, 0
      %v800 = vsel %vm425, %v778, 0
      %v803 = vsel %vm425, %v779, 0
      %v806 = vsel %vm425, %v780, 0
      %v809 = vsel %vm425, %v781, 0
      %v812 = vsel %vm425, %v782, 0
      %v815 = vsel %vm425, %v783, 0
      %817 = vmatpush.bf16.msra.mxu0 0
      %818 = vmatpush.bf16.msra.mxu0 0
      %819 = vmatpush.bf16.msra.mxu0 0
      %820 = vmatpush.bf16.msra.mxu0 0
      %821 = vmatpush.bf16.msra.mxu0 0
      %822 = vmatpush.bf16.msra.mxu0 0
      %823 = vmatpush.bf16.msra.mxu0 0
      %824 = vmatpush.bf16.msra.mxu0 %v788
      %825 = vmatmul.bf16.gmra.mxu0 %v785
      %v826 = vpop.f32.mrf.mxu0
      %v827 = vadd.f32 0.0, %v826
      %v828 = vpop.f32.mrf.mxu0
      %829 = vdwg.mxu0
      %830 = vmatpush.bf16.msra.mxu0 0
      %831 = vmatpush.bf16.msra.mxu0 0
      %832 = vmatpush.bf16.msra.mxu0 0
      %833 = vmatpush.bf16.msra.mxu0 0
      %834 = vmatpush.bf16.msra.mxu0 0
      %835 = vmatpush.bf16.msra.mxu0 0
      %836 = vmatpush.bf16.msra.mxu0 0
      %837 = vmatpush.bf16.msra.mxu0 %v791
      %838 = vmatmul.bf16.gmra.mxu0 %v785
      %v839 = vpop.f32.mrf.mxu0
      %v840 = vadd.f32 0.0, %v839
      %v841 = vpop.f32.mrf.mxu0
      %842 = vdwg.mxu0
      %843 = vmatpush.bf16.msra.mxu0 0
      %844 = vmatpush.bf16.msra.mxu0 0
      %845 = vmatpush.bf16.msra.mxu0 0
      %846 = vmatpush.bf16.msra.mxu0 0
      %847 = vmatpush.bf16.msra.mxu0 0
      %848 = vmatpush.bf16.msra.mxu0 0
      %849 = vmatpush.bf16.msra.mxu0 0
      %850 = vmatpush.bf16.msra.mxu0 %v794
      %851 = vmatmul.bf16.gmra.mxu0 %v785
      %v852 = vpop.f32.mrf.mxu0
      %v853 = vadd.f32 0.0, %v852
      %v854 = vpop.f32.mrf.mxu0
      %855 = vdwg.mxu0
      %856 = vmatpush.bf16.msra.mxu0 0
      %857 = vmatpush.bf16.msra.mxu0 0
      %858 = vmatpush.bf16.msra.mxu0 0
      %859 = vmatpush.bf16.msra.mxu0 0
      %860 = vmatpush.bf16.msra.mxu0 0
      %861 = vmatpush.bf16.msra.mxu0 0
      %862 = vmatpush.bf16.msra.mxu0 0
      %863 = vmatpush.bf16.msra.mxu0 %v797
      %864 = vmatmul.bf16.gmra.mxu0 %v785
      %v865 = vpop.f32.mrf.mxu0
      %v866 = vadd.f32 0.0, %v865
      %v867 = vpop.f32.mrf.mxu0
      %868 = vdwg.mxu0
      %869 = vmatpush.bf16.msra.mxu0 0
      %870 = vmatpush.bf16.msra.mxu0 0
      %871 = vmatpush.bf16.msra.mxu0 0
      %872 = vmatpush.bf16.msra.mxu0 0
      %873 = vmatpush.bf16.msra.mxu0 0
      %874 = vmatpush.bf16.msra.mxu0 0
      %875 = vmatpush.bf16.msra.mxu0 0
      %876 = vmatpush.bf16.msra.mxu0 %v800
      %877 = vmatmul.bf16.gmra.mxu0 %v785
      %v878 = vpop.f32.mrf.mxu0
      %v879 = vadd.f32 0.0, %v878
      %v880 = vpop.f32.mrf.mxu0
      %881 = vdwg.mxu0
      %882 = vmatpush.bf16.msra.mxu0 0
      %883 = vmatpush.bf16.msra.mxu0 0
      %884 = vmatpush.bf16.msra.mxu0 0
      %885 = vmatpush.bf16.msra.mxu0 0
      %886 = vmatpush.bf16.msra.mxu0 0
      %887 = vmatpush.bf16.msra.mxu0 0
      %888 = vmatpush.bf16.msra.mxu0 0
      %889 = vmatpush.bf16.msra.mxu0 %v803
      %890 = vmatmul.bf16.gmra.mxu0 %v785
      %v891 = vpop.f32.mrf.mxu0
      %v892 = vadd.f32 0.0, %v891
      %v893 = vpop.f32.mrf.mxu0
      %894 = vdwg.mxu0
      %895 = vmatpush.bf16.msra.mxu0 0
      %896 = vmatpush.bf16.msra.mxu0 0
      %897 = vmatpush.bf16.msra.mxu0 0
      %898 = vmatpush.bf16.msra.mxu0 0
      %899 = vmatpush.bf16.msra.mxu0 0
      %900 = vmatpush.bf16.msra.mxu0 0
      %901 = vmatpush.bf16.msra.mxu0 0
      %902 = vmatpush.bf16.msra.mxu0 %v806
      %903 = vmatmul.bf16.gmra.mxu0 %v785
      %v904 = vpop.f32.mrf.mxu0
      %v905 = vadd.f32 0.0, %v904
      %v906 = vpop.f32.mrf.mxu0
      %907 = vdwg.mxu0
      %908 = vmatpush.bf16.msra.mxu0 0
      %909 = vmatpush.bf16.msra.mxu0 0
      %910 = vmatpush.bf16.msra.mxu0 0
      %911 = vmatpush.bf16.msra.mxu0 0
      %912 = vmatpush.bf16.msra.mxu0 0
      %913 = vmatpush.bf16.msra.mxu0 0
      %914 = vmatpush.bf16.msra.mxu0 0
      %915 = vmatpush.bf16.msra.mxu0 %v809
      %916 = vmatmul.bf16.gmra.mxu0 %v785
      %v917 = vpop.f32.mrf.mxu0
      %v918 = vadd.f32 0.0, %v917
      %v919 = vpop.f32.mrf.mxu0
      %920 = vdwg.mxu0
      %921 = vmatpush.bf16.msra.mxu0 0
      %922 = vmatpush.bf16.msra.mxu0 0
      %923 = vmatpush.bf16.msra.mxu0 0
      %924 = vmatpush.bf16.msra.mxu0 0
      %925 = vmatpush.bf16.msra.mxu0 0
      %926 = vmatpush.bf16.msra.mxu0 0
      %927 = vmatpush.bf16.msra.mxu0 0
      %928 = vmatpush.bf16.msra.mxu0 %v812
      %929 = vmatmul.bf16.gmra.mxu0 %v785
      %v930 = vpop.f32.mrf.mxu0
      %v931 = vadd.f32 0.0, %v930
      %v932 = vpop.f32.mrf.mxu0
      %933 = vdwg.mxu0
      %934 = vmatpush.bf16.msra.mxu0 0
      %935 = vmatpush.bf16.msra.mxu0 0
      %936 = vmatpush.bf16.msra.mxu0 0
      %937 = vmatpush.bf16.msra.mxu0 0
      %938 = vmatpush.bf16.msra.mxu0 0
      %939 = vmatpush.bf16.msra.mxu0 0
      %940 = vmatpush.bf16.msra.mxu0 0
      %941 = vmatpush.bf16.msra.mxu0 %v815
      %942 = vmatmul.bf16.gmra.mxu0 %v785
      %v943 = vpop.f32.mrf.mxu0
      %v944 = vadd.f32 0.0, %v943
      %v945 = vpop.f32.mrf.mxu0
      %946 = vdwg.mxu0
      %v947 = vadd.f32 %v629, %v827
      %v948 = vadd.f32 %v642, %v840
      %v949 = vadd.f32 %v655, %v853
      %v950 = vadd.f32 %v668, %v866
      %v951 = vadd.f32 %v681, %v879
      %v952 = vadd.f32 %v694, %v892
      %v953 = vadd.f32 %v707, %v905
      %v954 = vadd.f32 %v720, %v918
      %v955 = vadd.f32 %v733, %v931
      %v956 = vadd.f32 %v746, %v944
      %s957 = scalar_lea.vmem %s2, 12
      %v958 = vld [vmem:[%s957] sm:$0xf]
      %959 = vrot.lane.b32.xlu0 %v370, 118
      %v960 = vpop.permute.xlu0 %959
      %961 = vrot.lane.b32.xlu0 %v371, 118
      %v962 = vpop.permute.xlu0 %961
      %963 = vrot.lane.b32.xlu0 %v372, 118
      %v964 = vpop.permute.xlu0 %963
      %965 = vrot.lane.b32.xlu0 %v373, 118
      %v966 = vpop.permute.xlu0 %965
      %967 = vrot.lane.b32.xlu0 %v374, 118
      %v968 = vpop.permute.xlu0 %967
      %969 = vrot.lane.b32.xlu0 %v375, 118
      %v970 = vpop.permute.xlu0 %969
      %971 = vrot.lane.b32.xlu0 %v376, 118
      %v972 = vpop.permute.xlu0 %971
      %973 = vrot.lane.b32.xlu0 %v377, 118
      %v974 = vpop.permute.xlu0 %973
      %975 = vrot.lane.b32.xlu0 %v378, 118
      %v976 = vpop.permute.xlu0 %975
      %977 = vrot.lane.b32.xlu0 %v379, 118
      %v978 = vpop.permute.xlu0 %977
      %979 = vrot.lane.b32.xlu0 %v383, 118
      %v980 = vpop.permute.xlu0 %979
      %vm981 = vcmask 965632
      %v982 = vsel %vm981, %v960, %v962
      %v983 = vsel %vm981, %v962, %v964
      %v984 = vsel %vm981, %v964, %v966
      %v985 = vsel %vm981, %v966, %v968
      %v986 = vsel %vm981, %v968, %v970
      %v987 = vsel %vm981, %v970, %v972
      %v988 = vsel %vm981, %v972, %v974
      %v989 = vsel %vm981, %v974, %v976
      %v990 = vsel %vm981, %v976, %v978
      %v991 = vsel %vm981, %v978, %v980
      %v993 = vsel %vm421, %v958, 0
      %v996 = vsel %vm425, %v982, 0
      %v999 = vsel %vm425, %v983, 0
      %v1002 = vsel %vm425, %v984, 0
      %v1005 = vsel %vm425, %v985, 0
      %v1008 = vsel %vm425, %v986, 0
      %v1011 = vsel %vm425, %v987, 0
      %v1014 = vsel %vm425, %v988, 0
      %v1017 = vsel %vm425, %v989, 0
      %v1020 = vsel %vm425, %v990, 0
      %v1023 = vsel %vm425, %v991, 0
      %1025 = vmatpush.bf16.msra.mxu0 0
      %1026 = vmatpush.bf16.msra.mxu0 0
      %1027 = vmatpush.bf16.msra.mxu0 0
      %1028 = vmatpush.bf16.msra.mxu0 0
      %1029 = vmatpush.bf16.msra.mxu0 0
      %1030 = vmatpush.bf16.msra.mxu0 0
      %1031 = vmatpush.bf16.msra.mxu0 0
      %1032 = vmatpush.bf16.msra.mxu0 %v996
      %1033 = vmatmul.bf16.gmra.mxu0 %v993
      %v1034 = vpop.f32.mrf.mxu0
      %v1035 = vadd.f32 0.0, %v1034
      %v1036 = vpop.f32.mrf.mxu0
      %1037 = vdwg.mxu0
      %1038 = vmatpush.bf16.msra.mxu0 0
      %1039 = vmatpush.bf16.msra.mxu0 0
      %1040 = vmatpush.bf16.msra.mxu0 0
      %1041 = vmatpush.bf16.msra.mxu0 0
      %1042 = vmatpush.bf16.msra.mxu0 0
      %1043 = vmatpush.bf16.msra.mxu0 0
      %1044 = vmatpush.bf16.msra.mxu0 0
      %1045 = vmatpush.bf16.msra.mxu0 %v999
      %1046 = vmatmul.bf16.gmra.mxu0 %v993
      %v1047 = vpop.f32.mrf.mxu0
      %v1048 = vadd.f32 0.0, %v1047
      %v1049 = vpop.f32.mrf.mxu0
      %1050 = vdwg.mxu0
      %1051 = vmatpush.bf16.msra.mxu0 0
      %1052 = vmatpush.bf16.msra.mxu0 0
      %1053 = vmatpush.bf16.msra.mxu0 0
      %1054 = vmatpush.bf16.msra.mxu0 0
      %1055 = vmatpush.bf16.msra.mxu0 0
      %1056 = vmatpush.bf16.msra.mxu0 0
      %1057 = vmatpush.bf16.msra.mxu0 0
      %1058 = vmatpush.bf16.msra.mxu0 %v1002
      %1059 = vmatmul.bf16.gmra.mxu0 %v993
      %v1060 = vpop.f32.mrf.mxu0
      %v1061 = vadd.f32 0.0, %v1060
      %v1062 = vpop.f32.mrf.mxu0
      %1063 = vdwg.mxu0
      %1064 = vmatpush.bf16.msra.mxu0 0
      %1065 = vmatpush.bf16.msra.mxu0 0
      %1066 = vmatpush.bf16.msra.mxu0 0
      %1067 = vmatpush.bf16.msra.mxu0 0
      %1068 = vmatpush.bf16.msra.mxu0 0
      %1069 = vmatpush.bf16.msra.mxu0 0
      %1070 = vmatpush.bf16.msra.mxu0 0
      %1071 = vmatpush.bf16.msra.mxu0 %v1005
      %1072 = vmatmul.bf16.gmra.mxu0 %v993
      %v1073 = vpop.f32.mrf.mxu0
      %v1074 = vadd.f32 0.0, %v1073
      %v1075 = vpop.f32.mrf.mxu0
      %1076 = vdwg.mxu0
      %1077 = vmatpush.bf16.msra.mxu0 0
      %1078 = vmatpush.bf16.msra.mxu0 0
      %1079 = vmatpush.bf16.msra.mxu0 0
      %1080 = vmatpush.bf16.msra.mxu0 0
      %1081 = vmatpush.bf16.msra.mxu0 0
      %1082 = vmatpush.bf16.msra.mxu0 0
      %1083 = vmatpush.bf16.msra.mxu0 0
      %1084 = vmatpush.bf16.msra.mxu0 %v1008
      %1085 = vmatmul.bf16.gmra.mxu0 %v993
      %v1086 = vpop.f32.mrf.mxu0
      %v1087 = vadd.f32 0.0, %v1086
      %v1088 = vpop.f32.mrf.mxu0
      %1089 = vdwg.mxu0
      %1090 = vmatpush.bf16.msra.mxu0 0
      %1091 = vmatpush.bf16.msra.mxu0 0
      %1092 = vmatpush.bf16.msra.mxu0 0
      %1093 = vmatpush.bf16.msra.mxu0 0
      %1094 = vmatpush.bf16.msra.mxu0 0
      %1095 = vmatpush.bf16.msra.mxu0 0
      %1096 = vmatpush.bf16.msra.mxu0 0
      %1097 = vmatpush.bf16.msra.mxu0 %v1011
      %1098 = vmatmul.bf16.gmra.mxu0 %v993
      %v1099 = vpop.f32.mrf.mxu0
      %v1100 = vadd.f32 0.0, %v1099
      %v1101 = vpop.f32.mrf.mxu0
      %1102 = vdwg.mxu0
      %1103 = vmatpush.bf16.msra.mxu0 0
      %1104 = vmatpush.bf16.msra.mxu0 0
      %1105 = vmatpush.bf16.msra.mxu0 0
      %1106 = vmatpush.bf16.msra.mxu0 0
      %1107 = vmatpush.bf16.msra.mxu0 0
      %1108 = vmatpush.bf16.msra.mxu0 0
      %1109 = vmatpush.bf16.msra.mxu0 0
      %1110 = vmatpush.bf16.msra.mxu0 %v1014
      %1111 = vmatmul.bf16.gmra.mxu0 %v993
      %v1112 = vpop.f32.mrf.mxu0
      %v1113 = vadd.f32 0.0, %v1112
      %v1114 = vpop.f32.mrf.mxu0
      %1115 = vdwg.mxu0
      %1116 = vmatpush.bf16.msra.mxu0 0
      %1117 = vmatpush.bf16.msra.mxu0 0
      %1118 = vmatpush.bf16.msra.mxu0 0
      %1119 = vmatpush.bf16.msra.mxu0 0
      %1120 = vmatpush.bf16.msra.mxu0 0
      %1121 = vmatpush.bf16.msra.mxu0 0
      %1122 = vmatpush.bf16.msra.mxu0 0
      %1123 = vmatpush.bf16.msra.mxu0 %v1017
      %1124 = vmatmul.bf16.gmra.mxu0 %v993
      %v1125 = vpop.f32.mrf.mxu0
      %v1126 = vadd.f32 0.0, %v1125
      %v1127 = vpop.f32.mrf.mxu0
      %1128 = vdwg.mxu0
      %1129 = vmatpush.bf16.msra.mxu0 0
      %1130 = vmatpush.bf16.msra.mxu0 0
      %1131 = vmatpush.bf16.msra.mxu0 0
      %1132 = vmatpush.bf16.msra.mxu0 0
      %1133 = vmatpush.bf16.msra.mxu0 0
      %1134 = vmatpush.bf16.msra.mxu0 0
      %1135 = vmatpush.bf16.msra.mxu0 0
      %1136 = vmatpush.bf16.msra.mxu0 %v1020
      %1137 = vmatmul.bf16.gmra.mxu0 %v993
      %v1138 = vpop.f32.mrf.mxu0
      %v1139 = vadd.f32 0.0, %v1138
      %v1140 = vpop.f32.mrf.mxu0
      %1141 = vdwg.mxu0
      %1142 = vmatpush.bf16.msra.mxu0 0
      %1143 = vmatpush.bf16.msra.mxu0 0
      %1144 = vmatpush.bf16.msra.mxu0 0
      %1145 = vmatpush.bf16.msra.mxu0 0
      %1146 = vmatpush.bf16.msra.mxu0 0
      %1147 = vmatpush.bf16.msra.mxu0 0
      %1148 = vmatpush.bf16.msra.mxu0 0
      %1149 = vmatpush.bf16.msra.mxu0 %v1023
      %1150 = vmatmul.bf16.gmra.mxu0 %v993
      %v1151 = vpop.f32.mrf.mxu0
      %v1152 = vadd.f32 0.0, %v1151
      %v1153 = vpop.f32.mrf.mxu0
      %1154 = vdwg.mxu0
      %v1155 = vadd.f32 %v947, %v1035
      %v1156 = vadd.f32 %v948, %v1048
      %v1157 = vadd.f32 %v949, %v1061
      %v1158 = vadd.f32 %v950, %v1074
      %v1159 = vadd.f32 %v951, %v1087
      %v1160 = vadd.f32 %v952, %v1100
      %v1161 = vadd.f32 %v953, %v1113
      %v1162 = vadd.f32 %v954, %v1126
      %v1163 = vadd.f32 %v955, %v1139
      %v1164 = vadd.f32 %v956, %v1152
      %s1165 = scalar_lea.vmem %s2, 16
      %v1166 = vld [vmem:[%s1165] sm:$0xf]
      %1167 = vrot.lane.b32.xlu0 %v370, 117
      %v1168 = vpop.permute.xlu0 %1167
      %1169 = vrot.lane.b32.xlu0 %v371, 117
      %v1170 = vpop.permute.xlu0 %1169
      %1171 = vrot.lane.b32.xlu0 %v372, 117
      %v1172 = vpop.permute.xlu0 %1171
      %1173 = vrot.lane.b32.xlu0 %v373, 117
      %v1174 = vpop.permute.xlu0 %1173
      %1175 = vrot.lane.b32.xlu0 %v374, 117
      %v1176 = vpop.permute.xlu0 %1175
      %1177 = vrot.lane.b32.xlu0 %v375, 117
      %v1178 = vpop.permute.xlu0 %1177
      %1179 = vrot.lane.b32.xlu0 %v376, 117
      %v1180 = vpop.permute.xlu0 %1179
      %1181 = vrot.lane.b32.xlu0 %v377, 117
      %v1182 = vpop.permute.xlu0 %1181
      %1183 = vrot.lane.b32.xlu0 %v378, 117
      %v1184 = vpop.permute.xlu0 %1183
      %1185 = vrot.lane.b32.xlu0 %v379, 117
      %v1186 = vpop.permute.xlu0 %1185
      %1187 = vrot.lane.b32.xlu0 %v383, 117
      %v1188 = vpop.permute.xlu0 %1187
      %vm1189 = vcmask 957440
      %v1190 = vsel %vm1189, %v1168, %v1170
      %v1191 = vsel %vm1189, %v1170, %v1172
      %v1192 = vsel %vm1189, %v1172, %v1174
      %v1193 = vsel %vm1189, %v1174, %v1176
      %v1194 = vsel %vm1189, %v1176, %v1178
      %v1195 = vsel %vm1189, %v1178, %v1180
      %v1196 = vsel %vm1189, %v1180, %v1182
      %v1197 = vsel %vm1189, %v1182, %v1184
      %v1198 = vsel %vm1189, %v1184, %v1186
      %v1199 = vsel %vm1189, %v1186, %v1188
      %v1201 = vsel %vm421, %v1166, 0
      %v1204 = vsel %vm425, %v1190, 0
      %v1207 = vsel %vm425, %v1191, 0
      %v1210 = vsel %vm425, %v1192, 0
      %v1213 = vsel %vm425, %v1193, 0
      %v1216 = vsel %vm425, %v1194, 0
      %v1219 = vsel %vm425, %v1195, 0
      %v1222 = vsel %vm425, %v1196, 0
      %v1225 = vsel %vm425, %v1197, 0
      %v1228 = vsel %vm425, %v1198, 0
      %v1231 = vsel %vm425, %v1199, 0
      %1233 = vmatpush.bf16.msra.mxu0 0
      %1234 = vmatpush.bf16.msra.mxu0 0
      %1235 = vmatpush.bf16.msra.mxu0 0
      %1236 = vmatpush.bf16.msra.mxu0 0
      %1237 = vmatpush.bf16.msra.mxu0 0
      %1238 = vmatpush.bf16.msra.mxu0 0
      %1239 = vmatpush.bf16.msra.mxu0 0
      %1240 = vmatpush.bf16.msra.mxu0 %v1204
      %1241 = vmatmul.bf16.gmra.mxu0 %v1201
      %v1242 = vpop.f32.mrf.mxu0
      %v1243 = vadd.f32 0.0, %v1242
      %v1244 = vpop.f32.mrf.mxu0
      %1245 = vdwg.mxu0
      %1246 = vmatpush.bf16.msra.mxu0 0
      %1247 = vmatpush.bf16.msra.mxu0 0
      %1248 = vmatpush.bf16.msra.mxu0 0
      %1249 = vmatpush.bf16.msra.mxu0 0
      %1250 = vmatpush.bf16.msra.mxu0 0
      %1251 = vmatpush.bf16.msra.mxu0 0
      %1252 = vmatpush.bf16.msra.mxu0 0
      %1253 = vmatpush.bf16.msra.mxu0 %v1207
      %1254 = vmatmul.bf16.gmra.mxu0 %v1201
      %v1255 = vpop.f32.mrf.mxu0
      %v1256 = vadd.f32 0.0, %v1255
      %v1257 = vpop.f32.mrf.mxu0
      %1258 = vdwg.mxu0
      %1259 = vmatpush.bf16.msra.mxu0 0
      %1260 = vmatpush.bf16.msra.mxu0 0
      %1261 = vmatpush.bf16.msra.mxu0 0
      %1262 = vmatpush.bf16.msra.mxu0 0
      %1263 = vmatpush.bf16.msra.mxu0 0
      %1264 = vmatpush.bf16.msra.mxu0 0
      %1265 = vmatpush.bf16.msra.mxu0 0
      %1266 = vmatpush.bf16.msra.mxu0 %v1210
      %1267 = vmatmul.bf16.gmra.mxu0 %v1201
      %v1268 = vpop.f32.mrf.mxu0
      %v1269 = vadd.f32 0.0, %v1268
      %v1270 = vpop.f32.mrf.mxu0
      %1271 = vdwg.mxu0
      %1272 = vmatpush.bf16.msra.mxu0 0
      %1273 = vmatpush.bf16.msra.mxu0 0
      %1274 = vmatpush.bf16.msra.mxu0 0
      %1275 = vmatpush.bf16.msra.mxu0 0
      %1276 = vmatpush.bf16.msra.mxu0 0
      %1277 = vmatpush.bf16.msra.mxu0 0
      %1278 = vmatpush.bf16.msra.mxu0 0
      %1279 = vmatpush.bf16.msra.mxu0 %v1213
      %1280 = vmatmul.bf16.gmra.mxu0 %v1201
      %v1281 = vpop.f32.mrf.mxu0
      %v1282 = vadd.f32 0.0, %v1281
      %v1283 = vpop.f32.mrf.mxu0
      %1284 = vdwg.mxu0
      %1285 = vmatpush.bf16.msra.mxu0 0
      %1286 = vmatpush.bf16.msra.mxu0 0
      %1287 = vmatpush.bf16.msra.mxu0 0
      %1288 = vmatpush.bf16.msra.mxu0 0
      %1289 = vmatpush.bf16.msra.mxu0 0
      %1290 = vmatpush.bf16.msra.mxu0 0
      %1291 = vmatpush.bf16.msra.mxu0 0
      %1292 = vmatpush.bf16.msra.mxu0 %v1216
      %1293 = vmatmul.bf16.gmra.mxu0 %v1201
      %v1294 = vpop.f32.mrf.mxu0
      %v1295 = vadd.f32 0.0, %v1294
      %v1296 = vpop.f32.mrf.mxu0
      %1297 = vdwg.mxu0
      %1298 = vmatpush.bf16.msra.mxu0 0
      %1299 = vmatpush.bf16.msra.mxu0 0
      %1300 = vmatpush.bf16.msra.mxu0 0
      %1301 = vmatpush.bf16.msra.mxu0 0
      %1302 = vmatpush.bf16.msra.mxu0 0
      %1303 = vmatpush.bf16.msra.mxu0 0
      %1304 = vmatpush.bf16.msra.mxu0 0
      %1305 = vmatpush.bf16.msra.mxu0 %v1219
      %1306 = vmatmul.bf16.gmra.mxu0 %v1201
      %v1307 = vpop.f32.mrf.mxu0
      %v1308 = vadd.f32 0.0, %v1307
      %v1309 = vpop.f32.mrf.mxu0
      %1310 = vdwg.mxu0
      %1311 = vmatpush.bf16.msra.mxu0 0
      %1312 = vmatpush.bf16.msra.mxu0 0
      %1313 = vmatpush.bf16.msra.mxu0 0
      %1314 = vmatpush.bf16.msra.mxu0 0
      %1315 = vmatpush.bf16.msra.mxu0 0
      %1316 = vmatpush.bf16.msra.mxu0 0
      %1317 = vmatpush.bf16.msra.mxu0 0
      %1318 = vmatpush.bf16.msra.mxu0 %v1222
      %1319 = vmatmul.bf16.gmra.mxu0 %v1201
      %v1320 = vpop.f32.mrf.mxu0
      %v1321 = vadd.f32 0.0, %v1320
      %v1322 = vpop.f32.mrf.mxu0
      %1323 = vdwg.mxu0
      %1324 = vmatpush.bf16.msra.mxu0 0
      %1325 = vmatpush.bf16.msra.mxu0 0
      %1326 = vmatpush.bf16.msra.mxu0 0
      %1327 = vmatpush.bf16.msra.mxu0 0
      %1328 = vmatpush.bf16.msra.mxu0 0
      %1329 = vmatpush.bf16.msra.mxu0 0
      %1330 = vmatpush.bf16.msra.mxu0 0
      %1331 = vmatpush.bf16.msra.mxu0 %v1225
      %1332 = vmatmul.bf16.gmra.mxu0 %v1201
      %v1333 = vpop.f32.mrf.mxu0
      %v1334 = vadd.f32 0.0, %v1333
      %v1335 = vpop.f32.mrf.mxu0
      %1336 = vdwg.mxu0
      %1337 = vmatpush.bf16.msra.mxu0 0
      %1338 = vmatpush.bf16.msra.mxu0 0
      %1339 = vmatpush.bf16.msra.mxu0 0
      %1340 = vmatpush.bf16.msra.mxu0 0
      %1341 = vmatpush.bf16.msra.mxu0 0
      %1342 = vmatpush.bf16.msra.mxu0 0
      %1343 = vmatpush.bf16.msra.mxu0 0
      %1344 = vmatpush.bf16.msra.mxu0 %v1228
      %1345 = vmatmul.bf16.gmra.mxu0 %v1201
      %v1346 = vpop.f32.mrf.mxu0
      %v1347 = vadd.f32 0.0, %v1346
      %v1348 = vpop.f32.mrf.mxu0
      %1349 = vdwg.mxu0
      %1350 = vmatpush.bf16.msra.mxu0 0
      %1351 = vmatpush.bf16.msra.mxu0 0
      %1352 = vmatpush.bf16.msra.mxu0 0
      %1353 = vmatpush.bf16.msra.mxu0 0
      %1354 = vmatpush.bf16.msra.mxu0 0
      %1355 = vmatpush.bf16.msra.mxu0 0
      %1356 = vmatpush.bf16.msra.mxu0 0
      %1357 = vmatpush.bf16.msra.mxu0 %v1231
      %1358 = vmatmul.bf16.gmra.mxu0 %v1201
      %v1359 = vpop.f32.mrf.mxu0
      %v1360 = vadd.f32 0.0, %v1359
      %v1361 = vpop.f32.mrf.mxu0
      %1362 = vdwg.mxu0
      %v1363 = vadd.f32 %v1155, %v1243
      %v1364 = vadd.f32 %v1156, %v1256
      %v1365 = vadd.f32 %v1157, %v1269
      %v1366 = vadd.f32 %v1158, %v1282
      %v1367 = vadd.f32 %v1159, %v1295
      %v1368 = vadd.f32 %v1160, %v1308
      %v1369 = vadd.f32 %v1161, %v1321
      %v1370 = vadd.f32 %v1162, %v1334
      %v1371 = vadd.f32 %v1163, %v1347
      %v1372 = vadd.f32 %v1164, %v1360
      %s1373 = scalar_lea.vmem %s2, 20
      %v1374 = vld [vmem:[%s1373] sm:$0xf]
      %1375 = vrot.lane.b32.xlu0 %v370, 116
      %v1376 = vpop.permute.xlu0 %1375
      %1377 = vrot.lane.b32.xlu0 %v371, 116
      %v1378 = vpop.permute.xlu0 %1377
      %1379 = vrot.lane.b32.xlu0 %v372, 116
      %v1380 = vpop.permute.xlu0 %1379
      %1381 = vrot.lane.b32.xlu0 %v373, 116
      %v1382 = vpop.permute.xlu0 %1381
      %1383 = vrot.lane.b32.xlu0 %v374, 116
      %v1384 = vpop.permute.xlu0 %1383
      %1385 = vrot.lane.b32.xlu0 %v375, 116
      %v1386 = vpop.permute.xlu0 %1385
      %1387 = vrot.lane.b32.xlu0 %v376, 116
      %v1388 = vpop.permute.xlu0 %1387
      %1389 = vrot.lane.b32.xlu0 %v377, 116
      %v1390 = vpop.permute.xlu0 %1389
      %1391 = vrot.lane.b32.xlu0 %v378, 116
      %v1392 = vpop.permute.xlu0 %1391
      %1393 = vrot.lane.b32.xlu0 %v379, 116
      %v1394 = vpop.permute.xlu0 %1393
      %1395 = vrot.lane.b32.xlu0 %v383, 116
      %v1396 = vpop.permute.xlu0 %1395
      %vm1397 = vcmask 949248
      %v1398 = vsel %vm1397, %v1376, %v1378
      %v1399 = vsel %vm1397, %v1378, %v1380
      %v1400 = vsel %vm1397, %v1380, %v1382
      %v1401 = vsel %vm1397, %v1382, %v1384
      %v1402 = vsel %vm1397, %v1384, %v1386
      %v1403 = vsel %vm1397, %v1386, %v1388
      %v1404 = vsel %vm1397, %v1388, %v1390
      %v1405 = vsel %vm1397, %v1390, %v1392
      %v1406 = vsel %vm1397, %v1392, %v1394
      %v1407 = vsel %vm1397, %v1394, %v1396
      %v1409 = vsel %vm421, %v1374, 0
      %v1412 = vsel %vm425, %v1398, 0
      %v1415 = vsel %vm425, %v1399, 0
      %v1418 = vsel %vm425, %v1400, 0
      %v1421 = vsel %vm425, %v1401, 0
      %v1424 = vsel %vm425, %v1402, 0
      %v1427 = vsel %vm425, %v1403, 0
      %v1430 = vsel %vm425, %v1404, 0
      %v1433 = vsel %vm425, %v1405, 0
      %v1436 = vsel %vm425, %v1406, 0
      %v1439 = vsel %vm425, %v1407, 0
      %1441 = vmatpush.bf16.msra.mxu0 0
      %1442 = vmatpush.bf16.msra.mxu0 0
      %1443 = vmatpush.bf16.msra.mxu0 0
      %1444 = vmatpush.bf16.msra.mxu0 0
      %1445 = vmatpush.bf16.msra.mxu0 0
      %1446 = vmatpush.bf16.msra.mxu0 0
      %1447 = vmatpush.bf16.msra.mxu0 0
      %1448 = vmatpush.bf16.msra.mxu0 %v1412
      %1449 = vmatmul.bf16.gmra.mxu0 %v1409
      %v1450 = vpop.f32.mrf.mxu0
      %v1451 = vadd.f32 0.0, %v1450
      %v1452 = vpop.f32.mrf.mxu0
      %1453 = vdwg.mxu0
      %1454 = vmatpush.bf16.msra.mxu0 0
      %1455 = vmatpush.bf16.msra.mxu0 0
      %1456 = vmatpush.bf16.msra.mxu0 0
      %1457 = vmatpush.bf16.msra.mxu0 0
      %1458 = vmatpush.bf16.msra.mxu0 0
      %1459 = vmatpush.bf16.msra.mxu0 0
      %1460 = vmatpush.bf16.msra.mxu0 0
      %1461 = vmatpush.bf16.msra.mxu0 %v1415
      %1462 = vmatmul.bf16.gmra.mxu0 %v1409
      %v1463 = vpop.f32.mrf.mxu0
      %v1464 = vadd.f32 0.0, %v1463
      %v1465 = vpop.f32.mrf.mxu0
      %1466 = vdwg.mxu0
      %1467 = vmatpush.bf16.msra.mxu0 0
      %1468 = vmatpush.bf16.msra.mxu0 0
      %1469 = vmatpush.bf16.msra.mxu0 0
      %1470 = vmatpush.bf16.msra.mxu0 0
      %1471 = vmatpush.bf16.msra.mxu0 0
      %1472 = vmatpush.bf16.msra.mxu0 0
      %1473 = vmatpush.bf16.msra.mxu0 0
      %1474 = vmatpush.bf16.msra.mxu0 %v1418
      %1475 = vmatmul.bf16.gmra.mxu0 %v1409
      %v1476 = vpop.f32.mrf.mxu0
      %v1477 = vadd.f32 0.0, %v1476
      %v1478 = vpop.f32.mrf.mxu0
      %1479 = vdwg.mxu0
      %1480 = vmatpush.bf16.msra.mxu0 0
      %1481 = vmatpush.bf16.msra.mxu0 0
      %1482 = vmatpush.bf16.msra.mxu0 0
      %1483 = vmatpush.bf16.msra.mxu0 0
      %1484 = vmatpush.bf16.msra.mxu0 0
      %1485 = vmatpush.bf16.msra.mxu0 0
      %1486 = vmatpush.bf16.msra.mxu0 0
      %1487 = vmatpush.bf16.msra.mxu0 %v1421
      %1488 = vmatmul.bf16.gmra.mxu0 %v1409
      %v1489 = vpop.f32.mrf.mxu0
      %v1490 = vadd.f32 0.0, %v1489
      %v1491 = vpop.f32.mrf.mxu0
      %1492 = vdwg.mxu0
      %1493 = vmatpush.bf16.msra.mxu0 0
      %1494 = vmatpush.bf16.msra.mxu0 0
      %1495 = vmatpush.bf16.msra.mxu0 0
      %1496 = vmatpush.bf16.msra.mxu0 0
      %1497 = vmatpush.bf16.msra.mxu0 0
      %1498 = vmatpush.bf16.msra.mxu0 0
      %1499 = vmatpush.bf16.msra.mxu0 0
      %1500 = vmatpush.bf16.msra.mxu0 %v1424
      %1501 = vmatmul.bf16.gmra.mxu0 %v1409
      %v1502 = vpop.f32.mrf.mxu0
      %v1503 = vadd.f32 0.0, %v1502
      %v1504 = vpop.f32.mrf.mxu0
      %1505 = vdwg.mxu0
      %1506 = vmatpush.bf16.msra.mxu0 0
      %1507 = vmatpush.bf16.msra.mxu0 0
      %1508 = vmatpush.bf16.msra.mxu0 0
      %1509 = vmatpush.bf16.msra.mxu0 0
      %1510 = vmatpush.bf16.msra.mxu0 0
      %1511 = vmatpush.bf16.msra.mxu0 0
      %1512 = vmatpush.bf16.msra.mxu0 0
      %1513 = vmatpush.bf16.msra.mxu0 %v1427
      %1514 = vmatmul.bf16.gmra.mxu0 %v1409
      %v1515 = vpop.f32.mrf.mxu0
      %v1516 = vadd.f32 0.0, %v1515
      %v1517 = vpop.f32.mrf.mxu0
      %1518 = vdwg.mxu0
      %1519 = vmatpush.bf16.msra.mxu0 0
      %1520 = vmatpush.bf16.msra.mxu0 0
      %1521 = vmatpush.bf16.msra.mxu0 0
      %1522 = vmatpush.bf16.msra.mxu0 0
      %1523 = vmatpush.bf16.msra.mxu0 0
      %1524 = vmatpush.bf16.msra.mxu0 0
      %1525 = vmatpush.bf16.msra.mxu0 0
      %1526 = vmatpush.bf16.msra.mxu0 %v1430
      %1527 = vmatmul.bf16.gmra.mxu0 %v1409
      %v1528 = vpop.f32.mrf.mxu0
      %v1529 = vadd.f32 0.0, %v1528
      %v1530 = vpop.f32.mrf.mxu0
      %1531 = vdwg.mxu0
      %1532 = vmatpush.bf16.msra.mxu0 0
      %1533 = vmatpush.bf16.msra.mxu0 0
      %1534 = vmatpush.bf16.msra.mxu0 0
      %1535 = vmatpush.bf16.msra.mxu0 0
      %1536 = vmatpush.bf16.msra.mxu0 0
      %1537 = vmatpush.bf16.msra.mxu0 0
      %1538 = vmatpush.bf16.msra.mxu0 0
      %1539 = vmatpush.bf16.msra.mxu0 %v1433
      %1540 = vmatmul.bf16.gmra.mxu0 %v1409
      %v1541 = vpop.f32.mrf.mxu0
      %v1542 = vadd.f32 0.0, %v1541
      %v1543 = vpop.f32.mrf.mxu0
      %1544 = vdwg.mxu0
      %1545 = vmatpush.bf16.msra.mxu0 0
      %1546 = vmatpush.bf16.msra.mxu0 0
      %1547 = vmatpush.bf16.msra.mxu0 0
      %1548 = vmatpush.bf16.msra.mxu0 0
      %1549 = vmatpush.bf16.msra.mxu0 0
      %1550 = vmatpush.bf16.msra.mxu0 0
      %1551 = vmatpush.bf16.msra.mxu0 0
      %1552 = vmatpush.bf16.msra.mxu0 %v1436
      %1553 = vmatmul.bf16.gmra.mxu0 %v1409
      %v1554 = vpop.f32.mrf.mxu0
      %v1555 = vadd.f32 0.0, %v1554
      %v1556 = vpop.f32.mrf.mxu0
      %1557 = vdwg.mxu0
      %1558 = vmatpush.bf16.msra.mxu0 0
      %1559 = vmatpush.bf16.msra.mxu0 0
      %1560 = vmatpush.bf16.msra.mxu0 0
      %1561 = vmatpush.bf16.msra.mxu0 0
      %1562 = vmatpush.bf16.msra.mxu0 0
      %1563 = vmatpush.bf16.msra.mxu0 0
      %1564 = vmatpush.bf16.msra.mxu0 0
      %1565 = vmatpush.bf16.msra.mxu0 %v1439
      %1566 = vmatmul.bf16.gmra.mxu0 %v1409
      %v1567 = vpop.f32.mrf.mxu0
      %v1568 = vadd.f32 0.0, %v1567
      %v1569 = vpop.f32.mrf.mxu0
      %1570 = vdwg.mxu0
      %v1571 = vadd.f32 %v1363, %v1451
      %v1572 = vadd.f32 %v1364, %v1464
      %v1573 = vadd.f32 %v1365, %v1477
      %v1574 = vadd.f32 %v1366, %v1490
      %v1575 = vadd.f32 %v1367, %v1503
      %v1576 = vadd.f32 %v1368, %v1516
      %v1577 = vadd.f32 %v1369, %v1529
      %v1578 = vadd.f32 %v1370, %v1542
      %v1579 = vadd.f32 %v1371, %v1555
      %v1580 = vadd.f32 %v1372, %v1568
      %s1581 = scalar_lea.vmem %s2, 24
      %v1582 = vld [vmem:[%s1581] sm:$0xf]
      %1583 = vrot.lane.b32.xlu0 %v370, 108
      %v1584 = vpop.permute.xlu0 %1583
      %1585 = vrot.lane.b32.xlu0 %v371, 108
      %v1586 = vpop.permute.xlu0 %1585
      %1587 = vrot.lane.b32.xlu0 %v372, 108
      %v1588 = vpop.permute.xlu0 %1587
      %1589 = vrot.lane.b32.xlu0 %v373, 108
      %v1590 = vpop.permute.xlu0 %1589
      %1591 = vrot.lane.b32.xlu0 %v374, 108
      %v1592 = vpop.permute.xlu0 %1591
      %1593 = vrot.lane.b32.xlu0 %v375, 108
      %v1594 = vpop.permute.xlu0 %1593
      %1595 = vrot.lane.b32.xlu0 %v376, 108
      %v1596 = vpop.permute.xlu0 %1595
      %1597 = vrot.lane.b32.xlu0 %v377, 108
      %v1598 = vpop.permute.xlu0 %1597
      %1599 = vrot.lane.b32.xlu0 %v378, 108
      %v1600 = vpop.permute.xlu0 %1599
      %1601 = vrot.lane.b32.xlu0 %v379, 108
      %v1602 = vpop.permute.xlu0 %1601
      %1603 = vrot.lane.b32.xlu0 %v383, 108
      %v1604 = vpop.permute.xlu0 %1603
      %vm1605 = vcmask 883712
      %v1606 = vsel %vm1605, %v1584, %v1586
      %v1607 = vsel %vm1605, %v1586, %v1588
      %v1608 = vsel %vm1605, %v1588, %v1590
      %v1609 = vsel %vm1605, %v1590, %v1592
      %v1610 = vsel %vm1605, %v1592, %v1594
      %v1611 = vsel %vm1605, %v1594, %v1596
      %v1612 = vsel %vm1605, %v1596, %v1598
      %v1613 = vsel %vm1605, %v1598, %v1600
      %v1614 = vsel %vm1605, %v1600, %v1602
      %v1615 = vsel %vm1605, %v1602, %v1604
      %v1617 = vsel %vm421, %v1582, 0
      %v1620 = vsel %vm425, %v1606, 0
      %v1623 = vsel %vm425, %v1607, 0
      %v1626 = vsel %vm425, %v1608, 0
      %v1629 = vsel %vm425, %v1609, 0
      %v1632 = vsel %vm425, %v1610, 0
      %v1635 = vsel %vm425, %v1611, 0
      %v1638 = vsel %vm425, %v1612, 0
      %v1641 = vsel %vm425, %v1613, 0
      %v1644 = vsel %vm425, %v1614, 0
      %v1647 = vsel %vm425, %v1615, 0
      %1649 = vmatpush.bf16.msra.mxu0 0
      %1650 = vmatpush.bf16.msra.mxu0 0
      %1651 = vmatpush.bf16.msra.mxu0 0
      %1652 = vmatpush.bf16.msra.mxu0 0
      %1653 = vmatpush.bf16.msra.mxu0 0
      %1654 = vmatpush.bf16.msra.mxu0 0
      %1655 = vmatpush.bf16.msra.mxu0 0
      %1656 = vmatpush.bf16.msra.mxu0 %v1620
      %1657 = vmatmul.bf16.gmra.mxu0 %v1617
      %v1658 = vpop.f32.mrf.mxu0
      %v1659 = vadd.f32 0.0, %v1658
      %v1660 = vpop.f32.mrf.mxu0
      %1661 = vdwg.mxu0
      %1662 = vmatpush.bf16.msra.mxu0 0
      %1663 = vmatpush.bf16.msra.mxu0 0
      %1664 = vmatpush.bf16.msra.mxu0 0
      %1665 = vmatpush.bf16.msra.mxu0 0
      %1666 = vmatpush.bf16.msra.mxu0 0
      %1667 = vmatpush.bf16.msra.mxu0 0
      %1668 = vmatpush.bf16.msra.mxu0 0
      %1669 = vmatpush.bf16.msra.mxu0 %v1623
      %1670 = vmatmul.bf16.gmra.mxu0 %v1617
      %v1671 = vpop.f32.mrf.mxu0
      %v1672 = vadd.f32 0.0, %v1671
      %v1673 = vpop.f32.mrf.mxu0
      %1674 = vdwg.mxu0
      %1675 = vmatpush.bf16.msra.mxu0 0
      %1676 = vmatpush.bf16.msra.mxu0 0
      %1677 = vmatpush.bf16.msra.mxu0 0
      %1678 = vmatpush.bf16.msra.mxu0 0
      %1679 = vmatpush.bf16.msra.mxu0 0
      %1680 = vmatpush.bf16.msra.mxu0 0
      %1681 = vmatpush.bf16.msra.mxu0 0
      %1682 = vmatpush.bf16.msra.mxu0 %v1626
      %1683 = vmatmul.bf16.gmra.mxu0 %v1617
      %v1684 = vpop.f32.mrf.mxu0
      %v1685 = vadd.f32 0.0, %v1684
      %v1686 = vpop.f32.mrf.mxu0
      %1687 = vdwg.mxu0
      %1688 = vmatpush.bf16.msra.mxu0 0
      %1689 = vmatpush.bf16.msra.mxu0 0
      %1690 = vmatpush.bf16.msra.mxu0 0
      %1691 = vmatpush.bf16.msra.mxu0 0
      %1692 = vmatpush.bf16.msra.mxu0 0
      %1693 = vmatpush.bf16.msra.mxu0 0
      %1694 = vmatpush.bf16.msra.mxu0 0
      %1695 = vmatpush.bf16.msra.mxu0 %v1629
      %1696 = vmatmul.bf16.gmra.mxu0 %v1617
      %v1697 = vpop.f32.mrf.mxu0
      %v1698 = vadd.f32 0.0, %v1697
      %v1699 = vpop.f32.mrf.mxu0
      %1700 = vdwg.mxu0
      %1701 = vmatpush.bf16.msra.mxu0 0
      %1702 = vmatpush.bf16.msra.mxu0 0
      %1703 = vmatpush.bf16.msra.mxu0 0
      %1704 = vmatpush.bf16.msra.mxu0 0
      %1705 = vmatpush.bf16.msra.mxu0 0
      %1706 = vmatpush.bf16.msra.mxu0 0
      %1707 = vmatpush.bf16.msra.mxu0 0
      %1708 = vmatpush.bf16.msra.mxu0 %v1632
      %1709 = vmatmul.bf16.gmra.mxu0 %v1617
      %v1710 = vpop.f32.mrf.mxu0
      %v1711 = vadd.f32 0.0, %v1710
      %v1712 = vpop.f32.mrf.mxu0
      %1713 = vdwg.mxu0
      %1714 = vmatpush.bf16.msra.mxu0 0
      %1715 = vmatpush.bf16.msra.mxu0 0
      %1716 = vmatpush.bf16.msra.mxu0 0
      %1717 = vmatpush.bf16.msra.mxu0 0
      %1718 = vmatpush.bf16.msra.mxu0 0
      %1719 = vmatpush.bf16.msra.mxu0 0
      %1720 = vmatpush.bf16.msra.mxu0 0
      %1721 = vmatpush.bf16.msra.mxu0 %v1635
      %1722 = vmatmul.bf16.gmra.mxu0 %v1617
      %v1723 = vpop.f32.mrf.mxu0
      %v1724 = vadd.f32 0.0, %v1723
      %v1725 = vpop.f32.mrf.mxu0
      %1726 = vdwg.mxu0
      %1727 = vmatpush.bf16.msra.mxu0 0
      %1728 = vmatpush.bf16.msra.mxu0 0
      %1729 = vmatpush.bf16.msra.mxu0 0
      %1730 = vmatpush.bf16.msra.mxu0 0
      %1731 = vmatpush.bf16.msra.mxu0 0
      %1732 = vmatpush.bf16.msra.mxu0 0
      %1733 = vmatpush.bf16.msra.mxu0 0
      %1734 = vmatpush.bf16.msra.mxu0 %v1638
      %1735 = vmatmul.bf16.gmra.mxu0 %v1617
      %v1736 = vpop.f32.mrf.mxu0
      %v1737 = vadd.f32 0.0, %v1736
      %v1738 = vpop.f32.mrf.mxu0
      %1739 = vdwg.mxu0
      %1740 = vmatpush.bf16.msra.mxu0 0
      %1741 = vmatpush.bf16.msra.mxu0 0
      %1742 = vmatpush.bf16.msra.mxu0 0
      %1743 = vmatpush.bf16.msra.mxu0 0
      %1744 = vmatpush.bf16.msra.mxu0 0
      %1745 = vmatpush.bf16.msra.mxu0 0
      %1746 = vmatpush.bf16.msra.mxu0 0
      %1747 = vmatpush.bf16.msra.mxu0 %v1641
      %1748 = vmatmul.bf16.gmra.mxu0 %v1617
      %v1749 = vpop.f32.mrf.mxu0
      %v1750 = vadd.f32 0.0, %v1749
      %v1751 = vpop.f32.mrf.mxu0
      %1752 = vdwg.mxu0
      %1753 = vmatpush.bf16.msra.mxu0 0
      %1754 = vmatpush.bf16.msra.mxu0 0
      %1755 = vmatpush.bf16.msra.mxu0 0
      %1756 = vmatpush.bf16.msra.mxu0 0
      %1757 = vmatpush.bf16.msra.mxu0 0
      %1758 = vmatpush.bf16.msra.mxu0 0
      %1759 = vmatpush.bf16.msra.mxu0 0
      %1760 = vmatpush.bf16.msra.mxu0 %v1644
      %1761 = vmatmul.bf16.gmra.mxu0 %v1617
      %v1762 = vpop.f32.mrf.mxu0
      %v1763 = vadd.f32 0.0, %v1762
      %v1764 = vpop.f32.mrf.mxu0
      %1765 = vdwg.mxu0
      %1766 = vmatpush.bf16.msra.mxu0 0
      %1767 = vmatpush.bf16.msra.mxu0 0
      %1768 = vmatpush.bf16.msra.mxu0 0
      %1769 = vmatpush.bf16.msra.mxu0 0
      %1770 = vmatpush.bf16.msra.mxu0 0
      %1771 = vmatpush.bf16.msra.mxu0 0
      %1772 = vmatpush.bf16.msra.mxu0 0
      %1773 = vmatpush.bf16.msra.mxu0 %v1647
      %1774 = vmatmul.bf16.gmra.mxu0 %v1617
      %v1775 = vpop.f32.mrf.mxu0
      %v1776 = vadd.f32 0.0, %v1775
      %v1777 = vpop.f32.mrf.mxu0
      %1778 = vdwg.mxu0
      %v1779 = vadd.f32 %v1571, %v1659
      %v1780 = vadd.f32 %v1572, %v1672
      %v1781 = vadd.f32 %v1573, %v1685
      %v1782 = vadd.f32 %v1574, %v1698
      %v1783 = vadd.f32 %v1575, %v1711
      %v1784 = vadd.f32 %v1576, %v1724
      %v1785 = vadd.f32 %v1577, %v1737
      %v1786 = vadd.f32 %v1578, %v1750
      %v1787 = vadd.f32 %v1579, %v1763
      %v1788 = vadd.f32 %v1580, %v1776
      %s1789 = scalar_lea.vmem %s2, 28
      %v1790 = vld [vmem:[%s1789] sm:$0xf]
      %1791 = vrot.lane.b32.xlu0 %v370, 107
      %v1792 = vpop.permute.xlu0 %1791
      %1793 = vrot.lane.b32.xlu0 %v371, 107
      %v1794 = vpop.permute.xlu0 %1793
      %1795 = vrot.lane.b32.xlu0 %v372, 107
      %v1796 = vpop.permute.xlu0 %1795
      %1797 = vrot.lane.b32.xlu0 %v373, 107
      %v1798 = vpop.permute.xlu0 %1797
      %1799 = vrot.lane.b32.xlu0 %v374, 107
      %v1800 = vpop.permute.xlu0 %1799
      %1801 = vrot.lane.b32.xlu0 %v375, 107
      %v1802 = vpop.permute.xlu0 %1801
      %1803 = vrot.lane.b32.xlu0 %v376, 107
      %v1804 = vpop.permute.xlu0 %1803
      %1805 = vrot.lane.b32.xlu0 %v377, 107
      %v1806 = vpop.permute.xlu0 %1805
      %1807 = vrot.lane.b32.xlu0 %v378, 107
      %v1808 = vpop.permute.xlu0 %1807
      %1809 = vrot.lane.b32.xlu0 %v379, 107
      %v1810 = vpop.permute.xlu0 %1809
      %1811 = vrot.lane.b32.xlu0 %v383, 107
      %v1812 = vpop.permute.xlu0 %1811
      %vm1813 = vcmask 875520
      %v1814 = vsel %vm1813, %v1792, %v1794
      %v1815 = vsel %vm1813, %v1794, %v1796
      %v1816 = vsel %vm1813, %v1796, %v1798
      %v1817 = vsel %vm1813, %v1798, %v1800
      %v1818 = vsel %vm1813, %v1800, %v1802
      %v1819 = vsel %vm1813, %v1802, %v1804
      %v1820 = vsel %vm1813, %v1804, %v1806
      %v1821 = vsel %vm1813, %v1806, %v1808
      %v1822 = vsel %vm1813, %v1808, %v1810
      %v1823 = vsel %vm1813, %v1810, %v1812
      %v1825 = vsel %vm421, %v1790, 0
      %v1828 = vsel %vm425, %v1814, 0
      %v1831 = vsel %vm425, %v1815, 0
      %v1834 = vsel %vm425, %v1816, 0
      %v1837 = vsel %vm425, %v1817, 0
      %v1840 = vsel %vm425, %v1818, 0
      %v1843 = vsel %vm425, %v1819, 0
      %v1846 = vsel %vm425, %v1820, 0
      %v1849 = vsel %vm425, %v1821, 0
      %v1852 = vsel %vm425, %v1822, 0
      %v1855 = vsel %vm425, %v1823, 0
      %1857 = vmatpush.bf16.msra.mxu0 0
      %1858 = vmatpush.bf16.msra.mxu0 0
      %1859 = vmatpush.bf16.msra.mxu0 0
      %1860 = vmatpush.bf16.msra.mxu0 0
      %1861 = vmatpush.bf16.msra.mxu0 0
      %1862 = vmatpush.bf16.msra.mxu0 0
      %1863 = vmatpush.bf16.msra.mxu0 0
      %1864 = vmatpush.bf16.msra.mxu0 %v1828
      %1865 = vmatmul.bf16.gmra.mxu0 %v1825
      %v1866 = vpop.f32.mrf.mxu0
      %v1867 = vadd.f32 0.0, %v1866
      %v1868 = vpop.f32.mrf.mxu0
      %1869 = vdwg.mxu0
      %1870 = vmatpush.bf16.msra.mxu0 0
      %1871 = vmatpush.bf16.msra.mxu0 0
      %1872 = vmatpush.bf16.msra.mxu0 0
      %1873 = vmatpush.bf16.msra.mxu0 0
      %1874 = vmatpush.bf16.msra.mxu0 0
      %1875 = vmatpush.bf16.msra.mxu0 0
      %1876 = vmatpush.bf16.msra.mxu0 0
      %1877 = vmatpush.bf16.msra.mxu0 %v1831
      %1878 = vmatmul.bf16.gmra.mxu0 %v1825
      %v1879 = vpop.f32.mrf.mxu0
      %v1880 = vadd.f32 0.0, %v1879
      %v1881 = vpop.f32.mrf.mxu0
      %1882 = vdwg.mxu0
      %1883 = vmatpush.bf16.msra.mxu0 0
      %1884 = vmatpush.bf16.msra.mxu0 0
      %1885 = vmatpush.bf16.msra.mxu0 0
      %1886 = vmatpush.bf16.msra.mxu0 0
      %1887 = vmatpush.bf16.msra.mxu0 0
      %1888 = vmatpush.bf16.msra.mxu0 0
      %1889 = vmatpush.bf16.msra.mxu0 0
      %1890 = vmatpush.bf16.msra.mxu0 %v1834
      %1891 = vmatmul.bf16.gmra.mxu0 %v1825
      %v1892 = vpop.f32.mrf.mxu0
      %v1893 = vadd.f32 0.0, %v1892
      %v1894 = vpop.f32.mrf.mxu0
      %1895 = vdwg.mxu0
      %1896 = vmatpush.bf16.msra.mxu0 0
      %1897 = vmatpush.bf16.msra.mxu0 0
      %1898 = vmatpush.bf16.msra.mxu0 0
      %1899 = vmatpush.bf16.msra.mxu0 0
      %1900 = vmatpush.bf16.msra.mxu0 0
      %1901 = vmatpush.bf16.msra.mxu0 0
      %1902 = vmatpush.bf16.msra.mxu0 0
      %1903 = vmatpush.bf16.msra.mxu0 %v1837
      %1904 = vmatmul.bf16.gmra.mxu0 %v1825
      %v1905 = vpop.f32.mrf.mxu0
      %v1906 = vadd.f32 0.0, %v1905
      %v1907 = vpop.f32.mrf.mxu0
      %1908 = vdwg.mxu0
      %1909 = vmatpush.bf16.msra.mxu0 0
      %1910 = vmatpush.bf16.msra.mxu0 0
      %1911 = vmatpush.bf16.msra.mxu0 0
      %1912 = vmatpush.bf16.msra.mxu0 0
      %1913 = vmatpush.bf16.msra.mxu0 0
      %1914 = vmatpush.bf16.msra.mxu0 0
      %1915 = vmatpush.bf16.msra.mxu0 0
      %1916 = vmatpush.bf16.msra.mxu0 %v1840
      %1917 = vmatmul.bf16.gmra.mxu0 %v1825
      %v1918 = vpop.f32.mrf.mxu0
      %v1919 = vadd.f32 0.0, %v1918
      %v1920 = vpop.f32.mrf.mxu0
      %1921 = vdwg.mxu0
      %1922 = vmatpush.bf16.msra.mxu0 0
      %1923 = vmatpush.bf16.msra.mxu0 0
      %1924 = vmatpush.bf16.msra.mxu0 0
      %1925 = vmatpush.bf16.msra.mxu0 0
      %1926 = vmatpush.bf16.msra.mxu0 0
      %1927 = vmatpush.bf16.msra.mxu0 0
      %1928 = vmatpush.bf16.msra.mxu0 0
      %1929 = vmatpush.bf16.msra.mxu0 %v1843
      %1930 = vmatmul.bf16.gmra.mxu0 %v1825
      %v1931 = vpop.f32.mrf.mxu0
      %v1932 = vadd.f32 0.0, %v1931
      %v1933 = vpop.f32.mrf.mxu0
      %1934 = vdwg.mxu0
      %1935 = vmatpush.bf16.msra.mxu0 0
      %1936 = vmatpush.bf16.msra.mxu0 0
      %1937 = vmatpush.bf16.msra.mxu0 0
      %1938 = vmatpush.bf16.msra.mxu0 0
      %1939 = vmatpush.bf16.msra.mxu0 0
      %1940 = vmatpush.bf16.msra.mxu0 0
      %1941 = vmatpush.bf16.msra.mxu0 0
      %1942 = vmatpush.bf16.msra.mxu0 %v1846
      %1943 = vmatmul.bf16.gmra.mxu0 %v1825
      %v1944 = vpop.f32.mrf.mxu0
      %v1945 = vadd.f32 0.0, %v1944
      %v1946 = vpop.f32.mrf.mxu0
      %1947 = vdwg.mxu0
      %1948 = vmatpush.bf16.msra.mxu0 0
      %1949 = vmatpush.bf16.msra.mxu0 0
      %1950 = vmatpush.bf16.msra.mxu0 0
      %1951 = vmatpush.bf16.msra.mxu0 0
      %1952 = vmatpush.bf16.msra.mxu0 0
      %1953 = vmatpush.bf16.msra.mxu0 0
      %1954 = vmatpush.bf16.msra.mxu0 0
      %1955 = vmatpush.bf16.msra.mxu0 %v1849
      %1956 = vmatmul.bf16.gmra.mxu0 %v1825
      %v1957 = vpop.f32.mrf.mxu0
      %v1958 = vadd.f32 0.0, %v1957
      %v1959 = vpop.f32.mrf.mxu0
      %1960 = vdwg.mxu0
      %1961 = vmatpush.bf16.msra.mxu0 0
      %1962 = vmatpush.bf16.msra.mxu0 0
      %1963 = vmatpush.bf16.msra.mxu0 0
      %1964 = vmatpush.bf16.msra.mxu0 0
      %1965 = vmatpush.bf16.msra.mxu0 0
      %1966 = vmatpush.bf16.msra.mxu0 0
      %1967 = vmatpush.bf16.msra.mxu0 0
      %1968 = vmatpush.bf16.msra.mxu0 %v1852
      %1969 = vmatmul.bf16.gmra.mxu0 %v1825
      %v1970 = vpop.f32.mrf.mxu0
      %v1971 = vadd.f32 0.0, %v1970
      %v1972 = vpop.f32.mrf.mxu0
      %1973 = vdwg.mxu0
      %1974 = vmatpush.bf16.msra.mxu0 0
      %1975 = vmatpush.bf16.msra.mxu0 0
      %1976 = vmatpush.bf16.msra.mxu0 0
      %1977 = vmatpush.bf16.msra.mxu0 0
      %1978 = vmatpush.bf16.msra.mxu0 0
      %1979 = vmatpush.bf16.msra.mxu0 0
      %1980 = vmatpush.bf16.msra.mxu0 0
      %1981 = vmatpush.bf16.msra.mxu0 %v1855
      %1982 = vmatmul.bf16.gmra.mxu0 %v1825
      %v1983 = vpop.f32.mrf.mxu0
      %v1984 = vadd.f32 0.0, %v1983
      %v1985 = vpop.f32.mrf.mxu0
      %1986 = vdwg.mxu0
      %v1987 = vadd.f32 %v1779, %v1867
      %v1988 = vadd.f32 %v1780, %v1880
      %v1989 = vadd.f32 %v1781, %v1893
      %v1990 = vadd.f32 %v1782, %v1906
      %v1991 = vadd.f32 %v1783, %v1919
      %v1992 = vadd.f32 %v1784, %v1932
      %v1993 = vadd.f32 %v1785, %v1945
      %v1994 = vadd.f32 %v1786, %v1958
      %v1995 = vadd.f32 %v1787, %v1971
      %v1996 = vadd.f32 %v1788, %v1984
      %s1997 = scalar_lea.vmem %s2, 32
      %v1998 = vld [vmem:[%s1997] sm:$0xf]
      %1999 = vrot.lane.b32.xlu0 %v370, 106
      %v2000 = vpop.permute.xlu0 %1999
      %2001 = vrot.lane.b32.xlu0 %v371, 106
      %v2002 = vpop.permute.xlu0 %2001
      %2003 = vrot.lane.b32.xlu0 %v372, 106
      %v2004 = vpop.permute.xlu0 %2003
      %2005 = vrot.lane.b32.xlu0 %v373, 106
      %v2006 = vpop.permute.xlu0 %2005
      %2007 = vrot.lane.b32.xlu0 %v374, 106
      %v2008 = vpop.permute.xlu0 %2007
      %2009 = vrot.lane.b32.xlu0 %v375, 106
      %v2010 = vpop.permute.xlu0 %2009
      %2011 = vrot.lane.b32.xlu0 %v376, 106
      %v2012 = vpop.permute.xlu0 %2011
      %2013 = vrot.lane.b32.xlu0 %v377, 106
      %v2014 = vpop.permute.xlu0 %2013
      %2015 = vrot.lane.b32.xlu0 %v378, 106
      %v2016 = vpop.permute.xlu0 %2015
      %2017 = vrot.lane.b32.xlu0 %v379, 106
      %v2018 = vpop.permute.xlu0 %2017
      %2019 = vrot.lane.b32.xlu0 %v383, 106
      %v2020 = vpop.permute.xlu0 %2019
      %vm2021 = vcmask 867328
      %v2022 = vsel %vm2021, %v2000, %v2002
      %v2023 = vsel %vm2021, %v2002, %v2004
      %v2024 = vsel %vm2021, %v2004, %v2006
      %v2025 = vsel %vm2021, %v2006, %v2008
      %v2026 = vsel %vm2021, %v2008, %v2010
      %v2027 = vsel %vm2021, %v2010, %v2012
      %v2028 = vsel %vm2021, %v2012, %v2014
      %v2029 = vsel %vm2021, %v2014, %v2016
      %v2030 = vsel %vm2021, %v2016, %v2018
      %v2031 = vsel %vm2021, %v2018, %v2020
      %v2033 = vsel %vm421, %v1998, 0
      %v2036 = vsel %vm425, %v2022, 0
      %v2039 = vsel %vm425, %v2023, 0
      %v2042 = vsel %vm425, %v2024, 0
      %v2045 = vsel %vm425, %v2025, 0
      %v2048 = vsel %vm425, %v2026, 0
      %v2051 = vsel %vm425, %v2027, 0
      %v2054 = vsel %vm425, %v2028, 0
      %v2057 = vsel %vm425, %v2029, 0
      %v2060 = vsel %vm425, %v2030, 0
      %v2063 = vsel %vm425, %v2031, 0
      %2065 = vmatpush.bf16.msra.mxu0 0
      %2066 = vmatpush.bf16.msra.mxu0 0
      %2067 = vmatpush.bf16.msra.mxu0 0
      %2068 = vmatpush.bf16.msra.mxu0 0
      %2069 = vmatpush.bf16.msra.mxu0 0
      %2070 = vmatpush.bf16.msra.mxu0 0
      %2071 = vmatpush.bf16.msra.mxu0 0
      %2072 = vmatpush.bf16.msra.mxu0 %v2036
      %2073 = vmatmul.bf16.gmra.mxu0 %v2033
      %v2074 = vpop.f32.mrf.mxu0
      %v2075 = vadd.f32 0.0, %v2074
      %v2076 = vpop.f32.mrf.mxu0
      %2077 = vdwg.mxu0
      %2078 = vmatpush.bf16.msra.mxu0 0
      %2079 = vmatpush.bf16.msra.mxu0 0
      %2080 = vmatpush.bf16.msra.mxu0 0
      %2081 = vmatpush.bf16.msra.mxu0 0
      %2082 = vmatpush.bf16.msra.mxu0 0
      %2083 = vmatpush.bf16.msra.mxu0 0
      %2084 = vmatpush.bf16.msra.mxu0 0
      %2085 = vmatpush.bf16.msra.mxu0 %v2039
      %2086 = vmatmul.bf16.gmra.mxu0 %v2033
      %v2087 = vpop.f32.mrf.mxu0
      %v2088 = vadd.f32 0.0, %v2087
      %v2089 = vpop.f32.mrf.mxu0
      %2090 = vdwg.mxu0
      %2091 = vmatpush.bf16.msra.mxu0 0
      %2092 = vmatpush.bf16.msra.mxu0 0
      %2093 = vmatpush.bf16.msra.mxu0 0
      %2094 = vmatpush.bf16.msra.mxu0 0
      %2095 = vmatpush.bf16.msra.mxu0 0
      %2096 = vmatpush.bf16.msra.mxu0 0
      %2097 = vmatpush.bf16.msra.mxu0 0
      %2098 = vmatpush.bf16.msra.mxu0 %v2042
      %2099 = vmatmul.bf16.gmra.mxu0 %v2033
      %v2100 = vpop.f32.mrf.mxu0
      %v2101 = vadd.f32 0.0, %v2100
      %v2102 = vpop.f32.mrf.mxu0
      %2103 = vdwg.mxu0
      %2104 = vmatpush.bf16.msra.mxu0 0
      %2105 = vmatpush.bf16.msra.mxu0 0
      %2106 = vmatpush.bf16.msra.mxu0 0
      %2107 = vmatpush.bf16.msra.mxu0 0
      %2108 = vmatpush.bf16.msra.mxu0 0
      %2109 = vmatpush.bf16.msra.mxu0 0
      %2110 = vmatpush.bf16.msra.mxu0 0
      %2111 = vmatpush.bf16.msra.mxu0 %v2045
      %2112 = vmatmul.bf16.gmra.mxu0 %v2033
      %v2113 = vpop.f32.mrf.mxu0
      %v2114 = vadd.f32 0.0, %v2113
      %v2115 = vpop.f32.mrf.mxu0
      %2116 = vdwg.mxu0
      %2117 = vmatpush.bf16.msra.mxu0 0
      %2118 = vmatpush.bf16.msra.mxu0 0
      %2119 = vmatpush.bf16.msra.mxu0 0
      %2120 = vmatpush.bf16.msra.mxu0 0
      %2121 = vmatpush.bf16.msra.mxu0 0
      %2122 = vmatpush.bf16.msra.mxu0 0
      %2123 = vmatpush.bf16.msra.mxu0 0
      %2124 = vmatpush.bf16.msra.mxu0 %v2048
      %2125 = vmatmul.bf16.gmra.mxu0 %v2033
      %v2126 = vpop.f32.mrf.mxu0
      %v2127 = vadd.f32 0.0, %v2126
      %v2128 = vpop.f32.mrf.mxu0
      %2129 = vdwg.mxu0
      %2130 = vmatpush.bf16.msra.mxu0 0
      %2131 = vmatpush.bf16.msra.mxu0 0
      %2132 = vmatpush.bf16.msra.mxu0 0
      %2133 = vmatpush.bf16.msra.mxu0 0
      %2134 = vmatpush.bf16.msra.mxu0 0
      %2135 = vmatpush.bf16.msra.mxu0 0
      %2136 = vmatpush.bf16.msra.mxu0 0
      %2137 = vmatpush.bf16.msra.mxu0 %v2051
      %2138 = vmatmul.bf16.gmra.mxu0 %v2033
      %v2139 = vpop.f32.mrf.mxu0
      %v2140 = vadd.f32 0.0, %v2139
      %v2141 = vpop.f32.mrf.mxu0
      %2142 = vdwg.mxu0
      %2143 = vmatpush.bf16.msra.mxu0 0
      %2144 = vmatpush.bf16.msra.mxu0 0
      %2145 = vmatpush.bf16.msra.mxu0 0
      %2146 = vmatpush.bf16.msra.mxu0 0
      %2147 = vmatpush.bf16.msra.mxu0 0
      %2148 = vmatpush.bf16.msra.mxu0 0
      %2149 = vmatpush.bf16.msra.mxu0 0
      %2150 = vmatpush.bf16.msra.mxu0 %v2054
      %2151 = vmatmul.bf16.gmra.mxu0 %v2033
      %v2152 = vpop.f32.mrf.mxu0
      %v2153 = vadd.f32 0.0, %v2152
      %v2154 = vpop.f32.mrf.mxu0
      %2155 = vdwg.mxu0
      %2156 = vmatpush.bf16.msra.mxu0 0
      %2157 = vmatpush.bf16.msra.mxu0 0
      %2158 = vmatpush.bf16.msra.mxu0 0
      %2159 = vmatpush.bf16.msra.mxu0 0
      %2160 = vmatpush.bf16.msra.mxu0 0
      %2161 = vmatpush.bf16.msra.mxu0 0
      %2162 = vmatpush.bf16.msra.mxu0 0
      %2163 = vmatpush.bf16.msra.mxu0 %v2057
      %2164 = vmatmul.bf16.gmra.mxu0 %v2033
      %v2165 = vpop.f32.mrf.mxu0
      %v2166 = vadd.f32 0.0, %v2165
      %v2167 = vpop.f32.mrf.mxu0
      %2168 = vdwg.mxu0
      %2169 = vmatpush.bf16.msra.mxu0 0
      %2170 = vmatpush.bf16.msra.mxu0 0
      %2171 = vmatpush.bf16.msra.mxu0 0
      %2172 = vmatpush.bf16.msra.mxu0 0
      %2173 = vmatpush.bf16.msra.mxu0 0
      %2174 = vmatpush.bf16.msra.mxu0 0
      %2175 = vmatpush.bf16.msra.mxu0 0
      %2176 = vmatpush.bf16.msra.mxu0 %v2060
      %2177 = vmatmul.bf16.gmra.mxu0 %v2033
      %v2178 = vpop.f32.mrf.mxu0
      %v2179 = vadd.f32 0.0, %v2178
      %v2180 = vpop.f32.mrf.mxu0
      %2181 = vdwg.mxu0
      %2182 = vmatpush.bf16.msra.mxu0 0
      %2183 = vmatpush.bf16.msra.mxu0 0
      %2184 = vmatpush.bf16.msra.mxu0 0
      %2185 = vmatpush.bf16.msra.mxu0 0
      %2186 = vmatpush.bf16.msra.mxu0 0
      %2187 = vmatpush.bf16.msra.mxu0 0
      %2188 = vmatpush.bf16.msra.mxu0 0
      %2189 = vmatpush.bf16.msra.mxu0 %v2063
      %2190 = vmatmul.bf16.gmra.mxu0 %v2033
      %v2191 = vpop.f32.mrf.mxu0
      %v2192 = vadd.f32 0.0, %v2191
      %v2193 = vpop.f32.mrf.mxu0
      %2194 = vdwg.mxu0
      %v2195 = vadd.f32 %v1987, %v2075
      %v2196 = vadd.f32 %v1988, %v2088
      %v2197 = vadd.f32 %v1989, %v2101
      %v2198 = vadd.f32 %v1990, %v2114
      %v2199 = vadd.f32 %v1991, %v2127
      %v2200 = vadd.f32 %v1992, %v2140
      %v2201 = vadd.f32 %v1993, %v2153
      %v2202 = vadd.f32 %v1994, %v2166
      %v2203 = vadd.f32 %v1995, %v2179
      %v2204 = vadd.f32 %v1996, %v2192
      %s2205 = scalar_lea.vmem %s2, 36
      %v2206 = vld [vmem:[%s2205] sm:$0xf]
      %2207 = vrot.lane.b32.xlu0 %v370, 28
      %v2208 = vpop.permute.xlu0 %2207
      %2209 = vrot.lane.b32.xlu0 %v371, 28
      %v2210 = vpop.permute.xlu0 %2209
      %2211 = vrot.lane.b32.xlu0 %v372, 28
      %v2212 = vpop.permute.xlu0 %2211
      %2213 = vrot.lane.b32.xlu0 %v373, 28
      %v2214 = vpop.permute.xlu0 %2213
      %2215 = vrot.lane.b32.xlu0 %v374, 28
      %v2216 = vpop.permute.xlu0 %2215
      %2217 = vrot.lane.b32.xlu0 %v375, 28
      %v2218 = vpop.permute.xlu0 %2217
      %2219 = vrot.lane.b32.xlu0 %v376, 28
      %v2220 = vpop.permute.xlu0 %2219
      %2221 = vrot.lane.b32.xlu0 %v377, 28
      %v2222 = vpop.permute.xlu0 %2221
      %2223 = vrot.lane.b32.xlu0 %v378, 28
      %v2224 = vpop.permute.xlu0 %2223
      %2225 = vrot.lane.b32.xlu0 %v379, 28
      %v2226 = vpop.permute.xlu0 %2225
      %2227 = vrot.lane.b32.xlu0 %v383, 28
      %v2228 = vpop.permute.xlu0 %2227
      %vm2229 = vcmask 228352
      %v2230 = vsel %vm2229, %v2208, %v2210
      %v2231 = vsel %vm2229, %v2210, %v2212
      %v2232 = vsel %vm2229, %v2212, %v2214
      %v2233 = vsel %vm2229, %v2214, %v2216
      %v2234 = vsel %vm2229, %v2216, %v2218
      %v2235 = vsel %vm2229, %v2218, %v2220
      %v2236 = vsel %vm2229, %v2220, %v2222
      %v2237 = vsel %vm2229, %v2222, %v2224
      %v2238 = vsel %vm2229, %v2224, %v2226
      %v2239 = vsel %vm2229, %v2226, %v2228
      %v2241 = vsel %vm421, %v2206, 0
      %v2244 = vsel %vm425, %v2230, 0
      %v2247 = vsel %vm425, %v2231, 0
      %v2250 = vsel %vm425, %v2232, 0
      %v2253 = vsel %vm425, %v2233, 0
      %v2256 = vsel %vm425, %v2234, 0
      %v2259 = vsel %vm425, %v2235, 0
      %v2262 = vsel %vm425, %v2236, 0
      %v2265 = vsel %vm425, %v2237, 0
      %v2268 = vsel %vm425, %v2238, 0
      %v2271 = vsel %vm425, %v2239, 0
      %2273 = vmatpush.bf16.msra.mxu0 0
      %2274 = vmatpush.bf16.msra.mxu0 0
      %2275 = vmatpush.bf16.msra.mxu0 0
      %2276 = vmatpush.bf16.msra.mxu0 0
      %2277 = vmatpush.bf16.msra.mxu0 0
      %2278 = vmatpush.bf16.msra.mxu0 0
      %2279 = vmatpush.bf16.msra.mxu0 0
      %2280 = vmatpush.bf16.msra.mxu0 %v2244
      %2281 = vmatmul.bf16.gmra.mxu0 %v2241
      %v2282 = vpop.f32.mrf.mxu0
      %v2283 = vadd.f32 0.0, %v2282
      %v2284 = vpop.f32.mrf.mxu0
      %2285 = vdwg.mxu0
      %2286 = vmatpush.bf16.msra.mxu0 0
      %2287 = vmatpush.bf16.msra.mxu0 0
      %2288 = vmatpush.bf16.msra.mxu0 0
      %2289 = vmatpush.bf16.msra.mxu0 0
      %2290 = vmatpush.bf16.msra.mxu0 0
      %2291 = vmatpush.bf16.msra.mxu0 0
      %2292 = vmatpush.bf16.msra.mxu0 0
      %2293 = vmatpush.bf16.msra.mxu0 %v2247
      %2294 = vmatmul.bf16.gmra.mxu0 %v2241
      %v2295 = vpop.f32.mrf.mxu0
      %v2296 = vadd.f32 0.0, %v2295
      %v2297 = vpop.f32.mrf.mxu0
      %2298 = vdwg.mxu0
      %2299 = vmatpush.bf16.msra.mxu0 0
      %2300 = vmatpush.bf16.msra.mxu0 0
      %2301 = vmatpush.bf16.msra.mxu0 0
      %2302 = vmatpush.bf16.msra.mxu0 0
      %2303 = vmatpush.bf16.msra.mxu0 0
      %2304 = vmatpush.bf16.msra.mxu0 0
      %2305 = vmatpush.bf16.msra.mxu0 0
      %2306 = vmatpush.bf16.msra.mxu0 %v2250
      %2307 = vmatmul.bf16.gmra.mxu0 %v2241
      %v2308 = vpop.f32.mrf.mxu0
      %v2309 = vadd.f32 0.0, %v2308
      %v2310 = vpop.f32.mrf.mxu0
      %2311 = vdwg.mxu0
      %2312 = vmatpush.bf16.msra.mxu0 0
      %2313 = vmatpush.bf16.msra.mxu0 0
      %2314 = vmatpush.bf16.msra.mxu0 0
      %2315 = vmatpush.bf16.msra.mxu0 0
      %2316 = vmatpush.bf16.msra.mxu0 0
      %2317 = vmatpush.bf16.msra.mxu0 0
      %2318 = vmatpush.bf16.msra.mxu0 0
      %2319 = vmatpush.bf16.msra.mxu0 %v2253
      %2320 = vmatmul.bf16.gmra.mxu0 %v2241
      %v2321 = vpop.f32.mrf.mxu0
      %v2322 = vadd.f32 0.0, %v2321
      %v2323 = vpop.f32.mrf.mxu0
      %2324 = vdwg.mxu0
      %2325 = vmatpush.bf16.msra.mxu0 0
      %2326 = vmatpush.bf16.msra.mxu0 0
      %2327 = vmatpush.bf16.msra.mxu0 0
      %2328 = vmatpush.bf16.msra.mxu0 0
      %2329 = vmatpush.bf16.msra.mxu0 0
      %2330 = vmatpush.bf16.msra.mxu0 0
      %2331 = vmatpush.bf16.msra.mxu0 0
      %2332 = vmatpush.bf16.msra.mxu0 %v2256
      %2333 = vmatmul.bf16.gmra.mxu0 %v2241
      %v2334 = vpop.f32.mrf.mxu0
      %v2335 = vadd.f32 0.0, %v2334
      %v2336 = vpop.f32.mrf.mxu0
      %2337 = vdwg.mxu0
      %2338 = vmatpush.bf16.msra.mxu0 0
      %2339 = vmatpush.bf16.msra.mxu0 0
      %2340 = vmatpush.bf16.msra.mxu0 0
      %2341 = vmatpush.bf16.msra.mxu0 0
      %2342 = vmatpush.bf16.msra.mxu0 0
      %2343 = vmatpush.bf16.msra.mxu0 0
      %2344 = vmatpush.bf16.msra.mxu0 0
      %2345 = vmatpush.bf16.msra.mxu0 %v2259
      %2346 = vmatmul.bf16.gmra.mxu0 %v2241
      %v2347 = vpop.f32.mrf.mxu0
      %v2348 = vadd.f32 0.0, %v2347
      %v2349 = vpop.f32.mrf.mxu0
      %2350 = vdwg.mxu0
      %2351 = vmatpush.bf16.msra.mxu0 0
      %2352 = vmatpush.bf16.msra.mxu0 0
      %2353 = vmatpush.bf16.msra.mxu0 0
      %2354 = vmatpush.bf16.msra.mxu0 0
      %2355 = vmatpush.bf16.msra.mxu0 0
      %2356 = vmatpush.bf16.msra.mxu0 0
      %2357 = vmatpush.bf16.msra.mxu0 0
      %2358 = vmatpush.bf16.msra.mxu0 %v2262
      %2359 = vmatmul.bf16.gmra.mxu0 %v2241
      %v2360 = vpop.f32.mrf.mxu0
      %v2361 = vadd.f32 0.0, %v2360
      %v2362 = vpop.f32.mrf.mxu0
      %2363 = vdwg.mxu0
      %2364 = vmatpush.bf16.msra.mxu0 0
      %2365 = vmatpush.bf16.msra.mxu0 0
      %2366 = vmatpush.bf16.msra.mxu0 0
      %2367 = vmatpush.bf16.msra.mxu0 0
      %2368 = vmatpush.bf16.msra.mxu0 0
      %2369 = vmatpush.bf16.msra.mxu0 0
      %2370 = vmatpush.bf16.msra.mxu0 0
      %2371 = vmatpush.bf16.msra.mxu0 %v2265
      %2372 = vmatmul.bf16.gmra.mxu0 %v2241
      %v2373 = vpop.f32.mrf.mxu0
      %v2374 = vadd.f32 0.0, %v2373
      %v2375 = vpop.f32.mrf.mxu0
      %2376 = vdwg.mxu0
      %2377 = vmatpush.bf16.msra.mxu0 0
      %2378 = vmatpush.bf16.msra.mxu0 0
      %2379 = vmatpush.bf16.msra.mxu0 0
      %2380 = vmatpush.bf16.msra.mxu0 0
      %2381 = vmatpush.bf16.msra.mxu0 0
      %2382 = vmatpush.bf16.msra.mxu0 0
      %2383 = vmatpush.bf16.msra.mxu0 0
      %2384 = vmatpush.bf16.msra.mxu0 %v2268
      %2385 = vmatmul.bf16.gmra.mxu0 %v2241
      %v2386 = vpop.f32.mrf.mxu0
      %v2387 = vadd.f32 0.0, %v2386
      %v2388 = vpop.f32.mrf.mxu0
      %2389 = vdwg.mxu0
      %2390 = vmatpush.bf16.msra.mxu0 0
      %2391 = vmatpush.bf16.msra.mxu0 0
      %2392 = vmatpush.bf16.msra.mxu0 0
      %2393 = vmatpush.bf16.msra.mxu0 0
      %2394 = vmatpush.bf16.msra.mxu0 0
      %2395 = vmatpush.bf16.msra.mxu0 0
      %2396 = vmatpush.bf16.msra.mxu0 0
      %2397 = vmatpush.bf16.msra.mxu0 %v2271
      %2398 = vmatmul.bf16.gmra.mxu0 %v2241
      %v2399 = vpop.f32.mrf.mxu0
      %v2400 = vadd.f32 0.0, %v2399
      %v2401 = vpop.f32.mrf.mxu0
      %2402 = vdwg.mxu0
      %v2403 = vadd.f32 %v2195, %v2283
      %v2404 = vadd.f32 %v2196, %v2296
      %v2405 = vadd.f32 %v2197, %v2309
      %v2406 = vadd.f32 %v2198, %v2322
      %v2407 = vadd.f32 %v2199, %v2335
      %v2408 = vadd.f32 %v2200, %v2348
      %v2409 = vadd.f32 %v2201, %v2361
      %v2410 = vadd.f32 %v2202, %v2374
      %v2411 = vadd.f32 %v2203, %v2387
      %v2412 = vadd.f32 %v2204, %v2400
      %s2413 = scalar_lea.vmem %s2, 40
      %v2414 = vld [vmem:[%s2413] sm:$0xf]
      %2415 = vrot.lane.b32.xlu0 %v370, 27
      %v2416 = vpop.permute.xlu0 %2415
      %2417 = vrot.lane.b32.xlu0 %v371, 27
      %v2418 = vpop.permute.xlu0 %2417
      %2419 = vrot.lane.b32.xlu0 %v372, 27
      %v2420 = vpop.permute.xlu0 %2419
      %2421 = vrot.lane.b32.xlu0 %v373, 27
      %v2422 = vpop.permute.xlu0 %2421
      %2423 = vrot.lane.b32.xlu0 %v374, 27
      %v2424 = vpop.permute.xlu0 %2423
      %2425 = vrot.lane.b32.xlu0 %v375, 27
      %v2426 = vpop.permute.xlu0 %2425
      %2427 = vrot.lane.b32.xlu0 %v376, 27
      %v2428 = vpop.permute.xlu0 %2427
      %2429 = vrot.lane.b32.xlu0 %v377, 27
      %v2430 = vpop.permute.xlu0 %2429
      %2431 = vrot.lane.b32.xlu0 %v378, 27
      %v2432 = vpop.permute.xlu0 %2431
      %2433 = vrot.lane.b32.xlu0 %v379, 27
      %v2434 = vpop.permute.xlu0 %2433
      %2435 = vrot.lane.b32.xlu0 %v383, 27
      %v2436 = vpop.permute.xlu0 %2435
      %vm2437 = vcmask 220160
      %v2438 = vsel %vm2437, %v2416, %v2418
      %v2439 = vsel %vm2437, %v2418, %v2420
      %v2440 = vsel %vm2437, %v2420, %v2422
      %v2441 = vsel %vm2437, %v2422, %v2424
      %v2442 = vsel %vm2437, %v2424, %v2426
      %v2443 = vsel %vm2437, %v2426, %v2428
      %v2444 = vsel %vm2437, %v2428, %v2430
      %v2445 = vsel %vm2437, %v2430, %v2432
      %v2446 = vsel %vm2437, %v2432, %v2434
      %v2447 = vsel %vm2437, %v2434, %v2436
      %v2449 = vsel %vm421, %v2414, 0
      %v2452 = vsel %vm425, %v2438, 0
      %v2455 = vsel %vm425, %v2439, 0
      %v2458 = vsel %vm425, %v2440, 0
      %v2461 = vsel %vm425, %v2441, 0
      %v2464 = vsel %vm425, %v2442, 0
      %v2467 = vsel %vm425, %v2443, 0
      %v2470 = vsel %vm425, %v2444, 0
      %v2473 = vsel %vm425, %v2445, 0
      %v2476 = vsel %vm425, %v2446, 0
      %v2479 = vsel %vm425, %v2447, 0
      %2481 = vmatpush.bf16.msra.mxu0 0
      %2482 = vmatpush.bf16.msra.mxu0 0
      %2483 = vmatpush.bf16.msra.mxu0 0
      %2484 = vmatpush.bf16.msra.mxu0 0
      %2485 = vmatpush.bf16.msra.mxu0 0
      %2486 = vmatpush.bf16.msra.mxu0 0
      %2487 = vmatpush.bf16.msra.mxu0 0
      %2488 = vmatpush.bf16.msra.mxu0 %v2452
      %2489 = vmatmul.bf16.gmra.mxu0 %v2449
      %v2490 = vpop.f32.mrf.mxu0
      %v2491 = vadd.f32 0.0, %v2490
      %v2492 = vpop.f32.mrf.mxu0
      %2493 = vdwg.mxu0
      %2494 = vmatpush.bf16.msra.mxu0 0
      %2495 = vmatpush.bf16.msra.mxu0 0
      %2496 = vmatpush.bf16.msra.mxu0 0
      %2497 = vmatpush.bf16.msra.mxu0 0
      %2498 = vmatpush.bf16.msra.mxu0 0
      %2499 = vmatpush.bf16.msra.mxu0 0
      %2500 = vmatpush.bf16.msra.mxu0 0
      %2501 = vmatpush.bf16.msra.mxu0 %v2455
      %2502 = vmatmul.bf16.gmra.mxu0 %v2449
      %v2503 = vpop.f32.mrf.mxu0
      %v2504 = vadd.f32 0.0, %v2503
      %v2505 = vpop.f32.mrf.mxu0
      %2506 = vdwg.mxu0
      %2507 = vmatpush.bf16.msra.mxu0 0
      %2508 = vmatpush.bf16.msra.mxu0 0
      %2509 = vmatpush.bf16.msra.mxu0 0
      %2510 = vmatpush.bf16.msra.mxu0 0
      %2511 = vmatpush.bf16.msra.mxu0 0
      %2512 = vmatpush.bf16.msra.mxu0 0
      %2513 = vmatpush.bf16.msra.mxu0 0
      %2514 = vmatpush.bf16.msra.mxu0 %v2458
      %2515 = vmatmul.bf16.gmra.mxu0 %v2449
      %v2516 = vpop.f32.mrf.mxu0
      %v2517 = vadd.f32 0.0, %v2516
      %v2518 = vpop.f32.mrf.mxu0
      %2519 = vdwg.mxu0
      %2520 = vmatpush.bf16.msra.mxu0 0
      %2521 = vmatpush.bf16.msra.mxu0 0
      %2522 = vmatpush.bf16.msra.mxu0 0
      %2523 = vmatpush.bf16.msra.mxu0 0
      %2524 = vmatpush.bf16.msra.mxu0 0
      %2525 = vmatpush.bf16.msra.mxu0 0
      %2526 = vmatpush.bf16.msra.mxu0 0
      %2527 = vmatpush.bf16.msra.mxu0 %v2461
      %2528 = vmatmul.bf16.gmra.mxu0 %v2449
      %v2529 = vpop.f32.mrf.mxu0
      %v2530 = vadd.f32 0.0, %v2529
      %v2531 = vpop.f32.mrf.mxu0
      %2532 = vdwg.mxu0
      %2533 = vmatpush.bf16.msra.mxu0 0
      %2534 = vmatpush.bf16.msra.mxu0 0
      %2535 = vmatpush.bf16.msra.mxu0 0
      %2536 = vmatpush.bf16.msra.mxu0 0
      %2537 = vmatpush.bf16.msra.mxu0 0
      %2538 = vmatpush.bf16.msra.mxu0 0
      %2539 = vmatpush.bf16.msra.mxu0 0
      %2540 = vmatpush.bf16.msra.mxu0 %v2464
      %2541 = vmatmul.bf16.gmra.mxu0 %v2449
      %v2542 = vpop.f32.mrf.mxu0
      %v2543 = vadd.f32 0.0, %v2542
      %v2544 = vpop.f32.mrf.mxu0
      %2545 = vdwg.mxu0
      %2546 = vmatpush.bf16.msra.mxu0 0
      %2547 = vmatpush.bf16.msra.mxu0 0
      %2548 = vmatpush.bf16.msra.mxu0 0
      %2549 = vmatpush.bf16.msra.mxu0 0
      %2550 = vmatpush.bf16.msra.mxu0 0
      %2551 = vmatpush.bf16.msra.mxu0 0
      %2552 = vmatpush.bf16.msra.mxu0 0
      %2553 = vmatpush.bf16.msra.mxu0 %v2467
      %2554 = vmatmul.bf16.gmra.mxu0 %v2449
      %v2555 = vpop.f32.mrf.mxu0
      %v2556 = vadd.f32 0.0, %v2555
      %v2557 = vpop.f32.mrf.mxu0
      %2558 = vdwg.mxu0
      %2559 = vmatpush.bf16.msra.mxu0 0
      %2560 = vmatpush.bf16.msra.mxu0 0
      %2561 = vmatpush.bf16.msra.mxu0 0
      %2562 = vmatpush.bf16.msra.mxu0 0
      %2563 = vmatpush.bf16.msra.mxu0 0
      %2564 = vmatpush.bf16.msra.mxu0 0
      %2565 = vmatpush.bf16.msra.mxu0 0
      %2566 = vmatpush.bf16.msra.mxu0 %v2470
      %2567 = vmatmul.bf16.gmra.mxu0 %v2449
      %v2568 = vpop.f32.mrf.mxu0
      %v2569 = vadd.f32 0.0, %v2568
      %v2570 = vpop.f32.mrf.mxu0
      %2571 = vdwg.mxu0
      %2572 = vmatpush.bf16.msra.mxu0 0
      %2573 = vmatpush.bf16.msra.mxu0 0
      %2574 = vmatpush.bf16.msra.mxu0 0
      %2575 = vmatpush.bf16.msra.mxu0 0
      %2576 = vmatpush.bf16.msra.mxu0 0
      %2577 = vmatpush.bf16.msra.mxu0 0
      %2578 = vmatpush.bf16.msra.mxu0 0
      %2579 = vmatpush.bf16.msra.mxu0 %v2473
      %2580 = vmatmul.bf16.gmra.mxu0 %v2449
      %v2581 = vpop.f32.mrf.mxu0
      %v2582 = vadd.f32 0.0, %v2581
      %v2583 = vpop.f32.mrf.mxu0
      %2584 = vdwg.mxu0
      %2585 = vmatpush.bf16.msra.mxu0 0
      %2586 = vmatpush.bf16.msra.mxu0 0
      %2587 = vmatpush.bf16.msra.mxu0 0
      %2588 = vmatpush.bf16.msra.mxu0 0
      %2589 = vmatpush.bf16.msra.mxu0 0
      %2590 = vmatpush.bf16.msra.mxu0 0
      %2591 = vmatpush.bf16.msra.mxu0 0
      %2592 = vmatpush.bf16.msra.mxu0 %v2476
      %2593 = vmatmul.bf16.gmra.mxu0 %v2449
      %v2594 = vpop.f32.mrf.mxu0
      %v2595 = vadd.f32 0.0, %v2594
      %v2596 = vpop.f32.mrf.mxu0
      %2597 = vdwg.mxu0
      %2598 = vmatpush.bf16.msra.mxu0 0
      %2599 = vmatpush.bf16.msra.mxu0 0
      %2600 = vmatpush.bf16.msra.mxu0 0
      %2601 = vmatpush.bf16.msra.mxu0 0
      %2602 = vmatpush.bf16.msra.mxu0 0
      %2603 = vmatpush.bf16.msra.mxu0 0
      %2604 = vmatpush.bf16.msra.mxu0 0
      %2605 = vmatpush.bf16.msra.mxu0 %v2479
      %2606 = vmatmul.bf16.gmra.mxu0 %v2449
      %v2607 = vpop.f32.mrf.mxu0
      %v2608 = vadd.f32 0.0, %v2607
      %v2609 = vpop.f32.mrf.mxu0
      %2610 = vdwg.mxu0
      %v2611 = vadd.f32 %v2403, %v2491
      %v2612 = vadd.f32 %v2404, %v2504
      %v2613 = vadd.f32 %v2405, %v2517
      %v2614 = vadd.f32 %v2406, %v2530
      %v2615 = vadd.f32 %v2407, %v2543
      %v2616 = vadd.f32 %v2408, %v2556
      %v2617 = vadd.f32 %v2409, %v2569
      %v2618 = vadd.f32 %v2410, %v2582
      %v2619 = vadd.f32 %v2411, %v2595
      %v2620 = vadd.f32 %v2412, %v2608
      %s2621 = scalar_lea.vmem %s2, 44
      %v2622 = vld [vmem:[%s2621] sm:$0xf]
      %2623 = vrot.lane.b32.xlu0 %v370, 26
      %v2624 = vpop.permute.xlu0 %2623
      %2625 = vrot.lane.b32.xlu0 %v371, 26
      %v2626 = vpop.permute.xlu0 %2625
      %2627 = vrot.lane.b32.xlu0 %v372, 26
      %v2628 = vpop.permute.xlu0 %2627
      %2629 = vrot.lane.b32.xlu0 %v373, 26
      %v2630 = vpop.permute.xlu0 %2629
      %2631 = vrot.lane.b32.xlu0 %v374, 26
      %v2632 = vpop.permute.xlu0 %2631
      %2633 = vrot.lane.b32.xlu0 %v375, 26
      %v2634 = vpop.permute.xlu0 %2633
      %2635 = vrot.lane.b32.xlu0 %v376, 26
      %v2636 = vpop.permute.xlu0 %2635
      %2637 = vrot.lane.b32.xlu0 %v377, 26
      %v2638 = vpop.permute.xlu0 %2637
      %2639 = vrot.lane.b32.xlu0 %v378, 26
      %v2640 = vpop.permute.xlu0 %2639
      %2641 = vrot.lane.b32.xlu0 %v379, 26
      %v2642 = vpop.permute.xlu0 %2641
      %2643 = vrot.lane.b32.xlu0 %v383, 26
      %v2644 = vpop.permute.xlu0 %2643
      %vm2645 = vcmask 211968
      %v2646 = vsel %vm2645, %v2624, %v2626
      %v2647 = vsel %vm2645, %v2626, %v2628
      %v2648 = vsel %vm2645, %v2628, %v2630
      %v2649 = vsel %vm2645, %v2630, %v2632
      %v2650 = vsel %vm2645, %v2632, %v2634
      %v2651 = vsel %vm2645, %v2634, %v2636
      %v2652 = vsel %vm2645, %v2636, %v2638
      %v2653 = vsel %vm2645, %v2638, %v2640
      %v2654 = vsel %vm2645, %v2640, %v2642
      %v2655 = vsel %vm2645, %v2642, %v2644
      %v2657 = vsel %vm421, %v2622, 0
      %v2660 = vsel %vm425, %v2646, 0
      %v2663 = vsel %vm425, %v2647, 0
      %v2666 = vsel %vm425, %v2648, 0
      %v2669 = vsel %vm425, %v2649, 0
      %v2672 = vsel %vm425, %v2650, 0
      %v2675 = vsel %vm425, %v2651, 0
      %v2678 = vsel %vm425, %v2652, 0
      %v2681 = vsel %vm425, %v2653, 0
      %v2684 = vsel %vm425, %v2654, 0
      %v2687 = vsel %vm425, %v2655, 0
      %2689 = vmatpush.bf16.msra.mxu0 0
      %2690 = vmatpush.bf16.msra.mxu0 0
      %2691 = vmatpush.bf16.msra.mxu0 0
      %2692 = vmatpush.bf16.msra.mxu0 0
      %2693 = vmatpush.bf16.msra.mxu0 0
      %2694 = vmatpush.bf16.msra.mxu0 0
      %2695 = vmatpush.bf16.msra.mxu0 0
      %2696 = vmatpush.bf16.msra.mxu0 %v2660
      %2697 = vmatmul.bf16.gmra.mxu0 %v2657
      %v2698 = vpop.f32.mrf.mxu0
      %v2699 = vadd.f32 0.0, %v2698
      %v2700 = vpop.f32.mrf.mxu0
      %2701 = vdwg.mxu0
      %2702 = vmatpush.bf16.msra.mxu0 0
      %2703 = vmatpush.bf16.msra.mxu0 0
      %2704 = vmatpush.bf16.msra.mxu0 0
      %2705 = vmatpush.bf16.msra.mxu0 0
      %2706 = vmatpush.bf16.msra.mxu0 0
      %2707 = vmatpush.bf16.msra.mxu0 0
      %2708 = vmatpush.bf16.msra.mxu0 0
      %2709 = vmatpush.bf16.msra.mxu0 %v2663
      %2710 = vmatmul.bf16.gmra.mxu0 %v2657
      %v2711 = vpop.f32.mrf.mxu0
      %v2712 = vadd.f32 0.0, %v2711
      %v2713 = vpop.f32.mrf.mxu0
      %2714 = vdwg.mxu0
      %2715 = vmatpush.bf16.msra.mxu0 0
      %2716 = vmatpush.bf16.msra.mxu0 0
      %2717 = vmatpush.bf16.msra.mxu0 0
      %2718 = vmatpush.bf16.msra.mxu0 0
      %2719 = vmatpush.bf16.msra.mxu0 0
      %2720 = vmatpush.bf16.msra.mxu0 0
      %2721 = vmatpush.bf16.msra.mxu0 0
      %2722 = vmatpush.bf16.msra.mxu0 %v2666
      %2723 = vmatmul.bf16.gmra.mxu0 %v2657
      %v2724 = vpop.f32.mrf.mxu0
      %v2725 = vadd.f32 0.0, %v2724
      %v2726 = vpop.f32.mrf.mxu0
      %2727 = vdwg.mxu0
      %2728 = vmatpush.bf16.msra.mxu0 0
      %2729 = vmatpush.bf16.msra.mxu0 0
      %2730 = vmatpush.bf16.msra.mxu0 0
      %2731 = vmatpush.bf16.msra.mxu0 0
      %2732 = vmatpush.bf16.msra.mxu0 0
      %2733 = vmatpush.bf16.msra.mxu0 0
      %2734 = vmatpush.bf16.msra.mxu0 0
      %2735 = vmatpush.bf16.msra.mxu0 %v2669
      %2736 = vmatmul.bf16.gmra.mxu0 %v2657
      %v2737 = vpop.f32.mrf.mxu0
      %v2738 = vadd.f32 0.0, %v2737
      %v2739 = vpop.f32.mrf.mxu0
      %2740 = vdwg.mxu0
      %2741 = vmatpush.bf16.msra.mxu0 0
      %2742 = vmatpush.bf16.msra.mxu0 0
      %2743 = vmatpush.bf16.msra.mxu0 0
      %2744 = vmatpush.bf16.msra.mxu0 0
      %2745 = vmatpush.bf16.msra.mxu0 0
      %2746 = vmatpush.bf16.msra.mxu0 0
      %2747 = vmatpush.bf16.msra.mxu0 0
      %2748 = vmatpush.bf16.msra.mxu0 %v2672
      %2749 = vmatmul.bf16.gmra.mxu0 %v2657
      %v2750 = vpop.f32.mrf.mxu0
      %v2751 = vadd.f32 0.0, %v2750
      %v2752 = vpop.f32.mrf.mxu0
      %2753 = vdwg.mxu0
      %2754 = vmatpush.bf16.msra.mxu0 0
      %2755 = vmatpush.bf16.msra.mxu0 0
      %2756 = vmatpush.bf16.msra.mxu0 0
      %2757 = vmatpush.bf16.msra.mxu0 0
      %2758 = vmatpush.bf16.msra.mxu0 0
      %2759 = vmatpush.bf16.msra.mxu0 0
      %2760 = vmatpush.bf16.msra.mxu0 0
      %2761 = vmatpush.bf16.msra.mxu0 %v2675
      %2762 = vmatmul.bf16.gmra.mxu0 %v2657
      %v2763 = vpop.f32.mrf.mxu0
      %v2764 = vadd.f32 0.0, %v2763
      %v2765 = vpop.f32.mrf.mxu0
      %2766 = vdwg.mxu0
      %2767 = vmatpush.bf16.msra.mxu0 0
      %2768 = vmatpush.bf16.msra.mxu0 0
      %2769 = vmatpush.bf16.msra.mxu0 0
      %2770 = vmatpush.bf16.msra.mxu0 0
      %2771 = vmatpush.bf16.msra.mxu0 0
      %2772 = vmatpush.bf16.msra.mxu0 0
      %2773 = vmatpush.bf16.msra.mxu0 0
      %2774 = vmatpush.bf16.msra.mxu0 %v2678
      %2775 = vmatmul.bf16.gmra.mxu0 %v2657
      %v2776 = vpop.f32.mrf.mxu0
      %v2777 = vadd.f32 0.0, %v2776
      %v2778 = vpop.f32.mrf.mxu0
      %2779 = vdwg.mxu0
      %2780 = vmatpush.bf16.msra.mxu0 0
      %2781 = vmatpush.bf16.msra.mxu0 0
      %2782 = vmatpush.bf16.msra.mxu0 0
      %2783 = vmatpush.bf16.msra.mxu0 0
      %2784 = vmatpush.bf16.msra.mxu0 0
      %2785 = vmatpush.bf16.msra.mxu0 0
      %2786 = vmatpush.bf16.msra.mxu0 0
      %2787 = vmatpush.bf16.msra.mxu0 %v2681
      %2788 = vmatmul.bf16.gmra.mxu0 %v2657
      %v2789 = vpop.f32.mrf.mxu0
      %v2790 = vadd.f32 0.0, %v2789
      %v2791 = vpop.f32.mrf.mxu0
      %2792 = vdwg.mxu0
      %2793 = vmatpush.bf16.msra.mxu0 0
      %2794 = vmatpush.bf16.msra.mxu0 0
      %2795 = vmatpush.bf16.msra.mxu0 0
      %2796 = vmatpush.bf16.msra.mxu0 0
      %2797 = vmatpush.bf16.msra.mxu0 0
      %2798 = vmatpush.bf16.msra.mxu0 0
      %2799 = vmatpush.bf16.msra.mxu0 0
      %2800 = vmatpush.bf16.msra.mxu0 %v2684
      %2801 = vmatmul.bf16.gmra.mxu0 %v2657
      %v2802 = vpop.f32.mrf.mxu0
      %v2803 = vadd.f32 0.0, %v2802
      %v2804 = vpop.f32.mrf.mxu0
      %2805 = vdwg.mxu0
      %2806 = vmatpush.bf16.msra.mxu0 0
      %2807 = vmatpush.bf16.msra.mxu0 0
      %2808 = vmatpush.bf16.msra.mxu0 0
      %2809 = vmatpush.bf16.msra.mxu0 0
      %2810 = vmatpush.bf16.msra.mxu0 0
      %2811 = vmatpush.bf16.msra.mxu0 0
      %2812 = vmatpush.bf16.msra.mxu0 0
      %2813 = vmatpush.bf16.msra.mxu0 %v2687
      %2814 = vmatmul.bf16.gmra.mxu0 %v2657
      %v2815 = vpop.f32.mrf.mxu0
      %v2816 = vadd.f32 0.0, %v2815
      %v2817 = vpop.f32.mrf.mxu0
      %2818 = vdwg.mxu0
      %v2819 = vadd.f32 %v2611, %v2699
      %v2820 = vadd.f32 %v2612, %v2712
      %v2821 = vadd.f32 %v2613, %v2725
      %v2822 = vadd.f32 %v2614, %v2738
      %v2823 = vadd.f32 %v2615, %v2751
      %v2824 = vadd.f32 %v2616, %v2764
      %v2825 = vadd.f32 %v2617, %v2777
      %v2826 = vadd.f32 %v2618, %v2790
      %v2827 = vadd.f32 %v2619, %v2803
      %v2828 = vadd.f32 %v2620, %v2816
      %s2829 = scalar_lea.vmem %s2, 48
      %v2830 = vld [vmem:[%s2829] sm:$0xf]
      %2831 = vrot.lane.b32.xlu0 %v370, 18
      %v2832 = vpop.permute.xlu0 %2831
      %2833 = vrot.lane.b32.xlu0 %v371, 18
      %v2834 = vpop.permute.xlu0 %2833
      %2835 = vrot.lane.b32.xlu0 %v372, 18
      %v2836 = vpop.permute.xlu0 %2835
      %2837 = vrot.lane.b32.xlu0 %v373, 18
      %v2838 = vpop.permute.xlu0 %2837
      %2839 = vrot.lane.b32.xlu0 %v374, 18
      %v2840 = vpop.permute.xlu0 %2839
      %2841 = vrot.lane.b32.xlu0 %v375, 18
      %v2842 = vpop.permute.xlu0 %2841
      %2843 = vrot.lane.b32.xlu0 %v376, 18
      %v2844 = vpop.permute.xlu0 %2843
      %2845 = vrot.lane.b32.xlu0 %v377, 18
      %v2846 = vpop.permute.xlu0 %2845
      %2847 = vrot.lane.b32.xlu0 %v378, 18
      %v2848 = vpop.permute.xlu0 %2847
      %2849 = vrot.lane.b32.xlu0 %v379, 18
      %v2850 = vpop.permute.xlu0 %2849
      %2851 = vrot.lane.b32.xlu0 %v383, 18
      %v2852 = vpop.permute.xlu0 %2851
      %vm2853 = vcmask 146432
      %v2854 = vsel %vm2853, %v2832, %v2834
      %v2855 = vsel %vm2853, %v2834, %v2836
      %v2856 = vsel %vm2853, %v2836, %v2838
      %v2857 = vsel %vm2853, %v2838, %v2840
      %v2858 = vsel %vm2853, %v2840, %v2842
      %v2859 = vsel %vm2853, %v2842, %v2844
      %v2860 = vsel %vm2853, %v2844, %v2846
      %v2861 = vsel %vm2853, %v2846, %v2848
      %v2862 = vsel %vm2853, %v2848, %v2850
      %v2863 = vsel %vm2853, %v2850, %v2852
      %v2865 = vsel %vm421, %v2830, 0
      %v2868 = vsel %vm425, %v2854, 0
      %v2871 = vsel %vm425, %v2855, 0
      %v2874 = vsel %vm425, %v2856, 0
      %v2877 = vsel %vm425, %v2857, 0
      %v2880 = vsel %vm425, %v2858, 0
      %v2883 = vsel %vm425, %v2859, 0
      %v2886 = vsel %vm425, %v2860, 0
      %v2889 = vsel %vm425, %v2861, 0
      %v2892 = vsel %vm425, %v2862, 0
      %v2895 = vsel %vm425, %v2863, 0
      %2897 = vmatpush.bf16.msra.mxu0 0
      %2898 = vmatpush.bf16.msra.mxu0 0
      %2899 = vmatpush.bf16.msra.mxu0 0
      %2900 = vmatpush.bf16.msra.mxu0 0
      %2901 = vmatpush.bf16.msra.mxu0 0
      %2902 = vmatpush.bf16.msra.mxu0 0
      %2903 = vmatpush.bf16.msra.mxu0 0
      %2904 = vmatpush.bf16.msra.mxu0 %v2868
      %2905 = vmatmul.bf16.gmra.mxu0 %v2865
      %v2906 = vpop.f32.mrf.mxu0
      %v2907 = vadd.f32 0.0, %v2906
      %v2908 = vpop.f32.mrf.mxu0
      %2909 = vdwg.mxu0
      %2910 = vmatpush.bf16.msra.mxu0 0
      %2911 = vmatpush.bf16.msra.mxu0 0
      %2912 = vmatpush.bf16.msra.mxu0 0
      %2913 = vmatpush.bf16.msra.mxu0 0
      %2914 = vmatpush.bf16.msra.mxu0 0
      %2915 = vmatpush.bf16.msra.mxu0 0
      %2916 = vmatpush.bf16.msra.mxu0 0
      %2917 = vmatpush.bf16.msra.mxu0 %v2871
      %2918 = vmatmul.bf16.gmra.mxu0 %v2865
      %v2919 = vpop.f32.mrf.mxu0
      %v2920 = vadd.f32 0.0, %v2919
      %v2921 = vpop.f32.mrf.mxu0
      %2922 = vdwg.mxu0
      %2923 = vmatpush.bf16.msra.mxu0 0
      %2924 = vmatpush.bf16.msra.mxu0 0
      %2925 = vmatpush.bf16.msra.mxu0 0
      %2926 = vmatpush.bf16.msra.mxu0 0
      %2927 = vmatpush.bf16.msra.mxu0 0
      %2928 = vmatpush.bf16.msra.mxu0 0
      %2929 = vmatpush.bf16.msra.mxu0 0
      %2930 = vmatpush.bf16.msra.mxu0 %v2874
      %2931 = vmatmul.bf16.gmra.mxu0 %v2865
      %v2932 = vpop.f32.mrf.mxu0
      %v2933 = vadd.f32 0.0, %v2932
      %v2934 = vpop.f32.mrf.mxu0
      %2935 = vdwg.mxu0
      %2936 = vmatpush.bf16.msra.mxu0 0
      %2937 = vmatpush.bf16.msra.mxu0 0
      %2938 = vmatpush.bf16.msra.mxu0 0
      %2939 = vmatpush.bf16.msra.mxu0 0
      %2940 = vmatpush.bf16.msra.mxu0 0
      %2941 = vmatpush.bf16.msra.mxu0 0
      %2942 = vmatpush.bf16.msra.mxu0 0
      %2943 = vmatpush.bf16.msra.mxu0 %v2877
      %2944 = vmatmul.bf16.gmra.mxu0 %v2865
      %v2945 = vpop.f32.mrf.mxu0
      %v2946 = vadd.f32 0.0, %v2945
      %v2947 = vpop.f32.mrf.mxu0
      %2948 = vdwg.mxu0
      %2949 = vmatpush.bf16.msra.mxu0 0
      %2950 = vmatpush.bf16.msra.mxu0 0
      %2951 = vmatpush.bf16.msra.mxu0 0
      %2952 = vmatpush.bf16.msra.mxu0 0
      %2953 = vmatpush.bf16.msra.mxu0 0
      %2954 = vmatpush.bf16.msra.mxu0 0
      %2955 = vmatpush.bf16.msra.mxu0 0
      %2956 = vmatpush.bf16.msra.mxu0 %v2880
      %2957 = vmatmul.bf16.gmra.mxu0 %v2865
      %v2958 = vpop.f32.mrf.mxu0
      %v2959 = vadd.f32 0.0, %v2958
      %v2960 = vpop.f32.mrf.mxu0
      %2961 = vdwg.mxu0
      %2962 = vmatpush.bf16.msra.mxu0 0
      %2963 = vmatpush.bf16.msra.mxu0 0
      %2964 = vmatpush.bf16.msra.mxu0 0
      %2965 = vmatpush.bf16.msra.mxu0 0
      %2966 = vmatpush.bf16.msra.mxu0 0
      %2967 = vmatpush.bf16.msra.mxu0 0
      %2968 = vmatpush.bf16.msra.mxu0 0
      %2969 = vmatpush.bf16.msra.mxu0 %v2883
      %2970 = vmatmul.bf16.gmra.mxu0 %v2865
      %v2971 = vpop.f32.mrf.mxu0
      %v2972 = vadd.f32 0.0, %v2971
      %v2973 = vpop.f32.mrf.mxu0
      %2974 = vdwg.mxu0
      %2975 = vmatpush.bf16.msra.mxu0 0
      %2976 = vmatpush.bf16.msra.mxu0 0
      %2977 = vmatpush.bf16.msra.mxu0 0
      %2978 = vmatpush.bf16.msra.mxu0 0
      %2979 = vmatpush.bf16.msra.mxu0 0
      %2980 = vmatpush.bf16.msra.mxu0 0
      %2981 = vmatpush.bf16.msra.mxu0 0
      %2982 = vmatpush.bf16.msra.mxu0 %v2886
      %2983 = vmatmul.bf16.gmra.mxu0 %v2865
      %v2984 = vpop.f32.mrf.mxu0
      %v2985 = vadd.f32 0.0, %v2984
      %v2986 = vpop.f32.mrf.mxu0
      %2987 = vdwg.mxu0
      %2988 = vmatpush.bf16.msra.mxu0 0
      %2989 = vmatpush.bf16.msra.mxu0 0
      %2990 = vmatpush.bf16.msra.mxu0 0
      %2991 = vmatpush.bf16.msra.mxu0 0
      %2992 = vmatpush.bf16.msra.mxu0 0
      %2993 = vmatpush.bf16.msra.mxu0 0
      %2994 = vmatpush.bf16.msra.mxu0 0
      %2995 = vmatpush.bf16.msra.mxu0 %v2889
      %2996 = vmatmul.bf16.gmra.mxu0 %v2865
      %v2997 = vpop.f32.mrf.mxu0
      %v2998 = vadd.f32 0.0, %v2997
      %v2999 = vpop.f32.mrf.mxu0
      %3000 = vdwg.mxu0
      %3001 = vmatpush.bf16.msra.mxu0 0
      %3002 = vmatpush.bf16.msra.mxu0 0
      %3003 = vmatpush.bf16.msra.mxu0 0
      %3004 = vmatpush.bf16.msra.mxu0 0
      %3005 = vmatpush.bf16.msra.mxu0 0
      %3006 = vmatpush.bf16.msra.mxu0 0
      %3007 = vmatpush.bf16.msra.mxu0 0
      %3008 = vmatpush.bf16.msra.mxu0 %v2892
      %3009 = vmatmul.bf16.gmra.mxu0 %v2865
      %v3010 = vpop.f32.mrf.mxu0
      %v3011 = vadd.f32 0.0, %v3010
      %v3012 = vpop.f32.mrf.mxu0
      %3013 = vdwg.mxu0
      %3014 = vmatpush.bf16.msra.mxu0 0
      %3015 = vmatpush.bf16.msra.mxu0 0
      %3016 = vmatpush.bf16.msra.mxu0 0
      %3017 = vmatpush.bf16.msra.mxu0 0
      %3018 = vmatpush.bf16.msra.mxu0 0
      %3019 = vmatpush.bf16.msra.mxu0 0
      %3020 = vmatpush.bf16.msra.mxu0 0
      %3021 = vmatpush.bf16.msra.mxu0 %v2895
      %3022 = vmatmul.bf16.gmra.mxu0 %v2865
      %v3023 = vpop.f32.mrf.mxu0
      %v3024 = vadd.f32 0.0, %v3023
      %v3025 = vpop.f32.mrf.mxu0
      %3026 = vdwg.mxu0
      %v3027 = vadd.f32 %v2819, %v2907
      %v3028 = vadd.f32 %v2820, %v2920
      %v3029 = vadd.f32 %v2821, %v2933
      %v3030 = vadd.f32 %v2822, %v2946
      %v3031 = vadd.f32 %v2823, %v2959
      %v3032 = vadd.f32 %v2824, %v2972
      %v3033 = vadd.f32 %v2825, %v2985
      %v3034 = vadd.f32 %v2826, %v2998
      %v3035 = vadd.f32 %v2827, %v3011
      %v3036 = vadd.f32 %v2828, %v3024
      %s3037 = scalar_lea.vmem %s2, 52
      %v3038 = vld [vmem:[%s3037] sm:$0xf]
      %3039 = vrot.lane.b32.xlu0 %v370, 17
      %v3040 = vpop.permute.xlu0 %3039
      %3041 = vrot.lane.b32.xlu0 %v371, 17
      %v3042 = vpop.permute.xlu0 %3041
      %3043 = vrot.lane.b32.xlu0 %v372, 17
      %v3044 = vpop.permute.xlu0 %3043
      %3045 = vrot.lane.b32.xlu0 %v373, 17
      %v3046 = vpop.permute.xlu0 %3045
      %3047 = vrot.lane.b32.xlu0 %v374, 17
      %v3048 = vpop.permute.xlu0 %3047
      %3049 = vrot.lane.b32.xlu0 %v375, 17
      %v3050 = vpop.permute.xlu0 %3049
      %3051 = vrot.lane.b32.xlu0 %v376, 17
      %v3052 = vpop.permute.xlu0 %3051
      %3053 = vrot.lane.b32.xlu0 %v377, 17
      %v3054 = vpop.permute.xlu0 %3053
      %3055 = vrot.lane.b32.xlu0 %v378, 17
      %v3056 = vpop.permute.xlu0 %3055
      %3057 = vrot.lane.b32.xlu0 %v379, 17
      %v3058 = vpop.permute.xlu0 %3057
      %3059 = vrot.lane.b32.xlu0 %v383, 17
      %v3060 = vpop.permute.xlu0 %3059
      %vm3061 = vcmask 138240
      %v3062 = vsel %vm3061, %v3040, %v3042
      %v3063 = vsel %vm3061, %v3042, %v3044
      %v3064 = vsel %vm3061, %v3044, %v3046
      %v3065 = vsel %vm3061, %v3046, %v3048
      %v3066 = vsel %vm3061, %v3048, %v3050
      %v3067 = vsel %vm3061, %v3050, %v3052
      %v3068 = vsel %vm3061, %v3052, %v3054
      %v3069 = vsel %vm3061, %v3054, %v3056
      %v3070 = vsel %vm3061, %v3056, %v3058
      %v3071 = vsel %vm3061, %v3058, %v3060
      %v3073 = vsel %vm421, %v3038, 0
      %v3076 = vsel %vm425, %v3062, 0
      %v3079 = vsel %vm425, %v3063, 0
      %v3082 = vsel %vm425, %v3064, 0
      %v3085 = vsel %vm425, %v3065, 0
      %v3088 = vsel %vm425, %v3066, 0
      %v3091 = vsel %vm425, %v3067, 0
      %v3094 = vsel %vm425, %v3068, 0
      %v3097 = vsel %vm425, %v3069, 0
      %v3100 = vsel %vm425, %v3070, 0
      %v3103 = vsel %vm425, %v3071, 0
      %3105 = vmatpush.bf16.msra.mxu0 0
      %3106 = vmatpush.bf16.msra.mxu0 0
      %3107 = vmatpush.bf16.msra.mxu0 0
      %3108 = vmatpush.bf16.msra.mxu0 0
      %3109 = vmatpush.bf16.msra.mxu0 0
      %3110 = vmatpush.bf16.msra.mxu0 0
      %3111 = vmatpush.bf16.msra.mxu0 0
      %3112 = vmatpush.bf16.msra.mxu0 %v3076
      %3113 = vmatmul.bf16.gmra.mxu0 %v3073
      %v3114 = vpop.f32.mrf.mxu0
      %v3115 = vadd.f32 0.0, %v3114
      %v3116 = vpop.f32.mrf.mxu0
      %3117 = vdwg.mxu0
      %3118 = vmatpush.bf16.msra.mxu0 0
      %3119 = vmatpush.bf16.msra.mxu0 0
      %3120 = vmatpush.bf16.msra.mxu0 0
      %3121 = vmatpush.bf16.msra.mxu0 0
      %3122 = vmatpush.bf16.msra.mxu0 0
      %3123 = vmatpush.bf16.msra.mxu0 0
      %3124 = vmatpush.bf16.msra.mxu0 0
      %3125 = vmatpush.bf16.msra.mxu0 %v3079
      %3126 = vmatmul.bf16.gmra.mxu0 %v3073
      %v3127 = vpop.f32.mrf.mxu0
      %v3128 = vadd.f32 0.0, %v3127
      %v3129 = vpop.f32.mrf.mxu0
      %3130 = vdwg.mxu0
      %3131 = vmatpush.bf16.msra.mxu0 0
      %3132 = vmatpush.bf16.msra.mxu0 0
      %3133 = vmatpush.bf16.msra.mxu0 0
      %3134 = vmatpush.bf16.msra.mxu0 0
      %3135 = vmatpush.bf16.msra.mxu0 0
      %3136 = vmatpush.bf16.msra.mxu0 0
      %3137 = vmatpush.bf16.msra.mxu0 0
      %3138 = vmatpush.bf16.msra.mxu0 %v3082
      %3139 = vmatmul.bf16.gmra.mxu0 %v3073
      %v3140 = vpop.f32.mrf.mxu0
      %v3141 = vadd.f32 0.0, %v3140
      %v3142 = vpop.f32.mrf.mxu0
      %3143 = vdwg.mxu0
      %3144 = vmatpush.bf16.msra.mxu0 0
      %3145 = vmatpush.bf16.msra.mxu0 0
      %3146 = vmatpush.bf16.msra.mxu0 0
      %3147 = vmatpush.bf16.msra.mxu0 0
      %3148 = vmatpush.bf16.msra.mxu0 0
      %3149 = vmatpush.bf16.msra.mxu0 0
      %3150 = vmatpush.bf16.msra.mxu0 0
      %3151 = vmatpush.bf16.msra.mxu0 %v3085
      %3152 = vmatmul.bf16.gmra.mxu0 %v3073
      %v3153 = vpop.f32.mrf.mxu0
      %v3154 = vadd.f32 0.0, %v3153
      %v3155 = vpop.f32.mrf.mxu0
      %3156 = vdwg.mxu0
      %3157 = vmatpush.bf16.msra.mxu0 0
      %3158 = vmatpush.bf16.msra.mxu0 0
      %3159 = vmatpush.bf16.msra.mxu0 0
      %3160 = vmatpush.bf16.msra.mxu0 0
      %3161 = vmatpush.bf16.msra.mxu0 0
      %3162 = vmatpush.bf16.msra.mxu0 0
      %3163 = vmatpush.bf16.msra.mxu0 0
      %3164 = vmatpush.bf16.msra.mxu0 %v3088
      %3165 = vmatmul.bf16.gmra.mxu0 %v3073
      %v3166 = vpop.f32.mrf.mxu0
      %v3167 = vadd.f32 0.0, %v3166
      %v3168 = vpop.f32.mrf.mxu0
      %3169 = vdwg.mxu0
      %3170 = vmatpush.bf16.msra.mxu0 0
      %3171 = vmatpush.bf16.msra.mxu0 0
      %3172 = vmatpush.bf16.msra.mxu0 0
      %3173 = vmatpush.bf16.msra.mxu0 0
      %3174 = vmatpush.bf16.msra.mxu0 0
      %3175 = vmatpush.bf16.msra.mxu0 0
      %3176 = vmatpush.bf16.msra.mxu0 0
      %3177 = vmatpush.bf16.msra.mxu0 %v3091
      %3178 = vmatmul.bf16.gmra.mxu0 %v3073
      %v3179 = vpop.f32.mrf.mxu0
      %v3180 = vadd.f32 0.0, %v3179
      %v3181 = vpop.f32.mrf.mxu0
      %3182 = vdwg.mxu0
      %3183 = vmatpush.bf16.msra.mxu0 0
      %3184 = vmatpush.bf16.msra.mxu0 0
      %3185 = vmatpush.bf16.msra.mxu0 0
      %3186 = vmatpush.bf16.msra.mxu0 0
      %3187 = vmatpush.bf16.msra.mxu0 0
      %3188 = vmatpush.bf16.msra.mxu0 0
      %3189 = vmatpush.bf16.msra.mxu0 0
      %3190 = vmatpush.bf16.msra.mxu0 %v3094
      %3191 = vmatmul.bf16.gmra.mxu0 %v3073
      %v3192 = vpop.f32.mrf.mxu0
      %v3193 = vadd.f32 0.0, %v3192
      %v3194 = vpop.f32.mrf.mxu0
      %3195 = vdwg.mxu0
      %3196 = vmatpush.bf16.msra.mxu0 0
      %3197 = vmatpush.bf16.msra.mxu0 0
      %3198 = vmatpush.bf16.msra.mxu0 0
      %3199 = vmatpush.bf16.msra.mxu0 0
      %3200 = vmatpush.bf16.msra.mxu0 0
      %3201 = vmatpush.bf16.msra.mxu0 0
      %3202 = vmatpush.bf16.msra.mxu0 0
      %3203 = vmatpush.bf16.msra.mxu0 %v3097
      %3204 = vmatmul.bf16.gmra.mxu0 %v3073
      %v3205 = vpop.f32.mrf.mxu0
      %v3206 = vadd.f32 0.0, %v3205
      %v3207 = vpop.f32.mrf.mxu0
      %3208 = vdwg.mxu0
      %3209 = vmatpush.bf16.msra.mxu0 0
      %3210 = vmatpush.bf16.msra.mxu0 0
      %3211 = vmatpush.bf16.msra.mxu0 0
      %3212 = vmatpush.bf16.msra.mxu0 0
      %3213 = vmatpush.bf16.msra.mxu0 0
      %3214 = vmatpush.bf16.msra.mxu0 0
      %3215 = vmatpush.bf16.msra.mxu0 0
      %3216 = vmatpush.bf16.msra.mxu0 %v3100
      %3217 = vmatmul.bf16.gmra.mxu0 %v3073
      %v3218 = vpop.f32.mrf.mxu0
      %v3219 = vadd.f32 0.0, %v3218
      %v3220 = vpop.f32.mrf.mxu0
      %3221 = vdwg.mxu0
      %3222 = vmatpush.bf16.msra.mxu0 0
      %3223 = vmatpush.bf16.msra.mxu0 0
      %3224 = vmatpush.bf16.msra.mxu0 0
      %3225 = vmatpush.bf16.msra.mxu0 0
      %3226 = vmatpush.bf16.msra.mxu0 0
      %3227 = vmatpush.bf16.msra.mxu0 0
      %3228 = vmatpush.bf16.msra.mxu0 0
      %3229 = vmatpush.bf16.msra.mxu0 %v3103
      %3230 = vmatmul.bf16.gmra.mxu0 %v3073
      %v3231 = vpop.f32.mrf.mxu0
      %v3232 = vadd.f32 0.0, %v3231
      %v3233 = vpop.f32.mrf.mxu0
      %3234 = vdwg.mxu0
      %v3235 = vadd.f32 %v3027, %v3115
      %v3236 = vadd.f32 %v3028, %v3128
      %v3237 = vadd.f32 %v3029, %v3141
      %v3238 = vadd.f32 %v3030, %v3154
      %v3239 = vadd.f32 %v3031, %v3167
      %v3240 = vadd.f32 %v3032, %v3180
      %v3241 = vadd.f32 %v3033, %v3193
      %v3242 = vadd.f32 %v3034, %v3206
      %v3243 = vadd.f32 %v3035, %v3219
      %v3244 = vadd.f32 %v3036, %v3232
      %s3245 = scalar_lea.vmem %s2, 56
      %v3246 = vld [vmem:[%s3245] sm:$0xf]
      %3247 = vrot.lane.b32.xlu0 %v370, 16
      %v3248 = vpop.permute.xlu0 %3247
      %3249 = vrot.lane.b32.xlu0 %v371, 16
      %v3250 = vpop.permute.xlu0 %3249
      %3251 = vrot.lane.b32.xlu0 %v372, 16
      %v3252 = vpop.permute.xlu0 %3251
      %3253 = vrot.lane.b32.xlu0 %v373, 16
      %v3254 = vpop.permute.xlu0 %3253
      %3255 = vrot.lane.b32.xlu0 %v374, 16
      %v3256 = vpop.permute.xlu0 %3255
      %3257 = vrot.lane.b32.xlu0 %v375, 16
      %v3258 = vpop.permute.xlu0 %3257
      %3259 = vrot.lane.b32.xlu0 %v376, 16
      %v3260 = vpop.permute.xlu0 %3259
      %3261 = vrot.lane.b32.xlu0 %v377, 16
      %v3262 = vpop.permute.xlu0 %3261
      %3263 = vrot.lane.b32.xlu0 %v378, 16
      %v3264 = vpop.permute.xlu0 %3263
      %3265 = vrot.lane.b32.xlu0 %v379, 16
      %v3266 = vpop.permute.xlu0 %3265
      %3267 = vrot.lane.b32.xlu0 %v383, 16
      %v3268 = vpop.permute.xlu0 %3267
      %vm3269 = vcmask 130048
      %v3270 = vsel %vm3269, %v3248, %v3250
      %v3271 = vsel %vm3269, %v3250, %v3252
      %v3272 = vsel %vm3269, %v3252, %v3254
      %v3273 = vsel %vm3269, %v3254, %v3256
      %v3274 = vsel %vm3269, %v3256, %v3258
      %v3275 = vsel %vm3269, %v3258, %v3260
      %v3276 = vsel %vm3269, %v3260, %v3262
      %v3277 = vsel %vm3269, %v3262, %v3264
      %v3278 = vsel %vm3269, %v3264, %v3266
      %v3279 = vsel %vm3269, %v3266, %v3268
      %v3281 = vsel %vm421, %v3246, 0
      %v3284 = vsel %vm425, %v3270, 0
      %v3287 = vsel %vm425, %v3271, 0
      %v3290 = vsel %vm425, %v3272, 0
      %v3293 = vsel %vm425, %v3273, 0
      %v3296 = vsel %vm425, %v3274, 0
      %v3299 = vsel %vm425, %v3275, 0
      %v3302 = vsel %vm425, %v3276, 0
      %v3305 = vsel %vm425, %v3277, 0
      %v3308 = vsel %vm425, %v3278, 0
      %v3311 = vsel %vm425, %v3279, 0
      %3313 = vmatpush.bf16.msra.mxu0 0
      %3314 = vmatpush.bf16.msra.mxu0 0
      %3315 = vmatpush.bf16.msra.mxu0 0
      %3316 = vmatpush.bf16.msra.mxu0 0
      %3317 = vmatpush.bf16.msra.mxu0 0
      %3318 = vmatpush.bf16.msra.mxu0 0
      %3319 = vmatpush.bf16.msra.mxu0 0
      %3320 = vmatpush.bf16.msra.mxu0 %v3284
      %3321 = vmatmul.bf16.gmra.mxu0 %v3281
      %v3322 = vpop.f32.mrf.mxu0
      %v3323 = vadd.f32 0.0, %v3322
      %v3324 = vpop.f32.mrf.mxu0
      %3325 = vdwg.mxu0
      %3326 = vmatpush.bf16.msra.mxu0 0
      %3327 = vmatpush.bf16.msra.mxu0 0
      %3328 = vmatpush.bf16.msra.mxu0 0
      %3329 = vmatpush.bf16.msra.mxu0 0
      %3330 = vmatpush.bf16.msra.mxu0 0
      %3331 = vmatpush.bf16.msra.mxu0 0
      %3332 = vmatpush.bf16.msra.mxu0 0
      %3333 = vmatpush.bf16.msra.mxu0 %v3287
      %3334 = vmatmul.bf16.gmra.mxu0 %v3281
      %v3335 = vpop.f32.mrf.mxu0
      %v3336 = vadd.f32 0.0, %v3335
      %v3337 = vpop.f32.mrf.mxu0
      %3338 = vdwg.mxu0
      %3339 = vmatpush.bf16.msra.mxu0 0
      %3340 = vmatpush.bf16.msra.mxu0 0
      %3341 = vmatpush.bf16.msra.mxu0 0
      %3342 = vmatpush.bf16.msra.mxu0 0
      %3343 = vmatpush.bf16.msra.mxu0 0
      %3344 = vmatpush.bf16.msra.mxu0 0
      %3345 = vmatpush.bf16.msra.mxu0 0
      %3346 = vmatpush.bf16.msra.mxu0 %v3290
      %3347 = vmatmul.bf16.gmra.mxu0 %v3281
      %v3348 = vpop.f32.mrf.mxu0
      %v3349 = vadd.f32 0.0, %v3348
      %v3350 = vpop.f32.mrf.mxu0
      %3351 = vdwg.mxu0
      %3352 = vmatpush.bf16.msra.mxu0 0
      %3353 = vmatpush.bf16.msra.mxu0 0
      %3354 = vmatpush.bf16.msra.mxu0 0
      %3355 = vmatpush.bf16.msra.mxu0 0
      %3356 = vmatpush.bf16.msra.mxu0 0
      %3357 = vmatpush.bf16.msra.mxu0 0
      %3358 = vmatpush.bf16.msra.mxu0 0
      %3359 = vmatpush.bf16.msra.mxu0 %v3293
      %3360 = vmatmul.bf16.gmra.mxu0 %v3281
      %v3361 = vpop.f32.mrf.mxu0
      %v3362 = vadd.f32 0.0, %v3361
      %v3363 = vpop.f32.mrf.mxu0
      %3364 = vdwg.mxu0
      %3365 = vmatpush.bf16.msra.mxu0 0
      %3366 = vmatpush.bf16.msra.mxu0 0
      %3367 = vmatpush.bf16.msra.mxu0 0
      %3368 = vmatpush.bf16.msra.mxu0 0
      %3369 = vmatpush.bf16.msra.mxu0 0
      %3370 = vmatpush.bf16.msra.mxu0 0
      %3371 = vmatpush.bf16.msra.mxu0 0
      %3372 = vmatpush.bf16.msra.mxu0 %v3296
      %3373 = vmatmul.bf16.gmra.mxu0 %v3281
      %v3374 = vpop.f32.mrf.mxu0
      %v3375 = vadd.f32 0.0, %v3374
      %v3376 = vpop.f32.mrf.mxu0
      %3377 = vdwg.mxu0
      %3378 = vmatpush.bf16.msra.mxu0 0
      %3379 = vmatpush.bf16.msra.mxu0 0
      %3380 = vmatpush.bf16.msra.mxu0 0
      %3381 = vmatpush.bf16.msra.mxu0 0
      %3382 = vmatpush.bf16.msra.mxu0 0
      %3383 = vmatpush.bf16.msra.mxu0 0
      %3384 = vmatpush.bf16.msra.mxu0 0
      %3385 = vmatpush.bf16.msra.mxu0 %v3299
      %3386 = vmatmul.bf16.gmra.mxu0 %v3281
      %v3387 = vpop.f32.mrf.mxu0
      %v3388 = vadd.f32 0.0, %v3387
      %v3389 = vpop.f32.mrf.mxu0
      %3390 = vdwg.mxu0
      %3391 = vmatpush.bf16.msra.mxu0 0
      %3392 = vmatpush.bf16.msra.mxu0 0
      %3393 = vmatpush.bf16.msra.mxu0 0
      %3394 = vmatpush.bf16.msra.mxu0 0
      %3395 = vmatpush.bf16.msra.mxu0 0
      %3396 = vmatpush.bf16.msra.mxu0 0
      %3397 = vmatpush.bf16.msra.mxu0 0
      %3398 = vmatpush.bf16.msra.mxu0 %v3302
      %3399 = vmatmul.bf16.gmra.mxu0 %v3281
      %v3400 = vpop.f32.mrf.mxu0
      %v3401 = vadd.f32 0.0, %v3400
      %v3402 = vpop.f32.mrf.mxu0
      %3403 = vdwg.mxu0
      %3404 = vmatpush.bf16.msra.mxu0 0
      %3405 = vmatpush.bf16.msra.mxu0 0
      %3406 = vmatpush.bf16.msra.mxu0 0
      %3407 = vmatpush.bf16.msra.mxu0 0
      %3408 = vmatpush.bf16.msra.mxu0 0
      %3409 = vmatpush.bf16.msra.mxu0 0
      %3410 = vmatpush.bf16.msra.mxu0 0
      %3411 = vmatpush.bf16.msra.mxu0 %v3305
      %3412 = vmatmul.bf16.gmra.mxu0 %v3281
      %v3413 = vpop.f32.mrf.mxu0
      %v3414 = vadd.f32 0.0, %v3413
      %v3415 = vpop.f32.mrf.mxu0
      %3416 = vdwg.mxu0
      %3417 = vmatpush.bf16.msra.mxu0 0
      %3418 = vmatpush.bf16.msra.mxu0 0
      %3419 = vmatpush.bf16.msra.mxu0 0
      %3420 = vmatpush.bf16.msra.mxu0 0
      %3421 = vmatpush.bf16.msra.mxu0 0
      %3422 = vmatpush.bf16.msra.mxu0 0
      %3423 = vmatpush.bf16.msra.mxu0 0
      %3424 = vmatpush.bf16.msra.mxu0 %v3308
      %3425 = vmatmul.bf16.gmra.mxu0 %v3281
      %v3426 = vpop.f32.mrf.mxu0
      %v3427 = vadd.f32 0.0, %v3426
      %v3428 = vpop.f32.mrf.mxu0
      %3429 = vdwg.mxu0
      %3430 = vmatpush.bf16.msra.mxu0 0
      %3431 = vmatpush.bf16.msra.mxu0 0
      %3432 = vmatpush.bf16.msra.mxu0 0
      %3433 = vmatpush.bf16.msra.mxu0 0
      %3434 = vmatpush.bf16.msra.mxu0 0
      %3435 = vmatpush.bf16.msra.mxu0 0
      %3436 = vmatpush.bf16.msra.mxu0 0
      %3437 = vmatpush.bf16.msra.mxu0 %v3311
      %3438 = vmatmul.bf16.gmra.mxu0 %v3281
      %v3439 = vpop.f32.mrf.mxu0
      %v3440 = vadd.f32 0.0, %v3439
      %v3441 = vpop.f32.mrf.mxu0
      %3442 = vdwg.mxu0
      %v3443 = vadd.f32 %v3235, %v3323
      %v3444 = vadd.f32 %v3236, %v3336
      %v3445 = vadd.f32 %v3237, %v3349
      %v3446 = vadd.f32 %v3238, %v3362
      %v3447 = vadd.f32 %v3239, %v3375
      %v3448 = vadd.f32 %v3240, %v3388
      %v3449 = vadd.f32 %v3241, %v3401
      %v3450 = vadd.f32 %v3242, %v3414
      %v3451 = vadd.f32 %v3243, %v3427
      %v3452 = vadd.f32 %v3244, %v3440
      %s3453 = scalar_lea.vmem %s2, 60
      %v3454 = vld [vmem:[%s3453] sm:$0xf]
      %3455 = vrot.lane.b32.xlu0 %v370, 8
      %v3456 = vpop.permute.xlu0 %3455
      %3457 = vrot.lane.b32.xlu0 %v371, 8
      %v3458 = vpop.permute.xlu0 %3457
      %3459 = vrot.lane.b32.xlu0 %v372, 8
      %v3460 = vpop.permute.xlu0 %3459
      %3461 = vrot.lane.b32.xlu0 %v373, 8
      %v3462 = vpop.permute.xlu0 %3461
      %3463 = vrot.lane.b32.xlu0 %v374, 8
      %v3464 = vpop.permute.xlu0 %3463
      %3465 = vrot.lane.b32.xlu0 %v375, 8
      %v3466 = vpop.permute.xlu0 %3465
      %3467 = vrot.lane.b32.xlu0 %v376, 8
      %v3468 = vpop.permute.xlu0 %3467
      %3469 = vrot.lane.b32.xlu0 %v377, 8
      %v3470 = vpop.permute.xlu0 %3469
      %3471 = vrot.lane.b32.xlu0 %v378, 8
      %v3472 = vpop.permute.xlu0 %3471
      %3473 = vrot.lane.b32.xlu0 %v379, 8
      %v3474 = vpop.permute.xlu0 %3473
      %3475 = vrot.lane.b32.xlu0 %v383, 8
      %v3476 = vpop.permute.xlu0 %3475
      %vm3477 = vcmask 64512
      %v3478 = vsel %vm3477, %v3456, %v3458
      %v3479 = vsel %vm3477, %v3458, %v3460
      %v3480 = vsel %vm3477, %v3460, %v3462
      %v3481 = vsel %vm3477, %v3462, %v3464
      %v3482 = vsel %vm3477, %v3464, %v3466
      %v3483 = vsel %vm3477, %v3466, %v3468
      %v3484 = vsel %vm3477, %v3468, %v3470
      %v3485 = vsel %vm3477, %v3470, %v3472
      %v3486 = vsel %vm3477, %v3472, %v3474
      %v3487 = vsel %vm3477, %v3474, %v3476
      %v3489 = vsel %vm421, %v3454, 0
      %v3492 = vsel %vm425, %v3478, 0
      %v3495 = vsel %vm425, %v3479, 0
      %v3498 = vsel %vm425, %v3480, 0
      %v3501 = vsel %vm425, %v3481, 0
      %v3504 = vsel %vm425, %v3482, 0
      %v3507 = vsel %vm425, %v3483, 0
      %v3510 = vsel %vm425, %v3484, 0
      %v3513 = vsel %vm425, %v3485, 0
      %v3516 = vsel %vm425, %v3486, 0
      %v3519 = vsel %vm425, %v3487, 0
      %3521 = vmatpush.bf16.msra.mxu0 0
      %3522 = vmatpush.bf16.msra.mxu0 0
      %3523 = vmatpush.bf16.msra.mxu0 0
      %3524 = vmatpush.bf16.msra.mxu0 0
      %3525 = vmatpush.bf16.msra.mxu0 0
      %3526 = vmatpush.bf16.msra.mxu0 0
      %3527 = vmatpush.bf16.msra.mxu0 0
      %3528 = vmatpush.bf16.msra.mxu0 %v3492
      %3529 = vmatmul.bf16.gmra.mxu0 %v3489
      %v3530 = vpop.f32.mrf.mxu0
      %v3531 = vadd.f32 0.0, %v3530
      %v3532 = vpop.f32.mrf.mxu0
      %3533 = vdwg.mxu0
      %3534 = vmatpush.bf16.msra.mxu0 0
      %3535 = vmatpush.bf16.msra.mxu0 0
      %3536 = vmatpush.bf16.msra.mxu0 0
      %3537 = vmatpush.bf16.msra.mxu0 0
      %3538 = vmatpush.bf16.msra.mxu0 0
      %3539 = vmatpush.bf16.msra.mxu0 0
      %3540 = vmatpush.bf16.msra.mxu0 0
      %3541 = vmatpush.bf16.msra.mxu0 %v3495
      %3542 = vmatmul.bf16.gmra.mxu0 %v3489
      %v3543 = vpop.f32.mrf.mxu0
      %v3544 = vadd.f32 0.0, %v3543
      %v3545 = vpop.f32.mrf.mxu0
      %3546 = vdwg.mxu0
      %3547 = vmatpush.bf16.msra.mxu0 0
      %3548 = vmatpush.bf16.msra.mxu0 0
      %3549 = vmatpush.bf16.msra.mxu0 0
      %3550 = vmatpush.bf16.msra.mxu0 0
      %3551 = vmatpush.bf16.msra.mxu0 0
      %3552 = vmatpush.bf16.msra.mxu0 0
      %3553 = vmatpush.bf16.msra.mxu0 0
      %3554 = vmatpush.bf16.msra.mxu0 %v3498
      %3555 = vmatmul.bf16.gmra.mxu0 %v3489
      %v3556 = vpop.f32.mrf.mxu0
      %v3557 = vadd.f32 0.0, %v3556
      %v3558 = vpop.f32.mrf.mxu0
      %3559 = vdwg.mxu0
      %3560 = vmatpush.bf16.msra.mxu0 0
      %3561 = vmatpush.bf16.msra.mxu0 0
      %3562 = vmatpush.bf16.msra.mxu0 0
      %3563 = vmatpush.bf16.msra.mxu0 0
      %3564 = vmatpush.bf16.msra.mxu0 0
      %3565 = vmatpush.bf16.msra.mxu0 0
      %3566 = vmatpush.bf16.msra.mxu0 0
      %3567 = vmatpush.bf16.msra.mxu0 %v3501
      %3568 = vmatmul.bf16.gmra.mxu0 %v3489
      %v3569 = vpop.f32.mrf.mxu0
      %v3570 = vadd.f32 0.0, %v3569
      %v3571 = vpop.f32.mrf.mxu0
      %3572 = vdwg.mxu0
      %3573 = vmatpush.bf16.msra.mxu0 0
      %3574 = vmatpush.bf16.msra.mxu0 0
      %3575 = vmatpush.bf16.msra.mxu0 0
      %3576 = vmatpush.bf16.msra.mxu0 0
      %3577 = vmatpush.bf16.msra.mxu0 0
      %3578 = vmatpush.bf16.msra.mxu0 0
      %3579 = vmatpush.bf16.msra.mxu0 0
      %3580 = vmatpush.bf16.msra.mxu0 %v3504
      %3581 = vmatmul.bf16.gmra.mxu0 %v3489
      %v3582 = vpop.f32.mrf.mxu0
      %v3583 = vadd.f32 0.0, %v3582
      %v3584 = vpop.f32.mrf.mxu0
      %3585 = vdwg.mxu0
      %3586 = vmatpush.bf16.msra.mxu0 0
      %3587 = vmatpush.bf16.msra.mxu0 0
      %3588 = vmatpush.bf16.msra.mxu0 0
      %3589 = vmatpush.bf16.msra.mxu0 0
      %3590 = vmatpush.bf16.msra.mxu0 0
      %3591 = vmatpush.bf16.msra.mxu0 0
      %3592 = vmatpush.bf16.msra.mxu0 0
      %3593 = vmatpush.bf16.msra.mxu0 %v3507
      %3594 = vmatmul.bf16.gmra.mxu0 %v3489
      %v3595 = vpop.f32.mrf.mxu0
      %v3596 = vadd.f32 0.0, %v3595
      %v3597 = vpop.f32.mrf.mxu0
      %3598 = vdwg.mxu0
      %3599 = vmatpush.bf16.msra.mxu0 0
      %3600 = vmatpush.bf16.msra.mxu0 0
      %3601 = vmatpush.bf16.msra.mxu0 0
      %3602 = vmatpush.bf16.msra.mxu0 0
      %3603 = vmatpush.bf16.msra.mxu0 0
      %3604 = vmatpush.bf16.msra.mxu0 0
      %3605 = vmatpush.bf16.msra.mxu0 0
      %3606 = vmatpush.bf16.msra.mxu0 %v3510
      %3607 = vmatmul.bf16.gmra.mxu0 %v3489
      %v3608 = vpop.f32.mrf.mxu0
      %v3609 = vadd.f32 0.0, %v3608
      %v3610 = vpop.f32.mrf.mxu0
      %3611 = vdwg.mxu0
      %3612 = vmatpush.bf16.msra.mxu0 0
      %3613 = vmatpush.bf16.msra.mxu0 0
      %3614 = vmatpush.bf16.msra.mxu0 0
      %3615 = vmatpush.bf16.msra.mxu0 0
      %3616 = vmatpush.bf16.msra.mxu0 0
      %3617 = vmatpush.bf16.msra.mxu0 0
      %3618 = vmatpush.bf16.msra.mxu0 0
      %3619 = vmatpush.bf16.msra.mxu0 %v3513
      %3620 = vmatmul.bf16.gmra.mxu0 %v3489
      %v3621 = vpop.f32.mrf.mxu0
      %v3622 = vadd.f32 0.0, %v3621
      %v3623 = vpop.f32.mrf.mxu0
      %3624 = vdwg.mxu0
      %3625 = vmatpush.bf16.msra.mxu0 0
      %3626 = vmatpush.bf16.msra.mxu0 0
      %3627 = vmatpush.bf16.msra.mxu0 0
      %3628 = vmatpush.bf16.msra.mxu0 0
      %3629 = vmatpush.bf16.msra.mxu0 0
      %3630 = vmatpush.bf16.msra.mxu0 0
      %3631 = vmatpush.bf16.msra.mxu0 0
      %3632 = vmatpush.bf16.msra.mxu0 %v3516
      %3633 = vmatmul.bf16.gmra.mxu0 %v3489
      %v3634 = vpop.f32.mrf.mxu0
      %v3635 = vadd.f32 0.0, %v3634
      %v3636 = vpop.f32.mrf.mxu0
      %3637 = vdwg.mxu0
      %3638 = vmatpush.bf16.msra.mxu0 0
      %3639 = vmatpush.bf16.msra.mxu0 0
      %3640 = vmatpush.bf16.msra.mxu0 0
      %3641 = vmatpush.bf16.msra.mxu0 0
      %3642 = vmatpush.bf16.msra.mxu0 0
      %3643 = vmatpush.bf16.msra.mxu0 0
      %3644 = vmatpush.bf16.msra.mxu0 0
      %3645 = vmatpush.bf16.msra.mxu0 %v3519
      %3646 = vmatmul.bf16.gmra.mxu0 %v3489
      %v3647 = vpop.f32.mrf.mxu0
      %v3648 = vadd.f32 0.0, %v3647
      %v3649 = vpop.f32.mrf.mxu0
      %3650 = vdwg.mxu0
      %v3651 = vadd.f32 %v3443, %v3531
      %v3652 = vadd.f32 %v3444, %v3544
      %v3653 = vadd.f32 %v3445, %v3557
      %v3654 = vadd.f32 %v3446, %v3570
      %v3655 = vadd.f32 %v3447, %v3583
      %v3656 = vadd.f32 %v3448, %v3596
      %v3657 = vadd.f32 %v3449, %v3609
      %v3658 = vadd.f32 %v3450, %v3622
      %v3659 = vadd.f32 %v3451, %v3635
      %v3660 = vadd.f32 %v3452, %v3648
      %s3661 = scalar_lea.vmem %s2, 64
      %v3662 = vld [vmem:[%s3661] sm:$0xf]
      %3663 = vrot.lane.b32.xlu0 %v370, 7
      %v3664 = vpop.permute.xlu0 %3663
      %3665 = vrot.lane.b32.xlu0 %v371, 7
      %v3666 = vpop.permute.xlu0 %3665
      %3667 = vrot.lane.b32.xlu0 %v372, 7
      %v3668 = vpop.permute.xlu0 %3667
      %3669 = vrot.lane.b32.xlu0 %v373, 7
      %v3670 = vpop.permute.xlu0 %3669
      %3671 = vrot.lane.b32.xlu0 %v374, 7
      %v3672 = vpop.permute.xlu0 %3671
      %3673 = vrot.lane.b32.xlu0 %v375, 7
      %v3674 = vpop.permute.xlu0 %3673
      %3675 = vrot.lane.b32.xlu0 %v376, 7
      %v3676 = vpop.permute.xlu0 %3675
      %3677 = vrot.lane.b32.xlu0 %v377, 7
      %v3678 = vpop.permute.xlu0 %3677
      %3679 = vrot.lane.b32.xlu0 %v378, 7
      %v3680 = vpop.permute.xlu0 %3679
      %3681 = vrot.lane.b32.xlu0 %v379, 7
      %v3682 = vpop.permute.xlu0 %3681
      %3683 = vrot.lane.b32.xlu0 %v383, 7
      %v3684 = vpop.permute.xlu0 %3683
      %vm3685 = vcmask 56320
      %v3686 = vsel %vm3685, %v3664, %v3666
      %v3687 = vsel %vm3685, %v3666, %v3668
      %v3688 = vsel %vm3685, %v3668, %v3670
      %v3689 = vsel %vm3685, %v3670, %v3672
      %v3690 = vsel %vm3685, %v3672, %v3674
      %v3691 = vsel %vm3685, %v3674, %v3676
      %v3692 = vsel %vm3685, %v3676, %v3678
      %v3693 = vsel %vm3685, %v3678, %v3680
      %v3694 = vsel %vm3685, %v3680, %v3682
      %v3695 = vsel %vm3685, %v3682, %v3684
      %v3697 = vsel %vm421, %v3662, 0
      %v3700 = vsel %vm425, %v3686, 0
      %v3703 = vsel %vm425, %v3687, 0
      %v3706 = vsel %vm425, %v3688, 0
      %v3709 = vsel %vm425, %v3689, 0
      %v3712 = vsel %vm425, %v3690, 0
      %v3715 = vsel %vm425, %v3691, 0
      %v3718 = vsel %vm425, %v3692, 0
      %v3721 = vsel %vm425, %v3693, 0
      %v3724 = vsel %vm425, %v3694, 0
      %v3727 = vsel %vm425, %v3695, 0
      %3729 = vmatpush.bf16.msra.mxu0 0
      %3730 = vmatpush.bf16.msra.mxu0 0
      %3731 = vmatpush.bf16.msra.mxu0 0
      %3732 = vmatpush.bf16.msra.mxu0 0
      %3733 = vmatpush.bf16.msra.mxu0 0
      %3734 = vmatpush.bf16.msra.mxu0 0
      %3735 = vmatpush.bf16.msra.mxu0 0
      %3736 = vmatpush.bf16.msra.mxu0 %v3700
      %3737 = vmatmul.bf16.gmra.mxu0 %v3697
      %v3738 = vpop.f32.mrf.mxu0
      %v3739 = vadd.f32 0.0, %v3738
      %v3740 = vpop.f32.mrf.mxu0
      %3741 = vdwg.mxu0
      %3742 = vmatpush.bf16.msra.mxu0 0
      %3743 = vmatpush.bf16.msra.mxu0 0
      %3744 = vmatpush.bf16.msra.mxu0 0
      %3745 = vmatpush.bf16.msra.mxu0 0
      %3746 = vmatpush.bf16.msra.mxu0 0
      %3747 = vmatpush.bf16.msra.mxu0 0
      %3748 = vmatpush.bf16.msra.mxu0 0
      %3749 = vmatpush.bf16.msra.mxu0 %v3703
      %3750 = vmatmul.bf16.gmra.mxu0 %v3697
      %v3751 = vpop.f32.mrf.mxu0
      %v3752 = vadd.f32 0.0, %v3751
      %v3753 = vpop.f32.mrf.mxu0
      %3754 = vdwg.mxu0
      %3755 = vmatpush.bf16.msra.mxu0 0
      %3756 = vmatpush.bf16.msra.mxu0 0
      %3757 = vmatpush.bf16.msra.mxu0 0
      %3758 = vmatpush.bf16.msra.mxu0 0
      %3759 = vmatpush.bf16.msra.mxu0 0
      %3760 = vmatpush.bf16.msra.mxu0 0
      %3761 = vmatpush.bf16.msra.mxu0 0
      %3762 = vmatpush.bf16.msra.mxu0 %v3706
      %3763 = vmatmul.bf16.gmra.mxu0 %v3697
      %v3764 = vpop.f32.mrf.mxu0
      %v3765 = vadd.f32 0.0, %v3764
      %v3766 = vpop.f32.mrf.mxu0
      %3767 = vdwg.mxu0
      %3768 = vmatpush.bf16.msra.mxu0 0
      %3769 = vmatpush.bf16.msra.mxu0 0
      %3770 = vmatpush.bf16.msra.mxu0 0
      %3771 = vmatpush.bf16.msra.mxu0 0
      %3772 = vmatpush.bf16.msra.mxu0 0
      %3773 = vmatpush.bf16.msra.mxu0 0
      %3774 = vmatpush.bf16.msra.mxu0 0
      %3775 = vmatpush.bf16.msra.mxu0 %v3709
      %3776 = vmatmul.bf16.gmra.mxu0 %v3697
      %v3777 = vpop.f32.mrf.mxu0
      %v3778 = vadd.f32 0.0, %v3777
      %v3779 = vpop.f32.mrf.mxu0
      %3780 = vdwg.mxu0
      %3781 = vmatpush.bf16.msra.mxu0 0
      %3782 = vmatpush.bf16.msra.mxu0 0
      %3783 = vmatpush.bf16.msra.mxu0 0
      %3784 = vmatpush.bf16.msra.mxu0 0
      %3785 = vmatpush.bf16.msra.mxu0 0
      %3786 = vmatpush.bf16.msra.mxu0 0
      %3787 = vmatpush.bf16.msra.mxu0 0
      %3788 = vmatpush.bf16.msra.mxu0 %v3712
      %3789 = vmatmul.bf16.gmra.mxu0 %v3697
      %v3790 = vpop.f32.mrf.mxu0
      %v3791 = vadd.f32 0.0, %v3790
      %v3792 = vpop.f32.mrf.mxu0
      %3793 = vdwg.mxu0
      %3794 = vmatpush.bf16.msra.mxu0 0
      %3795 = vmatpush.bf16.msra.mxu0 0
      %3796 = vmatpush.bf16.msra.mxu0 0
      %3797 = vmatpush.bf16.msra.mxu0 0
      %3798 = vmatpush.bf16.msra.mxu0 0
      %3799 = vmatpush.bf16.msra.mxu0 0
      %3800 = vmatpush.bf16.msra.mxu0 0
      %3801 = vmatpush.bf16.msra.mxu0 %v3715
      %3802 = vmatmul.bf16.gmra.mxu0 %v3697
      %v3803 = vpop.f32.mrf.mxu0
      %v3804 = vadd.f32 0.0, %v3803
      %v3805 = vpop.f32.mrf.mxu0
      %3806 = vdwg.mxu0
      %3807 = vmatpush.bf16.msra.mxu0 0
      %3808 = vmatpush.bf16.msra.mxu0 0
      %3809 = vmatpush.bf16.msra.mxu0 0
      %3810 = vmatpush.bf16.msra.mxu0 0
      %3811 = vmatpush.bf16.msra.mxu0 0
      %3812 = vmatpush.bf16.msra.mxu0 0
      %3813 = vmatpush.bf16.msra.mxu0 0
      %3814 = vmatpush.bf16.msra.mxu0 %v3718
      %3815 = vmatmul.bf16.gmra.mxu0 %v3697
      %v3816 = vpop.f32.mrf.mxu0
      %v3817 = vadd.f32 0.0, %v3816
      %v3818 = vpop.f32.mrf.mxu0
      %3819 = vdwg.mxu0
      %3820 = vmatpush.bf16.msra.mxu0 0
      %3821 = vmatpush.bf16.msra.mxu0 0
      %3822 = vmatpush.bf16.msra.mxu0 0
      %3823 = vmatpush.bf16.msra.mxu0 0
      %3824 = vmatpush.bf16.msra.mxu0 0
      %3825 = vmatpush.bf16.msra.mxu0 0
      %3826 = vmatpush.bf16.msra.mxu0 0
      %3827 = vmatpush.bf16.msra.mxu0 %v3721
      %3828 = vmatmul.bf16.gmra.mxu0 %v3697
      %v3829 = vpop.f32.mrf.mxu0
      %v3830 = vadd.f32 0.0, %v3829
      %v3831 = vpop.f32.mrf.mxu0
      %3832 = vdwg.mxu0
      %3833 = vmatpush.bf16.msra.mxu0 0
      %3834 = vmatpush.bf16.msra.mxu0 0
      %3835 = vmatpush.bf16.msra.mxu0 0
      %3836 = vmatpush.bf16.msra.mxu0 0
      %3837 = vmatpush.bf16.msra.mxu0 0
      %3838 = vmatpush.bf16.msra.mxu0 0
      %3839 = vmatpush.bf16.msra.mxu0 0
      %3840 = vmatpush.bf16.msra.mxu0 %v3724
      %3841 = vmatmul.bf16.gmra.mxu0 %v3697
      %v3842 = vpop.f32.mrf.mxu0
      %v3843 = vadd.f32 0.0, %v3842
      %v3844 = vpop.f32.mrf.mxu0
      %3845 = vdwg.mxu0
      %3846 = vmatpush.bf16.msra.mxu0 0
      %3847 = vmatpush.bf16.msra.mxu0 0
      %3848 = vmatpush.bf16.msra.mxu0 0
      %3849 = vmatpush.bf16.msra.mxu0 0
      %3850 = vmatpush.bf16.msra.mxu0 0
      %3851 = vmatpush.bf16.msra.mxu0 0
      %3852 = vmatpush.bf16.msra.mxu0 0
      %3853 = vmatpush.bf16.msra.mxu0 %v3727
      %3854 = vmatmul.bf16.gmra.mxu0 %v3697
      %v3855 = vpop.f32.mrf.mxu0
      %v3856 = vadd.f32 0.0, %v3855
      %v3857 = vpop.f32.mrf.mxu0
      %3858 = vdwg.mxu0
      %v3859 = vadd.f32 %v3651, %v3739
      %v3860 = vadd.f32 %v3652, %v3752
      %v3861 = vadd.f32 %v3653, %v3765
      %v3862 = vadd.f32 %v3654, %v3778
      %v3863 = vadd.f32 %v3655, %v3791
      %v3864 = vadd.f32 %v3656, %v3804
      %v3865 = vadd.f32 %v3657, %v3817
      %v3866 = vadd.f32 %v3658, %v3830
      %v3867 = vadd.f32 %v3659, %v3843
      %v3868 = vadd.f32 %v3660, %v3856
      %s3869 = scalar_lea.vmem %s2, 68
      %v3870 = vld [vmem:[%s3869] sm:$0xf]
      %3871 = vrot.lane.b32.xlu0 %v370, 6
      %v3872 = vpop.permute.xlu0 %3871
      %3873 = vrot.lane.b32.xlu0 %v371, 6
      %v3874 = vpop.permute.xlu0 %3873
      %3875 = vrot.lane.b32.xlu0 %v372, 6
      %v3876 = vpop.permute.xlu0 %3875
      %3877 = vrot.lane.b32.xlu0 %v373, 6
      %v3878 = vpop.permute.xlu0 %3877
      %3879 = vrot.lane.b32.xlu0 %v374, 6
      %v3880 = vpop.permute.xlu0 %3879
      %3881 = vrot.lane.b32.xlu0 %v375, 6
      %v3882 = vpop.permute.xlu0 %3881
      %3883 = vrot.lane.b32.xlu0 %v376, 6
      %v3884 = vpop.permute.xlu0 %3883
      %3885 = vrot.lane.b32.xlu0 %v377, 6
      %v3886 = vpop.permute.xlu0 %3885
      %3887 = vrot.lane.b32.xlu0 %v378, 6
      %v3888 = vpop.permute.xlu0 %3887
      %3889 = vrot.lane.b32.xlu0 %v379, 6
      %v3890 = vpop.permute.xlu0 %3889
      %3891 = vrot.lane.b32.xlu0 %v383, 6
      %v3892 = vpop.permute.xlu0 %3891
      %vm3893 = vcmask 48128
      %v3894 = vsel %vm3893, %v3872, %v3874
      %v3895 = vsel %vm3893, %v3874, %v3876
      %v3896 = vsel %vm3893, %v3876, %v3878
      %v3897 = vsel %vm3893, %v3878, %v3880
      %v3898 = vsel %vm3893, %v3880, %v3882
      %v3899 = vsel %vm3893, %v3882, %v3884
      %v3900 = vsel %vm3893, %v3884, %v3886
      %v3901 = vsel %vm3893, %v3886, %v3888
      %v3902 = vsel %vm3893, %v3888, %v3890
      %v3903 = vsel %vm3893, %v3890, %v3892
      %v3905 = vsel %vm421, %v3870, 0
      %v3908 = vsel %vm425, %v3894, 0
      %v3911 = vsel %vm425, %v3895, 0
      %v3914 = vsel %vm425, %v3896, 0
      %v3917 = vsel %vm425, %v3897, 0
      %v3920 = vsel %vm425, %v3898, 0
      %v3923 = vsel %vm425, %v3899, 0
      %v3926 = vsel %vm425, %v3900, 0
      %v3929 = vsel %vm425, %v3901, 0
      %v3932 = vsel %vm425, %v3902, 0
      %v3935 = vsel %vm425, %v3903, 0
      %3937 = vmatpush.bf16.msra.mxu0 0
      %3938 = vmatpush.bf16.msra.mxu0 0
      %3939 = vmatpush.bf16.msra.mxu0 0
      %3940 = vmatpush.bf16.msra.mxu0 0
      %3941 = vmatpush.bf16.msra.mxu0 0
      %3942 = vmatpush.bf16.msra.mxu0 0
      %3943 = vmatpush.bf16.msra.mxu0 0
      %3944 = vmatpush.bf16.msra.mxu0 %v3908
      %3945 = vmatmul.bf16.gmra.mxu0 %v3905
      %v3946 = vpop.f32.mrf.mxu0
      %v3947 = vadd.f32 0.0, %v3946
      %v3948 = vpop.f32.mrf.mxu0
      %3949 = vdwg.mxu0
      %3950 = vmatpush.bf16.msra.mxu0 0
      %3951 = vmatpush.bf16.msra.mxu0 0
      %3952 = vmatpush.bf16.msra.mxu0 0
      %3953 = vmatpush.bf16.msra.mxu0 0
      %3954 = vmatpush.bf16.msra.mxu0 0
      %3955 = vmatpush.bf16.msra.mxu0 0
      %3956 = vmatpush.bf16.msra.mxu0 0
      %3957 = vmatpush.bf16.msra.mxu0 %v3911
      %3958 = vmatmul.bf16.gmra.mxu0 %v3905
      %v3959 = vpop.f32.mrf.mxu0
      %v3960 = vadd.f32 0.0, %v3959
      %v3961 = vpop.f32.mrf.mxu0
      %3962 = vdwg.mxu0
      %3963 = vmatpush.bf16.msra.mxu0 0
      %3964 = vmatpush.bf16.msra.mxu0 0
      %3965 = vmatpush.bf16.msra.mxu0 0
      %3966 = vmatpush.bf16.msra.mxu0 0
      %3967 = vmatpush.bf16.msra.mxu0 0
      %3968 = vmatpush.bf16.msra.mxu0 0
      %3969 = vmatpush.bf16.msra.mxu0 0
      %3970 = vmatpush.bf16.msra.mxu0 %v3914
      %3971 = vmatmul.bf16.gmra.mxu0 %v3905
      %v3972 = vpop.f32.mrf.mxu0
      %v3973 = vadd.f32 0.0, %v3972
      %v3974 = vpop.f32.mrf.mxu0
      %3975 = vdwg.mxu0
      %3976 = vmatpush.bf16.msra.mxu0 0
      %3977 = vmatpush.bf16.msra.mxu0 0
      %3978 = vmatpush.bf16.msra.mxu0 0
      %3979 = vmatpush.bf16.msra.mxu0 0
      %3980 = vmatpush.bf16.msra.mxu0 0
      %3981 = vmatpush.bf16.msra.mxu0 0
      %3982 = vmatpush.bf16.msra.mxu0 0
      %3983 = vmatpush.bf16.msra.mxu0 %v3917
      %3984 = vmatmul.bf16.gmra.mxu0 %v3905
      %v3985 = vpop.f32.mrf.mxu0
      %v3986 = vadd.f32 0.0, %v3985
      %v3987 = vpop.f32.mrf.mxu0
      %3988 = vdwg.mxu0
      %3989 = vmatpush.bf16.msra.mxu0 0
      %3990 = vmatpush.bf16.msra.mxu0 0
      %3991 = vmatpush.bf16.msra.mxu0 0
      %3992 = vmatpush.bf16.msra.mxu0 0
      %3993 = vmatpush.bf16.msra.mxu0 0
      %3994 = vmatpush.bf16.msra.mxu0 0
      %3995 = vmatpush.bf16.msra.mxu0 0
      %3996 = vmatpush.bf16.msra.mxu0 %v3920
      %3997 = vmatmul.bf16.gmra.mxu0 %v3905
      %v3998 = vpop.f32.mrf.mxu0
      %v3999 = vadd.f32 0.0, %v3998
      %v4000 = vpop.f32.mrf.mxu0
      %4001 = vdwg.mxu0
      %4002 = vmatpush.bf16.msra.mxu0 0
      %4003 = vmatpush.bf16.msra.mxu0 0
      %4004 = vmatpush.bf16.msra.mxu0 0
      %4005 = vmatpush.bf16.msra.mxu0 0
      %4006 = vmatpush.bf16.msra.mxu0 0
      %4007 = vmatpush.bf16.msra.mxu0 0
      %4008 = vmatpush.bf16.msra.mxu0 0
      %4009 = vmatpush.bf16.msra.mxu0 %v3923
      %4010 = vmatmul.bf16.gmra.mxu0 %v3905
      %v4011 = vpop.f32.mrf.mxu0
      %v4012 = vadd.f32 0.0, %v4011
      %v4013 = vpop.f32.mrf.mxu0
      %4014 = vdwg.mxu0
      %4015 = vmatpush.bf16.msra.mxu0 0
      %4016 = vmatpush.bf16.msra.mxu0 0
      %4017 = vmatpush.bf16.msra.mxu0 0
      %4018 = vmatpush.bf16.msra.mxu0 0
      %4019 = vmatpush.bf16.msra.mxu0 0
      %4020 = vmatpush.bf16.msra.mxu0 0
      %4021 = vmatpush.bf16.msra.mxu0 0
      %4022 = vmatpush.bf16.msra.mxu0 %v3926
      %4023 = vmatmul.bf16.gmra.mxu0 %v3905
      %v4024 = vpop.f32.mrf.mxu0
      %v4025 = vadd.f32 0.0, %v4024
      %v4026 = vpop.f32.mrf.mxu0
      %4027 = vdwg.mxu0
      %4028 = vmatpush.bf16.msra.mxu0 0
      %4029 = vmatpush.bf16.msra.mxu0 0
      %4030 = vmatpush.bf16.msra.mxu0 0
      %4031 = vmatpush.bf16.msra.mxu0 0
      %4032 = vmatpush.bf16.msra.mxu0 0
      %4033 = vmatpush.bf16.msra.mxu0 0
      %4034 = vmatpush.bf16.msra.mxu0 0
      %4035 = vmatpush.bf16.msra.mxu0 %v3929
      %4036 = vmatmul.bf16.gmra.mxu0 %v3905
      %v4037 = vpop.f32.mrf.mxu0
      %v4038 = vadd.f32 0.0, %v4037
      %v4039 = vpop.f32.mrf.mxu0
      %4040 = vdwg.mxu0
      %4041 = vmatpush.bf16.msra.mxu0 0
      %4042 = vmatpush.bf16.msra.mxu0 0
      %4043 = vmatpush.bf16.msra.mxu0 0
      %4044 = vmatpush.bf16.msra.mxu0 0
      %4045 = vmatpush.bf16.msra.mxu0 0
      %4046 = vmatpush.bf16.msra.mxu0 0
      %4047 = vmatpush.bf16.msra.mxu0 0
      %4048 = vmatpush.bf16.msra.mxu0 %v3932
      %4049 = vmatmul.bf16.gmra.mxu0 %v3905
      %v4050 = vpop.f32.mrf.mxu0
      %v4051 = vadd.f32 0.0, %v4050
      %v4052 = vpop.f32.mrf.mxu0
      %4053 = vdwg.mxu0
      %4054 = vmatpush.bf16.msra.mxu0 0
      %4055 = vmatpush.bf16.msra.mxu0 0
      %4056 = vmatpush.bf16.msra.mxu0 0
      %4057 = vmatpush.bf16.msra.mxu0 0
      %4058 = vmatpush.bf16.msra.mxu0 0
      %4059 = vmatpush.bf16.msra.mxu0 0
      %4060 = vmatpush.bf16.msra.mxu0 0
      %4061 = vmatpush.bf16.msra.mxu0 %v3935
      %4062 = vmatmul.bf16.gmra.mxu0 %v3905
      %v4063 = vpop.f32.mrf.mxu0
      %v4064 = vadd.f32 0.0, %v4063
      %v4065 = vpop.f32.mrf.mxu0
      %4066 = vdwg.mxu0
      %v4067 = vadd.f32 %v3859, %v3947
      %v4068 = vadd.f32 %v3860, %v3960
      %v4069 = vadd.f32 %v3861, %v3973
      %v4070 = vadd.f32 %v3862, %v3986
      %v4071 = vadd.f32 %v3863, %v3999
      %v4072 = vadd.f32 %v3864, %v4012
      %v4073 = vadd.f32 %v3865, %v4025
      %v4074 = vadd.f32 %v3866, %v4038
      %v4075 = vadd.f32 %v3867, %v4051
      %v4076 = vadd.f32 %v3868, %v4064
      %s4077 = scalar_lea.vmem %s2, 72
      %v4078 = vld [vmem:[%s4077] sm:$0xf]
      %4079 = vrot.lane.b32.xlu0 %v371, 56
      %v4080 = vpop.permute.xlu0 %4079
      %4081 = vrot.lane.b32.xlu0 %v372, 56
      %v4082 = vpop.permute.xlu0 %4081
      %4083 = vrot.lane.b32.xlu0 %v373, 56
      %v4084 = vpop.permute.xlu0 %4083
      %4085 = vrot.lane.b32.xlu0 %v374, 56
      %v4086 = vpop.permute.xlu0 %4085
      %4087 = vrot.lane.b32.xlu0 %v375, 56
      %v4088 = vpop.permute.xlu0 %4087
      %4089 = vrot.lane.b32.xlu0 %v376, 56
      %v4090 = vpop.permute.xlu0 %4089
      %4091 = vrot.lane.b32.xlu0 %v377, 56
      %v4092 = vpop.permute.xlu0 %4091
      %4093 = vrot.lane.b32.xlu0 %v378, 56
      %v4094 = vpop.permute.xlu0 %4093
      %4095 = vrot.lane.b32.xlu0 %v379, 56
      %v4096 = vpop.permute.xlu0 %4095
      %4097 = vrot.lane.b32.xlu0 %v383, 56
      %v4098 = vpop.permute.xlu0 %4097
      %4099 = vrot.lane.b32.xlu0 %v384, 56
      %v4100 = vpop.permute.xlu0 %4099
      %vm4101 = vcmask 457728
      %v4102 = vsel %vm4101, %v4080, %v4082
      %v4103 = vsel %vm4101, %v4082, %v4084
      %v4104 = vsel %vm4101, %v4084, %v4086
      %v4105 = vsel %vm4101, %v4086, %v4088
      %v4106 = vsel %vm4101, %v4088, %v4090
      %v4107 = vsel %vm4101, %v4090, %v4092
      %v4108 = vsel %vm4101, %v4092, %v4094
      %v4109 = vsel %vm4101, %v4094, %v4096
      %v4110 = vsel %vm4101, %v4096, %v4098
      %v4111 = vsel %vm4101, %v4098, %v4100
      %v4113 = vsel %vm421, %v4078, 0
      %v4116 = vsel %vm425, %v4102, 0
      %v4119 = vsel %vm425, %v4103, 0
      %v4122 = vsel %vm425, %v4104, 0
      %v4125 = vsel %vm425, %v4105, 0
      %v4128 = vsel %vm425, %v4106, 0
      %v4131 = vsel %vm425, %v4107, 0
      %v4134 = vsel %vm425, %v4108, 0
      %v4137 = vsel %vm425, %v4109, 0
      %v4140 = vsel %vm425, %v4110, 0
      %v4143 = vsel %vm425, %v4111, 0
      %4145 = vmatpush.bf16.msra.mxu0 0
      %4146 = vmatpush.bf16.msra.mxu0 0
      %4147 = vmatpush.bf16.msra.mxu0 0
      %4148 = vmatpush.bf16.msra.mxu0 0
      %4149 = vmatpush.bf16.msra.mxu0 0
      %4150 = vmatpush.bf16.msra.mxu0 0
      %4151 = vmatpush.bf16.msra.mxu0 0
      %4152 = vmatpush.bf16.msra.mxu0 %v4116
      %4153 = vmatmul.bf16.gmra.mxu0 %v4113
      %v4154 = vpop.f32.mrf.mxu0
      %v4155 = vadd.f32 0.0, %v4154
      %v4156 = vpop.f32.mrf.mxu0
      %4157 = vdwg.mxu0
      %4158 = vmatpush.bf16.msra.mxu0 0
      %4159 = vmatpush.bf16.msra.mxu0 0
      %4160 = vmatpush.bf16.msra.mxu0 0
      %4161 = vmatpush.bf16.msra.mxu0 0
      %4162 = vmatpush.bf16.msra.mxu0 0
      %4163 = vmatpush.bf16.msra.mxu0 0
      %4164 = vmatpush.bf16.msra.mxu0 0
      %4165 = vmatpush.bf16.msra.mxu0 %v4119
      %4166 = vmatmul.bf16.gmra.mxu0 %v4113
      %v4167 = vpop.f32.mrf.mxu0
      %v4168 = vadd.f32 0.0, %v4167
      %v4169 = vpop.f32.mrf.mxu0
      %4170 = vdwg.mxu0
      %4171 = vmatpush.bf16.msra.mxu0 0
      %4172 = vmatpush.bf16.msra.mxu0 0
      %4173 = vmatpush.bf16.msra.mxu0 0
      %4174 = vmatpush.bf16.msra.mxu0 0
      %4175 = vmatpush.bf16.msra.mxu0 0
      %4176 = vmatpush.bf16.msra.mxu0 0
      %4177 = vmatpush.bf16.msra.mxu0 0
      %4178 = vmatpush.bf16.msra.mxu0 %v4122
      %4179 = vmatmul.bf16.gmra.mxu0 %v4113
      %v4180 = vpop.f32.mrf.mxu0
      %v4181 = vadd.f32 0.0, %v4180
      %v4182 = vpop.f32.mrf.mxu0
      %4183 = vdwg.mxu0
      %4184 = vmatpush.bf16.msra.mxu0 0
      %4185 = vmatpush.bf16.msra.mxu0 0
      %4186 = vmatpush.bf16.msra.mxu0 0
      %4187 = vmatpush.bf16.msra.mxu0 0
      %4188 = vmatpush.bf16.msra.mxu0 0
      %4189 = vmatpush.bf16.msra.mxu0 0
      %4190 = vmatpush.bf16.msra.mxu0 0
      %4191 = vmatpush.bf16.msra.mxu0 %v4125
      %4192 = vmatmul.bf16.gmra.mxu0 %v4113
      %v4193 = vpop.f32.mrf.mxu0
      %v4194 = vadd.f32 0.0, %v4193
      %v4195 = vpop.f32.mrf.mxu0
      %4196 = vdwg.mxu0
      %4197 = vmatpush.bf16.msra.mxu0 0
      %4198 = vmatpush.bf16.msra.mxu0 0
      %4199 = vmatpush.bf16.msra.mxu0 0
      %4200 = vmatpush.bf16.msra.mxu0 0
      %4201 = vmatpush.bf16.msra.mxu0 0
      %4202 = vmatpush.bf16.msra.mxu0 0
      %4203 = vmatpush.bf16.msra.mxu0 0
      %4204 = vmatpush.bf16.msra.mxu0 %v4128
      %4205 = vmatmul.bf16.gmra.mxu0 %v4113
      %v4206 = vpop.f32.mrf.mxu0
      %v4207 = vadd.f32 0.0, %v4206
      %v4208 = vpop.f32.mrf.mxu0
      %4209 = vdwg.mxu0
      %4210 = vmatpush.bf16.msra.mxu0 0
      %4211 = vmatpush.bf16.msra.mxu0 0
      %4212 = vmatpush.bf16.msra.mxu0 0
      %4213 = vmatpush.bf16.msra.mxu0 0
      %4214 = vmatpush.bf16.msra.mxu0 0
      %4215 = vmatpush.bf16.msra.mxu0 0
      %4216 = vmatpush.bf16.msra.mxu0 0
      %4217 = vmatpush.bf16.msra.mxu0 %v4131
      %4218 = vmatmul.bf16.gmra.mxu0 %v4113
      %v4219 = vpop.f32.mrf.mxu0
      %v4220 = vadd.f32 0.0, %v4219
      %v4221 = vpop.f32.mrf.mxu0
      %4222 = vdwg.mxu0
      %4223 = vmatpush.bf16.msra.mxu0 0
      %4224 = vmatpush.bf16.msra.mxu0 0
      %4225 = vmatpush.bf16.msra.mxu0 0
      %4226 = vmatpush.bf16.msra.mxu0 0
      %4227 = vmatpush.bf16.msra.mxu0 0
      %4228 = vmatpush.bf16.msra.mxu0 0
      %4229 = vmatpush.bf16.msra.mxu0 0
      %4230 = vmatpush.bf16.msra.mxu0 %v4134
      %4231 = vmatmul.bf16.gmra.mxu0 %v4113
      %v4232 = vpop.f32.mrf.mxu0
      %v4233 = vadd.f32 0.0, %v4232
      %v4234 = vpop.f32.mrf.mxu0
      %4235 = vdwg.mxu0
      %4236 = vmatpush.bf16.msra.mxu0 0
      %4237 = vmatpush.bf16.msra.mxu0 0
      %4238 = vmatpush.bf16.msra.mxu0 0
      %4239 = vmatpush.bf16.msra.mxu0 0
      %4240 = vmatpush.bf16.msra.mxu0 0
      %4241 = vmatpush.bf16.msra.mxu0 0
      %4242 = vmatpush.bf16.msra.mxu0 0
      %4243 = vmatpush.bf16.msra.mxu0 %v4137
      %4244 = vmatmul.bf16.gmra.mxu0 %v4113
      %v4245 = vpop.f32.mrf.mxu0
      %v4246 = vadd.f32 0.0, %v4245
      %v4247 = vpop.f32.mrf.mxu0
      %4248 = vdwg.mxu0
      %4249 = vmatpush.bf16.msra.mxu0 0
      %4250 = vmatpush.bf16.msra.mxu0 0
      %4251 = vmatpush.bf16.msra.mxu0 0
      %4252 = vmatpush.bf16.msra.mxu0 0
      %4253 = vmatpush.bf16.msra.mxu0 0
      %4254 = vmatpush.bf16.msra.mxu0 0
      %4255 = vmatpush.bf16.msra.mxu0 0
      %4256 = vmatpush.bf16.msra.mxu0 %v4140
      %4257 = vmatmul.bf16.gmra.mxu0 %v4113
      %v4258 = vpop.f32.mrf.mxu0
      %v4259 = vadd.f32 0.0, %v4258
      %v4260 = vpop.f32.mrf.mxu0
      %4261 = vdwg.mxu0
      %4262 = vmatpush.bf16.msra.mxu0 0
      %4263 = vmatpush.bf16.msra.mxu0 0
      %4264 = vmatpush.bf16.msra.mxu0 0
      %4265 = vmatpush.bf16.msra.mxu0 0
      %4266 = vmatpush.bf16.msra.mxu0 0
      %4267 = vmatpush.bf16.msra.mxu0 0
      %4268 = vmatpush.bf16.msra.mxu0 0
      %4269 = vmatpush.bf16.msra.mxu0 %v4143
      %4270 = vmatmul.bf16.gmra.mxu0 %v4113
      %v4271 = vpop.f32.mrf.mxu0
      %v4272 = vadd.f32 0.0, %v4271
      %v4273 = vpop.f32.mrf.mxu0
      %4274 = vdwg.mxu0
      %v4275 = vadd.f32 %v4067, %v4155
      %v4276 = vadd.f32 %v4068, %v4168
      %v4277 = vadd.f32 %v4069, %v4181
      %v4278 = vadd.f32 %v4070, %v4194
      %v4279 = vadd.f32 %v4071, %v4207
      %v4280 = vadd.f32 %v4072, %v4220
      %v4281 = vadd.f32 %v4073, %v4233
      %v4282 = vadd.f32 %v4074, %v4246
      %v4283 = vadd.f32 %v4075, %v4259
      %v4284 = vadd.f32 %v4076, %v4272
      %s4285 = scalar_lea.vmem %s2, 76
      %v4286 = vld [vmem:[%s4285] sm:$0xf]
      %4287 = vrot.lane.b32.xlu0 %v371, 55
      %v4288 = vpop.permute.xlu0 %4287
      %4289 = vrot.lane.b32.xlu0 %v372, 55
      %v4290 = vpop.permute.xlu0 %4289
      %4291 = vrot.lane.b32.xlu0 %v373, 55
      %v4292 = vpop.permute.xlu0 %4291
      %4293 = vrot.lane.b32.xlu0 %v374, 55
      %v4294 = vpop.permute.xlu0 %4293
      %4295 = vrot.lane.b32.xlu0 %v375, 55
      %v4296 = vpop.permute.xlu0 %4295
      %4297 = vrot.lane.b32.xlu0 %v376, 55
      %v4298 = vpop.permute.xlu0 %4297
      %4299 = vrot.lane.b32.xlu0 %v377, 55
      %v4300 = vpop.permute.xlu0 %4299
      %4301 = vrot.lane.b32.xlu0 %v378, 55
      %v4302 = vpop.permute.xlu0 %4301
      %4303 = vrot.lane.b32.xlu0 %v379, 55
      %v4304 = vpop.permute.xlu0 %4303
      %4305 = vrot.lane.b32.xlu0 %v383, 55
      %v4306 = vpop.permute.xlu0 %4305
      %4307 = vrot.lane.b32.xlu0 %v384, 55
      %v4308 = vpop.permute.xlu0 %4307
      %vm4309 = vcmask 449536
      %v4310 = vsel %vm4309, %v4288, %v4290
      %v4311 = vsel %vm4309, %v4290, %v4292
      %v4312 = vsel %vm4309, %v4292, %v4294
      %v4313 = vsel %vm4309, %v4294, %v4296
      %v4314 = vsel %vm4309, %v4296, %v4298
      %v4315 = vsel %vm4309, %v4298, %v4300
      %v4316 = vsel %vm4309, %v4300, %v4302
      %v4317 = vsel %vm4309, %v4302, %v4304
      %v4318 = vsel %vm4309, %v4304, %v4306
      %v4319 = vsel %vm4309, %v4306, %v4308
      %v4321 = vsel %vm421, %v4286, 0
      %v4324 = vsel %vm425, %v4310, 0
      %v4327 = vsel %vm425, %v4311, 0
      %v4330 = vsel %vm425, %v4312, 0
      %v4333 = vsel %vm425, %v4313, 0
      %v4336 = vsel %vm425, %v4314, 0
      %v4339 = vsel %vm425, %v4315, 0
      %v4342 = vsel %vm425, %v4316, 0
      %v4345 = vsel %vm425, %v4317, 0
      %v4348 = vsel %vm425, %v4318, 0
      %v4351 = vsel %vm425, %v4319, 0
      %4353 = vmatpush.bf16.msra.mxu0 0
      %4354 = vmatpush.bf16.msra.mxu0 0
      %4355 = vmatpush.bf16.msra.mxu0 0
      %4356 = vmatpush.bf16.msra.mxu0 0
      %4357 = vmatpush.bf16.msra.mxu0 0
      %4358 = vmatpush.bf16.msra.mxu0 0
      %4359 = vmatpush.bf16.msra.mxu0 0
      %4360 = vmatpush.bf16.msra.mxu0 %v4324
      %4361 = vmatmul.bf16.gmra.mxu0 %v4321
      %v4362 = vpop.f32.mrf.mxu0
      %v4363 = vadd.f32 0.0, %v4362
      %v4364 = vpop.f32.mrf.mxu0
      %4365 = vdwg.mxu0
      %4366 = vmatpush.bf16.msra.mxu0 0
      %4367 = vmatpush.bf16.msra.mxu0 0
      %4368 = vmatpush.bf16.msra.mxu0 0
      %4369 = vmatpush.bf16.msra.mxu0 0
      %4370 = vmatpush.bf16.msra.mxu0 0
      %4371 = vmatpush.bf16.msra.mxu0 0
      %4372 = vmatpush.bf16.msra.mxu0 0
      %4373 = vmatpush.bf16.msra.mxu0 %v4327
      %4374 = vmatmul.bf16.gmra.mxu0 %v4321
      %v4375 = vpop.f32.mrf.mxu0
      %v4376 = vadd.f32 0.0, %v4375
      %v4377 = vpop.f32.mrf.mxu0
      %4378 = vdwg.mxu0
      %4379 = vmatpush.bf16.msra.mxu0 0
      %4380 = vmatpush.bf16.msra.mxu0 0
      %4381 = vmatpush.bf16.msra.mxu0 0
      %4382 = vmatpush.bf16.msra.mxu0 0
      %4383 = vmatpush.bf16.msra.mxu0 0
      %4384 = vmatpush.bf16.msra.mxu0 0
      %4385 = vmatpush.bf16.msra.mxu0 0
      %4386 = vmatpush.bf16.msra.mxu0 %v4330
      %4387 = vmatmul.bf16.gmra.mxu0 %v4321
      %v4388 = vpop.f32.mrf.mxu0
      %v4389 = vadd.f32 0.0, %v4388
      %v4390 = vpop.f32.mrf.mxu0
      %4391 = vdwg.mxu0
      %4392 = vmatpush.bf16.msra.mxu0 0
      %4393 = vmatpush.bf16.msra.mxu0 0
      %4394 = vmatpush.bf16.msra.mxu0 0
      %4395 = vmatpush.bf16.msra.mxu0 0
      %4396 = vmatpush.bf16.msra.mxu0 0
      %4397 = vmatpush.bf16.msra.mxu0 0
      %4398 = vmatpush.bf16.msra.mxu0 0
      %4399 = vmatpush.bf16.msra.mxu0 %v4333
      %4400 = vmatmul.bf16.gmra.mxu0 %v4321
      %v4401 = vpop.f32.mrf.mxu0
      %v4402 = vadd.f32 0.0, %v4401
      %v4403 = vpop.f32.mrf.mxu0
      %4404 = vdwg.mxu0
      %4405 = vmatpush.bf16.msra.mxu0 0
      %4406 = vmatpush.bf16.msra.mxu0 0
      %4407 = vmatpush.bf16.msra.mxu0 0
      %4408 = vmatpush.bf16.msra.mxu0 0
      %4409 = vmatpush.bf16.msra.mxu0 0
      %4410 = vmatpush.bf16.msra.mxu0 0
      %4411 = vmatpush.bf16.msra.mxu0 0
      %4412 = vmatpush.bf16.msra.mxu0 %v4336
      %4413 = vmatmul.bf16.gmra.mxu0 %v4321
      %v4414 = vpop.f32.mrf.mxu0
      %v4415 = vadd.f32 0.0, %v4414
      %v4416 = vpop.f32.mrf.mxu0
      %4417 = vdwg.mxu0
      %4418 = vmatpush.bf16.msra.mxu0 0
      %4419 = vmatpush.bf16.msra.mxu0 0
      %4420 = vmatpush.bf16.msra.mxu0 0
      %4421 = vmatpush.bf16.msra.mxu0 0
      %4422 = vmatpush.bf16.msra.mxu0 0
      %4423 = vmatpush.bf16.msra.mxu0 0
      %4424 = vmatpush.bf16.msra.mxu0 0
      %4425 = vmatpush.bf16.msra.mxu0 %v4339
      %4426 = vmatmul.bf16.gmra.mxu0 %v4321
      %v4427 = vpop.f32.mrf.mxu0
      %v4428 = vadd.f32 0.0, %v4427
      %v4429 = vpop.f32.mrf.mxu0
      %4430 = vdwg.mxu0
      %4431 = vmatpush.bf16.msra.mxu0 0
      %4432 = vmatpush.bf16.msra.mxu0 0
      %4433 = vmatpush.bf16.msra.mxu0 0
      %4434 = vmatpush.bf16.msra.mxu0 0
      %4435 = vmatpush.bf16.msra.mxu0 0
      %4436 = vmatpush.bf16.msra.mxu0 0
      %4437 = vmatpush.bf16.msra.mxu0 0
      %4438 = vmatpush.bf16.msra.mxu0 %v4342
      %4439 = vmatmul.bf16.gmra.mxu0 %v4321
      %v4440 = vpop.f32.mrf.mxu0
      %v4441 = vadd.f32 0.0, %v4440
      %v4442 = vpop.f32.mrf.mxu0
      %4443 = vdwg.mxu0
      %4444 = vmatpush.bf16.msra.mxu0 0
      %4445 = vmatpush.bf16.msra.mxu0 0
      %4446 = vmatpush.bf16.msra.mxu0 0
      %4447 = vmatpush.bf16.msra.mxu0 0
      %4448 = vmatpush.bf16.msra.mxu0 0
      %4449 = vmatpush.bf16.msra.mxu0 0
      %4450 = vmatpush.bf16.msra.mxu0 0
      %4451 = vmatpush.bf16.msra.mxu0 %v4345
      %4452 = vmatmul.bf16.gmra.mxu0 %v4321
      %v4453 = vpop.f32.mrf.mxu0
      %v4454 = vadd.f32 0.0, %v4453
      %v4455 = vpop.f32.mrf.mxu0
      %4456 = vdwg.mxu0
      %4457 = vmatpush.bf16.msra.mxu0 0
      %4458 = vmatpush.bf16.msra.mxu0 0
      %4459 = vmatpush.bf16.msra.mxu0 0
      %4460 = vmatpush.bf16.msra.mxu0 0
      %4461 = vmatpush.bf16.msra.mxu0 0
      %4462 = vmatpush.bf16.msra.mxu0 0
      %4463 = vmatpush.bf16.msra.mxu0 0
      %4464 = vmatpush.bf16.msra.mxu0 %v4348
      %4465 = vmatmul.bf16.gmra.mxu0 %v4321
      %v4466 = vpop.f32.mrf.mxu0
      %v4467 = vadd.f32 0.0, %v4466
      %v4468 = vpop.f32.mrf.mxu0
      %4469 = vdwg.mxu0
      %4470 = vmatpush.bf16.msra.mxu0 0
      %4471 = vmatpush.bf16.msra.mxu0 0
      %4472 = vmatpush.bf16.msra.mxu0 0
      %4473 = vmatpush.bf16.msra.mxu0 0
      %4474 = vmatpush.bf16.msra.mxu0 0
      %4475 = vmatpush.bf16.msra.mxu0 0
      %4476 = vmatpush.bf16.msra.mxu0 0
      %4477 = vmatpush.bf16.msra.mxu0 %v4351
      %4478 = vmatmul.bf16.gmra.mxu0 %v4321
      %v4479 = vpop.f32.mrf.mxu0
      %v4480 = vadd.f32 0.0, %v4479
      %v4481 = vpop.f32.mrf.mxu0
      %4482 = vdwg.mxu0
      %v4483 = vadd.f32 %v4275, %v4363
      %v4484 = vadd.f32 %v4276, %v4376
      %v4485 = vadd.f32 %v4277, %v4389
      %v4486 = vadd.f32 %v4278, %v4402
      %v4487 = vadd.f32 %v4279, %v4415
      %v4488 = vadd.f32 %v4280, %v4428
      %v4489 = vadd.f32 %v4281, %v4441
      %v4490 = vadd.f32 %v4282, %v4454
      %v4491 = vadd.f32 %v4283, %v4467
      %v4492 = vadd.f32 %v4284, %v4480
      %s4493 = scalar_lea.vmem %s2, 80
      %v4494 = vld [vmem:[%s4493] sm:$0xf]
      %4495 = vrot.lane.b32.xlu0 %v371, 54
      %v4496 = vpop.permute.xlu0 %4495
      %4497 = vrot.lane.b32.xlu0 %v372, 54
      %v4498 = vpop.permute.xlu0 %4497
      %4499 = vrot.lane.b32.xlu0 %v373, 54
      %v4500 = vpop.permute.xlu0 %4499
      %4501 = vrot.lane.b32.xlu0 %v374, 54
      %v4502 = vpop.permute.xlu0 %4501
      %4503 = vrot.lane.b32.xlu0 %v375, 54
      %v4504 = vpop.permute.xlu0 %4503
      %4505 = vrot.lane.b32.xlu0 %v376, 54
      %v4506 = vpop.permute.xlu0 %4505
      %4507 = vrot.lane.b32.xlu0 %v377, 54
      %v4508 = vpop.permute.xlu0 %4507
      %4509 = vrot.lane.b32.xlu0 %v378, 54
      %v4510 = vpop.permute.xlu0 %4509
      %4511 = vrot.lane.b32.xlu0 %v379, 54
      %v4512 = vpop.permute.xlu0 %4511
      %4513 = vrot.lane.b32.xlu0 %v383, 54
      %v4514 = vpop.permute.xlu0 %4513
      %4515 = vrot.lane.b32.xlu0 %v384, 54
      %v4516 = vpop.permute.xlu0 %4515
      %vm4517 = vcmask 441344
      %v4518 = vsel %vm4517, %v4496, %v4498
      %v4519 = vsel %vm4517, %v4498, %v4500
      %v4520 = vsel %vm4517, %v4500, %v4502
      %v4521 = vsel %vm4517, %v4502, %v4504
      %v4522 = vsel %vm4517, %v4504, %v4506
      %v4523 = vsel %vm4517, %v4506, %v4508
      %v4524 = vsel %vm4517, %v4508, %v4510
      %v4525 = vsel %vm4517, %v4510, %v4512
      %v4526 = vsel %vm4517, %v4512, %v4514
      %v4527 = vsel %vm4517, %v4514, %v4516
      %v4529 = vsel %vm421, %v4494, 0
      %v4532 = vsel %vm425, %v4518, 0
      %v4535 = vsel %vm425, %v4519, 0
      %v4538 = vsel %vm425, %v4520, 0
      %v4541 = vsel %vm425, %v4521, 0
      %v4544 = vsel %vm425, %v4522, 0
      %v4547 = vsel %vm425, %v4523, 0
      %v4550 = vsel %vm425, %v4524, 0
      %v4553 = vsel %vm425, %v4525, 0
      %v4556 = vsel %vm425, %v4526, 0
      %v4559 = vsel %vm425, %v4527, 0
      %4561 = vmatpush.bf16.msra.mxu0 0
      %4562 = vmatpush.bf16.msra.mxu0 0
      %4563 = vmatpush.bf16.msra.mxu0 0
      %4564 = vmatpush.bf16.msra.mxu0 0
      %4565 = vmatpush.bf16.msra.mxu0 0
      %4566 = vmatpush.bf16.msra.mxu0 0
      %4567 = vmatpush.bf16.msra.mxu0 0
      %4568 = vmatpush.bf16.msra.mxu0 %v4532
      %4569 = vmatmul.bf16.gmra.mxu0 %v4529
      %v4570 = vpop.f32.mrf.mxu0
      %v4571 = vadd.f32 0.0, %v4570
      %v4572 = vpop.f32.mrf.mxu0
      %4573 = vdwg.mxu0
      %4574 = vmatpush.bf16.msra.mxu0 0
      %4575 = vmatpush.bf16.msra.mxu0 0
      %4576 = vmatpush.bf16.msra.mxu0 0
      %4577 = vmatpush.bf16.msra.mxu0 0
      %4578 = vmatpush.bf16.msra.mxu0 0
      %4579 = vmatpush.bf16.msra.mxu0 0
      %4580 = vmatpush.bf16.msra.mxu0 0
      %4581 = vmatpush.bf16.msra.mxu0 %v4535
      %4582 = vmatmul.bf16.gmra.mxu0 %v4529
      %v4583 = vpop.f32.mrf.mxu0
      %v4584 = vadd.f32 0.0, %v4583
      %v4585 = vpop.f32.mrf.mxu0
      %4586 = vdwg.mxu0
      %4587 = vmatpush.bf16.msra.mxu0 0
      %4588 = vmatpush.bf16.msra.mxu0 0
      %4589 = vmatpush.bf16.msra.mxu0 0
      %4590 = vmatpush.bf16.msra.mxu0 0
      %4591 = vmatpush.bf16.msra.mxu0 0
      %4592 = vmatpush.bf16.msra.mxu0 0
      %4593 = vmatpush.bf16.msra.mxu0 0
      %4594 = vmatpush.bf16.msra.mxu0 %v4538
      %4595 = vmatmul.bf16.gmra.mxu0 %v4529
      %v4596 = vpop.f32.mrf.mxu0
      %v4597 = vadd.f32 0.0, %v4596
      %v4598 = vpop.f32.mrf.mxu0
      %4599 = vdwg.mxu0
      %4600 = vmatpush.bf16.msra.mxu0 0
      %4601 = vmatpush.bf16.msra.mxu0 0
      %4602 = vmatpush.bf16.msra.mxu0 0
      %4603 = vmatpush.bf16.msra.mxu0 0
      %4604 = vmatpush.bf16.msra.mxu0 0
      %4605 = vmatpush.bf16.msra.mxu0 0
      %4606 = vmatpush.bf16.msra.mxu0 0
      %4607 = vmatpush.bf16.msra.mxu0 %v4541
      %4608 = vmatmul.bf16.gmra.mxu0 %v4529
      %v4609 = vpop.f32.mrf.mxu0
      %v4610 = vadd.f32 0.0, %v4609
      %v4611 = vpop.f32.mrf.mxu0
      %4612 = vdwg.mxu0
      %4613 = vmatpush.bf16.msra.mxu0 0
      %4614 = vmatpush.bf16.msra.mxu0 0
      %4615 = vmatpush.bf16.msra.mxu0 0
      %4616 = vmatpush.bf16.msra.mxu0 0
      %4617 = vmatpush.bf16.msra.mxu0 0
      %4618 = vmatpush.bf16.msra.mxu0 0
      %4619 = vmatpush.bf16.msra.mxu0 0
      %4620 = vmatpush.bf16.msra.mxu0 %v4544
      %4621 = vmatmul.bf16.gmra.mxu0 %v4529
      %v4622 = vpop.f32.mrf.mxu0
      %v4623 = vadd.f32 0.0, %v4622
      %v4624 = vpop.f32.mrf.mxu0
      %4625 = vdwg.mxu0
      %4626 = vmatpush.bf16.msra.mxu0 0
      %4627 = vmatpush.bf16.msra.mxu0 0
      %4628 = vmatpush.bf16.msra.mxu0 0
      %4629 = vmatpush.bf16.msra.mxu0 0
      %4630 = vmatpush.bf16.msra.mxu0 0
      %4631 = vmatpush.bf16.msra.mxu0 0
      %4632 = vmatpush.bf16.msra.mxu0 0
      %4633 = vmatpush.bf16.msra.mxu0 %v4547
      %4634 = vmatmul.bf16.gmra.mxu0 %v4529
      %v4635 = vpop.f32.mrf.mxu0
      %v4636 = vadd.f32 0.0, %v4635
      %v4637 = vpop.f32.mrf.mxu0
      %4638 = vdwg.mxu0
      %4639 = vmatpush.bf16.msra.mxu0 0
      %4640 = vmatpush.bf16.msra.mxu0 0
      %4641 = vmatpush.bf16.msra.mxu0 0
      %4642 = vmatpush.bf16.msra.mxu0 0
      %4643 = vmatpush.bf16.msra.mxu0 0
      %4644 = vmatpush.bf16.msra.mxu0 0
      %4645 = vmatpush.bf16.msra.mxu0 0
      %4646 = vmatpush.bf16.msra.mxu0 %v4550
      %4647 = vmatmul.bf16.gmra.mxu0 %v4529
      %v4648 = vpop.f32.mrf.mxu0
      %v4649 = vadd.f32 0.0, %v4648
      %v4650 = vpop.f32.mrf.mxu0
      %4651 = vdwg.mxu0
      %4652 = vmatpush.bf16.msra.mxu0 0
      %4653 = vmatpush.bf16.msra.mxu0 0
      %4654 = vmatpush.bf16.msra.mxu0 0
      %4655 = vmatpush.bf16.msra.mxu0 0
      %4656 = vmatpush.bf16.msra.mxu0 0
      %4657 = vmatpush.bf16.msra.mxu0 0
      %4658 = vmatpush.bf16.msra.mxu0 0
      %4659 = vmatpush.bf16.msra.mxu0 %v4553
      %4660 = vmatmul.bf16.gmra.mxu0 %v4529
      %v4661 = vpop.f32.mrf.mxu0
      %v4662 = vadd.f32 0.0, %v4661
      %v4663 = vpop.f32.mrf.mxu0
      %4664 = vdwg.mxu0
      %4665 = vmatpush.bf16.msra.mxu0 0
      %4666 = vmatpush.bf16.msra.mxu0 0
      %4667 = vmatpush.bf16.msra.mxu0 0
      %4668 = vmatpush.bf16.msra.mxu0 0
      %4669 = vmatpush.bf16.msra.mxu0 0
      %4670 = vmatpush.bf16.msra.mxu0 0
      %4671 = vmatpush.bf16.msra.mxu0 0
      %4672 = vmatpush.bf16.msra.mxu0 %v4556
      %4673 = vmatmul.bf16.gmra.mxu0 %v4529
      %v4674 = vpop.f32.mrf.mxu0
      %v4675 = vadd.f32 0.0, %v4674
      %v4676 = vpop.f32.mrf.mxu0
      %4677 = vdwg.mxu0
      %4678 = vmatpush.bf16.msra.mxu0 0
      %4679 = vmatpush.bf16.msra.mxu0 0
      %4680 = vmatpush.bf16.msra.mxu0 0
      %4681 = vmatpush.bf16.msra.mxu0 0
      %4682 = vmatpush.bf16.msra.mxu0 0
      %4683 = vmatpush.bf16.msra.mxu0 0
      %4684 = vmatpush.bf16.msra.mxu0 0
      %4685 = vmatpush.bf16.msra.mxu0 %v4559
      %4686 = vmatmul.bf16.gmra.mxu0 %v4529
      %v4687 = vpop.f32.mrf.mxu0
      %v4688 = vadd.f32 0.0, %v4687
      %v4689 = vpop.f32.mrf.mxu0
      %4690 = vdwg.mxu0
      %v4691 = vadd.f32 %v4483, %v4571
      %v4692 = vadd.f32 %v4484, %v4584
      %v4693 = vadd.f32 %v4485, %v4597
      %v4694 = vadd.f32 %v4486, %v4610
      %v4695 = vadd.f32 %v4487, %v4623
      %v4696 = vadd.f32 %v4488, %v4636
      %v4697 = vadd.f32 %v4489, %v4649
      %v4698 = vadd.f32 %v4490, %v4662
      %v4699 = vadd.f32 %v4491, %v4675
      %v4700 = vadd.f32 %v4492, %v4688
      %s4701 = scalar_lea.vmem %s2, 84
      %v4702 = vld [vmem:[%s4701] sm:$0xf]
      %4703 = vrot.lane.b32.xlu0 %v371, 46
      %v4704 = vpop.permute.xlu0 %4703
      %4705 = vrot.lane.b32.xlu0 %v372, 46
      %v4706 = vpop.permute.xlu0 %4705
      %4707 = vrot.lane.b32.xlu0 %v373, 46
      %v4708 = vpop.permute.xlu0 %4707
      %4709 = vrot.lane.b32.xlu0 %v374, 46
      %v4710 = vpop.permute.xlu0 %4709
      %4711 = vrot.lane.b32.xlu0 %v375, 46
      %v4712 = vpop.permute.xlu0 %4711
      %4713 = vrot.lane.b32.xlu0 %v376, 46
      %v4714 = vpop.permute.xlu0 %4713
      %4715 = vrot.lane.b32.xlu0 %v377, 46
      %v4716 = vpop.permute.xlu0 %4715
      %4717 = vrot.lane.b32.xlu0 %v378, 46
      %v4718 = vpop.permute.xlu0 %4717
      %4719 = vrot.lane.b32.xlu0 %v379, 46
      %v4720 = vpop.permute.xlu0 %4719
      %4721 = vrot.lane.b32.xlu0 %v383, 46
      %v4722 = vpop.permute.xlu0 %4721
      %4723 = vrot.lane.b32.xlu0 %v384, 46
      %v4724 = vpop.permute.xlu0 %4723
      %vm4725 = vcmask 375808
      %v4726 = vsel %vm4725, %v4704, %v4706
      %v4727 = vsel %vm4725, %v4706, %v4708
      %v4728 = vsel %vm4725, %v4708, %v4710
      %v4729 = vsel %vm4725, %v4710, %v4712
      %v4730 = vsel %vm4725, %v4712, %v4714
      %v4731 = vsel %vm4725, %v4714, %v4716
      %v4732 = vsel %vm4725, %v4716, %v4718
      %v4733 = vsel %vm4725, %v4718, %v4720
      %v4734 = vsel %vm4725, %v4720, %v4722
      %v4735 = vsel %vm4725, %v4722, %v4724
      %v4737 = vsel %vm421, %v4702, 0
      %v4740 = vsel %vm425, %v4726, 0
      %v4743 = vsel %vm425, %v4727, 0
      %v4746 = vsel %vm425, %v4728, 0
      %v4749 = vsel %vm425, %v4729, 0
      %v4752 = vsel %vm425, %v4730, 0
      %v4755 = vsel %vm425, %v4731, 0
      %v4758 = vsel %vm425, %v4732, 0
      %v4761 = vsel %vm425, %v4733, 0
      %v4764 = vsel %vm425, %v4734, 0
      %v4767 = vsel %vm425, %v4735, 0
      %4769 = vmatpush.bf16.msra.mxu0 0
      %4770 = vmatpush.bf16.msra.mxu0 0
      %4771 = vmatpush.bf16.msra.mxu0 0
      %4772 = vmatpush.bf16.msra.mxu0 0
      %4773 = vmatpush.bf16.msra.mxu0 0
      %4774 = vmatpush.bf16.msra.mxu0 0
      %4775 = vmatpush.bf16.msra.mxu0 0
      %4776 = vmatpush.bf16.msra.mxu0 %v4740
      %4777 = vmatmul.bf16.gmra.mxu0 %v4737
      %v4778 = vpop.f32.mrf.mxu0
      %v4779 = vadd.f32 0.0, %v4778
      %v4780 = vpop.f32.mrf.mxu0
      %4781 = vdwg.mxu0
      %4782 = vmatpush.bf16.msra.mxu0 0
      %4783 = vmatpush.bf16.msra.mxu0 0
      %4784 = vmatpush.bf16.msra.mxu0 0
      %4785 = vmatpush.bf16.msra.mxu0 0
      %4786 = vmatpush.bf16.msra.mxu0 0
      %4787 = vmatpush.bf16.msra.mxu0 0
      %4788 = vmatpush.bf16.msra.mxu0 0
      %4789 = vmatpush.bf16.msra.mxu0 %v4743
      %4790 = vmatmul.bf16.gmra.mxu0 %v4737
      %v4791 = vpop.f32.mrf.mxu0
      %v4792 = vadd.f32 0.0, %v4791
      %v4793 = vpop.f32.mrf.mxu0
      %4794 = vdwg.mxu0
      %4795 = vmatpush.bf16.msra.mxu0 0
      %4796 = vmatpush.bf16.msra.mxu0 0
      %4797 = vmatpush.bf16.msra.mxu0 0
      %4798 = vmatpush.bf16.msra.mxu0 0
      %4799 = vmatpush.bf16.msra.mxu0 0
      %4800 = vmatpush.bf16.msra.mxu0 0
      %4801 = vmatpush.bf16.msra.mxu0 0
      %4802 = vmatpush.bf16.msra.mxu0 %v4746
      %4803 = vmatmul.bf16.gmra.mxu0 %v4737
      %v4804 = vpop.f32.mrf.mxu0
      %v4805 = vadd.f32 0.0, %v4804
      %v4806 = vpop.f32.mrf.mxu0
      %4807 = vdwg.mxu0
      %4808 = vmatpush.bf16.msra.mxu0 0
      %4809 = vmatpush.bf16.msra.mxu0 0
      %4810 = vmatpush.bf16.msra.mxu0 0
      %4811 = vmatpush.bf16.msra.mxu0 0
      %4812 = vmatpush.bf16.msra.mxu0 0
      %4813 = vmatpush.bf16.msra.mxu0 0
      %4814 = vmatpush.bf16.msra.mxu0 0
      %4815 = vmatpush.bf16.msra.mxu0 %v4749
      %4816 = vmatmul.bf16.gmra.mxu0 %v4737
      %v4817 = vpop.f32.mrf.mxu0
      %v4818 = vadd.f32 0.0, %v4817
      %v4819 = vpop.f32.mrf.mxu0
      %4820 = vdwg.mxu0
      %4821 = vmatpush.bf16.msra.mxu0 0
      %4822 = vmatpush.bf16.msra.mxu0 0
      %4823 = vmatpush.bf16.msra.mxu0 0
      %4824 = vmatpush.bf16.msra.mxu0 0
      %4825 = vmatpush.bf16.msra.mxu0 0
      %4826 = vmatpush.bf16.msra.mxu0 0
      %4827 = vmatpush.bf16.msra.mxu0 0
      %4828 = vmatpush.bf16.msra.mxu0 %v4752
      %4829 = vmatmul.bf16.gmra.mxu0 %v4737
      %v4830 = vpop.f32.mrf.mxu0
      %v4831 = vadd.f32 0.0, %v4830
      %v4832 = vpop.f32.mrf.mxu0
      %4833 = vdwg.mxu0
      %4834 = vmatpush.bf16.msra.mxu0 0
      %4835 = vmatpush.bf16.msra.mxu0 0
      %4836 = vmatpush.bf16.msra.mxu0 0
      %4837 = vmatpush.bf16.msra.mxu0 0
      %4838 = vmatpush.bf16.msra.mxu0 0
      %4839 = vmatpush.bf16.msra.mxu0 0
      %4840 = vmatpush.bf16.msra.mxu0 0
      %4841 = vmatpush.bf16.msra.mxu0 %v4755
      %4842 = vmatmul.bf16.gmra.mxu0 %v4737
      %v4843 = vpop.f32.mrf.mxu0
      %v4844 = vadd.f32 0.0, %v4843
      %v4845 = vpop.f32.mrf.mxu0
      %4846 = vdwg.mxu0
      %4847 = vmatpush.bf16.msra.mxu0 0
      %4848 = vmatpush.bf16.msra.mxu0 0
      %4849 = vmatpush.bf16.msra.mxu0 0
      %4850 = vmatpush.bf16.msra.mxu0 0
      %4851 = vmatpush.bf16.msra.mxu0 0
      %4852 = vmatpush.bf16.msra.mxu0 0
      %4853 = vmatpush.bf16.msra.mxu0 0
      %4854 = vmatpush.bf16.msra.mxu0 %v4758
      %4855 = vmatmul.bf16.gmra.mxu0 %v4737
      %v4856 = vpop.f32.mrf.mxu0
      %v4857 = vadd.f32 0.0, %v4856
      %v4858 = vpop.f32.mrf.mxu0
      %4859 = vdwg.mxu0
      %4860 = vmatpush.bf16.msra.mxu0 0
      %4861 = vmatpush.bf16.msra.mxu0 0
      %4862 = vmatpush.bf16.msra.mxu0 0
      %4863 = vmatpush.bf16.msra.mxu0 0
      %4864 = vmatpush.bf16.msra.mxu0 0
      %4865 = vmatpush.bf16.msra.mxu0 0
      %4866 = vmatpush.bf16.msra.mxu0 0
      %4867 = vmatpush.bf16.msra.mxu0 %v4761
      %4868 = vmatmul.bf16.gmra.mxu0 %v4737
      %v4869 = vpop.f32.mrf.mxu0
      %v4870 = vadd.f32 0.0, %v4869
      %v4871 = vpop.f32.mrf.mxu0
      %4872 = vdwg.mxu0
      %4873 = vmatpush.bf16.msra.mxu0 0
      %4874 = vmatpush.bf16.msra.mxu0 0
      %4875 = vmatpush.bf16.msra.mxu0 0
      %4876 = vmatpush.bf16.msra.mxu0 0
      %4877 = vmatpush.bf16.msra.mxu0 0
      %4878 = vmatpush.bf16.msra.mxu0 0
      %4879 = vmatpush.bf16.msra.mxu0 0
      %4880 = vmatpush.bf16.msra.mxu0 %v4764
      %4881 = vmatmul.bf16.gmra.mxu0 %v4737
      %v4882 = vpop.f32.mrf.mxu0
      %v4883 = vadd.f32 0.0, %v4882
      %v4884 = vpop.f32.mrf.mxu0
      %4885 = vdwg.mxu0
      %4886 = vmatpush.bf16.msra.mxu0 0
      %4887 = vmatpush.bf16.msra.mxu0 0
      %4888 = vmatpush.bf16.msra.mxu0 0
      %4889 = vmatpush.bf16.msra.mxu0 0
      %4890 = vmatpush.bf16.msra.mxu0 0
      %4891 = vmatpush.bf16.msra.mxu0 0
      %4892 = vmatpush.bf16.msra.mxu0 0
      %4893 = vmatpush.bf16.msra.mxu0 %v4767
      %4894 = vmatmul.bf16.gmra.mxu0 %v4737
      %v4895 = vpop.f32.mrf.mxu0
      %v4896 = vadd.f32 0.0, %v4895
      %v4897 = vpop.f32.mrf.mxu0
      %4898 = vdwg.mxu0
      %v4899 = vadd.f32 %v4691, %v4779
      %v4900 = vadd.f32 %v4692, %v4792
      %v4901 = vadd.f32 %v4693, %v4805
      %v4902 = vadd.f32 %v4694, %v4818
      %v4903 = vadd.f32 %v4695, %v4831
      %v4904 = vadd.f32 %v4696, %v4844
      %v4905 = vadd.f32 %v4697, %v4857
      %v4906 = vadd.f32 %v4698, %v4870
      %v4907 = vadd.f32 %v4699, %v4883
      %v4908 = vadd.f32 %v4700, %v4896
      %s4909 = scalar_lea.vmem %s2, 88
      %v4910 = vld [vmem:[%s4909] sm:$0xf]
      %4911 = vrot.lane.b32.xlu0 %v371, 45
      %v4912 = vpop.permute.xlu0 %4911
      %4913 = vrot.lane.b32.xlu0 %v372, 45
      %v4914 = vpop.permute.xlu0 %4913
      %4915 = vrot.lane.b32.xlu0 %v373, 45
      %v4916 = vpop.permute.xlu0 %4915
      %4917 = vrot.lane.b32.xlu0 %v374, 45
      %v4918 = vpop.permute.xlu0 %4917
      %4919 = vrot.lane.b32.xlu0 %v375, 45
      %v4920 = vpop.permute.xlu0 %4919
      %4921 = vrot.lane.b32.xlu0 %v376, 45
      %v4922 = vpop.permute.xlu0 %4921
      %4923 = vrot.lane.b32.xlu0 %v377, 45
      %v4924 = vpop.permute.xlu0 %4923
      %4925 = vrot.lane.b32.xlu0 %v378, 45
      %v4926 = vpop.permute.xlu0 %4925
      %4927 = vrot.lane.b32.xlu0 %v379, 45
      %v4928 = vpop.permute.xlu0 %4927
      %4929 = vrot.lane.b32.xlu0 %v383, 45
      %v4930 = vpop.permute.xlu0 %4929
      %4931 = vrot.lane.b32.xlu0 %v384, 45
      %v4932 = vpop.permute.xlu0 %4931
      %vm4933 = vcmask 367616
      %v4934 = vsel %vm4933, %v4912, %v4914
      %v4935 = vsel %vm4933, %v4914, %v4916
      %v4936 = vsel %vm4933, %v4916, %v4918
      %v4937 = vsel %vm4933, %v4918, %v4920
      %v4938 = vsel %vm4933, %v4920, %v4922
      %v4939 = vsel %vm4933, %v4922, %v4924
      %v4940 = vsel %vm4933, %v4924, %v4926
      %v4941 = vsel %vm4933, %v4926, %v4928
      %v4942 = vsel %vm4933, %v4928, %v4930
      %v4943 = vsel %vm4933, %v4930, %v4932
      %v4945 = vsel %vm421, %v4910, 0
      %v4948 = vsel %vm425, %v4934, 0
      %v4951 = vsel %vm425, %v4935, 0
      %v4954 = vsel %vm425, %v4936, 0
      %v4957 = vsel %vm425, %v4937, 0
      %v4960 = vsel %vm425, %v4938, 0
      %v4963 = vsel %vm425, %v4939, 0
      %v4966 = vsel %vm425, %v4940, 0
      %v4969 = vsel %vm425, %v4941, 0
      %v4972 = vsel %vm425, %v4942, 0
      %v4975 = vsel %vm425, %v4943, 0
      %4977 = vmatpush.bf16.msra.mxu0 0
      %4978 = vmatpush.bf16.msra.mxu0 0
      %4979 = vmatpush.bf16.msra.mxu0 0
      %4980 = vmatpush.bf16.msra.mxu0 0
      %4981 = vmatpush.bf16.msra.mxu0 0
      %4982 = vmatpush.bf16.msra.mxu0 0
      %4983 = vmatpush.bf16.msra.mxu0 0
      %4984 = vmatpush.bf16.msra.mxu0 %v4948
      %4985 = vmatmul.bf16.gmra.mxu0 %v4945
      %v4986 = vpop.f32.mrf.mxu0
      %v4987 = vadd.f32 0.0, %v4986
      %v4988 = vpop.f32.mrf.mxu0
      %4989 = vdwg.mxu0
      %4990 = vmatpush.bf16.msra.mxu0 0
      %4991 = vmatpush.bf16.msra.mxu0 0
      %4992 = vmatpush.bf16.msra.mxu0 0
      %4993 = vmatpush.bf16.msra.mxu0 0
      %4994 = vmatpush.bf16.msra.mxu0 0
      %4995 = vmatpush.bf16.msra.mxu0 0
      %4996 = vmatpush.bf16.msra.mxu0 0
      %4997 = vmatpush.bf16.msra.mxu0 %v4951
      %4998 = vmatmul.bf16.gmra.mxu0 %v4945
      %v4999 = vpop.f32.mrf.mxu0
      %v5000 = vadd.f32 0.0, %v4999
      %v5001 = vpop.f32.mrf.mxu0
      %5002 = vdwg.mxu0
      %5003 = vmatpush.bf16.msra.mxu0 0
      %5004 = vmatpush.bf16.msra.mxu0 0
      %5005 = vmatpush.bf16.msra.mxu0 0
      %5006 = vmatpush.bf16.msra.mxu0 0
      %5007 = vmatpush.bf16.msra.mxu0 0
      %5008 = vmatpush.bf16.msra.mxu0 0
      %5009 = vmatpush.bf16.msra.mxu0 0
      %5010 = vmatpush.bf16.msra.mxu0 %v4954
      %5011 = vmatmul.bf16.gmra.mxu0 %v4945
      %v5012 = vpop.f32.mrf.mxu0
      %v5013 = vadd.f32 0.0, %v5012
      %v5014 = vpop.f32.mrf.mxu0
      %5015 = vdwg.mxu0
      %5016 = vmatpush.bf16.msra.mxu0 0
      %5017 = vmatpush.bf16.msra.mxu0 0
      %5018 = vmatpush.bf16.msra.mxu0 0
      %5019 = vmatpush.bf16.msra.mxu0 0
      %5020 = vmatpush.bf16.msra.mxu0 0
      %5021 = vmatpush.bf16.msra.mxu0 0
      %5022 = vmatpush.bf16.msra.mxu0 0
      %5023 = vmatpush.bf16.msra.mxu0 %v4957
      %5024 = vmatmul.bf16.gmra.mxu0 %v4945
      %v5025 = vpop.f32.mrf.mxu0
      %v5026 = vadd.f32 0.0, %v5025
      %v5027 = vpop.f32.mrf.mxu0
      %5028 = vdwg.mxu0
      %5029 = vmatpush.bf16.msra.mxu0 0
      %5030 = vmatpush.bf16.msra.mxu0 0
      %5031 = vmatpush.bf16.msra.mxu0 0
      %5032 = vmatpush.bf16.msra.mxu0 0
      %5033 = vmatpush.bf16.msra.mxu0 0
      %5034 = vmatpush.bf16.msra.mxu0 0
      %5035 = vmatpush.bf16.msra.mxu0 0
      %5036 = vmatpush.bf16.msra.mxu0 %v4960
      %5037 = vmatmul.bf16.gmra.mxu0 %v4945
      %v5038 = vpop.f32.mrf.mxu0
      %v5039 = vadd.f32 0.0, %v5038
      %v5040 = vpop.f32.mrf.mxu0
      %5041 = vdwg.mxu0
      %5042 = vmatpush.bf16.msra.mxu0 0
      %5043 = vmatpush.bf16.msra.mxu0 0
      %5044 = vmatpush.bf16.msra.mxu0 0
      %5045 = vmatpush.bf16.msra.mxu0 0
      %5046 = vmatpush.bf16.msra.mxu0 0
      %5047 = vmatpush.bf16.msra.mxu0 0
      %5048 = vmatpush.bf16.msra.mxu0 0
      %5049 = vmatpush.bf16.msra.mxu0 %v4963
      %5050 = vmatmul.bf16.gmra.mxu0 %v4945
      %v5051 = vpop.f32.mrf.mxu0
      %v5052 = vadd.f32 0.0, %v5051
      %v5053 = vpop.f32.mrf.mxu0
      %5054 = vdwg.mxu0
      %5055 = vmatpush.bf16.msra.mxu0 0
      %5056 = vmatpush.bf16.msra.mxu0 0
      %5057 = vmatpush.bf16.msra.mxu0 0
      %5058 = vmatpush.bf16.msra.mxu0 0
      %5059 = vmatpush.bf16.msra.mxu0 0
      %5060 = vmatpush.bf16.msra.mxu0 0
      %5061 = vmatpush.bf16.msra.mxu0 0
      %5062 = vmatpush.bf16.msra.mxu0 %v4966
      %5063 = vmatmul.bf16.gmra.mxu0 %v4945
      %v5064 = vpop.f32.mrf.mxu0
      %v5065 = vadd.f32 0.0, %v5064
      %v5066 = vpop.f32.mrf.mxu0
      %5067 = vdwg.mxu0
      %5068 = vmatpush.bf16.msra.mxu0 0
      %5069 = vmatpush.bf16.msra.mxu0 0
      %5070 = vmatpush.bf16.msra.mxu0 0
      %5071 = vmatpush.bf16.msra.mxu0 0
      %5072 = vmatpush.bf16.msra.mxu0 0
      %5073 = vmatpush.bf16.msra.mxu0 0
      %5074 = vmatpush.bf16.msra.mxu0 0
      %5075 = vmatpush.bf16.msra.mxu0 %v4969
      %5076 = vmatmul.bf16.gmra.mxu0 %v4945
      %v5077 = vpop.f32.mrf.mxu0
      %v5078 = vadd.f32 0.0, %v5077
      %v5079 = vpop.f32.mrf.mxu0
      %5080 = vdwg.mxu0
      %5081 = vmatpush.bf16.msra.mxu0 0
      %5082 = vmatpush.bf16.msra.mxu0 0
      %5083 = vmatpush.bf16.msra.mxu0 0
      %5084 = vmatpush.bf16.msra.mxu0 0
      %5085 = vmatpush.bf16.msra.mxu0 0
      %5086 = vmatpush.bf16.msra.mxu0 0
      %5087 = vmatpush.bf16.msra.mxu0 0
      %5088 = vmatpush.bf16.msra.mxu0 %v4972
      %5089 = vmatmul.bf16.gmra.mxu0 %v4945
      %v5090 = vpop.f32.mrf.mxu0
      %v5091 = vadd.f32 0.0, %v5090
      %v5092 = vpop.f32.mrf.mxu0
      %5093 = vdwg.mxu0
      %5094 = vmatpush.bf16.msra.mxu0 0
      %5095 = vmatpush.bf16.msra.mxu0 0
      %5096 = vmatpush.bf16.msra.mxu0 0
      %5097 = vmatpush.bf16.msra.mxu0 0
      %5098 = vmatpush.bf16.msra.mxu0 0
      %5099 = vmatpush.bf16.msra.mxu0 0
      %5100 = vmatpush.bf16.msra.mxu0 0
      %5101 = vmatpush.bf16.msra.mxu0 %v4975
      %5102 = vmatmul.bf16.gmra.mxu0 %v4945
      %v5103 = vpop.f32.mrf.mxu0
      %v5104 = vadd.f32 0.0, %v5103
      %v5105 = vpop.f32.mrf.mxu0
      %5106 = vdwg.mxu0
      %v5107 = vadd.f32 %v4899, %v4987
      %v5108 = vadd.f32 %v4900, %v5000
      %v5109 = vadd.f32 %v4901, %v5013
      %v5110 = vadd.f32 %v4902, %v5026
      %v5111 = vadd.f32 %v4903, %v5039
      %v5112 = vadd.f32 %v4904, %v5052
      %v5113 = vadd.f32 %v4905, %v5065
      %v5114 = vadd.f32 %v4906, %v5078
      %v5115 = vadd.f32 %v4907, %v5091
      %v5116 = vadd.f32 %v4908, %v5104
      %s5117 = scalar_lea.vmem %s2, 92
      %v5118 = vld [vmem:[%s5117] sm:$0xf]
      %5119 = vrot.lane.b32.xlu0 %v371, 44
      %v5120 = vpop.permute.xlu0 %5119
      %5121 = vrot.lane.b32.xlu0 %v372, 44
      %v5122 = vpop.permute.xlu0 %5121
      %5123 = vrot.lane.b32.xlu0 %v373, 44
      %v5124 = vpop.permute.xlu0 %5123
      %5125 = vrot.lane.b32.xlu0 %v374, 44
      %v5126 = vpop.permute.xlu0 %5125
      %5127 = vrot.lane.b32.xlu0 %v375, 44
      %v5128 = vpop.permute.xlu0 %5127
      %5129 = vrot.lane.b32.xlu0 %v376, 44
      %v5130 = vpop.permute.xlu0 %5129
      %5131 = vrot.lane.b32.xlu0 %v377, 44
      %v5132 = vpop.permute.xlu0 %5131
      %5133 = vrot.lane.b32.xlu0 %v378, 44
      %v5134 = vpop.permute.xlu0 %5133
      %5135 = vrot.lane.b32.xlu0 %v379, 44
      %v5136 = vpop.permute.xlu0 %5135
      %5137 = vrot.lane.b32.xlu0 %v383, 44
      %v5138 = vpop.permute.xlu0 %5137
      %5139 = vrot.lane.b32.xlu0 %v384, 44
      %v5140 = vpop.permute.xlu0 %5139
      %vm5141 = vcmask 359424
      %v5142 = vsel %vm5141, %v5120, %v5122
      %v5143 = vsel %vm5141, %v5122, %v5124
      %v5144 = vsel %vm5141, %v5124, %v5126
      %v5145 = vsel %vm5141, %v5126, %v5128
      %v5146 = vsel %vm5141, %v5128, %v5130
      %v5147 = vsel %vm5141, %v5130, %v5132
      %v5148 = vsel %vm5141, %v5132, %v5134
      %v5149 = vsel %vm5141, %v5134, %v5136
      %v5150 = vsel %vm5141, %v5136, %v5138
      %v5151 = vsel %vm5141, %v5138, %v5140
      %v5153 = vsel %vm421, %v5118, 0
      %v5156 = vsel %vm425, %v5142, 0
      %v5159 = vsel %vm425, %v5143, 0
      %v5162 = vsel %vm425, %v5144, 0
      %v5165 = vsel %vm425, %v5145, 0
      %v5168 = vsel %vm425, %v5146, 0
      %v5171 = vsel %vm425, %v5147, 0
      %v5174 = vsel %vm425, %v5148, 0
      %v5177 = vsel %vm425, %v5149, 0
      %v5180 = vsel %vm425, %v5150, 0
      %v5183 = vsel %vm425, %v5151, 0
      %5185 = vmatpush.bf16.msra.mxu0 0
      %5186 = vmatpush.bf16.msra.mxu0 0
      %5187 = vmatpush.bf16.msra.mxu0 0
      %5188 = vmatpush.bf16.msra.mxu0 0
      %5189 = vmatpush.bf16.msra.mxu0 0
      %5190 = vmatpush.bf16.msra.mxu0 0
      %5191 = vmatpush.bf16.msra.mxu0 0
      %5192 = vmatpush.bf16.msra.mxu0 %v5156
      %5193 = vmatmul.bf16.gmra.mxu0 %v5153
      %v5194 = vpop.f32.mrf.mxu0
      %v5195 = vadd.f32 0.0, %v5194
      %v5196 = vpop.f32.mrf.mxu0
      %5197 = vdwg.mxu0
      %5198 = vmatpush.bf16.msra.mxu0 0
      %5199 = vmatpush.bf16.msra.mxu0 0
      %5200 = vmatpush.bf16.msra.mxu0 0
      %5201 = vmatpush.bf16.msra.mxu0 0
      %5202 = vmatpush.bf16.msra.mxu0 0
      %5203 = vmatpush.bf16.msra.mxu0 0
      %5204 = vmatpush.bf16.msra.mxu0 0
      %5205 = vmatpush.bf16.msra.mxu0 %v5159
      %5206 = vmatmul.bf16.gmra.mxu0 %v5153
      %v5207 = vpop.f32.mrf.mxu0
      %v5208 = vadd.f32 0.0, %v5207
      %v5209 = vpop.f32.mrf.mxu0
      %5210 = vdwg.mxu0
      %5211 = vmatpush.bf16.msra.mxu0 0
      %5212 = vmatpush.bf16.msra.mxu0 0
      %5213 = vmatpush.bf16.msra.mxu0 0
      %5214 = vmatpush.bf16.msra.mxu0 0
      %5215 = vmatpush.bf16.msra.mxu0 0
      %5216 = vmatpush.bf16.msra.mxu0 0
      %5217 = vmatpush.bf16.msra.mxu0 0
      %5218 = vmatpush.bf16.msra.mxu0 %v5162
      %5219 = vmatmul.bf16.gmra.mxu0 %v5153
      %v5220 = vpop.f32.mrf.mxu0
      %v5221 = vadd.f32 0.0, %v5220
      %v5222 = vpop.f32.mrf.mxu0
      %5223 = vdwg.mxu0
      %5224 = vmatpush.bf16.msra.mxu0 0
      %5225 = vmatpush.bf16.msra.mxu0 0
      %5226 = vmatpush.bf16.msra.mxu0 0
      %5227 = vmatpush.bf16.msra.mxu0 0
      %5228 = vmatpush.bf16.msra.mxu0 0
      %5229 = vmatpush.bf16.msra.mxu0 0
      %5230 = vmatpush.bf16.msra.mxu0 0
      %5231 = vmatpush.bf16.msra.mxu0 %v5165
      %5232 = vmatmul.bf16.gmra.mxu0 %v5153
      %v5233 = vpop.f32.mrf.mxu0
      %v5234 = vadd.f32 0.0, %v5233
      %v5235 = vpop.f32.mrf.mxu0
      %5236 = vdwg.mxu0
      %5237 = vmatpush.bf16.msra.mxu0 0
      %5238 = vmatpush.bf16.msra.mxu0 0
      %5239 = vmatpush.bf16.msra.mxu0 0
      %5240 = vmatpush.bf16.msra.mxu0 0
      %5241 = vmatpush.bf16.msra.mxu0 0
      %5242 = vmatpush.bf16.msra.mxu0 0
      %5243 = vmatpush.bf16.msra.mxu0 0
      %5244 = vmatpush.bf16.msra.mxu0 %v5168
      %5245 = vmatmul.bf16.gmra.mxu0 %v5153
      %v5246 = vpop.f32.mrf.mxu0
      %v5247 = vadd.f32 0.0, %v5246
      %v5248 = vpop.f32.mrf.mxu0
      %5249 = vdwg.mxu0
      %5250 = vmatpush.bf16.msra.mxu0 0
      %5251 = vmatpush.bf16.msra.mxu0 0
      %5252 = vmatpush.bf16.msra.mxu0 0
      %5253 = vmatpush.bf16.msra.mxu0 0
      %5254 = vmatpush.bf16.msra.mxu0 0
      %5255 = vmatpush.bf16.msra.mxu0 0
      %5256 = vmatpush.bf16.msra.mxu0 0
      %5257 = vmatpush.bf16.msra.mxu0 %v5171
      %5258 = vmatmul.bf16.gmra.mxu0 %v5153
      %v5259 = vpop.f32.mrf.mxu0
      %v5260 = vadd.f32 0.0, %v5259
      %v5261 = vpop.f32.mrf.mxu0
      %5262 = vdwg.mxu0
      %5263 = vmatpush.bf16.msra.mxu0 0
      %5264 = vmatpush.bf16.msra.mxu0 0
      %5265 = vmatpush.bf16.msra.mxu0 0
      %5266 = vmatpush.bf16.msra.mxu0 0
      %5267 = vmatpush.bf16.msra.mxu0 0
      %5268 = vmatpush.bf16.msra.mxu0 0
      %5269 = vmatpush.bf16.msra.mxu0 0
      %5270 = vmatpush.bf16.msra.mxu0 %v5174
      %5271 = vmatmul.bf16.gmra.mxu0 %v5153
      %v5272 = vpop.f32.mrf.mxu0
      %v5273 = vadd.f32 0.0, %v5272
      %v5274 = vpop.f32.mrf.mxu0
      %5275 = vdwg.mxu0
      %5276 = vmatpush.bf16.msra.mxu0 0
      %5277 = vmatpush.bf16.msra.mxu0 0
      %5278 = vmatpush.bf16.msra.mxu0 0
      %5279 = vmatpush.bf16.msra.mxu0 0
      %5280 = vmatpush.bf16.msra.mxu0 0
      %5281 = vmatpush.bf16.msra.mxu0 0
      %5282 = vmatpush.bf16.msra.mxu0 0
      %5283 = vmatpush.bf16.msra.mxu0 %v5177
      %5284 = vmatmul.bf16.gmra.mxu0 %v5153
      %v5285 = vpop.f32.mrf.mxu0
      %v5286 = vadd.f32 0.0, %v5285
      %v5287 = vpop.f32.mrf.mxu0
      %5288 = vdwg.mxu0
      %5289 = vmatpush.bf16.msra.mxu0 0
      %5290 = vmatpush.bf16.msra.mxu0 0
      %5291 = vmatpush.bf16.msra.mxu0 0
      %5292 = vmatpush.bf16.msra.mxu0 0
      %5293 = vmatpush.bf16.msra.mxu0 0
      %5294 = vmatpush.bf16.msra.mxu0 0
      %5295 = vmatpush.bf16.msra.mxu0 0
      %5296 = vmatpush.bf16.msra.mxu0 %v5180
      %5297 = vmatmul.bf16.gmra.mxu0 %v5153
      %v5298 = vpop.f32.mrf.mxu0
      %v5299 = vadd.f32 0.0, %v5298
      %v5300 = vpop.f32.mrf.mxu0
      %5301 = vdwg.mxu0
      %5302 = vmatpush.bf16.msra.mxu0 0
      %5303 = vmatpush.bf16.msra.mxu0 0
      %5304 = vmatpush.bf16.msra.mxu0 0
      %5305 = vmatpush.bf16.msra.mxu0 0
      %5306 = vmatpush.bf16.msra.mxu0 0
      %5307 = vmatpush.bf16.msra.mxu0 0
      %5308 = vmatpush.bf16.msra.mxu0 0
      %5309 = vmatpush.bf16.msra.mxu0 %v5183
      %5310 = vmatmul.bf16.gmra.mxu0 %v5153
      %v5311 = vpop.f32.mrf.mxu0
      %v5312 = vadd.f32 0.0, %v5311
      %v5313 = vpop.f32.mrf.mxu0
      %5314 = vdwg.mxu0
      %v5315 = vadd.f32 %v5107, %v5195
      %v5316 = vadd.f32 %v5108, %v5208
      %v5317 = vadd.f32 %v5109, %v5221
      %v5318 = vadd.f32 %v5110, %v5234
      %v5319 = vadd.f32 %v5111, %v5247
      %v5320 = vadd.f32 %v5112, %v5260
      %v5321 = vadd.f32 %v5113, %v5273
      %v5322 = vadd.f32 %v5114, %v5286
      %v5323 = vadd.f32 %v5115, %v5299
      %v5324 = vadd.f32 %v5116, %v5312
      %s5325 = scalar_lea.vmem %s2, 96
      %v5326 = vld [vmem:[%s5325] sm:$0xf]
      %5327 = vrot.lane.b32.xlu0 %v371, 36
      %v5328 = vpop.permute.xlu0 %5327
      %5329 = vrot.lane.b32.xlu0 %v372, 36
      %v5330 = vpop.permute.xlu0 %5329
      %5331 = vrot.lane.b32.xlu0 %v373, 36
      %v5332 = vpop.permute.xlu0 %5331
      %5333 = vrot.lane.b32.xlu0 %v374, 36
      %v5334 = vpop.permute.xlu0 %5333
      %5335 = vrot.lane.b32.xlu0 %v375, 36
      %v5336 = vpop.permute.xlu0 %5335
      %5337 = vrot.lane.b32.xlu0 %v376, 36
      %v5338 = vpop.permute.xlu0 %5337
      %5339 = vrot.lane.b32.xlu0 %v377, 36
      %v5340 = vpop.permute.xlu0 %5339
      %5341 = vrot.lane.b32.xlu0 %v378, 36
      %v5342 = vpop.permute.xlu0 %5341
      %5343 = vrot.lane.b32.xlu0 %v379, 36
      %v5344 = vpop.permute.xlu0 %5343
      %5345 = vrot.lane.b32.xlu0 %v383, 36
      %v5346 = vpop.permute.xlu0 %5345
      %5347 = vrot.lane.b32.xlu0 %v384, 36
      %v5348 = vpop.permute.xlu0 %5347
      %vm5349 = vcmask 293888
      %v5350 = vsel %vm5349, %v5328, %v5330
      %v5351 = vsel %vm5349, %v5330, %v5332
      %v5352 = vsel %vm5349, %v5332, %v5334
      %v5353 = vsel %vm5349, %v5334, %v5336
      %v5354 = vsel %vm5349, %v5336, %v5338
      %v5355 = vsel %vm5349, %v5338, %v5340
      %v5356 = vsel %vm5349, %v5340, %v5342
      %v5357 = vsel %vm5349, %v5342, %v5344
      %v5358 = vsel %vm5349, %v5344, %v5346
      %v5359 = vsel %vm5349, %v5346, %v5348
      %v5361 = vsel %vm421, %v5326, 0
      %v5364 = vsel %vm425, %v5350, 0
      %v5367 = vsel %vm425, %v5351, 0
      %v5370 = vsel %vm425, %v5352, 0
      %v5373 = vsel %vm425, %v5353, 0
      %v5376 = vsel %vm425, %v5354, 0
      %v5379 = vsel %vm425, %v5355, 0
      %v5382 = vsel %vm425, %v5356, 0
      %v5385 = vsel %vm425, %v5357, 0
      %v5388 = vsel %vm425, %v5358, 0
      %v5391 = vsel %vm425, %v5359, 0
      %5393 = vmatpush.bf16.msra.mxu0 0
      %5394 = vmatpush.bf16.msra.mxu0 0
      %5395 = vmatpush.bf16.msra.mxu0 0
      %5396 = vmatpush.bf16.msra.mxu0 0
      %5397 = vmatpush.bf16.msra.mxu0 0
      %5398 = vmatpush.bf16.msra.mxu0 0
      %5399 = vmatpush.bf16.msra.mxu0 0
      %5400 = vmatpush.bf16.msra.mxu0 %v5364
      %5401 = vmatmul.bf16.gmra.mxu0 %v5361
      %v5402 = vpop.f32.mrf.mxu0
      %v5403 = vadd.f32 0.0, %v5402
      %v5404 = vpop.f32.mrf.mxu0
      %5405 = vdwg.mxu0
      %5406 = vmatpush.bf16.msra.mxu0 0
      %5407 = vmatpush.bf16.msra.mxu0 0
      %5408 = vmatpush.bf16.msra.mxu0 0
      %5409 = vmatpush.bf16.msra.mxu0 0
      %5410 = vmatpush.bf16.msra.mxu0 0
      %5411 = vmatpush.bf16.msra.mxu0 0
      %5412 = vmatpush.bf16.msra.mxu0 0
      %5413 = vmatpush.bf16.msra.mxu0 %v5367
      %5414 = vmatmul.bf16.gmra.mxu0 %v5361
      %v5415 = vpop.f32.mrf.mxu0
      %v5416 = vadd.f32 0.0, %v5415
      %v5417 = vpop.f32.mrf.mxu0
      %5418 = vdwg.mxu0
      %5419 = vmatpush.bf16.msra.mxu0 0
      %5420 = vmatpush.bf16.msra.mxu0 0
      %5421 = vmatpush.bf16.msra.mxu0 0
      %5422 = vmatpush.bf16.msra.mxu0 0
      %5423 = vmatpush.bf16.msra.mxu0 0
      %5424 = vmatpush.bf16.msra.mxu0 0
      %5425 = vmatpush.bf16.msra.mxu0 0
      %5426 = vmatpush.bf16.msra.mxu0 %v5370
      %5427 = vmatmul.bf16.gmra.mxu0 %v5361
      %v5428 = vpop.f32.mrf.mxu0
      %v5429 = vadd.f32 0.0, %v5428
      %v5430 = vpop.f32.mrf.mxu0
      %5431 = vdwg.mxu0
      %5432 = vmatpush.bf16.msra.mxu0 0
      %5433 = vmatpush.bf16.msra.mxu0 0
      %5434 = vmatpush.bf16.msra.mxu0 0
      %5435 = vmatpush.bf16.msra.mxu0 0
      %5436 = vmatpush.bf16.msra.mxu0 0
      %5437 = vmatpush.bf16.msra.mxu0 0
      %5438 = vmatpush.bf16.msra.mxu0 0
      %5439 = vmatpush.bf16.msra.mxu0 %v5373
      %5440 = vmatmul.bf16.gmra.mxu0 %v5361
      %v5441 = vpop.f32.mrf.mxu0
      %v5442 = vadd.f32 0.0, %v5441
      %v5443 = vpop.f32.mrf.mxu0
      %5444 = vdwg.mxu0
      %5445 = vmatpush.bf16.msra.mxu0 0
      %5446 = vmatpush.bf16.msra.mxu0 0
      %5447 = vmatpush.bf16.msra.mxu0 0
      %5448 = vmatpush.bf16.msra.mxu0 0
      %5449 = vmatpush.bf16.msra.mxu0 0
      %5450 = vmatpush.bf16.msra.mxu0 0
      %5451 = vmatpush.bf16.msra.mxu0 0
      %5452 = vmatpush.bf16.msra.mxu0 %v5376
      %5453 = vmatmul.bf16.gmra.mxu0 %v5361
      %v5454 = vpop.f32.mrf.mxu0
      %v5455 = vadd.f32 0.0, %v5454
      %v5456 = vpop.f32.mrf.mxu0
      %5457 = vdwg.mxu0
      %5458 = vmatpush.bf16.msra.mxu0 0
      %5459 = vmatpush.bf16.msra.mxu0 0
      %5460 = vmatpush.bf16.msra.mxu0 0
      %5461 = vmatpush.bf16.msra.mxu0 0
      %5462 = vmatpush.bf16.msra.mxu0 0
      %5463 = vmatpush.bf16.msra.mxu0 0
      %5464 = vmatpush.bf16.msra.mxu0 0
      %5465 = vmatpush.bf16.msra.mxu0 %v5379
      %5466 = vmatmul.bf16.gmra.mxu0 %v5361
      %v5467 = vpop.f32.mrf.mxu0
      %v5468 = vadd.f32 0.0, %v5467
      %v5469 = vpop.f32.mrf.mxu0
      %5470 = vdwg.mxu0
      %5471 = vmatpush.bf16.msra.mxu0 0
      %5472 = vmatpush.bf16.msra.mxu0 0
      %5473 = vmatpush.bf16.msra.mxu0 0
      %5474 = vmatpush.bf16.msra.mxu0 0
      %5475 = vmatpush.bf16.msra.mxu0 0
      %5476 = vmatpush.bf16.msra.mxu0 0
      %5477 = vmatpush.bf16.msra.mxu0 0
      %5478 = vmatpush.bf16.msra.mxu0 %v5382
      %5479 = vmatmul.bf16.gmra.mxu0 %v5361
      %v5480 = vpop.f32.mrf.mxu0
      %v5481 = vadd.f32 0.0, %v5480
      %v5482 = vpop.f32.mrf.mxu0
      %5483 = vdwg.mxu0
      %5484 = vmatpush.bf16.msra.mxu0 0
      %5485 = vmatpush.bf16.msra.mxu0 0
      %5486 = vmatpush.bf16.msra.mxu0 0
      %5487 = vmatpush.bf16.msra.mxu0 0
      %5488 = vmatpush.bf16.msra.mxu0 0
      %5489 = vmatpush.bf16.msra.mxu0 0
      %5490 = vmatpush.bf16.msra.mxu0 0
      %5491 = vmatpush.bf16.msra.mxu0 %v5385
      %5492 = vmatmul.bf16.gmra.mxu0 %v5361
      %v5493 = vpop.f32.mrf.mxu0
      %v5494 = vadd.f32 0.0, %v5493
      %v5495 = vpop.f32.mrf.mxu0
      %5496 = vdwg.mxu0
      %5497 = vmatpush.bf16.msra.mxu0 0
      %5498 = vmatpush.bf16.msra.mxu0 0
      %5499 = vmatpush.bf16.msra.mxu0 0
      %5500 = vmatpush.bf16.msra.mxu0 0
      %5501 = vmatpush.bf16.msra.mxu0 0
      %5502 = vmatpush.bf16.msra.mxu0 0
      %5503 = vmatpush.bf16.msra.mxu0 0
      %5504 = vmatpush.bf16.msra.mxu0 %v5388
      %5505 = vmatmul.bf16.gmra.mxu0 %v5361
      %v5506 = vpop.f32.mrf.mxu0
      %v5507 = vadd.f32 0.0, %v5506
      %v5508 = vpop.f32.mrf.mxu0
      %5509 = vdwg.mxu0
      %5510 = vmatpush.bf16.msra.mxu0 0
      %5511 = vmatpush.bf16.msra.mxu0 0
      %5512 = vmatpush.bf16.msra.mxu0 0
      %5513 = vmatpush.bf16.msra.mxu0 0
      %5514 = vmatpush.bf16.msra.mxu0 0
      %5515 = vmatpush.bf16.msra.mxu0 0
      %5516 = vmatpush.bf16.msra.mxu0 0
      %5517 = vmatpush.bf16.msra.mxu0 %v5391
      %5518 = vmatmul.bf16.gmra.mxu0 %v5361
      %v5519 = vpop.f32.mrf.mxu0
      %v5520 = vadd.f32 0.0, %v5519
      %v5521 = vpop.f32.mrf.mxu0
      %5522 = vdwg.mxu0
      %v5523 = vadd.f32 %v5315, %v5403
      %v5524 = vadd.f32 %v5316, %v5416
      %v5525 = vadd.f32 %v5317, %v5429
      %v5526 = vadd.f32 %v5318, %v5442
      %v5527 = vadd.f32 %v5319, %v5455
      %v5528 = vadd.f32 %v5320, %v5468
      %v5529 = vadd.f32 %v5321, %v5481
      %v5530 = vadd.f32 %v5322, %v5494
      %v5531 = vadd.f32 %v5323, %v5507
      %v5532 = vadd.f32 %v5324, %v5520
      %s5533 = scalar_lea.vmem %s2, 100
      %v5534 = vld [vmem:[%s5533] sm:$0xf]
      %5535 = vrot.lane.b32.xlu0 %v371, 35
      %v5536 = vpop.permute.xlu0 %5535
      %5537 = vrot.lane.b32.xlu0 %v372, 35
      %v5538 = vpop.permute.xlu0 %5537
      %5539 = vrot.lane.b32.xlu0 %v373, 35
      %v5540 = vpop.permute.xlu0 %5539
      %5541 = vrot.lane.b32.xlu0 %v374, 35
      %v5542 = vpop.permute.xlu0 %5541
      %5543 = vrot.lane.b32.xlu0 %v375, 35
      %v5544 = vpop.permute.xlu0 %5543
      %5545 = vrot.lane.b32.xlu0 %v376, 35
      %v5546 = vpop.permute.xlu0 %5545
      %5547 = vrot.lane.b32.xlu0 %v377, 35
      %v5548 = vpop.permute.xlu0 %5547
      %5549 = vrot.lane.b32.xlu0 %v378, 35
      %v5550 = vpop.permute.xlu0 %5549
      %5551 = vrot.lane.b32.xlu0 %v379, 35
      %v5552 = vpop.permute.xlu0 %5551
      %5553 = vrot.lane.b32.xlu0 %v383, 35
      %v5554 = vpop.permute.xlu0 %5553
      %5555 = vrot.lane.b32.xlu0 %v384, 35
      %v5556 = vpop.permute.xlu0 %5555
      %vm5557 = vcmask 285696
      %v5558 = vsel %vm5557, %v5536, %v5538
      %v5559 = vsel %vm5557, %v5538, %v5540
      %v5560 = vsel %vm5557, %v5540, %v5542
      %v5561 = vsel %vm5557, %v5542, %v5544
      %v5562 = vsel %vm5557, %v5544, %v5546
      %v5563 = vsel %vm5557, %v5546, %v5548
      %v5564 = vsel %vm5557, %v5548, %v5550
      %v5565 = vsel %vm5557, %v5550, %v5552
      %v5566 = vsel %vm5557, %v5552, %v5554
      %v5567 = vsel %vm5557, %v5554, %v5556
      %v5569 = vsel %vm421, %v5534, 0
      %v5572 = vsel %vm425, %v5558, 0
      %v5575 = vsel %vm425, %v5559, 0
      %v5578 = vsel %vm425, %v5560, 0
      %v5581 = vsel %vm425, %v5561, 0
      %v5584 = vsel %vm425, %v5562, 0
      %v5587 = vsel %vm425, %v5563, 0
      %v5590 = vsel %vm425, %v5564, 0
      %v5593 = vsel %vm425, %v5565, 0
      %v5596 = vsel %vm425, %v5566, 0
      %v5599 = vsel %vm425, %v5567, 0
      %5601 = vmatpush.bf16.msra.mxu0 0
      %5602 = vmatpush.bf16.msra.mxu0 0
      %5603 = vmatpush.bf16.msra.mxu0 0
      %5604 = vmatpush.bf16.msra.mxu0 0
      %5605 = vmatpush.bf16.msra.mxu0 0
      %5606 = vmatpush.bf16.msra.mxu0 0
      %5607 = vmatpush.bf16.msra.mxu0 0
      %5608 = vmatpush.bf16.msra.mxu0 %v5572
      %5609 = vmatmul.bf16.gmra.mxu0 %v5569
      %v5610 = vpop.f32.mrf.mxu0
      %v5611 = vadd.f32 0.0, %v5610
      %v5612 = vpop.f32.mrf.mxu0
      %5613 = vdwg.mxu0
      %5614 = vmatpush.bf16.msra.mxu0 0
      %5615 = vmatpush.bf16.msra.mxu0 0
      %5616 = vmatpush.bf16.msra.mxu0 0
      %5617 = vmatpush.bf16.msra.mxu0 0
      %5618 = vmatpush.bf16.msra.mxu0 0
      %5619 = vmatpush.bf16.msra.mxu0 0
      %5620 = vmatpush.bf16.msra.mxu0 0
      %5621 = vmatpush.bf16.msra.mxu0 %v5575
      %5622 = vmatmul.bf16.gmra.mxu0 %v5569
      %v5623 = vpop.f32.mrf.mxu0
      %v5624 = vadd.f32 0.0, %v5623
      %v5625 = vpop.f32.mrf.mxu0
      %5626 = vdwg.mxu0
      %5627 = vmatpush.bf16.msra.mxu0 0
      %5628 = vmatpush.bf16.msra.mxu0 0
      %5629 = vmatpush.bf16.msra.mxu0 0
      %5630 = vmatpush.bf16.msra.mxu0 0
      %5631 = vmatpush.bf16.msra.mxu0 0
      %5632 = vmatpush.bf16.msra.mxu0 0
      %5633 = vmatpush.bf16.msra.mxu0 0
      %5634 = vmatpush.bf16.msra.mxu0 %v5578
      %5635 = vmatmul.bf16.gmra.mxu0 %v5569
      %v5636 = vpop.f32.mrf.mxu0
      %v5637 = vadd.f32 0.0, %v5636
      %v5638 = vpop.f32.mrf.mxu0
      %5639 = vdwg.mxu0
      %5640 = vmatpush.bf16.msra.mxu0 0
      %5641 = vmatpush.bf16.msra.mxu0 0
      %5642 = vmatpush.bf16.msra.mxu0 0
      %5643 = vmatpush.bf16.msra.mxu0 0
      %5644 = vmatpush.bf16.msra.mxu0 0
      %5645 = vmatpush.bf16.msra.mxu0 0
      %5646 = vmatpush.bf16.msra.mxu0 0
      %5647 = vmatpush.bf16.msra.mxu0 %v5581
      %5648 = vmatmul.bf16.gmra.mxu0 %v5569
      %v5649 = vpop.f32.mrf.mxu0
      %v5650 = vadd.f32 0.0, %v5649
      %v5651 = vpop.f32.mrf.mxu0
      %5652 = vdwg.mxu0
      %5653 = vmatpush.bf16.msra.mxu0 0
      %5654 = vmatpush.bf16.msra.mxu0 0
      %5655 = vmatpush.bf16.msra.mxu0 0
      %5656 = vmatpush.bf16.msra.mxu0 0
      %5657 = vmatpush.bf16.msra.mxu0 0
      %5658 = vmatpush.bf16.msra.mxu0 0
      %5659 = vmatpush.bf16.msra.mxu0 0
      %5660 = vmatpush.bf16.msra.mxu0 %v5584
      %5661 = vmatmul.bf16.gmra.mxu0 %v5569
      %v5662 = vpop.f32.mrf.mxu0
      %v5663 = vadd.f32 0.0, %v5662
      %v5664 = vpop.f32.mrf.mxu0
      %5665 = vdwg.mxu0
      %5666 = vmatpush.bf16.msra.mxu0 0
      %5667 = vmatpush.bf16.msra.mxu0 0
      %5668 = vmatpush.bf16.msra.mxu0 0
      %5669 = vmatpush.bf16.msra.mxu0 0
      %5670 = vmatpush.bf16.msra.mxu0 0
      %5671 = vmatpush.bf16.msra.mxu0 0
      %5672 = vmatpush.bf16.msra.mxu0 0
      %5673 = vmatpush.bf16.msra.mxu0 %v5587
      %5674 = vmatmul.bf16.gmra.mxu0 %v5569
      %v5675 = vpop.f32.mrf.mxu0
      %v5676 = vadd.f32 0.0, %v5675
      %v5677 = vpop.f32.mrf.mxu0
      %5678 = vdwg.mxu0
      %5679 = vmatpush.bf16.msra.mxu0 0
      %5680 = vmatpush.bf16.msra.mxu0 0
      %5681 = vmatpush.bf16.msra.mxu0 0
      %5682 = vmatpush.bf16.msra.mxu0 0
      %5683 = vmatpush.bf16.msra.mxu0 0
      %5684 = vmatpush.bf16.msra.mxu0 0
      %5685 = vmatpush.bf16.msra.mxu0 0
      %5686 = vmatpush.bf16.msra.mxu0 %v5590
      %5687 = vmatmul.bf16.gmra.mxu0 %v5569
      %v5688 = vpop.f32.mrf.mxu0
      %v5689 = vadd.f32 0.0, %v5688
      %v5690 = vpop.f32.mrf.mxu0
      %5691 = vdwg.mxu0
      %5692 = vmatpush.bf16.msra.mxu0 0
      %5693 = vmatpush.bf16.msra.mxu0 0
      %5694 = vmatpush.bf16.msra.mxu0 0
      %5695 = vmatpush.bf16.msra.mxu0 0
      %5696 = vmatpush.bf16.msra.mxu0 0
      %5697 = vmatpush.bf16.msra.mxu0 0
      %5698 = vmatpush.bf16.msra.mxu0 0
      %5699 = vmatpush.bf16.msra.mxu0 %v5593
      %5700 = vmatmul.bf16.gmra.mxu0 %v5569
      %v5701 = vpop.f32.mrf.mxu0
      %v5702 = vadd.f32 0.0, %v5701
      %v5703 = vpop.f32.mrf.mxu0
      %5704 = vdwg.mxu0
      %5705 = vmatpush.bf16.msra.mxu0 0
      %5706 = vmatpush.bf16.msra.mxu0 0
      %5707 = vmatpush.bf16.msra.mxu0 0
      %5708 = vmatpush.bf16.msra.mxu0 0
      %5709 = vmatpush.bf16.msra.mxu0 0
      %5710 = vmatpush.bf16.msra.mxu0 0
      %5711 = vmatpush.bf16.msra.mxu0 0
      %5712 = vmatpush.bf16.msra.mxu0 %v5596
      %5713 = vmatmul.bf16.gmra.mxu0 %v5569
      %v5714 = vpop.f32.mrf.mxu0
      %v5715 = vadd.f32 0.0, %v5714
      %v5716 = vpop.f32.mrf.mxu0
      %5717 = vdwg.mxu0
      %5718 = vmatpush.bf16.msra.mxu0 0
      %5719 = vmatpush.bf16.msra.mxu0 0
      %5720 = vmatpush.bf16.msra.mxu0 0
      %5721 = vmatpush.bf16.msra.mxu0 0
      %5722 = vmatpush.bf16.msra.mxu0 0
      %5723 = vmatpush.bf16.msra.mxu0 0
      %5724 = vmatpush.bf16.msra.mxu0 0
      %5725 = vmatpush.bf16.msra.mxu0 %v5599
      %5726 = vmatmul.bf16.gmra.mxu0 %v5569
      %v5727 = vpop.f32.mrf.mxu0
      %v5728 = vadd.f32 0.0, %v5727
      %v5729 = vpop.f32.mrf.mxu0
      %5730 = vdwg.mxu0
      %v5731 = vadd.f32 %v5523, %v5611
      %v5732 = vadd.f32 %v5524, %v5624
      %v5733 = vadd.f32 %v5525, %v5637
      %v5734 = vadd.f32 %v5526, %v5650
      %v5735 = vadd.f32 %v5527, %v5663
      %v5736 = vadd.f32 %v5528, %v5676
      %v5737 = vadd.f32 %v5529, %v5689
      %v5738 = vadd.f32 %v5530, %v5702
      %v5739 = vadd.f32 %v5531, %v5715
      %v5740 = vadd.f32 %v5532, %v5728
      %s5741 = scalar_lea.vmem %s2, 104
      %v5742 = vld [vmem:[%s5741] sm:$0xf]
      %5743 = vrot.lane.b32.xlu0 %v371, 34
      %v5744 = vpop.permute.xlu0 %5743
      %5745 = vrot.lane.b32.xlu0 %v372, 34
      %v5746 = vpop.permute.xlu0 %5745
      %5747 = vrot.lane.b32.xlu0 %v373, 34
      %v5748 = vpop.permute.xlu0 %5747
      %5749 = vrot.lane.b32.xlu0 %v374, 34
      %v5750 = vpop.permute.xlu0 %5749
      %5751 = vrot.lane.b32.xlu0 %v375, 34
      %v5752 = vpop.permute.xlu0 %5751
      %5753 = vrot.lane.b32.xlu0 %v376, 34
      %v5754 = vpop.permute.xlu0 %5753
      %5755 = vrot.lane.b32.xlu0 %v377, 34
      %v5756 = vpop.permute.xlu0 %5755
      %5757 = vrot.lane.b32.xlu0 %v378, 34
      %v5758 = vpop.permute.xlu0 %5757
      %5759 = vrot.lane.b32.xlu0 %v379, 34
      %v5760 = vpop.permute.xlu0 %5759
      %5761 = vrot.lane.b32.xlu0 %v383, 34
      %v5762 = vpop.permute.xlu0 %5761
      %5763 = vrot.lane.b32.xlu0 %v384, 34
      %v5764 = vpop.permute.xlu0 %5763
      %vm5765 = vcmask 277504
      %v5766 = vsel %vm5765, %v5744, %v5746
      %v5767 = vsel %vm5765, %v5746, %v5748
      %v5768 = vsel %vm5765, %v5748, %v5750
      %v5769 = vsel %vm5765, %v5750, %v5752
      %v5770 = vsel %vm5765, %v5752, %v5754
      %v5771 = vsel %vm5765, %v5754, %v5756
      %v5772 = vsel %vm5765, %v5756, %v5758
      %v5773 = vsel %vm5765, %v5758, %v5760
      %v5774 = vsel %vm5765, %v5760, %v5762
      %v5775 = vsel %vm5765, %v5762, %v5764
      %v5777 = vsel %vm421, %v5742, 0
      %v5780 = vsel %vm425, %v5766, 0
      %v5783 = vsel %vm425, %v5767, 0
      %v5786 = vsel %vm425, %v5768, 0
      %v5789 = vsel %vm425, %v5769, 0
      %v5792 = vsel %vm425, %v5770, 0
      %v5795 = vsel %vm425, %v5771, 0
      %v5798 = vsel %vm425, %v5772, 0
      %v5801 = vsel %vm425, %v5773, 0
      %v5804 = vsel %vm425, %v5774, 0
      %v5807 = vsel %vm425, %v5775, 0
      %5809 = vmatpush.bf16.msra.mxu0 0
      %5810 = vmatpush.bf16.msra.mxu0 0
      %5811 = vmatpush.bf16.msra.mxu0 0
      %5812 = vmatpush.bf16.msra.mxu0 0
      %5813 = vmatpush.bf16.msra.mxu0 0
      %5814 = vmatpush.bf16.msra.mxu0 0
      %5815 = vmatpush.bf16.msra.mxu0 0
      %5816 = vmatpush.bf16.msra.mxu0 %v5780
      %5817 = vmatmul.bf16.gmra.mxu0 %v5777
      %v5818 = vpop.f32.mrf.mxu0
      %v5819 = vadd.f32 0.0, %v5818
      %v5820 = vpop.f32.mrf.mxu0
      %5821 = vdwg.mxu0
      %5822 = vmatpush.bf16.msra.mxu0 0
      %5823 = vmatpush.bf16.msra.mxu0 0
      %5824 = vmatpush.bf16.msra.mxu0 0
      %5825 = vmatpush.bf16.msra.mxu0 0
      %5826 = vmatpush.bf16.msra.mxu0 0
      %5827 = vmatpush.bf16.msra.mxu0 0
      %5828 = vmatpush.bf16.msra.mxu0 0
      %5829 = vmatpush.bf16.msra.mxu0 %v5783
      %5830 = vmatmul.bf16.gmra.mxu0 %v5777
      %v5831 = vpop.f32.mrf.mxu0
      %v5832 = vadd.f32 0.0, %v5831
      %v5833 = vpop.f32.mrf.mxu0
      %5834 = vdwg.mxu0
      %5835 = vmatpush.bf16.msra.mxu0 0
      %5836 = vmatpush.bf16.msra.mxu0 0
      %5837 = vmatpush.bf16.msra.mxu0 0
      %5838 = vmatpush.bf16.msra.mxu0 0
      %5839 = vmatpush.bf16.msra.mxu0 0
      %5840 = vmatpush.bf16.msra.mxu0 0
      %5841 = vmatpush.bf16.msra.mxu0 0
      %5842 = vmatpush.bf16.msra.mxu0 %v5786
      %5843 = vmatmul.bf16.gmra.mxu0 %v5777
      %v5844 = vpop.f32.mrf.mxu0
      %v5845 = vadd.f32 0.0, %v5844
      %v5846 = vpop.f32.mrf.mxu0
      %5847 = vdwg.mxu0
      %5848 = vmatpush.bf16.msra.mxu0 0
      %5849 = vmatpush.bf16.msra.mxu0 0
      %5850 = vmatpush.bf16.msra.mxu0 0
      %5851 = vmatpush.bf16.msra.mxu0 0
      %5852 = vmatpush.bf16.msra.mxu0 0
      %5853 = vmatpush.bf16.msra.mxu0 0
      %5854 = vmatpush.bf16.msra.mxu0 0
      %5855 = vmatpush.bf16.msra.mxu0 %v5789
      %5856 = vmatmul.bf16.gmra.mxu0 %v5777
      %v5857 = vpop.f32.mrf.mxu0
      %v5858 = vadd.f32 0.0, %v5857
      %v5859 = vpop.f32.mrf.mxu0
      %5860 = vdwg.mxu0
      %5861 = vmatpush.bf16.msra.mxu0 0
      %5862 = vmatpush.bf16.msra.mxu0 0
      %5863 = vmatpush.bf16.msra.mxu0 0
      %5864 = vmatpush.bf16.msra.mxu0 0
      %5865 = vmatpush.bf16.msra.mxu0 0
      %5866 = vmatpush.bf16.msra.mxu0 0
      %5867 = vmatpush.bf16.msra.mxu0 0
      %5868 = vmatpush.bf16.msra.mxu0 %v5792
      %5869 = vmatmul.bf16.gmra.mxu0 %v5777
      %v5870 = vpop.f32.mrf.mxu0
      %v5871 = vadd.f32 0.0, %v5870
      %v5872 = vpop.f32.mrf.mxu0
      %5873 = vdwg.mxu0
      %5874 = vmatpush.bf16.msra.mxu0 0
      %5875 = vmatpush.bf16.msra.mxu0 0
      %5876 = vmatpush.bf16.msra.mxu0 0
      %5877 = vmatpush.bf16.msra.mxu0 0
      %5878 = vmatpush.bf16.msra.mxu0 0
      %5879 = vmatpush.bf16.msra.mxu0 0
      %5880 = vmatpush.bf16.msra.mxu0 0
      %5881 = vmatpush.bf16.msra.mxu0 %v5795
      %5882 = vmatmul.bf16.gmra.mxu0 %v5777
      %v5883 = vpop.f32.mrf.mxu0
      %v5884 = vadd.f32 0.0, %v5883
      %v5885 = vpop.f32.mrf.mxu0
      %5886 = vdwg.mxu0
      %5887 = vmatpush.bf16.msra.mxu0 0
      %5888 = vmatpush.bf16.msra.mxu0 0
      %5889 = vmatpush.bf16.msra.mxu0 0
      %5890 = vmatpush.bf16.msra.mxu0 0
      %5891 = vmatpush.bf16.msra.mxu0 0
      %5892 = vmatpush.bf16.msra.mxu0 0
      %5893 = vmatpush.bf16.msra.mxu0 0
      %5894 = vmatpush.bf16.msra.mxu0 %v5798
      %5895 = vmatmul.bf16.gmra.mxu0 %v5777
      %v5896 = vpop.f32.mrf.mxu0
      %v5897 = vadd.f32 0.0, %v5896
      %v5898 = vpop.f32.mrf.mxu0
      %5899 = vdwg.mxu0
      %5900 = vmatpush.bf16.msra.mxu0 0
      %5901 = vmatpush.bf16.msra.mxu0 0
      %5902 = vmatpush.bf16.msra.mxu0 0
      %5903 = vmatpush.bf16.msra.mxu0 0
      %5904 = vmatpush.bf16.msra.mxu0 0
      %5905 = vmatpush.bf16.msra.mxu0 0
      %5906 = vmatpush.bf16.msra.mxu0 0
      %5907 = vmatpush.bf16.msra.mxu0 %v5801
      %5908 = vmatmul.bf16.gmra.mxu0 %v5777
      %v5909 = vpop.f32.mrf.mxu0
      %v5910 = vadd.f32 0.0, %v5909
      %v5911 = vpop.f32.mrf.mxu0
      %5912 = vdwg.mxu0
      %5913 = vmatpush.bf16.msra.mxu0 0
      %5914 = vmatpush.bf16.msra.mxu0 0
      %5915 = vmatpush.bf16.msra.mxu0 0
      %5916 = vmatpush.bf16.msra.mxu0 0
      %5917 = vmatpush.bf16.msra.mxu0 0
      %5918 = vmatpush.bf16.msra.mxu0 0
      %5919 = vmatpush.bf16.msra.mxu0 0
      %5920 = vmatpush.bf16.msra.mxu0 %v5804
      %5921 = vmatmul.bf16.gmra.mxu0 %v5777
      %v5922 = vpop.f32.mrf.mxu0
      %v5923 = vadd.f32 0.0, %v5922
      %v5924 = vpop.f32.mrf.mxu0
      %5925 = vdwg.mxu0
      %5926 = vmatpush.bf16.msra.mxu0 0
      %5927 = vmatpush.bf16.msra.mxu0 0
      %5928 = vmatpush.bf16.msra.mxu0 0
      %5929 = vmatpush.bf16.msra.mxu0 0
      %5930 = vmatpush.bf16.msra.mxu0 0
      %5931 = vmatpush.bf16.msra.mxu0 0
      %5932 = vmatpush.bf16.msra.mxu0 0
      %5933 = vmatpush.bf16.msra.mxu0 %v5807
      %5934 = vmatmul.bf16.gmra.mxu0 %v5777
      %v5935 = vpop.f32.mrf.mxu0
      %v5936 = vadd.f32 0.0, %v5935
      %v5937 = vpop.f32.mrf.mxu0
      %5938 = vdwg.mxu0
      %v5939 = vadd.f32 %v5731, %v5819
      %v5940 = vadd.f32 %v5732, %v5832
      %v5941 = vadd.f32 %v5733, %v5845
      %v5942 = vadd.f32 %v5734, %v5858
      %v5943 = vadd.f32 %v5735, %v5871
      %v5944 = vadd.f32 %v5736, %v5884
      %v5945 = vadd.f32 %v5737, %v5897
      %v5946 = vadd.f32 %v5738, %v5910
      %v5947 = vadd.f32 %v5739, %v5923
      %v5948 = vadd.f32 %v5740, %v5936
      %v5949 = vpack.c.bf16 %v5940, %v5939
      %v5950 = vpack.c.bf16 %v5942, %v5941
      %v5951 = vpack.c.bf16 %v5944, %v5943
      %v5952 = vpack.c.bf16 %v5946, %v5945
      %v5953 = vpack.c.bf16 %v5948, %v5947
      %5954 = vst [vmem:[%s335] sm:$0xff] %v5949
      %5955 = vst [vmem:[%s335 + $0x8] sm:$0xff] %v5950
      %5956 = vst [vmem:[%s335 + $0x10] sm:$0xff] %v5951
      %5957 = vst [vmem:[%s335 + $0x18] sm:$0xff] %v5952
      %5958 = vst [vmem:[%s335 + $0x20] sm:$0xff] %v5953
      %v5959 = vld [vmem:[%s324] sm:$0xff]
      %v5960 = vld [vmem:[%s324 + $0x8] sm:$0x3]
      %v5963 = vperm.slane %v5959, 0
      %v5964 = vperm.slane %v5959, 1
      %v5965 = vperm.slane %v5959, 2
      %v5966 = vperm.slane %v5959, 3
      %v5967 = vperm.slane %v5959, 4
      %v5968 = vperm.slane %v5959, 5
      %v5969 = vperm.slane %v5959, 6
      %v5970 = vperm.slane %v5959, 7
      %v5971 = vperm.slane %v5960, 0
      %v5972 = vperm.slane %v5960, 1
      %v5983 = vmul.f32 %v5939, %v5963
      %v5984 = vmul.f32 %v5940, %v5964
      %v5985 = vmul.f32 %v5941, %v5965
      %v5986 = vmul.f32 %v5942, %v5966
      %v5987 = vmul.f32 %v5943, %v5967
      %v5988 = vmul.f32 %v5944, %v5968
      %v5989 = vmul.f32 %v5945, %v5969
      %v5990 = vmul.f32 %v5946, %v5970
      %v5991 = vmul.f32 %v5947, %v5971
      %v5992 = vmul.f32 %v5948, %v5972
      %v5993 = vld [vmem:[#allocation2] sm:$0xff]
      %v5994 = vadd.f32 %v5983, %v5984
      %v5995 = vadd.f32 %v5994, %v5985
      %v5996 = vadd.f32 %v5995, %v5986
      %v5997 = vadd.f32 %v5996, %v5987
      %v5998 = vadd.f32 %v5997, %v5988
      %v5999 = vadd.f32 %v5998, %v5989
      %v6000 = vadd.f32 %v5999, %v5990
      %v6001 = vadd.f32 %v6000, %v5991
      %v6002 = vadd.f32 %v6001, %v5992
      %6003 = vadd.xlane.f32.xlu0 %v6002
      %v6004 = vpop.xlane.xlu0 %6003
      %v6005 = vmul.f32 %v5983, %v5939
      %v6006 = vmul.f32 %v5984, %v5940
      %v6007 = vmul.f32 %v5985, %v5941
      %v6008 = vmul.f32 %v5986, %v5942
      %v6009 = vmul.f32 %v5987, %v5943
      %v6010 = vmul.f32 %v5988, %v5944
      %v6011 = vmul.f32 %v5989, %v5945
      %v6012 = vmul.f32 %v5990, %v5946
      %v6013 = vmul.f32 %v5991, %v5947
      %v6014 = vmul.f32 %v5992, %v5948
      %v6015 = vadd.f32 %v6005, %v6006
      %v6016 = vadd.f32 %v6015, %v6007
      %v6017 = vadd.f32 %v6016, %v6008
      %v6018 = vadd.f32 %v6017, %v6009
      %v6019 = vadd.f32 %v6018, %v6010
      %v6020 = vadd.f32 %v6019, %v6011
      %v6021 = vadd.f32 %v6020, %v6012
      %v6022 = vadd.f32 %v6021, %v6013
      %v6023 = vadd.f32 %v6022, %v6014
      %6024 = vadd.xlane.f32.xlu0 %v6023
      %v6025 = vpop.xlane.xlu0 %6024
      %vm6026 = vcmask 7168
      %v6027 = vsel %vm6026, %v6004, %v6025
      %v6028 = vadd.f32 %v5993, %v6027
      %vm6029 = vcmask 15360
      %6030 = vst.msk [vmem:[#allocation2] sm:$0xff] %vm6029, %v6028
      // Predicated region
      $region41: #{downblock3dc_forward.4} parent=35 // pred_check
        %p6031 = pneg %p343
      $region42: #{downblock3dc_forward.4} parent=35 // pred_check_branch
        %6033 = sbr.rel (%p6031) target = $region44
      $region43: #{downblock3dc_forward.4} parent=35 // pred_region
        %v6034 = vld [vmem:[#allocation2] sm:$0xff]
        %6035 = vst.msk [vmem:[%s341] sm:$0xff] %vm6029, %v6034
      $region44: #{downblock3dc_forward.4} parent=35 // pred_fallthru
        _
      %s6036 = sadd.s32 %s22, 1
      %s6037 = smul.u32 10, %s6036
      %p6038 = scmp.lt.s32.totalorder %s21, 1
      %s6039 = scalar_select %p6038, %s21, 1
      %p6040 = scmp.lt.s32.totalorder %s6037, 29
      %s6041 = scalar_select %p6040, %s6037, 29
      %s6042 = smul.addr %s6039, 30
      %s6043 = sadd.s32 %s6041, %s6042
      %s6044 = smul.addr %s6043, 4
      %s6045 = scalar_lea.vmem %s4, %s6044
      %p6046 = scmp.lt.s32.totalorder %s21, 1
      %s6047 = scalar_select %p6046, %s21, 1
      %s6048 = smul.addr %s6047, 8
      %s6049 = scalar_lea.vmem %s5, %s6048
      // Predicated region
      $region45: #{downblock3dc_forward.4} parent=35 // pred_check
        %p6050 = pneg %p156
      $region46: #{downblock3dc_forward.4} parent=35 // pred_check_branch
        %6052 = sbr.rel (%p6050) target = $region48
      $region47: #{downblock3dc_forward.4} parent=35 // pred_region
        %s6053 = sadd.s32 %s22, 1
        %s6054 = smul.u32 10, %s6053
      $region48: #{downblock3dc_forward.4} parent=35 // pred_fallthru
        _
      // Predicated region
      $region49: #{downblock3dc_forward.4} parent=35 // pred_check
        %p6055 = pneg %p182
      $region50: #{downblock3dc_forward.4} parent=35 // pred_check_branch
        %6057 = sbr.rel (%p6055) target = $region52
      $region51: #{downblock3dc_forward.4} parent=35 // pred_region
        _
      $region52: #{downblock3dc_forward.4} parent=35 // pred_fallthru
        _
    $region36: #{downblock3dc_forward.4} parent=5 // pred_fallthru
      _
    %p6058 = scmp.le.s32.totalorder 2, %s12
    // Predicated region
    $region53: #{downblock3dc_forward.4} parent=5 // pred_check
      %p6059 = pneg %p6058
    $region54: #{downblock3dc_forward.4} parent=5 // pred_check_branch
      %6061 = sbr.rel (%p6059) target = $region56
    $region55: #{downblock3dc_forward.4} parent=5 // pred_region
      %s6062 = ssub.s32 %s12, 2
      // Predicated region
      $region57: #{downblock3dc_forward.4} parent=55 // pred_check
        %p6063 = pneg %p162
      $region58: #{downblock3dc_forward.4} parent=55 // pred_check_branch
        %6065 = sbr.rel (%p6063) target = $region60
      $region59: #{downblock3dc_forward.4} parent=55 // pred_region
        %s6066 = sadd.s32 %s24, 1
        %s6067 = smul.u32 10, %s6066
        %p6068 = scmp.lt.s32.totalorder %s23, 1
        %s6069 = scalar_select %p6068, %s23, 1
        %p6070 = scmp.lt.s32.totalorder %s6067, 29
        %s6071 = scalar_select %p6070, %s6067, 29
        %s6072 = smul.addr %s6069, 30
        %s6073 = sadd.s32 %s6071, %s6072
        %s6074 = smul.addr %s6073, 4
        %s6075 = scalar_lea.vmem %s4, %s6074
      $region60: #{downblock3dc_forward.4} parent=55 // pred_fallthru
        _
      // Predicated region
      $region61: #{downblock3dc_forward.4} parent=55 // pred_check
        %p6076 = pneg %p188
      $region62: #{downblock3dc_forward.4} parent=55 // pred_check_branch
        %6078 = sbr.rel (%p6076) target = $region64
      $region63: #{downblock3dc_forward.4} parent=55 // pred_region
        %p6079 = scmp.lt.s32.totalorder %s23, 1
        %s6080 = scalar_select %p6079, %s23, 1
        %s6081 = smul.addr %s6080, 8
        %s6082 = scalar_lea.vmem %s5, %s6081
      $region64: #{downblock3dc_forward.4} parent=55 // pred_fallthru
        _
    $region56: #{downblock3dc_forward.4} parent=5 // pred_fallthru
      _
  $region6: #{downblock3dc_forward.4} parent=0 // loop_footer
    %s16 = sadd.s32 1, %s12
  $region7: #{downblock3dc_forward.4} parent=0 // loop_footer_branch
    %11 = sbr.rel target = $region3
  $region8: #{downblock3dc_forward.4} parent=0 // loop_exit
    _

</llo_original>
